<compile_context>
chip_gen: v7x
topology: tpu7x:2x2x1
jax: 0.10.0
libtpu: 0.0.40
codegen_flags: <defaults>
</compile_context>

<pallas_src>
import functools

import numpy as np
import jax
import jax.numpy as jnp
from jax.experimental import pallas as pl
from jax.experimental.pallas import tpu as pltpu


_SQRT1_2 = 0.7071067811865476


def _gelu(y):
    # exact erf GELU (torch nn.GELU default)
    return 0.5 * y * (1.0 + jax.lax.erf(y * _SQRT1_2))


# ------------------------------------------------------------------
# Pallas kernels
# ------------------------------------------------------------------

def _ln_linear_kernel(x_ref, g_ref, b_ref, w_ref, wb_ref, o_ref, *, gelu):
    """Fused LayerNorm(x) @ W + b (+ GELU).  x block is (tm, K) with full K."""
    x = x_ref[...].astype(jnp.float32)
    mu = jnp.mean(x, axis=-1, keepdims=True)
    var = jnp.mean(jnp.square(x - mu), axis=-1, keepdims=True)   # biased var (torch LN)
    xn = (x - mu) * jax.lax.rsqrt(var + 1e-5)
    xn = xn * g_ref[...].astype(jnp.float32) + b_ref[...].astype(jnp.float32)
    # NOTE: for bf16 deployments cast xn / w to bf16 here to hit the bf16 MXU path.
    y = jnp.dot(xn, w_ref[...].astype(jnp.float32),
                preferred_element_type=jnp.float32)
    y = y + wb_ref[...].astype(jnp.float32)
    if gelu:
        y = _gelu(y)
    o_ref[...] = y.astype(o_ref.dtype)


def _linear_kernel(*refs, gelu, has_res):
    """x @ W + b (+ GELU) (+ residual).  Operands fed in native dtype."""
    if has_res:
        x_ref, w_ref, wb_ref, r_ref, o_ref = refs
    else:
        x_ref, w_ref, wb_ref, o_ref = refs
        r_ref = None
    y = jnp.dot(x_ref[...], w_ref[...], preferred_element_type=jnp.float32)
    y = y + wb_ref[...].astype(jnp.float32)
    if gelu:
        y = _gelu(y)
    if has_res:
        y = y + r_ref[...].astype(jnp.float32)
    o_ref[...] = y.astype(o_ref.dtype)


def _attn_core_kernel(q_ref, k_ref, v_ref, bias_ref, o_ref, *, scale):
    """Batched window-attention core.  One grid step = all windows*heads of one
    image.  bias_ref = rel-pos bias + shift mask, VMEM-resident (const index)."""
    q = q_ref[...].astype(jnp.float32) * scale                     # (G, N, D)
    k = k_ref[...].astype(jnp.float32)
    v = v_ref[...].astype(jnp.float32)
    s = jnp.einsum("gnd,gmd->gnm", q, k, preferred_element_type=jnp.float32)
    s = s + bias_ref[...].astype(jnp.float32)                      # (G, N, N)
    s = s - jnp.max(s, axis=-1, keepdims=True)
    p = jnp.exp(s)
    p = p * pl.reciprocal(jnp.sum(p, axis=-1, keepdims=True), approx=True)
    ctx = jnp.einsum("gnm,gmd->gnd", p, v, preferred_element_type=jnp.float32)
    o_ref[...] = ctx.astype(o_ref.dtype)


# ------------------------------------------------------------------
# Tiling helpers + kernel wrappers
# ------------------------------------------------------------------

_ROW_TILES = (1024, 512, 256, 128, 64, 32, 16, 8)
_COL_TILES = (512, 384, 256, 128)      # lane dim must be a multiple of 128 (or full)
_TILE_BUDGET = 8 << 20                 # bytes for one (single-buffered) tile set


def _pick_tile(dim, candidates):
    for t in candidates:
        if dim % t == 0:
            return t
    return dim                         # fall back to full extent (small / odd sizes)


def _matmul_tiles(M, K, N, extra_out_sized_inputs=0):
    tn = _pick_tile(N, _COL_TILES)
    tm = _pick_tile(M, _ROW_TILES)

    def est(tm_):
        return 4 * (tm_ * K + K * tn + tn + 2 * K
                    + (2 + extra_out_sized_inputs) * tm_ * tn)

    while (tm > 8 and est(tm) > _TILE_BUDGET and tm % 2 == 0
           and M % (tm // 2) == 0):
        tm //= 2
    return tm, tn, est(tm)


def _vmem_limit(est_bytes):
    # double-buffered pipeline + headroom, kept under v7x's 64 MiB physical VMEM
    return int(min(max(4 * est_bytes + (2 << 20), 32 << 20), 48 << 20))


def pallas_ln_linear(x2d, gamma, beta, w, b=None, gelu=False):
    M, K = x2d.shape
    K2, N = w.shape
    assert K == K2
    if b is None:
        b = jnp.zeros((N,), x2d.dtype)
    tm, tn, est = _matmul_tiles(M, K, N)
    kern = functools.partial(_ln_linear_kernel, gelu=gelu)
    return pl.pallas_call(
        kern,
        out_shape=jax.ShapeDtypeStruct((M, N), x2d.dtype),
        grid=(M // tm, N // tn),
        in_specs=[
            pl.BlockSpec((tm, K), lambda i, j: (i, 0)),
            pl.BlockSpec((1, K), lambda i, j: (0, 0)),
            pl.BlockSpec((1, K), lambda i, j: (0, 0)),
            pl.BlockSpec((K, tn), lambda i, j: (0, j)),
            pl.BlockSpec((1, tn), lambda i, j: (0, j)),
        ],
        out_specs=pl.BlockSpec((tm, tn), lambda i, j: (i, j)),
        compiler_params=pltpu.CompilerParams(
            dimension_semantics=("parallel", "parallel"),
            vmem_limit_bytes=_vmem_limit(est)),
    )(x2d, gamma.reshape(1, K), beta.reshape(1, K), w, b.reshape(1, N))


def pallas_linear(x2d, w, b=None, gelu=False, residual=None):
    # TODO(synk): a K-reduction grid axis (accumulator + pl.when) is not needed
    # here since N-tiling already bounds the per-step weight slab for Swin sizes.
    M, K = x2d.shape
    K2, N = w.shape
    assert K == K2
    if b is None:
        b = jnp.zeros((N,), x2d.dtype)
    has_res = residual is not None
    tm, tn, est = _matmul_tiles(M, K, N, extra_out_sized_inputs=1 if has_res else 0)
    kern = functools.partial(_linear_kernel, gelu=gelu, has_res=has_res)
    in_specs = [
        pl.BlockSpec((tm, K), lambda i, j: (i, 0)),
        pl.BlockSpec((K, tn), lambda i, j: (0, j)),
        pl.BlockSpec((1, tn), lambda i, j: (0, j)),
    ]
    args = [x2d, w, b.reshape(1, N)]
    if has_res:
        in_specs.append(pl.BlockSpec((tm, tn), lambda i, j: (i, j)))
        args.append(residual)
    return pl.pallas_call(
        kern,
        out_shape=jax.ShapeDtypeStruct((M, N), x2d.dtype),
        grid=(M // tm, N // tn),
        in_specs=in_specs,
        out_specs=pl.BlockSpec((tm, tn), lambda i, j: (i, j)),
        compiler_params=pltpu.CompilerParams(
            dimension_semantics=("parallel", "parallel"),
            vmem_limit_bytes=_vmem_limit(est)),
    )(*args)


def pallas_window_attention_core(q, k, v, bias, scale):
    """q/k/v: (B*nW*heads, N, D) head-major per window; bias: (nW*heads, N, N)."""
    G, N, D = q.shape
    gb = bias.shape[0]                 # windows*heads per image
    assert G % gb == 0
    n_img = G // gb
    est = 4 * gb * N * (4 * D + 3 * N)
    kern = functools.partial(_attn_core_kernel, scale=scale)
    return pl.pallas_call(
        kern,
        out_shape=jax.ShapeDtypeStruct((G, N, D), q.dtype),
        grid=(n_img,),
        in_specs=[
            pl.BlockSpec((gb, N, D), lambda b: (b, 0, 0)),
            pl.BlockSpec((gb, N, D), lambda b: (b, 0, 0)),
            pl.BlockSpec((gb, N, D), lambda b: (b, 0, 0)),
            pl.BlockSpec((gb, N, N), lambda b: (0, 0, 0)),   # constant -> resident
        ],
        out_specs=pl.BlockSpec((gb, N, D), lambda b: (b, 0, 0)),
        compiler_params=pltpu.CompilerParams(
            dimension_semantics=("parallel",),
            vmem_limit_bytes=_vmem_limit(est)),
    )(q, k, v, bias)


# ------------------------------------------------------------------
# Glue (window partition / shifts / model plumbing) in plain JAX
# ------------------------------------------------------------------

def window_partition(x, ws):
    B, H, W, C = x.shape
    x = x.reshape(B, H // ws, ws, W // ws, ws, C)
    return jnp.transpose(x, (0, 1, 3, 2, 4, 5)).reshape(-1, ws, ws, C)


def window_reverse(windows, ws, H, W):
    B = windows.shape[0] // ((H * W) // ws // ws)
    x = windows.reshape(B, H // ws, W // ws, ws, ws, -1)
    return jnp.transpose(x, (0, 1, 3, 2, 4, 5)).reshape(B, H, W, -1)


def _window_partition_np(x, ws):
    B, H, W, C = x.shape
    x = x.reshape(B, H // ws, ws, W // ws, ws, C)
    return np.transpose(x, (0, 1, 3, 2, 4, 5)).reshape(-1, ws, ws, C)


def build_attn_mask(H, W, ws, shift):
    N = ws * ws
    nW = (H // ws) * (W // ws)
    if shift == 0:
        return np.zeros((nW, N, N), np.float32)
    img = np.zeros((1, H, W, 1), np.float32)
    cnt = 0
    slices = (slice(0, -ws), slice(-ws, -shift), slice(-shift, None))
    for hs in slices:
        for wsl in slices:
            img[:, hs, wsl, :] = cnt
            cnt += 1
    mw = _window_partition_np(img, ws).reshape(-1, N)
    am = mw[:, None, :] - mw[:, :, None]
    return np.where(am != 0, -100.0, 0.0).astype(np.float32)


def build_rel_index(ws):
    coords = np.stack(np.meshgrid(np.arange(ws), np.arange(ws), indexing="ij"))
    flat = coords.reshape(2, -1)
    rel = flat[:, :, None] - flat[:, None, :]
    rel = np.transpose(rel, (1, 2, 0)).astype(np.int64)
    rel[:, :, 0] += ws - 1
    rel[:, :, 1] += ws - 1
    rel[:, :, 0] *= 2 * ws - 1
    return rel.sum(-1)                                   # (N, N)


def swin_block_forward(x, p, H, W, num_heads):
    B, L, C = x.shape
    ws, shift = p["ws"], p["shift"]
    N = ws * ws
    head_dim = C // num_heads
    scale = head_dim ** -0.5

    shortcut2d = x.reshape(-1, C)

    # roll + window partition FIRST (moves only C channels through the layout
    # ops); then the fused norm1 + QKV projection runs as one big matmul over
    # all window tokens (LN / linear are token-wise -> commute with the row
    # permutation).
    xs = x.reshape(B, H, W, C)
    if shift > 0:
        xs = jnp.roll(xs, shift=(-shift, -shift), axis=(1, 2))
    xw = window_partition(xs, ws).reshape(-1, C)                        # (B*nW*N, C)
    qkv = pallas_ln_linear(xw, p["norm1_g"], p["norm1_b"],
                           p["w_qkv"], p["b_qkv"])                      # (B*nW*N, 3C)
    Bw = xw.shape[0] // N
    qkv = qkv.reshape(Bw, N, 3, num_heads, head_dim)
    qkv = jnp.transpose(qkv, (2, 0, 3, 1, 4))                           # (3, Bw, Hh, N, D)
    q = qkv[0].reshape(Bw * num_heads, N, head_dim)
    k = qkv[1].reshape(Bw * num_heads, N, head_dim)
    v = qkv[2].reshape(Bw * num_heads, N, head_dim)

    ctx = pallas_window_attention_core(q, k, v, p["attn_bias"], scale)  # (Bw*Hh, N, D)
    ctx = ctx.reshape(Bw, num_heads, N, head_dim)
    ctx = jnp.transpose(ctx, (0, 2, 1, 3)).reshape(Bw, ws, ws, C)

    # window-reverse + roll BACK before the output projection so the attention
    # residual (shortcut) fuses into the proj matmul.
    ctx = window_reverse(ctx, ws, H, W)
    if shift > 0:
        ctx = jnp.roll(ctx, shift=(shift, shift), axis=(1, 2))
    x2d = pallas_linear(ctx.reshape(-1, C), p["w_proj"], p["b_proj"],
                        residual=shortcut2d)                            # (B*L, C)

    # MLP: fused norm2 + fc1 + GELU, then fc2 with fused residual add
    h = pallas_ln_linear(x2d, p["norm2_g"], p["norm2_b"],
                         p["fc1_w"], p["fc1_b"], gelu=True)
    y = pallas_linear(h, p["fc2_w"], p["fc2_b"], residual=x2d)
    return y.reshape(B, L, C)


def patch_merging_forward(x, p, H, W):
    B, L, C = x.shape
    x = x.reshape(B, H, W, C)
    x0 = x[:, 0::2, 0::2, :]
    x1 = x[:, 1::2, 0::2, :]
    x2 = x[:, 0::2, 1::2, :]
    x3 = x[:, 1::2, 1::2, :]
    xc = jnp.concatenate([x0, x1, x2, x3], -1).reshape(-1, 4 * C)
    y = pallas_ln_linear(xc, p["norm_g"], p["norm_b"], p["red_w"], None)  # fused LN + reduction
    return y.reshape(B, (H // 2) * (W // 2), 2 * C)


def swin_forward(x_nchw, params, cfg):
    B, Cin, H0, W0 = x_nchw.shape
    x = jnp.transpose(x_nchw.reshape(B, Cin, H0 * W0), (0, 2, 1))       # (B, L, C)
    for li, lp in enumerate(params["layers"]):
        H = cfg["H0"] // 2 ** li
        W = cfg["W0"] // 2 ** li
        for blk in lp["blocks"]:
            x = swin_block_forward(x, blk, H, W, cfg["num_heads"][li])
        if lp["downsample"] is not None:
            x = patch_merging_forward(x, lp["downsample"], H, W)
    # final norm + expension (fused)
    B_, L_, C_ = x.shape
    xf = pallas_ln_linear(x.reshape(-1, C_), params["norm_g"], params["norm_b"],
                          params["exp_w"], None)
    x = xf.reshape(B_, L_, -1)
    # transpose/upsample decode
    nl = cfg["num_layers"]
    for i in range(nl - 1, 0, -1):
        Bx, Lx, Cx = x.shape
        Hi, Wi = cfg["H0"] // 2 ** i, cfg["W0"] // 2 ** i
        if i > 1:
            x = x.reshape(Bx, Hi, Wi, 2, 2, Cx // 4)
            x = jnp.transpose(x, (0, 1, 4, 2, 3, 5)).reshape(Bx, Hi * 2 * Wi * 2, Cx // 4)
        else:
            x = x.reshape(Bx, Hi, Wi, 2, 2, Cx // 4)
            x = jnp.transpose(x, (0, 5, 1, 4, 2, 3)).reshape(Bx, Cx // 4, Hi * 2, Wi * 2)
    return x


# ------------------------------------------------------------------
# Deterministic parameter init (synthetic weights)
# ------------------------------------------------------------------

def init_params(key, cfg):
    keys = iter(jax.random.split(key, 512))

    def nrm(shape, std=0.02):
        return std * jax.random.normal(next(keys), shape, jnp.float32)

    params = {"layers": []}
    nl = cfg["num_layers"]
    for li in range(nl):
        dim = cfg["embed_dim"] * 2 ** li
        H = cfg["H0"] // 2 ** li
        W = cfg["W0"] // 2 ** li
        heads = cfg["num_heads"][li]
        hidden = int(dim * cfg["mlp_ratio"])
        blocks = []
        for bi in range(cfg["depths"][li]):
            ws = cfg["window_size"]
            shift = 0 if bi % 2 == 0 else ws // 2
            if min(H, W) <= ws:          # same adjustment as the torch module
                shift = 0
                ws = min(H, W)
            N = ws * ws
            table = nrm(((2 * ws - 1) * (2 * ws - 1), heads))
            idx = build_rel_index(ws)
            rel = jnp.transpose(table[idx.reshape(-1)].reshape(N, N, heads), (2, 0, 1))
            mask = jnp.asarray(build_attn_mask(H, W, ws, shift))        # (nW, N, N)
            # combined per-(window, head) additive bias: (nW*heads, N, N)
            attn_bias = (mask[:, None, :, :] + rel[None, :, :, :]).reshape(-1, N, N)
            blocks.append(dict(
                ws=ws, shift=shift,
                norm1_g=jnp.ones((dim,), jnp.float32), norm1_b=jnp.zeros((dim,), jnp.float32),
                w_qkv=nrm((dim, 3 * dim)), b_qkv=nrm((3 * dim,)),
                w_proj=nrm((dim, dim)), b_proj=nrm((dim,)),
                attn_bias=attn_bias,
                norm2_g=jnp.ones((dim,), jnp.float32), norm2_b=jnp.zeros((dim,), jnp.float32),
                fc1_w=nrm((dim, hidden)), fc1_b=nrm((hidden,)),
                fc2_w=nrm((hidden, dim)), fc2_b=nrm((dim,)),
            ))
        down = None
        if li < nl - 1:
            down = dict(
                norm_g=jnp.ones((4 * dim,), jnp.float32),
                norm_b=jnp.zeros((4 * dim,), jnp.float32),
                red_w=nrm((4 * dim, 2 * dim)),
            )
        params["layers"].append(dict(blocks=blocks, downsample=down))

    num_features = cfg["embed_dim"] * 2 ** (nl - 1)
    params["norm_g"] = jnp.ones((num_features,), jnp.float32)
    params["norm_b"] = jnp.zeros((num_features,), jnp.float32)
    params["exp_w"] = nrm((num_features, cfg["embed_dim"] * 4 ** (nl - 1)))
    return params


# ------------------------------------------------------------------

if __name__ == "__main__":
    cfg = dict(
        H0=8, W0=8,                 # input_shape
        embed_dim=16,               # input_channel
        depths=(2, 2),
        num_heads=(2, 2),
        num_layers=2,
        window_size=2,
        mlp_ratio=2.0,
    )
    key = jax.random.PRNGKey(0)
    k_param, k_data = jax.random.split(key)
    params = init_params(k_param, cfg)

    # input follows the torch forward: (bs, c, h, w)
    x = jax.random.normal(k_data, (2, cfg["embed_dim"], cfg["H0"], cfg["W0"]), jnp.float32)

    fwd = jax.jit(lambda inp: swin_forward(inp, params, cfg))
    out = jax.block_until_ready(fwd(x))

    expected = (2, cfg["embed_dim"], cfg["H0"], cfg["W0"])
    assert out.shape == expected, (out.shape, expected)
    assert bool(jnp.all(jnp.isfinite(out)))
    # TODO(synk): Dropout / DropPath (stochastic depth) are inference-identity and omitted.
    print("KERNEL_OK")
</pallas_src>

<mosaic_0001>
module attributes {stable_mosaic.version = 11 : i64} {
  func.func @_ln_linear_kernel(%arg0: i32, %arg1: i32, %arg2: memref<128x16xf32, #tpu.memory_space<vmem>>, %arg3: memref<1x16xf32, #tpu.memory_space<vmem>>, %arg4: memref<1x16xf32, #tpu.memory_space<vmem>>, %arg5: memref<16x48xf32, #tpu.memory_space<vmem>>, %arg6: memref<1x48xf32, #tpu.memory_space<vmem>>, %arg7: memref<128x48xf32, #tpu.memory_space<vmem>>) attributes {dimension_semantics = [#tpu.dimension_semantics<parallel>, #tpu.dimension_semantics<parallel>], iteration_bounds = array<i64: 1, 1>, scalar_prefetch = 0 : i64, scratch_operands = 0 : i64, tpu.core_type = #tpu.core_type<tc>, window_params = [{transform_indices = @transform_0, window_bounds = array<i64: 128, 16>}, {pipeline_mode = #tpu.pipeline_mode<synchronous>, transform_indices = @transform_1, window_bounds = array<i64: 1, 16>}, {pipeline_mode = #tpu.pipeline_mode<synchronous>, transform_indices = @transform_2, window_bounds = array<i64: 1, 16>}, {transform_indices = @transform_3, window_bounds = array<i64: 16, 48>}, {transform_indices = @transform_4, window_bounds = array<i64: 1, 48>}, {transform_indices = @transform_5, window_bounds = array<i64: 128, 48>}]} {
    %c0 = arith.constant 0 : index
    %c0_0 = arith.constant 0 : index
    %0 = vector.load %arg2[%c0, %c0_0] : memref<128x16xf32, #tpu.memory_space<vmem>>, vector<128x16xf32>
    %cst = arith.constant dense<0.000000e+00> : vector<128xf32>
    %1 = vector.multi_reduction <add>, %0, %cst [1] : vector<128x16xf32> to vector<128xf32>
    %2 = vector.shape_cast %1 : vector<128xf32> to vector<128x1xf32>
    %cst_1 = arith.constant 1.600000e+01 : f32
    %3 = vector.broadcast %cst_1 : f32 to vector<128x1xf32>
    %4 = arith.divf %2, %3 : vector<128x1xf32>
    %5 = vector.broadcast %4 : vector<128x1xf32> to vector<128x16xf32>
    %6 = arith.subf %0, %5 : vector<128x16xf32>
    %7 = arith.mulf %6, %6 : vector<128x16xf32>
    %cst_2 = arith.constant dense<0.000000e+00> : vector<128xf32>
    %8 = vector.multi_reduction <add>, %7, %cst_2 [1] : vector<128x16xf32> to vector<128xf32>
    %9 = vector.shape_cast %8 : vector<128xf32> to vector<128x1xf32>
    %cst_3 = arith.constant 1.600000e+01 : f32
    %10 = vector.broadcast %cst_3 : f32 to vector<128x1xf32>
    %11 = arith.divf %9, %10 : vector<128x1xf32>
    %12 = vector.broadcast %4 : vector<128x1xf32> to vector<128x16xf32>
    %13 = arith.subf %0, %12 : vector<128x16xf32>
    %cst_4 = arith.constant 9.99999974E-6 : f32
    %14 = vector.broadcast %cst_4 : f32 to vector<128x1xf32>
    %15 = arith.addf %11, %14 : vector<128x1xf32>
    %16 = math.rsqrt %15 : vector<128x1xf32>
    %17 = vector.broadcast %16 : vector<128x1xf32> to vector<128x16xf32>
    %18 = arith.mulf %13, %17 : vector<128x16xf32>
    %c0_5 = arith.constant 0 : index
    %c0_6 = arith.constant 0 : index
    %19 = vector.load %arg3[%c0_5, %c0_6] : memref<1x16xf32, #tpu.memory_space<vmem>>, vector<1x16xf32>
    %20 = vector.broadcast %19 : vector<1x16xf32> to vector<128x16xf32>
    %21 = arith.mulf %18, %20 : vector<128x16xf32>
    %c0_7 = arith.constant 0 : index
    %c0_8 = arith.constant 0 : index
    %22 = vector.load %arg4[%c0_7, %c0_8] : memref<1x16xf32, #tpu.memory_space<vmem>>, vector<1x16xf32>
    %23 = vector.broadcast %22 : vector<1x16xf32> to vector<128x16xf32>
    %24 = arith.addf %21, %23 : vector<128x16xf32>
    %c0_9 = arith.constant 0 : index
    %c0_10 = arith.constant 0 : index
    %25 = vector.load %arg5[%c0_9, %c0_10] : memref<16x48xf32, #tpu.memory_space<vmem>>, vector<16x48xf32>
    %cst_11 = arith.constant dense<0.000000e+00> : vector<128x48xf32>
    %26 = tpu.matmul %24, %25, %cst_11 {dimension_numbers = #tpu.dot_dimension_numbers<[1], [0], [0], [1], [0, 0, 1, 1], [], []>} : vector<128x16xf32>, vector<16x48xf32>, vector<128x48xf32> -> vector<128x48xf32>
    %c0_12 = arith.constant 0 : index
    %c0_13 = arith.constant 0 : index
    %27 = vector.load %arg6[%c0_12, %c0_13] : memref<1x48xf32, #tpu.memory_space<vmem>>, vector<1x48xf32>
    %28 = vector.broadcast %27 : vector<1x48xf32> to vector<128x48xf32>
    %29 = arith.addf %26, %28 : vector<128x48xf32>
    %c0_14 = arith.constant 0 : index
    %c0_15 = arith.constant 0 : index
    %30 = vector.load %arg7[%c0_14, %c0_15] : memref<128x48xf32, #tpu.memory_space<vmem>>, vector<128x48xf32>
    tpu.vector_store %arg7[%c0_14, %c0_15], %29 {strides = array<i32>} : memref<128x48xf32, #tpu.memory_space<vmem>>, vector<128x48xf32>,
    return
  }
  func.func @transform_0(%arg0: i32, %arg1: i32) -> (i32, i32) {
    %c0_i32 = arith.constant 0 : i32
    %c0_i32_0 = arith.constant 0 : i32
    return %arg0, %c0_i32 : i32, i32
  }
  func.func @transform_1(%arg0: i32, %arg1: i32) -> (i32, i32) {
    %c0_i32 = arith.constant 0 : i32
    %c0_i32_0 = arith.constant 0 : i32
    %c0_i32_1 = arith.constant 0 : i32
    return %c0_i32, %c0_i32_0 : i32, i32
  }
  func.func @transform_2(%arg0: i32, %arg1: i32) -> (i32, i32) {
    %c0_i32 = arith.constant 0 : i32
    %c0_i32_0 = arith.constant 0 : i32
    %c0_i32_1 = arith.constant 0 : i32
    return %c0_i32, %c0_i32_0 : i32, i32
  }
  func.func @transform_3(%arg0: i32, %arg1: i32) -> (i32, i32) {
    %c0_i32 = arith.constant 0 : i32
    %c0_i32_0 = arith.constant 0 : i32
    return %c0_i32, %arg1 : i32, i32
  }
  func.func @transform_4(%arg0: i32, %arg1: i32) -> (i32, i32) {
    %c0_i32 = arith.constant 0 : i32
    %c0_i32_0 = arith.constant 0 : i32
    return %c0_i32, %arg1 : i32, i32
  }
  func.func @transform_5(%arg0: i32, %arg1: i32) -> (i32, i32) {
    %c0_i32 = arith.constant 0 : i32
    return %arg0, %arg1 : i32, i32
  }
}

module attributes {stable_mosaic.version = 11 : i64} {
  func.func @_attn_core_kernel(%arg0: i32, %arg1: memref<32x4x8xf32, #tpu.memory_space<vmem>>, %arg2: memref<32x4x8xf32, #tpu.memory_space<vmem>>, %arg3: memref<32x4x8xf32, #tpu.memory_space<vmem>>, %arg4: memref<32x4x4xf32, #tpu.memory_space<vmem>>, %arg5: memref<32x4x8xf32, #tpu.memory_space<vmem>>) attributes {dimension_semantics = [#tpu.dimension_semantics<parallel>], iteration_bounds = array<i64: 2>, scalar_prefetch = 0 : i64, scratch_operands = 0 : i64, tpu.core_type = #tpu.core_type<tc>, window_params = [{transform_indices = @transform_0, window_bounds = array<i64: 32, 4, 8>}, {transform_indices = @transform_1, window_bounds = array<i64: 32, 4, 8>}, {transform_indices = @transform_2, window_bounds = array<i64: 32, 4, 8>}, {pipeline_mode = #tpu.pipeline_mode<synchronous>, transform_indices = @transform_3, window_bounds = array<i64: 32, 4, 4>}, {transform_indices = @transform_4, window_bounds = array<i64: 32, 4, 8>}]} {
    %c0 = arith.constant 0 : index
    %c0_0 = arith.constant 0 : index
    %c0_1 = arith.constant 0 : index
    %0 = vector.load %arg1[%c0, %c0_0, %c0_1] : memref<32x4x8xf32, #tpu.memory_space<vmem>>, vector<32x4x8xf32>
    %cst = arith.constant 0.353553385 : f32
    %1 = vector.broadcast %cst : f32 to vector<32x4x8xf32>
    %2 = arith.mulf %0, %1 : vector<32x4x8xf32>
    %c0_2 = arith.constant 0 : index
    %c0_3 = arith.constant 0 : index
    %c0_4 = arith.constant 0 : index
    %3 = vector.load %arg2[%c0_2, %c0_3, %c0_4] : memref<32x4x8xf32, #tpu.memory_space<vmem>>, vector<32x4x8xf32>
    %c0_5 = arith.constant 0 : index
    %c0_6 = arith.constant 0 : index
    %c0_7 = arith.constant 0 : index
    %4 = vector.load %arg3[%c0_5, %c0_6, %c0_7] : memref<32x4x8xf32, #tpu.memory_space<vmem>>, vector<32x4x8xf32>
    "tpu.trace_start"() <{level = 10 : i32, message = "gnd,gmd->gnm"}> : () -> ()
    %cst_8 = arith.constant dense<0.000000e+00> : vector<32x4x4xf32>
    %5 = tpu.matmul %2, %3, %cst_8 {dimension_numbers = #tpu.dot_dimension_numbers<[2], [2], [1], [1], [0, 0, 0, 1, 1, 1], [0], [0]>} : vector<32x4x8xf32>, vector<32x4x8xf32>, vector<32x4x4xf32> -> vector<32x4x4xf32>
    "tpu.trace_stop"() : () -> ()
    %c0_9 = arith.constant 0 : index
    %c0_10 = arith.constant 0 : index
    %c0_11 = arith.constant 0 : index
    %6 = vector.load %arg4[%c0_9, %c0_10, %c0_11] : memref<32x4x4xf32, #tpu.memory_space<vmem>>, vector<32x4x4xf32>
    %7 = arith.addf %5, %6 : vector<32x4x4xf32>
    %cst_12 = arith.constant dense<0xFF800000> : vector<32x4xf32>
    %8 = vector.multi_reduction <maximumf>, %7, %cst_12 [2] : vector<32x4x4xf32> to vector<32x4xf32>
    %9 = vector.shape_cast %8 : vector<32x4xf32> to vector<32x4x1xf32>
    %10 = vector.broadcast %9 : vector<32x4x1xf32> to vector<32x4x4xf32>
    %11 = arith.subf %7, %10 : vector<32x4x4xf32>
    %12 = math.exp %11 : vector<32x4x4xf32>
    %cst_13 = arith.constant dense<0.000000e+00> : vector<32x4xf32>
    %13 = vector.multi_reduction <add>, %12, %cst_13 [2] : vector<32x4x4xf32> to vector<32x4xf32>
    %14 = vector.shape_cast %13 : vector<32x4xf32> to vector<32x4x1xf32>
    %15 = tpu.reciprocal %14 {approx = true} : vector<32x4x1xf32> -> vector<32x4x1xf32>
    %16 = vector.broadcast %15 : vector<32x4x1xf32> to vector<32x4x4xf32>
    %17 = arith.mulf %12, %16 : vector<32x4x4xf32>
    "tpu.trace_start"() <{level = 10 : i32, message = "gnm,gmd->gnd"}> : () -> ()
    %cst_14 = arith.constant dense<0.000000e+00> : vector<32x4x8xf32>
    %18 = tpu.matmul %17, %4, %cst_14 {dimension_numbers = #tpu.dot_dimension_numbers<[2], [1], [1], [2], [0, 0, 0, 1, 1, 2], [0], [0]>} : vector<32x4x4xf32>, vector<32x4x8xf32>, vector<32x4x8xf32> -> vector<32x4x8xf32>
    "tpu.trace_stop"() : () -> ()
    %c0_15 = arith.constant 0 : index
    %c0_16 = arith.constant 0 : index
    %c0_17 = arith.constant 0 : index
    %19 = vector.load %arg5[%c0_15, %c0_16, %c0_17] : memref<32x4x8xf32, #tpu.memory_space<vmem>>, vector<32x4x8xf32>
    tpu.vector_store %arg5[%c0_15, %c0_16, %c0_17], %18 {strides = array<i32>} : memref<32x4x8xf32, #tpu.memory_space<vmem>>, vector<32x4x8xf32>,
    return
  }
  func.func @transform_0(%arg0: i32) -> (i32, i32, i32) {
    %c0_i32 = arith.constant 0 : i32
    %c0_i32_0 = arith.constant 0 : i32
    %c0_i32_1 = arith.constant 0 : i32
    return %arg0, %c0_i32, %c0_i32_0 : i32, i32, i32
  }
  func.func @transform_1(%arg0: i32) -> (i32, i32, i32) {
    %c0_i32 = arith.constant 0 : i32
    %c0_i32_0 = arith.constant 0 : i32
    %c0_i32_1 = arith.constant 0 : i32
    return %arg0, %c0_i32, %c0_i32_0 : i32, i32, i32
  }
  func.func @transform_2(%arg0: i32) -> (i32, i32, i32) {
    %c0_i32 = arith.constant 0 : i32
    %c0_i32_0 = arith.constant 0 : i32
    %c0_i32_1 = arith.constant 0 : i32
    return %arg0, %c0_i32, %c0_i32_0 : i32, i32, i32
  }
  func.func @transform_3(%arg0: i32) -> (i32, i32, i32) {
    %c0_i32 = arith.constant 0 : i32
    %c0_i32_0 = arith.constant 0 : i32
    %c0_i32_1 = arith.constant 0 : i32
    %c0_i32_2 = arith.constant 0 : i32
    return %c0_i32, %c0_i32_0, %c0_i32_1 : i32, i32, i32
  }
  func.func @transform_4(%arg0: i32) -> (i32, i32, i32) {
    %c0_i32 = arith.constant 0 : i32
    %c0_i32_0 = arith.constant 0 : i32
    %c0_i32_1 = arith.constant 0 : i32
    return %arg0, %c0_i32, %c0_i32_0 : i32, i32, i32
  }
}

module attributes {stable_mosaic.version = 11 : i64} {
  func.func @_linear_kernel(%arg0: i32, %arg1: i32, %arg2: memref<128x16xf32, #tpu.memory_space<vmem>>, %arg3: memref<16x16xf32, #tpu.memory_space<vmem>>, %arg4: memref<1x16xf32, #tpu.memory_space<vmem>>, %arg5: memref<128x16xf32, #tpu.memory_space<vmem>>, %arg6: memref<128x16xf32, #tpu.memory_space<vmem>>) attributes {dimension_semantics = [#tpu.dimension_semantics<parallel>, #tpu.dimension_semantics<parallel>], iteration_bounds = array<i64: 1, 1>, scalar_prefetch = 0 : i64, scratch_operands = 0 : i64, tpu.core_type = #tpu.core_type<tc>, window_params = [{transform_indices = @transform_0, window_bounds = array<i64: 128, 16>}, {transform_indices = @transform_1, window_bounds = array<i64: 16, 16>}, {transform_indices = @transform_2, window_bounds = array<i64: 1, 16>}, {transform_indices = @transform_3, window_bounds = array<i64: 128, 16>}, {transform_indices = @transform_4, window_bounds = array<i64: 128, 16>}]} {
    %c0 = arith.constant 0 : index
    %c0_0 = arith.constant 0 : index
    %0 = vector.load %arg2[%c0, %c0_0] : memref<128x16xf32, #tpu.memory_space<vmem>>, vector<128x16xf32>
    %c0_1 = arith.constant 0 : index
    %c0_2 = arith.constant 0 : index
    %1 = vector.load %arg3[%c0_1, %c0_2] : memref<16x16xf32, #tpu.memory_space<vmem>>, vector<16x16xf32>
    %cst = arith.constant dense<0.000000e+00> : vector<128x16xf32>
    %2 = tpu.matmul %0, %1, %cst {dimension_numbers = #tpu.dot_dimension_numbers<[1], [0], [0], [1], [0, 0, 1, 1], [], []>} : vector<128x16xf32>, vector<16x16xf32>, vector<128x16xf32> -> vector<128x16xf32>
    %c0_3 = arith.constant 0 : index
    %c0_4 = arith.constant 0 : index
    %3 = vector.load %arg4[%c0_3, %c0_4] : memref<1x16xf32, #tpu.memory_space<vmem>>, vector<1x16xf32>
    %4 = vector.broadcast %3 : vector<1x16xf32> to vector<128x16xf32>
    %5 = arith.addf %2, %4 : vector<128x16xf32>
    %c0_5 = arith.constant 0 : index
    %c0_6 = arith.constant 0 : index
    %6 = vector.load %arg5[%c0_5, %c0_6] : memref<128x16xf32, #tpu.memory_space<vmem>>, vector<128x16xf32>
    %7 = arith.addf %5, %6 : vector<128x16xf32>
    %c0_7 = arith.constant 0 : index
    %c0_8 = arith.constant 0 : index
    %8 = vector.load %arg6[%c0_7, %c0_8] : memref<128x16xf32, #tpu.memory_space<vmem>>, vector<128x16xf32>
    tpu.vector_store %arg6[%c0_7, %c0_8], %7 {strides = array<i32>} : memref<128x16xf32, #tpu.memory_space<vmem>>, vector<128x16xf32>,
    return
  }
  func.func @transform_0(%arg0: i32, %arg1: i32) -> (i32, i32) {
    %c0_i32 = arith.constant 0 : i32
    %c0_i32_0 = arith.constant 0 : i32
    return %arg0, %c0_i32 : i32, i32
  }
  func.func @transform_1(%arg0: i32, %arg1: i32) -> (i32, i32) {
    %c0_i32 = arith.constant 0 : i32
    %c0_i32_0 = arith.constant 0 : i32
    return %c0_i32, %arg1 : i32, i32
  }
  func.func @transform_2(%arg0: i32, %arg1: i32) -> (i32, i32) {
    %c0_i32 = arith.constant 0 : i32
    %c0_i32_0 = arith.constant 0 : i32
    return %c0_i32, %arg1 : i32, i32
  }
  func.func @transform_3(%arg0: i32, %arg1: i32) -> (i32, i32) {
    %c0_i32 = arith.constant 0 : i32
    return %arg0, %arg1 : i32, i32
  }
  func.func @transform_4(%arg0: i32, %arg1: i32) -> (i32, i32) {
    %c0_i32 = arith.constant 0 : i32
    return %arg0, %arg1 : i32, i32
  }
}

module attributes {stable_mosaic.version = 11 : i64} {
  func.func @_ln_linear_kernel(%arg0: i32, %arg1: i32, %arg2: memref<128x16xf32, #tpu.memory_space<vmem>>, %arg3: memref<1x16xf32, #tpu.memory_space<vmem>>, %arg4: memref<1x16xf32, #tpu.memory_space<vmem>>, %arg5: memref<16x32xf32, #tpu.memory_space<vmem>>, %arg6: memref<1x32xf32, #tpu.memory_space<vmem>>, %arg7: memref<128x32xf32, #tpu.memory_space<vmem>>) attributes {dimension_semantics = [#tpu.dimension_semantics<parallel>, #tpu.dimension_semantics<parallel>], iteration_bounds = array<i64: 1, 1>, scalar_prefetch = 0 : i64, scratch_operands = 0 : i64, tpu.core_type = #tpu.core_type<tc>, window_params = [{transform_indices = @transform_0, window_bounds = array<i64: 128, 16>}, {pipeline_mode = #tpu.pipeline_mode<synchronous>, transform_indices = @transform_1, window_bounds = array<i64: 1, 16>}, {pipeline_mode = #tpu.pipeline_mode<synchronous>, transform_indices = @transform_2, window_bounds = array<i64: 1, 16>}, {transform_indices = @transform_3, window_bounds = array<i64: 16, 32>}, {transform_indices = @transform_4, window_bounds = array<i64: 1, 32>}, {transform_indices = @transform_5, window_bounds = array<i64: 128, 32>}]} {
    %c0 = arith.constant 0 : index
    %c0_0 = arith.constant 0 : index
    %0 = vector.load %arg2[%c0, %c0_0] : memref<128x16xf32, #tpu.memory_space<vmem>>, vector<128x16xf32>
    %cst = arith.constant dense<0.000000e+00> : vector<128xf32>
    %1 = vector.multi_reduction <add>, %0, %cst [1] : vector<128x16xf32> to vector<128xf32>
    %2 = vector.shape_cast %1 : vector<128xf32> to vector<128x1xf32>
    %cst_1 = arith.constant 1.600000e+01 : f32
    %3 = vector.broadcast %cst_1 : f32 to vector<128x1xf32>
    %4 = arith.divf %2, %3 : vector<128x1xf32>
    %5 = vector.broadcast %4 : vector<128x1xf32> to vector<128x16xf32>
    %6 = arith.subf %0, %5 : vector<128x16xf32>
    %7 = arith.mulf %6, %6 : vector<128x16xf32>
    %cst_2 = arith.constant dense<0.000000e+00> : vector<128xf32>
    %8 = vector.multi_reduction <add>, %7, %cst_2 [1] : vector<128x16xf32> to vector<128xf32>
    %9 = vector.shape_cast %8 : vector<128xf32> to vector<128x1xf32>
    %cst_3 = arith.constant 1.600000e+01 : f32
    %10 = vector.broadcast %cst_3 : f32 to vector<128x1xf32>
    %11 = arith.divf %9, %10 : vector<128x1xf32>
    %12 = vector.broadcast %4 : vector<128x1xf32> to vector<128x16xf32>
    %13 = arith.subf %0, %12 : vector<128x16xf32>
    %cst_4 = arith.constant 9.99999974E-6 : f32
    %14 = vector.broadcast %cst_4 : f32 to vector<128x1xf32>
    %15 = arith.addf %11, %14 : vector<128x1xf32>
    %16 = math.rsqrt %15 : vector<128x1xf32>
    %17 = vector.broadcast %16 : vector<128x1xf32> to vector<128x16xf32>
    %18 = arith.mulf %13, %17 : vector<128x16xf32>
    %c0_5 = arith.constant 0 : index
    %c0_6 = arith.constant 0 : index
    %19 = vector.load %arg3[%c0_5, %c0_6] : memref<1x16xf32, #tpu.memory_space<vmem>>, vector<1x16xf32>
    %20 = vector.broadcast %19 : vector<1x16xf32> to vector<128x16xf32>
    %21 = arith.mulf %18, %20 : vector<128x16xf32>
    %c0_7 = arith.constant 0 : index
    %c0_8 = arith.constant 0 : index
    %22 = vector.load %arg4[%c0_7, %c0_8] : memref<1x16xf32, #tpu.memory_space<vmem>>, vector<1x16xf32>
    %23 = vector.broadcast %22 : vector<1x16xf32> to vector<128x16xf32>
    %24 = arith.addf %21, %23 : vector<128x16xf32>
    %c0_9 = arith.constant 0 : index
    %c0_10 = arith.constant 0 : index
    %25 = vector.load %arg5[%c0_9, %c0_10] : memref<16x32xf32, #tpu.memory_space<vmem>>, vector<16x32xf32>
    %cst_11 = arith.constant dense<0.000000e+00> : vector<128x32xf32>
    %26 = tpu.matmul %24, %25, %cst_11 {dimension_numbers = #tpu.dot_dimension_numbers<[1], [0], [0], [1], [0, 0, 1, 1], [], []>} : vector<128x16xf32>, vector<16x32xf32>, vector<128x32xf32> -> vector<128x32xf32>
    %c0_12 = arith.constant 0 : index
    %c0_13 = arith.constant 0 : index
    %27 = vector.load %arg6[%c0_12, %c0_13] : memref<1x32xf32, #tpu.memory_space<vmem>>, vector<1x32xf32>
    %28 = vector.broadcast %27 : vector<1x32xf32> to vector<128x32xf32>
    %29 = arith.addf %26, %28 : vector<128x32xf32>
    %cst_14 = arith.constant 5.000000e-01 : f32
    %30 = vector.broadcast %cst_14 : f32 to vector<128x32xf32>
    %31 = arith.mulf %30, %29 : vector<128x32xf32>
    %cst_15 = arith.constant 0.707106769 : f32
    %32 = vector.broadcast %cst_15 : f32 to vector<128x32xf32>
    %33 = arith.mulf %29, %32 : vector<128x32xf32>
    %34 = math.erf %33 : vector<128x32xf32>
    %cst_16 = arith.constant 1.000000e+00 : f32
    %35 = vector.broadcast %cst_16 : f32 to vector<128x32xf32>
    %36 = arith.addf %35, %34 : vector<128x32xf32>
    %37 = arith.mulf %31, %36 : vector<128x32xf32>
    %c0_17 = arith.constant 0 : index
    %c0_18 = arith.constant 0 : index
    %38 = vector.load %arg7[%c0_17, %c0_18] : memref<128x32xf32, #tpu.memory_space<vmem>>, vector<128x32xf32>
    tpu.vector_store %arg7[%c0_17, %c0_18], %37 {strides = array<i32>} : memref<128x32xf32, #tpu.memory_space<vmem>>, vector<128x32xf32>,
    return
  }
  func.func @transform_0(%arg0: i32, %arg1: i32) -> (i32, i32) {
    %c0_i32 = arith.constant 0 : i32
    %c0_i32_0 = arith.constant 0 : i32
    return %arg0, %c0_i32 : i32, i32
  }
  func.func @transform_1(%arg0: i32, %arg1: i32) -> (i32, i32) {
    %c0_i32 = arith.constant 0 : i32
    %c0_i32_0 = arith.constant 0 : i32
    %c0_i32_1 = arith.constant 0 : i32
    return %c0_i32, %c0_i32_0 : i32, i32
  }
  func.func @transform_2(%arg0: i32, %arg1: i32) -> (i32, i32) {
    %c0_i32 = arith.constant 0 : i32
    %c0_i32_0 = arith.constant 0 : i32
    %c0_i32_1 = arith.constant 0 : i32
    return %c0_i32, %c0_i32_0 : i32, i32
  }
  func.func @transform_3(%arg0: i32, %arg1: i32) -> (i32, i32) {
    %c0_i32 = arith.constant 0 : i32
    %c0_i32_0 = arith.constant 0 : i32
    return %c0_i32, %arg1 : i32, i32
  }
  func.func @transform_4(%arg0: i32, %arg1: i32) -> (i32, i32) {
    %c0_i32 = arith.constant 0 : i32
    %c0_i32_0 = arith.constant 0 : i32
    return %c0_i32, %arg1 : i32, i32
  }
  func.func @transform_5(%arg0: i32, %arg1: i32) -> (i32, i32) {
    %c0_i32 = arith.constant 0 : i32
    return %arg0, %arg1 : i32, i32
  }
}

module attributes {stable_mosaic.version = 11 : i64} {
  func.func @_linear_kernel(%arg0: i32, %arg1: i32, %arg2: memref<128x32xf32, #tpu.memory_space<vmem>>, %arg3: memref<32x16xf32, #tpu.memory_space<vmem>>, %arg4: memref<1x16xf32, #tpu.memory_space<vmem>>, %arg5: memref<128x16xf32, #tpu.memory_space<vmem>>, %arg6: memref<128x16xf32, #tpu.memory_space<vmem>>) attributes {dimension_semantics = [#tpu.dimension_semantics<parallel>, #tpu.dimension_semantics<parallel>], iteration_bounds = array<i64: 1, 1>, scalar_prefetch = 0 : i64, scratch_operands = 0 : i64, tpu.core_type = #tpu.core_type<tc>, window_params = [{transform_indices = @transform_0, window_bounds = array<i64: 128, 32>}, {transform_indices = @transform_1, window_bounds = array<i64: 32, 16>}, {transform_indices = @transform_2, window_bounds = array<i64: 1, 16>}, {transform_indices = @transform_3, window_bounds = array<i64: 128, 16>}, {transform_indices = @transform_4, window_bounds = array<i64: 128, 16>}]} {
    %c0 = arith.constant 0 : index
    %c0_0 = arith.constant 0 : index
    %0 = vector.load %arg2[%c0, %c0_0] : memref<128x32xf32, #tpu.memory_space<vmem>>, vector<128x32xf32>
    %c0_1 = arith.constant 0 : index
    %c0_2 = arith.constant 0 : index
    %1 = vector.load %arg3[%c0_1, %c0_2] : memref<32x16xf32, #tpu.memory_space<vmem>>, vector<32x16xf32>
    %cst = arith.constant dense<0.000000e+00> : vector<128x16xf32>
    %2 = tpu.matmul %0, %1, %cst {dimension_numbers = #tpu.dot_dimension_numbers<[1], [0], [0], [1], [0, 0, 1, 1], [], []>} : vector<128x32xf32>, vector<32x16xf32>, vector<128x16xf32> -> vector<128x16xf32>
    %c0_3 = arith.constant 0 : index
    %c0_4 = arith.constant 0 : index
    %3 = vector.load %arg4[%c0_3, %c0_4] : memref<1x16xf32, #tpu.memory_space<vmem>>, vector<1x16xf32>
    %4 = vector.broadcast %3 : vector<1x16xf32> to vector<128x16xf32>
    %5 = arith.addf %2, %4 : vector<128x16xf32>
    %c0_5 = arith.constant 0 : index
    %c0_6 = arith.constant 0 : index
    %6 = vector.load %arg5[%c0_5, %c0_6] : memref<128x16xf32, #tpu.memory_space<vmem>>, vector<128x16xf32>
    %7 = arith.addf %5, %6 : vector<128x16xf32>
    %c0_7 = arith.constant 0 : index
    %c0_8 = arith.constant 0 : index
    %8 = vector.load %arg6[%c0_7, %c0_8] : memref<128x16xf32, #tpu.memory_space<vmem>>, vector<128x16xf32>
    tpu.vector_store %arg6[%c0_7, %c0_8], %7 {strides = array<i32>} : memref<128x16xf32, #tpu.memory_space<vmem>>, vector<128x16xf32>,
    return
  }
  func.func @transform_0(%arg0: i32, %arg1: i32) -> (i32, i32) {
    %c0_i32 = arith.constant 0 : i32
    %c0_i32_0 = arith.constant 0 : i32
    return %arg0, %c0_i32 : i32, i32
  }
  func.func @transform_1(%arg0: i32, %arg1: i32) -> (i32, i32) {
    %c0_i32 = arith.constant 0 : i32
    %c0_i32_0 = arith.constant 0 : i32
    return %c0_i32, %arg1 : i32, i32
  }
  func.func @transform_2(%arg0: i32, %arg1: i32) -> (i32, i32) {
    %c0_i32 = arith.constant 0 : i32
    %c0_i32_0 = arith.constant 0 : i32
    return %c0_i32, %arg1 : i32, i32
  }
  func.func @transform_3(%arg0: i32, %arg1: i32) -> (i32, i32) {
    %c0_i32 = arith.constant 0 : i32
    return %arg0, %arg1 : i32, i32
  }
  func.func @transform_4(%arg0: i32, %arg1: i32) -> (i32, i32) {
    %c0_i32 = arith.constant 0 : i32
    return %arg0, %arg1 : i32, i32
  }
}

module attributes {stable_mosaic.version = 11 : i64} {
  func.func @_ln_linear_kernel(%arg0: i32, %arg1: i32, %arg2: memref<32x32xf32, #tpu.memory_space<vmem>>, %arg3: memref<1x32xf32, #tpu.memory_space<vmem>>, %arg4: memref<1x32xf32, #tpu.memory_space<vmem>>, %arg5: memref<32x96xf32, #tpu.memory_space<vmem>>, %arg6: memref<1x96xf32, #tpu.memory_space<vmem>>, %arg7: memref<32x96xf32, #tpu.memory_space<vmem>>) attributes {dimension_semantics = [#tpu.dimension_semantics<parallel>, #tpu.dimension_semantics<parallel>], iteration_bounds = array<i64: 1, 1>, scalar_prefetch = 0 : i64, scratch_operands = 0 : i64, tpu.core_type = #tpu.core_type<tc>, window_params = [{transform_indices = @transform_0, window_bounds = array<i64: 32, 32>}, {pipeline_mode = #tpu.pipeline_mode<synchronous>, transform_indices = @transform_1, window_bounds = array<i64: 1, 32>}, {pipeline_mode = #tpu.pipeline_mode<synchronous>, transform_indices = @transform_2, window_bounds = array<i64: 1, 32>}, {transform_indices = @transform_3, window_bounds = array<i64: 32, 96>}, {transform_indices = @transform_4, window_bounds = array<i64: 1, 96>}, {transform_indices = @transform_5, window_bounds = array<i64: 32, 96>}]} {
    %c0 = arith.constant 0 : index
    %c0_0 = arith.constant 0 : index
    %0 = vector.load %arg2[%c0, %c0_0] : memref<32x32xf32, #tpu.memory_space<vmem>>, vector<32x32xf32>
    %cst = arith.constant dense<0.000000e+00> : vector<32xf32>
    %1 = vector.multi_reduction <add>, %0, %cst [1] : vector<32x32xf32> to vector<32xf32>
    %2 = vector.shape_cast %1 : vector<32xf32> to vector<32x1xf32>
    %cst_1 = arith.constant 3.200000e+01 : f32
    %3 = vector.broadcast %cst_1 : f32 to vector<32x1xf32>
    %4 = arith.divf %2, %3 : vector<32x1xf32>
    %5 = vector.broadcast %4 : vector<32x1xf32> to vector<32x32xf32>
    %6 = arith.subf %0, %5 : vector<32x32xf32>
    %7 = arith.mulf %6, %6 : vector<32x32xf32>
    %cst_2 = arith.constant dense<0.000000e+00> : vector<32xf32>
    %8 = vector.multi_reduction <add>, %7, %cst_2 [1] : vector<32x32xf32> to vector<32xf32>
    %9 = vector.shape_cast %8 : vector<32xf32> to vector<32x1xf32>
    %cst_3 = arith.constant 3.200000e+01 : f32
    %10 = vector.broadcast %cst_3 : f32 to vector<32x1xf32>
    %11 = arith.divf %9, %10 : vector<32x1xf32>
    %12 = vector.broadcast %4 : vector<32x1xf32> to vector<32x32xf32>
    %13 = arith.subf %0, %12 : vector<32x32xf32>
    %cst_4 = arith.constant 9.99999974E-6 : f32
    %14 = vector.broadcast %cst_4 : f32 to vector<32x1xf32>
    %15 = arith.addf %11, %14 : vector<32x1xf32>
    %16 = math.rsqrt %15 : vector<32x1xf32>
    %17 = vector.broadcast %16 : vector<32x1xf32> to vector<32x32xf32>
    %18 = arith.mulf %13, %17 : vector<32x32xf32>
    %c0_5 = arith.constant 0 : index
    %c0_6 = arith.constant 0 : index
    %19 = vector.load %arg3[%c0_5, %c0_6] : memref<1x32xf32, #tpu.memory_space<vmem>>, vector<1x32xf32>
    %20 = vector.broadcast %19 : vector<1x32xf32> to vector<32x32xf32>
    %21 = arith.mulf %18, %20 : vector<32x32xf32>
    %c0_7 = arith.constant 0 : index
    %c0_8 = arith.constant 0 : index
    %22 = vector.load %arg4[%c0_7, %c0_8] : memref<1x32xf32, #tpu.memory_space<vmem>>, vector<1x32xf32>
    %23 = vector.broadcast %22 : vector<1x32xf32> to vector<32x32xf32>
    %24 = arith.addf %21, %23 : vector<32x32xf32>
    %c0_9 = arith.constant 0 : index
    %c0_10 = arith.constant 0 : index
    %25 = vector.load %arg5[%c0_9, %c0_10] : memref<32x96xf32, #tpu.memory_space<vmem>>, vector<32x96xf32>
    %cst_11 = arith.constant dense<0.000000e+00> : vector<32x96xf32>
    %26 = tpu.matmul %24, %25, %cst_11 {dimension_numbers = #tpu.dot_dimension_numbers<[1], [0], [0], [1], [0, 0, 1, 1], [], []>} : vector<32x32xf32>, vector<32x96xf32>, vector<32x96xf32> -> vector<32x96xf32>
    %c0_12 = arith.constant 0 : index
    %c0_13 = arith.constant 0 : index
    %27 = vector.load %arg6[%c0_12, %c0_13] : memref<1x96xf32, #tpu.memory_space<vmem>>, vector<1x96xf32>
    %28 = vector.broadcast %27 : vector<1x96xf32> to vector<32x96xf32>
    %29 = arith.addf %26, %28 : vector<32x96xf32>
    %c0_14 = arith.constant 0 : index
    %c0_15 = arith.constant 0 : index
    %30 = vector.load %arg7[%c0_14, %c0_15] : memref<32x96xf32, #tpu.memory_space<vmem>>, vector<32x96xf32>
    tpu.vector_store %arg7[%c0_14, %c0_15], %29 {strides = array<i32>} : memref<32x96xf32, #tpu.memory_space<vmem>>, vector<32x96xf32>,
    return
  }
  func.func @transform_0(%arg0: i32, %arg1: i32) -> (i32, i32) {
    %c0_i32 = arith.constant 0 : i32
    %c0_i32_0 = arith.constant 0 : i32
    return %arg0, %c0_i32 : i32, i32
  }
  func.func @transform_1(%arg0: i32, %arg1: i32) -> (i32, i32) {
    %c0_i32 = arith.constant 0 : i32
    %c0_i32_0 = arith.constant 0 : i32
    %c0_i32_1 = arith.constant 0 : i32
    return %c0_i32, %c0_i32_0 : i32, i32
  }
  func.func @transform_2(%arg0: i32, %arg1: i32) -> (i32, i32) {
    %c0_i32 = arith.constant 0 : i32
    %c0_i32_0 = arith.constant 0 : i32
    %c0_i32_1 = arith.constant 0 : i32
    return %c0_i32, %c0_i32_0 : i32, i32
  }
  func.func @transform_3(%arg0: i32, %arg1: i32) -> (i32, i32) {
    %c0_i32 = arith.constant 0 : i32
    %c0_i32_0 = arith.constant 0 : i32
    return %c0_i32, %arg1 : i32, i32
  }
  func.func @transform_4(%arg0: i32, %arg1: i32) -> (i32, i32) {
    %c0_i32 = arith.constant 0 : i32
    %c0_i32_0 = arith.constant 0 : i32
    return %c0_i32, %arg1 : i32, i32
  }
  func.func @transform_5(%arg0: i32, %arg1: i32) -> (i32, i32) {
    %c0_i32 = arith.constant 0 : i32
    return %arg0, %arg1 : i32, i32
  }
}

module attributes {stable_mosaic.version = 11 : i64} {
  func.func @_ln_linear_kernel(%arg0: i32, %arg1: i32, %arg2: memref<32x64xf32, #tpu.memory_space<vmem>>, %arg3: memref<1x64xf32, #tpu.memory_space<vmem>>, %arg4: memref<1x64xf32, #tpu.memory_space<vmem>>, %arg5: memref<64x32xf32, #tpu.memory_space<vmem>>, %arg6: memref<1x32xf32, #tpu.memory_space<vmem>>, %arg7: memref<32x32xf32, #tpu.memory_space<vmem>>) attributes {dimension_semantics = [#tpu.dimension_semantics<parallel>, #tpu.dimension_semantics<parallel>], iteration_bounds = array<i64: 1, 1>, scalar_prefetch = 0 : i64, scratch_operands = 0 : i64, tpu.core_type = #tpu.core_type<tc>, window_params = [{transform_indices = @transform_0, window_bounds = array<i64: 32, 64>}, {pipeline_mode = #tpu.pipeline_mode<synchronous>, transform_indices = @transform_1, window_bounds = array<i64: 1, 64>}, {pipeline_mode = #tpu.pipeline_mode<synchronous>, transform_indices = @transform_2, window_bounds = array<i64: 1, 64>}, {transform_indices = @transform_3, window_bounds = array<i64: 64, 32>}, {transform_indices = @transform_4, window_bounds = array<i64: 1, 32>}, {transform_indices = @transform_5, window_bounds = array<i64: 32, 32>}]} {
    %c0 = arith.constant 0 : index
    %c0_0 = arith.constant 0 : index
    %0 = vector.load %arg2[%c0, %c0_0] : memref<32x64xf32, #tpu.memory_space<vmem>>, vector<32x64xf32>
    %cst = arith.constant dense<0.000000e+00> : vector<32xf32>
    %1 = vector.multi_reduction <add>, %0, %cst [1] : vector<32x64xf32> to vector<32xf32>
    %2 = vector.shape_cast %1 : vector<32xf32> to vector<32x1xf32>
    %cst_1 = arith.constant 6.400000e+01 : f32
    %3 = vector.broadcast %cst_1 : f32 to vector<32x1xf32>
    %4 = arith.divf %2, %3 : vector<32x1xf32>
    %5 = vector.broadcast %4 : vector<32x1xf32> to vector<32x64xf32>
    %6 = arith.subf %0, %5 : vector<32x64xf32>
    %7 = arith.mulf %6, %6 : vector<32x64xf32>
    %cst_2 = arith.constant dense<0.000000e+00> : vector<32xf32>
    %8 = vector.multi_reduction <add>, %7, %cst_2 [1] : vector<32x64xf32> to vector<32xf32>
    %9 = vector.shape_cast %8 : vector<32xf32> to vector<32x1xf32>
    %cst_3 = arith.constant 6.400000e+01 : f32
    %10 = vector.broadcast %cst_3 : f32 to vector<32x1xf32>
    %11 = arith.divf %9, %10 : vector<32x1xf32>
    %12 = vector.broadcast %4 : vector<32x1xf32> to vector<32x64xf32>
    %13 = arith.subf %0, %12 : vector<32x64xf32>
    %cst_4 = arith.constant 9.99999974E-6 : f32
    %14 = vector.broadcast %cst_4 : f32 to vector<32x1xf32>
    %15 = arith.addf %11, %14 : vector<32x1xf32>
    %16 = math.rsqrt %15 : vector<32x1xf32>
    %17 = vector.broadcast %16 : vector<32x1xf32> to vector<32x64xf32>
    %18 = arith.mulf %13, %17 : vector<32x64xf32>
    %c0_5 = arith.constant 0 : index
    %c0_6 = arith.constant 0 : index
    %19 = vector.load %arg3[%c0_5, %c0_6] : memref<1x64xf32, #tpu.memory_space<vmem>>, vector<1x64xf32>
    %20 = vector.broadcast %19 : vector<1x64xf32> to vector<32x64xf32>
    %21 = arith.mulf %18, %20 : vector<32x64xf32>
    %c0_7 = arith.constant 0 : index
    %c0_8 = arith.constant 0 : index
    %22 = vector.load %arg4[%c0_7, %c0_8] : memref<1x64xf32, #tpu.memory_space<vmem>>, vector<1x64xf32>
    %23 = vector.broadcast %22 : vector<1x64xf32> to vector<32x64xf32>
    %24 = arith.addf %21, %23 : vector<32x64xf32>
    %c0_9 = arith.constant 0 : index
    %c0_10 = arith.constant 0 : index
    %25 = vector.load %arg5[%c0_9, %c0_10] : memref<64x32xf32, #tpu.memory_space<vmem>>, vector<64x32xf32>
    %cst_11 = arith.constant dense<0.000000e+00> : vector<32x32xf32>
    %26 = tpu.matmul %24, %25, %cst_11 {dimension_numbers = #tpu.dot_dimension_numbers<[1], [0], [0], [1], [0, 0, 1, 1], [], []>} : vector<32x64xf32>, vector<64x32xf32>, vector<32x32xf32> -> vector<32x32xf32>
    %c0_12 = arith.constant 0 : index
    %c0_13 = arith.constant 0 : index
    %27 = vector.load %arg6[%c0_12, %c0_13] : memref<1x32xf32, #tpu.memory_space<vmem>>, vector<1x32xf32>
    %28 = vector.broadcast %27 : vector<1x32xf32> to vector<32x32xf32>
    %29 = arith.addf %26, %28 : vector<32x32xf32>
    %c0_14 = arith.constant 0 : index
    %c0_15 = arith.constant 0 : index
    %30 = vector.load %arg7[%c0_14, %c0_15] : memref<32x32xf32, #tpu.memory_space<vmem>>, vector<32x32xf32>
    tpu.vector_store %arg7[%c0_14, %c0_15], %29 {strides = array<i32>} : memref<32x32xf32, #tpu.memory_space<vmem>>, vector<32x32xf32>,
    return
  }
  func.func @transform_0(%arg0: i32, %arg1: i32) -> (i32, i32) {
    %c0_i32 = arith.constant 0 : i32
    %c0_i32_0 = arith.constant 0 : i32
    return %arg0, %c0_i32 : i32, i32
  }
  func.func @transform_1(%arg0: i32, %arg1: i32) -> (i32, i32) {
    %c0_i32 = arith.constant 0 : i32
    %c0_i32_0 = arith.constant 0 : i32
    %c0_i32_1 = arith.constant 0 : i32
    return %c0_i32, %c0_i32_0 : i32, i32
  }
  func.func @transform_2(%arg0: i32, %arg1: i32) -> (i32, i32) {
    %c0_i32 = arith.constant 0 : i32
    %c0_i32_0 = arith.constant 0 : i32
    %c0_i32_1 = arith.constant 0 : i32
    return %c0_i32, %c0_i32_0 : i32, i32
  }
  func.func @transform_3(%arg0: i32, %arg1: i32) -> (i32, i32) {
    %c0_i32 = arith.constant 0 : i32
    %c0_i32_0 = arith.constant 0 : i32
    return %c0_i32, %arg1 : i32, i32
  }
  func.func @transform_4(%arg0: i32, %arg1: i32) -> (i32, i32) {
    %c0_i32 = arith.constant 0 : i32
    %c0_i32_0 = arith.constant 0 : i32
    return %c0_i32, %arg1 : i32, i32
  }
  func.func @transform_5(%arg0: i32, %arg1: i32) -> (i32, i32) {
    %c0_i32 = arith.constant 0 : i32
    return %arg0, %arg1 : i32, i32
  }
}

module attributes {stable_mosaic.version = 11 : i64} {
  func.func @_linear_kernel(%arg0: i32, %arg1: i32, %arg2: memref<32x32xf32, #tpu.memory_space<vmem>>, %arg3: memref<32x32xf32, #tpu.memory_space<vmem>>, %arg4: memref<1x32xf32, #tpu.memory_space<vmem>>, %arg5: memref<32x32xf32, #tpu.memory_space<vmem>>, %arg6: memref<32x32xf32, #tpu.memory_space<vmem>>) attributes {dimension_semantics = [#tpu.dimension_semantics<parallel>, #tpu.dimension_semantics<parallel>], iteration_bounds = array<i64: 1, 1>, scalar_prefetch = 0 : i64, scratch_operands = 0 : i64, tpu.core_type = #tpu.core_type<tc>, window_params = [{transform_indices = @transform_0, window_bounds = array<i64: 32, 32>}, {transform_indices = @transform_1, window_bounds = array<i64: 32, 32>}, {transform_indices = @transform_2, window_bounds = array<i64: 1, 32>}, {transform_indices = @transform_3, window_bounds = array<i64: 32, 32>}, {transform_indices = @transform_4, window_bounds = array<i64: 32, 32>}]} {
    %c0 = arith.constant 0 : index
    %c0_0 = arith.constant 0 : index
    %0 = vector.load %arg2[%c0, %c0_0] : memref<32x32xf32, #tpu.memory_space<vmem>>, vector<32x32xf32>
    %c0_1 = arith.constant 0 : index
    %c0_2 = arith.constant 0 : index
    %1 = vector.load %arg3[%c0_1, %c0_2] : memref<32x32xf32, #tpu.memory_space<vmem>>, vector<32x32xf32>
    %cst = arith.constant dense<0.000000e+00> : vector<32x32xf32>
    %2 = tpu.matmul %0, %1, %cst {dimension_numbers = #tpu.dot_dimension_numbers<[1], [0], [0], [1], [0, 0, 1, 1], [], []>} : vector<32x32xf32>, vector<32x32xf32>, vector<32x32xf32> -> vector<32x32xf32>
    %c0_3 = arith.constant 0 : index
    %c0_4 = arith.constant 0 : index
    %3 = vector.load %arg4[%c0_3, %c0_4] : memref<1x32xf32, #tpu.memory_space<vmem>>, vector<1x32xf32>
    %4 = vector.broadcast %3 : vector<1x32xf32> to vector<32x32xf32>
    %5 = arith.addf %2, %4 : vector<32x32xf32>
    %c0_5 = arith.constant 0 : index
    %c0_6 = arith.constant 0 : index
    %6 = vector.load %arg5[%c0_5, %c0_6] : memref<32x32xf32, #tpu.memory_space<vmem>>, vector<32x32xf32>
    %7 = arith.addf %5, %6 : vector<32x32xf32>
    %c0_7 = arith.constant 0 : index
    %c0_8 = arith.constant 0 : index
    %8 = vector.load %arg6[%c0_7, %c0_8] : memref<32x32xf32, #tpu.memory_space<vmem>>, vector<32x32xf32>
    tpu.vector_store %arg6[%c0_7, %c0_8], %7 {strides = array<i32>} : memref<32x32xf32, #tpu.memory_space<vmem>>, vector<32x32xf32>,
    return
  }
  func.func @transform_0(%arg0: i32, %arg1: i32) -> (i32, i32) {
    %c0_i32 = arith.constant 0 : i32
    %c0_i32_0 = arith.constant 0 : i32
    return %arg0, %c0_i32 : i32, i32
  }
  func.func @transform_1(%arg0: i32, %arg1: i32) -> (i32, i32) {
    %c0_i32 = arith.constant 0 : i32
    %c0_i32_0 = arith.constant 0 : i32
    return %c0_i32, %arg1 : i32, i32
  }
  func.func @transform_2(%arg0: i32, %arg1: i32) -> (i32, i32) {
    %c0_i32 = arith.constant 0 : i32
    %c0_i32_0 = arith.constant 0 : i32
    return %c0_i32, %arg1 : i32, i32
  }
  func.func @transform_3(%arg0: i32, %arg1: i32) -> (i32, i32) {
    %c0_i32 = arith.constant 0 : i32
    return %arg0, %arg1 : i32, i32
  }
  func.func @transform_4(%arg0: i32, %arg1: i32) -> (i32, i32) {
    %c0_i32 = arith.constant 0 : i32
    return %arg0, %arg1 : i32, i32
  }
}

module attributes {stable_mosaic.version = 11 : i64} {
  func.func @_attn_core_kernel(%arg0: i32, %arg1: memref<8x4x16xf32, #tpu.memory_space<vmem>>, %arg2: memref<8x4x16xf32, #tpu.memory_space<vmem>>, %arg3: memref<8x4x16xf32, #tpu.memory_space<vmem>>, %arg4: memref<8x4x4xf32, #tpu.memory_space<vmem>>, %arg5: memref<8x4x16xf32, #tpu.memory_space<vmem>>) attributes {dimension_semantics = [#tpu.dimension_semantics<parallel>], iteration_bounds = array<i64: 2>, scalar_prefetch = 0 : i64, scratch_operands = 0 : i64, tpu.core_type = #tpu.core_type<tc>, window_params = [{transform_indices = @transform_0, window_bounds = array<i64: 8, 4, 16>}, {transform_indices = @transform_1, window_bounds = array<i64: 8, 4, 16>}, {transform_indices = @transform_2, window_bounds = array<i64: 8, 4, 16>}, {pipeline_mode = #tpu.pipeline_mode<synchronous>, transform_indices = @transform_3, window_bounds = array<i64: 8, 4, 4>}, {transform_indices = @transform_4, window_bounds = array<i64: 8, 4, 16>}]} {
    %c0 = arith.constant 0 : index
    %c0_0 = arith.constant 0 : index
    %c0_1 = arith.constant 0 : index
    %0 = vector.load %arg1[%c0, %c0_0, %c0_1] : memref<8x4x16xf32, #tpu.memory_space<vmem>>, vector<8x4x16xf32>
    %cst = arith.constant 2.500000e-01 : f32
    %1 = vector.broadcast %cst : f32 to vector<8x4x16xf32>
    %2 = arith.mulf %0, %1 : vector<8x4x16xf32>
    %c0_2 = arith.constant 0 : index
    %c0_3 = arith.constant 0 : index
    %c0_4 = arith.constant 0 : index
    %3 = vector.load %arg2[%c0_2, %c0_3, %c0_4] : memref<8x4x16xf32, #tpu.memory_space<vmem>>, vector<8x4x16xf32>
    %c0_5 = arith.constant 0 : index
    %c0_6 = arith.constant 0 : index
    %c0_7 = arith.constant 0 : index
    %4 = vector.load %arg3[%c0_5, %c0_6, %c0_7] : memref<8x4x16xf32, #tpu.memory_space<vmem>>, vector<8x4x16xf32>
    "tpu.trace_start"() <{level = 10 : i32, message = "gnd,gmd->gnm"}> : () -> ()
    %cst_8 = arith.constant dense<0.000000e+00> : vector<8x4x4xf32>
    %5 = tpu.matmul %2, %3, %cst_8 {dimension_numbers = #tpu.dot_dimension_numbers<[2], [2], [1], [1], [0, 0, 0, 1, 1, 1], [0], [0]>} : vector<8x4x16xf32>, vector<8x4x16xf32>, vector<8x4x4xf32> -> vector<8x4x4xf32>
    "tpu.trace_stop"() : () -> ()
    %c0_9 = arith.constant 0 : index
    %c0_10 = arith.constant 0 : index
    %c0_11 = arith.constant 0 : index
    %6 = vector.load %arg4[%c0_9, %c0_10, %c0_11] : memref<8x4x4xf32, #tpu.memory_space<vmem>>, vector<8x4x4xf32>
    %7 = arith.addf %5, %6 : vector<8x4x4xf32>
    %cst_12 = arith.constant dense<0xFF800000> : vector<8x4xf32>
    %8 = vector.multi_reduction <maximumf>, %7, %cst_12 [2] : vector<8x4x4xf32> to vector<8x4xf32>
    %9 = vector.shape_cast %8 : vector<8x4xf32> to vector<8x4x1xf32>
    %10 = vector.broadcast %9 : vector<8x4x1xf32> to vector<8x4x4xf32>
    %11 = arith.subf %7, %10 : vector<8x4x4xf32>
    %12 = math.exp %11 : vector<8x4x4xf32>
    %cst_13 = arith.constant dense<0.000000e+00> : vector<8x4xf32>
    %13 = vector.multi_reduction <add>, %12, %cst_13 [2] : vector<8x4x4xf32> to vector<8x4xf32>
    %14 = vector.shape_cast %13 : vector<8x4xf32> to vector<8x4x1xf32>
    %15 = tpu.reciprocal %14 {approx = true} : vector<8x4x1xf32> -> vector<8x4x1xf32>
    %16 = vector.broadcast %15 : vector<8x4x1xf32> to vector<8x4x4xf32>
    %17 = arith.mulf %12, %16 : vector<8x4x4xf32>
    "tpu.trace_start"() <{level = 10 : i32, message = "gnm,gmd->gnd"}> : () -> ()
    %cst_14 = arith.constant dense<0.000000e+00> : vector<8x4x16xf32>
    %18 = tpu.matmul %17, %4, %cst_14 {dimension_numbers = #tpu.dot_dimension_numbers<[2], [1], [1], [2], [0, 0, 0, 1, 1, 2], [0], [0]>} : vector<8x4x4xf32>, vector<8x4x16xf32>, vector<8x4x16xf32> -> vector<8x4x16xf32>
    "tpu.trace_stop"() : () -> ()
    %c0_15 = arith.constant 0 : index
    %c0_16 = arith.constant 0 : index
    %c0_17 = arith.constant 0 : index
    %19 = vector.load %arg5[%c0_15, %c0_16, %c0_17] : memref<8x4x16xf32, #tpu.memory_space<vmem>>, vector<8x4x16xf32>
    tpu.vector_store %arg5[%c0_15, %c0_16, %c0_17], %18 {strides = array<i32>} : memref<8x4x16xf32, #tpu.memory_space<vmem>>, vector<8x4x16xf32>,
    return
  }
  func.func @transform_0(%arg0: i32) -> (i32, i32, i32) {
    %c0_i32 = arith.constant 0 : i32
    %c0_i32_0 = arith.constant 0 : i32
    %c0_i32_1 = arith.constant 0 : i32
    return %arg0, %c0_i32, %c0_i32_0 : i32, i32, i32
  }
  func.func @transform_1(%arg0: i32) -> (i32, i32, i32) {
    %c0_i32 = arith.constant 0 : i32
    %c0_i32_0 = arith.constant 0 : i32
    %c0_i32_1 = arith.constant 0 : i32
    return %arg0, %c0_i32, %c0_i32_0 : i32, i32, i32
  }
  func.func @transform_2(%arg0: i32) -> (i32, i32, i32) {
    %c0_i32 = arith.constant 0 : i32
    %c0_i32_0 = arith.constant 0 : i32
    %c0_i32_1 = arith.constant 0 : i32
    return %arg0, %c0_i32, %c0_i32_0 : i32, i32, i32
  }
  func.func @transform_3(%arg0: i32) -> (i32, i32, i32) {
    %c0_i32 = arith.constant 0 : i32
    %c0_i32_0 = arith.constant 0 : i32
    %c0_i32_1 = arith.constant 0 : i32
    %c0_i32_2 = arith.constant 0 : i32
    return %c0_i32, %c0_i32_0, %c0_i32_1 : i32, i32, i32
  }
  func.func @transform_4(%arg0: i32) -> (i32, i32, i32) {
    %c0_i32 = arith.constant 0 : i32
    %c0_i32_0 = arith.constant 0 : i32
    %c0_i32_1 = arith.constant 0 : i32
    return %arg0, %c0_i32, %c0_i32_0 : i32, i32, i32
  }
}

module attributes {stable_mosaic.version = 11 : i64} {
  func.func @_linear_kernel(%arg0: i32, %arg1: i32, %arg2: memref<32x64xf32, #tpu.memory_space<vmem>>, %arg3: memref<64x32xf32, #tpu.memory_space<vmem>>, %arg4: memref<1x32xf32, #tpu.memory_space<vmem>>, %arg5: memref<32x32xf32, #tpu.memory_space<vmem>>, %arg6: memref<32x32xf32, #tpu.memory_space<vmem>>) attributes {dimension_semantics = [#tpu.dimension_semantics<parallel>, #tpu.dimension_semantics<parallel>], iteration_bounds = array<i64: 1, 1>, scalar_prefetch = 0 : i64, scratch_operands = 0 : i64, tpu.core_type = #tpu.core_type<tc>, window_params = [{transform_indices = @transform_0, window_bounds = array<i64: 32, 64>}, {transform_indices = @transform_1, window_bounds = array<i64: 64, 32>}, {transform_indices = @transform_2, window_bounds = array<i64: 1, 32>}, {transform_indices = @transform_3, window_bounds = array<i64: 32, 32>}, {transform_indices = @transform_4, window_bounds = array<i64: 32, 32>}]} {
    %c0 = arith.constant 0 : index
    %c0_0 = arith.constant 0 : index
    %0 = vector.load %arg2[%c0, %c0_0] : memref<32x64xf32, #tpu.memory_space<vmem>>, vector<32x64xf32>
    %c0_1 = arith.constant 0 : index
    %c0_2 = arith.constant 0 : index
    %1 = vector.load %arg3[%c0_1, %c0_2] : memref<64x32xf32, #tpu.memory_space<vmem>>, vector<64x32xf32>
    %cst = arith.constant dense<0.000000e+00> : vector<32x32xf32>
    %2 = tpu.matmul %0, %1, %cst {dimension_numbers = #tpu.dot_dimension_numbers<[1], [0], [0], [1], [0, 0, 1, 1], [], []>} : vector<32x64xf32>, vector<64x32xf32>, vector<32x32xf32> -> vector<32x32xf32>
    %c0_3 = arith.constant 0 : index
    %c0_4 = arith.constant 0 : index
    %3 = vector.load %arg4[%c0_3, %c0_4] : memref<1x32xf32, #tpu.memory_space<vmem>>, vector<1x32xf32>
    %4 = vector.broadcast %3 : vector<1x32xf32> to vector<32x32xf32>
    %5 = arith.addf %2, %4 : vector<32x32xf32>
    %c0_5 = arith.constant 0 : index
    %c0_6 = arith.constant 0 : index
    %6 = vector.load %arg5[%c0_5, %c0_6] : memref<32x32xf32, #tpu.memory_space<vmem>>, vector<32x32xf32>
    %7 = arith.addf %5, %6 : vector<32x32xf32>
    %c0_7 = arith.constant 0 : index
    %c0_8 = arith.constant 0 : index
    %8 = vector.load %arg6[%c0_7, %c0_8] : memref<32x32xf32, #tpu.memory_space<vmem>>, vector<32x32xf32>
    tpu.vector_store %arg6[%c0_7, %c0_8], %7 {strides = array<i32>} : memref<32x32xf32, #tpu.memory_space<vmem>>, vector<32x32xf32>,
    return
  }
  func.func @transform_0(%arg0: i32, %arg1: i32) -> (i32, i32) {
    %c0_i32 = arith.constant 0 : i32
    %c0_i32_0 = arith.constant 0 : i32
    return %arg0, %c0_i32 : i32, i32
  }
  func.func @transform_1(%arg0: i32, %arg1: i32) -> (i32, i32) {
    %c0_i32 = arith.constant 0 : i32
    %c0_i32_0 = arith.constant 0 : i32
    return %c0_i32, %arg1 : i32, i32
  }
  func.func @transform_2(%arg0: i32, %arg1: i32) -> (i32, i32) {
    %c0_i32 = arith.constant 0 : i32
    %c0_i32_0 = arith.constant 0 : i32
    return %c0_i32, %arg1 : i32, i32
  }
  func.func @transform_3(%arg0: i32, %arg1: i32) -> (i32, i32) {
    %c0_i32 = arith.constant 0 : i32
    return %arg0, %arg1 : i32, i32
  }
  func.func @transform_4(%arg0: i32, %arg1: i32) -> (i32, i32) {
    %c0_i32 = arith.constant 0 : i32
    return %arg0, %arg1 : i32, i32
  }
}

module attributes {stable_mosaic.version = 11 : i64} {
  func.func @_ln_linear_kernel(%arg0: i32, %arg1: i32, %arg2: memref<32x32xf32, #tpu.memory_space<vmem>>, %arg3: memref<1x32xf32, #tpu.memory_space<vmem>>, %arg4: memref<1x32xf32, #tpu.memory_space<vmem>>, %arg5: memref<32x64xf32, #tpu.memory_space<vmem>>, %arg6: memref<1x64xf32, #tpu.memory_space<vmem>>, %arg7: memref<32x64xf32, #tpu.memory_space<vmem>>) attributes {dimension_semantics = [#tpu.dimension_semantics<parallel>, #tpu.dimension_semantics<parallel>], iteration_bounds = array<i64: 1, 1>, scalar_prefetch = 0 : i64, scratch_operands = 0 : i64, tpu.core_type = #tpu.core_type<tc>, window_params = [{transform_indices = @transform_0, window_bounds = array<i64: 32, 32>}, {pipeline_mode = #tpu.pipeline_mode<synchronous>, transform_indices = @transform_1, window_bounds = array<i64: 1, 32>}, {pipeline_mode = #tpu.pipeline_mode<synchronous>, transform_indices = @transform_2, window_bounds = array<i64: 1, 32>}, {transform_indices = @transform_3, window_bounds = array<i64: 32, 64>}, {transform_indices = @transform_4, window_bounds = array<i64: 1, 64>}, {transform_indices = @transform_5, window_bounds = array<i64: 32, 64>}]} {
    %c0 = arith.constant 0 : index
    %c0_0 = arith.constant 0 : index
    %0 = vector.load %arg2[%c0, %c0_0] : memref<32x32xf32, #tpu.memory_space<vmem>>, vector<32x32xf32>
    %cst = arith.constant dense<0.000000e+00> : vector<32xf32>
    %1 = vector.multi_reduction <add>, %0, %cst [1] : vector<32x32xf32> to vector<32xf32>
    %2 = vector.shape_cast %1 : vector<32xf32> to vector<32x1xf32>
    %cst_1 = arith.constant 3.200000e+01 : f32
    %3 = vector.broadcast %cst_1 : f32 to vector<32x1xf32>
    %4 = arith.divf %2, %3 : vector<32x1xf32>
    %5 = vector.broadcast %4 : vector<32x1xf32> to vector<32x32xf32>
    %6 = arith.subf %0, %5 : vector<32x32xf32>
    %7 = arith.mulf %6, %6 : vector<32x32xf32>
    %cst_2 = arith.constant dense<0.000000e+00> : vector<32xf32>
    %8 = vector.multi_reduction <add>, %7, %cst_2 [1] : vector<32x32xf32> to vector<32xf32>
    %9 = vector.shape_cast %8 : vector<32xf32> to vector<32x1xf32>
    %cst_3 = arith.constant 3.200000e+01 : f32
    %10 = vector.broadcast %cst_3 : f32 to vector<32x1xf32>
    %11 = arith.divf %9, %10 : vector<32x1xf32>
    %12 = vector.broadcast %4 : vector<32x1xf32> to vector<32x32xf32>
    %13 = arith.subf %0, %12 : vector<32x32xf32>
    %cst_4 = arith.constant 9.99999974E-6 : f32
    %14 = vector.broadcast %cst_4 : f32 to vector<32x1xf32>
    %15 = arith.addf %11, %14 : vector<32x1xf32>
    %16 = math.rsqrt %15 : vector<32x1xf32>
    %17 = vector.broadcast %16 : vector<32x1xf32> to vector<32x32xf32>
    %18 = arith.mulf %13, %17 : vector<32x32xf32>
    %c0_5 = arith.constant 0 : index
    %c0_6 = arith.constant 0 : index
    %19 = vector.load %arg3[%c0_5, %c0_6] : memref<1x32xf32, #tpu.memory_space<vmem>>, vector<1x32xf32>
    %20 = vector.broadcast %19 : vector<1x32xf32> to vector<32x32xf32>
    %21 = arith.mulf %18, %20 : vector<32x32xf32>
    %c0_7 = arith.constant 0 : index
    %c0_8 = arith.constant 0 : index
    %22 = vector.load %arg4[%c0_7, %c0_8] : memref<1x32xf32, #tpu.memory_space<vmem>>, vector<1x32xf32>
    %23 = vector.broadcast %22 : vector<1x32xf32> to vector<32x32xf32>
    %24 = arith.addf %21, %23 : vector<32x32xf32>
    %c0_9 = arith.constant 0 : index
    %c0_10 = arith.constant 0 : index
    %25 = vector.load %arg5[%c0_9, %c0_10] : memref<32x64xf32, #tpu.memory_space<vmem>>, vector<32x64xf32>
    %cst_11 = arith.constant dense<0.000000e+00> : vector<32x64xf32>
    %26 = tpu.matmul %24, %25, %cst_11 {dimension_numbers = #tpu.dot_dimension_numbers<[1], [0], [0], [1], [0, 0, 1, 1], [], []>} : vector<32x32xf32>, vector<32x64xf32>, vector<32x64xf32> -> vector<32x64xf32>
    %c0_12 = arith.constant 0 : index
    %c0_13 = arith.constant 0 : index
    %27 = vector.load %arg6[%c0_12, %c0_13] : memref<1x64xf32, #tpu.memory_space<vmem>>, vector<1x64xf32>
    %28 = vector.broadcast %27 : vector<1x64xf32> to vector<32x64xf32>
    %29 = arith.addf %26, %28 : vector<32x64xf32>
    %cst_14 = arith.constant 5.000000e-01 : f32
    %30 = vector.broadcast %cst_14 : f32 to vector<32x64xf32>
    %31 = arith.mulf %30, %29 : vector<32x64xf32>
    %cst_15 = arith.constant 0.707106769 : f32
    %32 = vector.broadcast %cst_15 : f32 to vector<32x64xf32>
    %33 = arith.mulf %29, %32 : vector<32x64xf32>
    %34 = math.erf %33 : vector<32x64xf32>
    %cst_16 = arith.constant 1.000000e+00 : f32
    %35 = vector.broadcast %cst_16 : f32 to vector<32x64xf32>
    %36 = arith.addf %35, %34 : vector<32x64xf32>
    %37 = arith.mulf %31, %36 : vector<32x64xf32>
    %c0_17 = arith.constant 0 : index
    %c0_18 = arith.constant 0 : index
    %38 = vector.load %arg7[%c0_17, %c0_18] : memref<32x64xf32, #tpu.memory_space<vmem>>, vector<32x64xf32>
    tpu.vector_store %arg7[%c0_17, %c0_18], %37 {strides = array<i32>} : memref<32x64xf32, #tpu.memory_space<vmem>>, vector<32x64xf32>,
    return
  }
  func.func @transform_0(%arg0: i32, %arg1: i32) -> (i32, i32) {
    %c0_i32 = arith.constant 0 : i32
    %c0_i32_0 = arith.constant 0 : i32
    return %arg0, %c0_i32 : i32, i32
  }
  func.func @transform_1(%arg0: i32, %arg1: i32) -> (i32, i32) {
    %c0_i32 = arith.constant 0 : i32
    %c0_i32_0 = arith.constant 0 : i32
    %c0_i32_1 = arith.constant 0 : i32
    return %c0_i32, %c0_i32_0 : i32, i32
  }
  func.func @transform_2(%arg0: i32, %arg1: i32) -> (i32, i32) {
    %c0_i32 = arith.constant 0 : i32
    %c0_i32_0 = arith.constant 0 : i32
    %c0_i32_1 = arith.constant 0 : i32
    return %c0_i32, %c0_i32_0 : i32, i32
  }
  func.func @transform_3(%arg0: i32, %arg1: i32) -> (i32, i32) {
    %c0_i32 = arith.constant 0 : i32
    %c0_i32_0 = arith.constant 0 : i32
    return %c0_i32, %arg1 : i32, i32
  }
  func.func @transform_4(%arg0: i32, %arg1: i32) -> (i32, i32) {
    %c0_i32 = arith.constant 0 : i32
    %c0_i32_0 = arith.constant 0 : i32
    return %c0_i32, %arg1 : i32, i32
  }
  func.func @transform_5(%arg0: i32, %arg1: i32) -> (i32, i32) {
    %c0_i32 = arith.constant 0 : i32
    return %arg0, %arg1 : i32, i32
  }
}

module attributes {stable_mosaic.version = 11 : i64} {
  func.func @_ln_linear_kernel(%arg0: i32, %arg1: i32, %arg2: memref<32x32xf32, #tpu.memory_space<vmem>>, %arg3: memref<1x32xf32, #tpu.memory_space<vmem>>, %arg4: memref<1x32xf32, #tpu.memory_space<vmem>>, %arg5: memref<32x64xf32, #tpu.memory_space<vmem>>, %arg6: memref<1x64xf32, #tpu.memory_space<vmem>>, %arg7: memref<32x64xf32, #tpu.memory_space<vmem>>) attributes {dimension_semantics = [#tpu.dimension_semantics<parallel>, #tpu.dimension_semantics<parallel>], iteration_bounds = array<i64: 1, 1>, scalar_prefetch = 0 : i64, scratch_operands = 0 : i64, tpu.core_type = #tpu.core_type<tc>, window_params = [{transform_indices = @transform_0, window_bounds = array<i64: 32, 32>}, {pipeline_mode = #tpu.pipeline_mode<synchronous>, transform_indices = @transform_1, window_bounds = array<i64: 1, 32>}, {pipeline_mode = #tpu.pipeline_mode<synchronous>, transform_indices = @transform_2, window_bounds = array<i64: 1, 32>}, {transform_indices = @transform_3, window_bounds = array<i64: 32, 64>}, {transform_indices = @transform_4, window_bounds = array<i64: 1, 64>}, {transform_indices = @transform_5, window_bounds = array<i64: 32, 64>}]} {
    %c0 = arith.constant 0 : index
    %c0_0 = arith.constant 0 : index
    %0 = vector.load %arg2[%c0, %c0_0] : memref<32x32xf32, #tpu.memory_space<vmem>>, vector<32x32xf32>
    %cst = arith.constant dense<0.000000e+00> : vector<32xf32>
    %1 = vector.multi_reduction <add>, %0, %cst [1] : vector<32x32xf32> to vector<32xf32>
    %2 = vector.shape_cast %1 : vector<32xf32> to vector<32x1xf32>
    %cst_1 = arith.constant 3.200000e+01 : f32
    %3 = vector.broadcast %cst_1 : f32 to vector<32x1xf32>
    %4 = arith.divf %2, %3 : vector<32x1xf32>
    %5 = vector.broadcast %4 : vector<32x1xf32> to vector<32x32xf32>
    %6 = arith.subf %0, %5 : vector<32x32xf32>
    %7 = arith.mulf %6, %6 : vector<32x32xf32>
    %cst_2 = arith.constant dense<0.000000e+00> : vector<32xf32>
    %8 = vector.multi_reduction <add>, %7, %cst_2 [1] : vector<32x32xf32> to vector<32xf32>
    %9 = vector.shape_cast %8 : vector<32xf32> to vector<32x1xf32>
    %cst_3 = arith.constant 3.200000e+01 : f32
    %10 = vector.broadcast %cst_3 : f32 to vector<32x1xf32>
    %11 = arith.divf %9, %10 : vector<32x1xf32>
    %12 = vector.broadcast %4 : vector<32x1xf32> to vector<32x32xf32>
    %13 = arith.subf %0, %12 : vector<32x32xf32>
    %cst_4 = arith.constant 9.99999974E-6 : f32
    %14 = vector.broadcast %cst_4 : f32 to vector<32x1xf32>
    %15 = arith.addf %11, %14 : vector<32x1xf32>
    %16 = math.rsqrt %15 : vector<32x1xf32>
    %17 = vector.broadcast %16 : vector<32x1xf32> to vector<32x32xf32>
    %18 = arith.mulf %13, %17 : vector<32x32xf32>
    %c0_5 = arith.constant 0 : index
    %c0_6 = arith.constant 0 : index
    %19 = vector.load %arg3[%c0_5, %c0_6] : memref<1x32xf32, #tpu.memory_space<vmem>>, vector<1x32xf32>
    %20 = vector.broadcast %19 : vector<1x32xf32> to vector<32x32xf32>
    %21 = arith.mulf %18, %20 : vector<32x32xf32>
    %c0_7 = arith.constant 0 : index
    %c0_8 = arith.constant 0 : index
    %22 = vector.load %arg4[%c0_7, %c0_8] : memref<1x32xf32, #tpu.memory_space<vmem>>, vector<1x32xf32>
    %23 = vector.broadcast %22 : vector<1x32xf32> to vector<32x32xf32>
    %24 = arith.addf %21, %23 : vector<32x32xf32>
    %c0_9 = arith.constant 0 : index
    %c0_10 = arith.constant 0 : index
    %25 = vector.load %arg5[%c0_9, %c0_10] : memref<32x64xf32, #tpu.memory_space<vmem>>, vector<32x64xf32>
    %cst_11 = arith.constant dense<0.000000e+00> : vector<32x64xf32>
    %26 = tpu.matmul %24, %25, %cst_11 {dimension_numbers = #tpu.dot_dimension_numbers<[1], [0], [0], [1], [0, 0, 1, 1], [], []>} : vector<32x32xf32>, vector<32x64xf32>, vector<32x64xf32> -> vector<32x64xf32>
    %c0_12 = arith.constant 0 : index
    %c0_13 = arith.constant 0 : index
    %27 = vector.load %arg6[%c0_12, %c0_13] : memref<1x64xf32, #tpu.memory_space<vmem>>, vector<1x64xf32>
    %28 = vector.broadcast %27 : vector<1x64xf32> to vector<32x64xf32>
    %29 = arith.addf %26, %28 : vector<32x64xf32>
    %c0_14 = arith.constant 0 : index
    %c0_15 = arith.constant 0 : index
    %30 = vector.load %arg7[%c0_14, %c0_15] : memref<32x64xf32, #tpu.memory_space<vmem>>, vector<32x64xf32>
    tpu.vector_store %arg7[%c0_14, %c0_15], %29 {strides = array<i32>} : memref<32x64xf32, #tpu.memory_space<vmem>>, vector<32x64xf32>,
    return
  }
  func.func @transform_0(%arg0: i32, %arg1: i32) -> (i32, i32) {
    %c0_i32 = arith.constant 0 : i32
    %c0_i32_0 = arith.constant 0 : i32
    return %arg0, %c0_i32 : i32, i32
  }
  func.func @transform_1(%arg0: i32, %arg1: i32) -> (i32, i32) {
    %c0_i32 = arith.constant 0 : i32
    %c0_i32_0 = arith.constant 0 : i32
    %c0_i32_1 = arith.constant 0 : i32
    return %c0_i32, %c0_i32_0 : i32, i32
  }
  func.func @transform_2(%arg0: i32, %arg1: i32) -> (i32, i32) {
    %c0_i32 = arith.constant 0 : i32
    %c0_i32_0 = arith.constant 0 : i32
    %c0_i32_1 = arith.constant 0 : i32
    return %c0_i32, %c0_i32_0 : i32, i32
  }
  func.func @transform_3(%arg0: i32, %arg1: i32) -> (i32, i32) {
    %c0_i32 = arith.constant 0 : i32
    %c0_i32_0 = arith.constant 0 : i32
    return %c0_i32, %arg1 : i32, i32
  }
  func.func @transform_4(%arg0: i32, %arg1: i32) -> (i32, i32) {
    %c0_i32 = arith.constant 0 : i32
    %c0_i32_0 = arith.constant 0 : i32
    return %c0_i32, %arg1 : i32, i32
  }
  func.func @transform_5(%arg0: i32, %arg1: i32) -> (i32, i32) {
    %c0_i32 = arith.constant 0 : i32
    return %arg0, %arg1 : i32, i32
  }
}

</mosaic_0001>

<llo_original>
// kernel: _lambda_.22
$region0: #{_lambda_.22}
  #allocation0 [shape = 'u32[]', space=smem, size = 0x4, offset = 0x4, fixed_abs, tag = 'smem constant byte address 0x4 - core index']
  #allocation1 [shape = 'u32[144,128]{1,0:T(1,128)}', space=vmem, size = 0x12000, scoped, tag = 'internal scratch']
  %s0 = inlined_call_operand.vmem [shape: f32[128,16], index: 0, kind: input, shape index: {}]
  %s1 = inlined_call_operand.vmem [shape: f32[1,16], index: 1, kind: input, shape index: {}]
  %s2 = inlined_call_operand.vmem [shape: f32[1,16], index: 2, kind: input, shape index: {}]
  %s3 = inlined_call_operand.vmem [shape: f32[16,48], index: 3, kind: input, shape index: {}]
  %s4 = inlined_call_operand.vmem [shape: f32[1,48], index: 4, kind: input, shape index: {}]
  %s5 = inlined_call_operand.vmem [shape: f32[128,48], index: 5, kind: output, shape index: {}]
  %s6 = sld [smem:[#allocation0]]
  $region30: #{_lambda_.22} parent=0
    _
  %s8 = ssub.s32 1, %s6
  %s9 = scalar_select 0, %s8, %s6
  // Predicated region
  $region2: #{_lambda_.22} parent=0 // pred_check
    _
  $region3: #{_lambda_.22} parent=0 // pred_check_branch
    %11 = sbr.rel (0) target = $region5
  $region4: #{_lambda_.22} parent=0 // pred_region
    _
  $region5: #{_lambda_.22} parent=0 // pred_fallthru
    _
  // Predicated region
  $region6: #{_lambda_.22} parent=0 // pred_check
    _
  $region7: #{_lambda_.22} parent=0 // pred_check_branch
    %13 = sbr.rel (0) target = $region9
  $region8: #{_lambda_.22} parent=0 // pred_region
    _
  $region9: #{_lambda_.22} parent=0 // pred_fallthru
    _
  // Predicated region
  $region10: #{_lambda_.22} parent=0 // pred_check
    _
  $region11: #{_lambda_.22} parent=0 // pred_check_branch
    %15 = sbr.rel (0) target = $region13
  $region12: #{_lambda_.22} parent=0 // pred_region
    _
  $region13: #{_lambda_.22} parent=0 // pred_fallthru
    _
  // Predicated region
  $region14: #{_lambda_.22} parent=0 // pred_check
    _
  $region15: #{_lambda_.22} parent=0 // pred_check_branch
    %17 = sbr.rel (0) target = $region17
  $region16: #{_lambda_.22} parent=0 // pred_region
    _
  $region17: #{_lambda_.22} parent=0 // pred_fallthru
    _
  // Predicated region
  $region18: #{_lambda_.22} parent=0 // pred_check
    _
  $region19: #{_lambda_.22} parent=0 // pred_check_branch
    %19 = sbr.rel (0) target = $region21
  $region20: #{_lambda_.22} parent=0 // pred_region
    _
  $region21: #{_lambda_.22} parent=0 // pred_fallthru
    _
  %v20 = vld [vmem:[%s0] sm:$0xff]
  %v21 = vld [vmem:[%s0 + $0x8] sm:$0xff]
  %v22 = vld [vmem:[%s0 + $0x10] sm:$0xff]
  %v23 = vld [vmem:[%s0 + $0x18] sm:$0xff]
  %v24 = vld [vmem:[%s0 + $0x20] sm:$0xff]
  %v25 = vld [vmem:[%s0 + $0x28] sm:$0xff]
  %v26 = vld [vmem:[%s0 + $0x30] sm:$0xff]
  %v27 = vld [vmem:[%s0 + $0x38] sm:$0xff]
  %v28 = vld [vmem:[%s0 + $0x40] sm:$0xff]
  %v29 = vld [vmem:[%s0 + $0x48] sm:$0xff]
  %v30 = vld [vmem:[%s0 + $0x50] sm:$0xff]
  %v31 = vld [vmem:[%s0 + $0x58] sm:$0xff]
  %v32 = vld [vmem:[%s0 + $0x60] sm:$0xff]
  %v33 = vld [vmem:[%s0 + $0x68] sm:$0xff]
  %v34 = vld [vmem:[%s0 + $0x70] sm:$0xff]
  %v35 = vld [vmem:[%s0 + $0x78] sm:$0xff]
  %vm36 = vcmask 130048
  %v37 = vsel %vm36, %v20, 0.0
  %38 = vadd.xlane.f32.xlu0 %v37
  %v39 = vpop.xlane.xlu0 %38
  %v40 = vsel %vm36, %v21, 0.0
  %41 = vadd.xlane.f32.xlu0 %v40
  %v42 = vpop.xlane.xlu0 %41
  %v43 = vsel %vm36, %v22, 0.0
  %44 = vadd.xlane.f32.xlu0 %v43
  %v45 = vpop.xlane.xlu0 %44
  %v46 = vsel %vm36, %v23, 0.0
  %47 = vadd.xlane.f32.xlu0 %v46
  %v48 = vpop.xlane.xlu0 %47
  %v49 = vsel %vm36, %v24, 0.0
  %50 = vadd.xlane.f32.xlu0 %v49
  %v51 = vpop.xlane.xlu0 %50
  %v52 = vsel %vm36, %v25, 0.0
  %53 = vadd.xlane.f32.xlu0 %v52
  %v54 = vpop.xlane.xlu0 %53
  %v55 = vsel %vm36, %v26, 0.0
  %56 = vadd.xlane.f32.xlu0 %v55
  %v57 = vpop.xlane.xlu0 %56
  %v58 = vsel %vm36, %v27, 0.0
  %59 = vadd.xlane.f32.xlu0 %v58
  %v60 = vpop.xlane.xlu0 %59
  %v61 = vsel %vm36, %v28, 0.0
  %62 = vadd.xlane.f32.xlu0 %v61
  %v63 = vpop.xlane.xlu0 %62
  %v64 = vsel %vm36, %v29, 0.0
  %65 = vadd.xlane.f32.xlu0 %v64
  %v66 = vpop.xlane.xlu0 %65
  %v67 = vsel %vm36, %v30, 0.0
  %68 = vadd.xlane.f32.xlu0 %v67
  %v69 = vpop.xlane.xlu0 %68
  %v70 = vsel %vm36, %v31, 0.0
  %71 = vadd.xlane.f32.xlu0 %v70
  %v72 = vpop.xlane.xlu0 %71
  %v73 = vsel %vm36, %v32, 0.0
  %74 = vadd.xlane.f32.xlu0 %v73
  %v75 = vpop.xlane.xlu0 %74
  %v76 = vsel %vm36, %v33, 0.0
  %77 = vadd.xlane.f32.xlu0 %v76
  %v78 = vpop.xlane.xlu0 %77
  %v79 = vsel %vm36, %v34, 0.0
  %80 = vadd.xlane.f32.xlu0 %v79
  %v81 = vpop.xlane.xlu0 %80
  %v82 = vsel %vm36, %v35, 0.0
  %83 = vadd.xlane.f32.xlu0 %v82
  %v84 = vpop.xlane.xlu0 %83
  %v85 = vrcp.pop 16.0
  %v86 = vmul.f32 %v39, %v85
  %v87 = vmul.f32 %v42, %v85
  %v88 = vmul.f32 %v45, %v85
  %v89 = vmul.f32 %v48, %v85
  %v90 = vmul.f32 %v51, %v85
  %v91 = vmul.f32 %v54, %v85
  %v92 = vmul.f32 %v57, %v85
  %v93 = vmul.f32 %v60, %v85
  %v94 = vmul.f32 %v63, %v85
  %v95 = vmul.f32 %v66, %v85
  %v96 = vmul.f32 %v69, %v85
  %v97 = vmul.f32 %v72, %v85
  %v98 = vmul.f32 %v75, %v85
  %v99 = vmul.f32 %v78, %v85
  %v100 = vmul.f32 %v81, %v85
  %v101 = vmul.f32 %v84, %v85
  %v102 = vsub.f32 %v20, %v86
  %v103 = vsub.f32 %v21, %v87
  %v104 = vsub.f32 %v22, %v88
  %v105 = vsub.f32 %v23, %v89
  %v106 = vsub.f32 %v24, %v90
  %v107 = vsub.f32 %v25, %v91
  %v108 = vsub.f32 %v26, %v92
  %v109 = vsub.f32 %v27, %v93
  %v110 = vsub.f32 %v28, %v94
  %v111 = vsub.f32 %v29, %v95
  %v112 = vsub.f32 %v30, %v96
  %v113 = vsub.f32 %v31, %v97
  %v114 = vsub.f32 %v32, %v98
  %v115 = vsub.f32 %v33, %v99
  %v116 = vsub.f32 %v34, %v100
  %v117 = vsub.f32 %v35, %v101
  %v118 = vmul.f32 %v102, %v102
  %v119 = vmul.f32 %v103, %v103
  %v120 = vmul.f32 %v104, %v104
  %v121 = vmul.f32 %v105, %v105
  %v122 = vmul.f32 %v106, %v106
  %v123 = vmul.f32 %v107, %v107
  %v124 = vmul.f32 %v108, %v108
  %v125 = vmul.f32 %v109, %v109
  %v126 = vmul.f32 %v110, %v110
  %v127 = vmul.f32 %v111, %v111
  %v128 = vmul.f32 %v112, %v112
  %v129 = vmul.f32 %v113, %v113
  %v130 = vmul.f32 %v114, %v114
  %v131 = vmul.f32 %v115, %v115
  %v132 = vmul.f32 %v116, %v116
  %v133 = vmul.f32 %v117, %v117
  %v134 = vsel %vm36, %v118, 0.0
  %135 = vadd.xlane.f32.xlu0 %v134
  %v136 = vpop.xlane.xlu0 %135
  %v137 = vsel %vm36, %v119, 0.0
  %138 = vadd.xlane.f32.xlu0 %v137
  %v139 = vpop.xlane.xlu0 %138
  %v140 = vsel %vm36, %v120, 0.0
  %141 = vadd.xlane.f32.xlu0 %v140
  %v142 = vpop.xlane.xlu0 %141
  %v143 = vsel %vm36, %v121, 0.0
  %144 = vadd.xlane.f32.xlu0 %v143
  %v145 = vpop.xlane.xlu0 %144
  %v146 = vsel %vm36, %v122, 0.0
  %147 = vadd.xlane.f32.xlu0 %v146
  %v148 = vpop.xlane.xlu0 %147
  %v149 = vsel %vm36, %v123, 0.0
  %150 = vadd.xlane.f32.xlu0 %v149
  %v151 = vpop.xlane.xlu0 %150
  %v152 = vsel %vm36, %v124, 0.0
  %153 = vadd.xlane.f32.xlu0 %v152
  %v154 = vpop.xlane.xlu0 %153
  %v155 = vsel %vm36, %v125, 0.0
  %156 = vadd.xlane.f32.xlu0 %v155
  %v157 = vpop.xlane.xlu0 %156
  %v158 = vsel %vm36, %v126, 0.0
  %159 = vadd.xlane.f32.xlu0 %v158
  %v160 = vpop.xlane.xlu0 %159
  %v161 = vsel %vm36, %v127, 0.0
  %162 = vadd.xlane.f32.xlu0 %v161
  %v163 = vpop.xlane.xlu0 %162
  %v164 = vsel %vm36, %v128, 0.0
  %165 = vadd.xlane.f32.xlu0 %v164
  %v166 = vpop.xlane.xlu0 %165
  %v167 = vsel %vm36, %v129, 0.0
  %168 = vadd.xlane.f32.xlu0 %v167
  %v169 = vpop.xlane.xlu0 %168
  %v170 = vsel %vm36, %v130, 0.0
  %171 = vadd.xlane.f32.xlu0 %v170
  %v172 = vpop.xlane.xlu0 %171
  %v173 = vsel %vm36, %v131, 0.0
  %174 = vadd.xlane.f32.xlu0 %v173
  %v175 = vpop.xlane.xlu0 %174
  %v176 = vsel %vm36, %v132, 0.0
  %177 = vadd.xlane.f32.xlu0 %v176
  %v178 = vpop.xlane.xlu0 %177
  %v179 = vsel %vm36, %v133, 0.0
  %180 = vadd.xlane.f32.xlu0 %v179
  %v181 = vpop.xlane.xlu0 %180
  %v182 = vmul.f32 %v136, %v85
  %v183 = vmul.f32 %v139, %v85
  %v184 = vmul.f32 %v142, %v85
  %v185 = vmul.f32 %v145, %v85
  %v186 = vmul.f32 %v148, %v85
  %v187 = vmul.f32 %v151, %v85
  %v188 = vmul.f32 %v154, %v85
  %v189 = vmul.f32 %v157, %v85
  %v190 = vmul.f32 %v160, %v85
  %v191 = vmul.f32 %v163, %v85
  %v192 = vmul.f32 %v166, %v85
  %v193 = vmul.f32 %v169, %v85
  %v194 = vmul.f32 %v172, %v85
  %v195 = vmul.f32 %v175, %v85
  %v196 = vmul.f32 %v178, %v85
  %v197 = vmul.f32 %v181, %v85
  %v198 = vadd.f32 %v182, 1e-05
  %v199 = vadd.f32 %v183, 1e-05
  %v200 = vadd.f32 %v184, 1e-05
  %v201 = vadd.f32 %v185, 1e-05
  %v202 = vadd.f32 %v186, 1e-05
  %v203 = vadd.f32 %v187, 1e-05
  %v204 = vadd.f32 %v188, 1e-05
  %v205 = vadd.f32 %v189, 1e-05
  %v206 = vadd.f32 %v190, 1e-05
  %v207 = vadd.f32 %v191, 1e-05
  %v208 = vadd.f32 %v192, 1e-05
  %v209 = vadd.f32 %v193, 1e-05
  %v210 = vadd.f32 %v194, 1e-05
  %v211 = vadd.f32 %v195, 1e-05
  %v212 = vadd.f32 %v196, 1e-05
  %v213 = vadd.f32 %v197, 1e-05
  %v214 = vrsqrt.pop %v198
  %v215 = vrsqrt.pop %v199
  %v216 = vrsqrt.pop %v200
  %v217 = vrsqrt.pop %v201
  %v218 = vrsqrt.pop %v202
  %v219 = vrsqrt.pop %v203
  %v220 = vrsqrt.pop %v204
  %v221 = vrsqrt.pop %v205
  %v222 = vrsqrt.pop %v206
  %v223 = vrsqrt.pop %v207
  %v224 = vrsqrt.pop %v208
  %v225 = vrsqrt.pop %v209
  %v226 = vrsqrt.pop %v210
  %v227 = vrsqrt.pop %v211
  %v228 = vrsqrt.pop %v212
  %v229 = vrsqrt.pop %v213
  %v230 = vmul.f32 %v102, %v214
  %v231 = vmul.f32 %v103, %v215
  %v232 = vmul.f32 %v104, %v216
  %v233 = vmul.f32 %v105, %v217
  %v234 = vmul.f32 %v106, %v218
  %v235 = vmul.f32 %v107, %v219
  %v236 = vmul.f32 %v108, %v220
  %v237 = vmul.f32 %v109, %v221
  %v238 = vmul.f32 %v110, %v222
  %v239 = vmul.f32 %v111, %v223
  %v240 = vmul.f32 %v112, %v224
  %v241 = vmul.f32 %v113, %v225
  %v242 = vmul.f32 %v114, %v226
  %v243 = vmul.f32 %v115, %v227
  %v244 = vmul.f32 %v116, %v228
  %v245 = vmul.f32 %v117, %v229
  %v246 = vld [vmem:[%s1] sm:$0x1]
  %v248 = vlaneseq
  %v249 = vshrl.u32 %v248, 7
  %v250 = vsub.s32 0, %v249
  %v251 = vrot.slane %v246, %v250
  %v253 = vmul.f32 %v230, %v251
  %v254 = vmul.f32 %v231, %v251
  %v255 = vmul.f32 %v232, %v251
  %v256 = vmul.f32 %v233, %v251
  %v257 = vmul.f32 %v234, %v251
  %v258 = vmul.f32 %v235, %v251
  %v259 = vmul.f32 %v236, %v251
  %v260 = vmul.f32 %v237, %v251
  %v261 = vmul.f32 %v238, %v251
  %v262 = vmul.f32 %v239, %v251
  %v263 = vmul.f32 %v240, %v251
  %v264 = vmul.f32 %v241, %v251
  %v265 = vmul.f32 %v242, %v251
  %v266 = vmul.f32 %v243, %v251
  %v267 = vmul.f32 %v244, %v251
  %v268 = vmul.f32 %v245, %v251
  %v269 = vld [vmem:[%s2] sm:$0x1]
  %v271 = vlaneseq
  %v272 = vshrl.u32 %v271, 7
  %v273 = vsub.s32 0, %v272
  %v274 = vrot.slane %v269, %v273
  %v276 = vadd.f32 %v253, %v274
  %v277 = vadd.f32 %v254, %v274
  %v278 = vadd.f32 %v255, %v274
  %v279 = vadd.f32 %v256, %v274
  %v280 = vadd.f32 %v257, %v274
  %v281 = vadd.f32 %v258, %v274
  %v282 = vadd.f32 %v259, %v274
  %v283 = vadd.f32 %v260, %v274
  %v284 = vadd.f32 %v261, %v274
  %v285 = vadd.f32 %v262, %v274
  %v286 = vadd.f32 %v263, %v274
  %v287 = vadd.f32 %v264, %v274
  %v288 = vadd.f32 %v265, %v274
  %v289 = vadd.f32 %v266, %v274
  %v290 = vadd.f32 %v267, %v274
  %v291 = vadd.f32 %v268, %v274
  %v292 = vld [vmem:[%s3] sm:$0xff]
  %v293 = vld [vmem:[%s3 + $0x8] sm:$0xff]
  %v294 = vld [vmem:[%s4] sm:$0x1]
  %v296 = vlaneseq
  %v297 = vshrl.u32 %v296, 7
  %v298 = vsub.s32 0, %v297
  %v299 = vrot.slane %v294, %v298
  %v302 = vsel %vm36, %v276, 0
  %v305 = vsel %vm36, %v277, 0
  %v308 = vsel %vm36, %v278, 0
  %v311 = vsel %vm36, %v279, 0
  %v314 = vsel %vm36, %v280, 0
  %v317 = vsel %vm36, %v281, 0
  %v320 = vsel %vm36, %v282, 0
  %v323 = vsel %vm36, %v283, 0
  %v326 = vsel %vm36, %v284, 0
  %v329 = vsel %vm36, %v285, 0
  %v332 = vsel %vm36, %v286, 0
  %v335 = vsel %vm36, %v287, 0
  %v338 = vsel %vm36, %v288, 0
  %v341 = vsel %vm36, %v289, 0
  %v344 = vsel %vm36, %v290, 0
  %v347 = vsel %vm36, %v291, 0
  %349 = vmatprep.subr.mxu0 0.0
  %350 = vmatpush1.msra.mxu0 %v292
  %351 = vmatprep.subr.mxu0 0.0
  %352 = vmatpush1.msra.mxu0 %v293
  %353 = vmatprep.subr.mxu0 0.0
  %354 = vmatpush1.msra.mxu0 0.0
  %355 = vmatprep.subr.mxu0 0.0
  %356 = vmatpush1.msra.mxu0 0.0
  %357 = vmatprep.subr.mxu0 0.0
  %358 = vmatpush1.msra.mxu0 0.0
  %359 = vmatprep.subr.mxu0 0.0
  %360 = vmatpush1.msra.mxu0 0.0
  %361 = vmatprep.subr.mxu0 0.0
  %362 = vmatpush1.msra.mxu0 0.0
  %363 = vmatprep.subr.mxu0 0.0
  %364 = vmatpush1.msra.mxu0 0.0
  %365 = vmatprep.subr.mxu0 0.0
  %366 = vmatpush1.msra.mxu0 0.0
  %367 = vmatprep.subr.mxu0 0.0
  %368 = vmatpush1.msra.mxu0 0.0
  %369 = vmatprep.subr.mxu0 0.0
  %370 = vmatpush1.msra.mxu0 0.0
  %371 = vmatprep.subr.mxu0 0.0
  %372 = vmatpush1.msra.mxu0 0.0
  %373 = vmatprep.subr.mxu0 0.0
  %374 = vmatpush1.msra.mxu0 0.0
  %375 = vmatprep.subr.mxu0 0.0
  %376 = vmatpush1.msra.mxu0 0.0
  %377 = vmatprep.subr.mxu0 0.0
  %378 = vmatpush1.msra.mxu0 0.0
  %379 = vmatprep.subr.mxu0 0.0
  %380 = vmatpush1.msra.mxu0 0.0
  %381 = vmatprep.subr.mxu0 0.0
  %382 = vmatpush1.msra.mxu0 0.0
  %383 = vmatprep.subr.mxu0 0.0
  %384 = vmatpush1.msra.mxu0 0.0
  %385 = vmatprep.subr.mxu0 0.0
  %386 = vmatpush1.msra.mxu0 0.0
  %387 = vmatprep.subr.mxu0 0.0
  %388 = vmatpush1.msra.mxu0 0.0
  %389 = vmatprep.subr.mxu0 0.0
  %390 = vmatpush1.msra.mxu0 0.0
  %391 = vmatprep.subr.mxu0 0.0
  %392 = vmatpush1.msra.mxu0 0.0
  %393 = vmatprep.subr.mxu0 0.0
  %394 = vmatpush1.msra.mxu0 0.0
  %395 = vmatprep.subr.mxu0 0.0
  %396 = vmatpush1.msra.mxu0 0.0
  %397 = vmatprep.subr.mxu0 0.0
  %398 = vmatpush1.msra.mxu0 0.0
  %399 = vmatprep.subr.mxu0 0.0
  %400 = vmatpush1.msra.mxu0 0.0
  %401 = vmatprep.subr.mxu0 0.0
  %402 = vmatpush1.msra.mxu0 0.0
  %403 = vmatprep.subr.mxu0 0.0
  %404 = vmatpush1.msra.mxu0 0.0
  %405 = vmatprep.subr.mxu0 0.0
  %406 = vmatpush1.msra.mxu0 0.0
  %407 = vmatprep.subr.mxu0 0.0
  %408 = vmatpush1.msra.mxu0 0.0
  %409 = vmatprep.subr.mxu0 0.0
  %410 = vmatpush1.msra.mxu0 0.0
  %411 = vmatprep.subr.mxu0 0.0
  %412 = vmatpush1.msra.mxu0 0.0
  %413 = vmatprep.mubr.f32.mxu0 0.0
  %414 = vmatmul.mubr.f32.gmra.mrb[0].mxu0 %v302
  %v415 = vpop.f32.mrb[0].mxu0
  %v416 = vadd.f32 %v299, %v415
  %v417 = vpop.f32.mrb[0].mxu0
  %418 = vmatprep.mubr.f32.mxu0 0.0
  %419 = vmatmul.mubr.f32.gmra.mrb[0].mxu0 %v305
  %v420 = vpop.f32.mrb[0].mxu0
  %v421 = vadd.f32 %v299, %v420
  %v422 = vpop.f32.mrb[0].mxu0
  %423 = vmatprep.mubr.f32.mxu0 0.0
  %424 = vmatmul.mubr.f32.gmra.mrb[0].mxu0 %v308
  %v425 = vpop.f32.mrb[0].mxu0
  %v426 = vadd.f32 %v299, %v425
  %v427 = vpop.f32.mrb[0].mxu0
  %428 = vmatprep.mubr.f32.mxu0 0.0
  %429 = vmatmul.mubr.f32.gmra.mrb[0].mxu0 %v311
  %v430 = vpop.f32.mrb[0].mxu0
  %v431 = vadd.f32 %v299, %v430
  %v432 = vpop.f32.mrb[0].mxu0
  %433 = vmatprep.mubr.f32.mxu0 0.0
  %434 = vmatmul.mubr.f32.gmra.mrb[0].mxu0 %v314
  %v435 = vpop.f32.mrb[0].mxu0
  %v436 = vadd.f32 %v299, %v435
  %v437 = vpop.f32.mrb[0].mxu0
  %438 = vmatprep.mubr.f32.mxu0 0.0
  %439 = vmatmul.mubr.f32.gmra.mrb[0].mxu0 %v317
  %v440 = vpop.f32.mrb[0].mxu0
  %v441 = vadd.f32 %v299, %v440
  %v442 = vpop.f32.mrb[0].mxu0
  %443 = vmatprep.mubr.f32.mxu0 0.0
  %444 = vmatmul.mubr.f32.gmra.mrb[0].mxu0 %v320
  %v445 = vpop.f32.mrb[0].mxu0
  %v446 = vadd.f32 %v299, %v445
  %v447 = vpop.f32.mrb[0].mxu0
  %448 = vmatprep.mubr.f32.mxu0 0.0
  %449 = vmatmul.mubr.f32.gmra.mrb[0].mxu0 %v323
  %v450 = vpop.f32.mrb[0].mxu0
  %v451 = vadd.f32 %v299, %v450
  %v452 = vpop.f32.mrb[0].mxu0
  %453 = vmatprep.mubr.f32.mxu0 0.0
  %454 = vmatmul.mubr.f32.gmra.mrb[0].mxu0 %v326
  %v455 = vpop.f32.mrb[0].mxu0
  %v456 = vadd.f32 %v299, %v455
  %v457 = vpop.f32.mrb[0].mxu0
  %458 = vmatprep.mubr.f32.mxu0 0.0
  %459 = vmatmul.mubr.f32.gmra.mrb[0].mxu0 %v329
  %v460 = vpop.f32.mrb[0].mxu0
  %v461 = vadd.f32 %v299, %v460
  %v462 = vpop.f32.mrb[0].mxu0
  %463 = vmatprep.mubr.f32.mxu0 0.0
  %464 = vmatmul.mubr.f32.gmra.mrb[0].mxu0 %v332
  %v465 = vpop.f32.mrb[0].mxu0
  %v466 = vadd.f32 %v299, %v465
  %v467 = vpop.f32.mrb[0].mxu0
  %468 = vmatprep.mubr.f32.mxu0 0.0
  %469 = vmatmul.mubr.f32.gmra.mrb[0].mxu0 %v335
  %v470 = vpop.f32.mrb[0].mxu0
  %v471 = vadd.f32 %v299, %v470
  %v472 = vpop.f32.mrb[0].mxu0
  %473 = vmatprep.mubr.f32.mxu0 0.0
  %474 = vmatmul.mubr.f32.gmra.mrb[0].mxu0 %v338
  %v475 = vpop.f32.mrb[0].mxu0
  %v476 = vadd.f32 %v299, %v475
  %v477 = vpop.f32.mrb[0].mxu0
  %478 = vmatprep.mubr.f32.mxu0 0.0
  %479 = vmatmul.mubr.f32.gmra.mrb[0].mxu0 %v341
  %v480 = vpop.f32.mrb[0].mxu0
  %v481 = vadd.f32 %v299, %v480
  %v482 = vpop.f32.mrb[0].mxu0
  %483 = vmatprep.mubr.f32.mxu0 0.0
  %484 = vmatmul.mubr.f32.gmra.mrb[0].mxu0 %v344
  %v485 = vpop.f32.mrb[0].mxu0
  %v486 = vadd.f32 %v299, %v485
  %v487 = vpop.f32.mrb[0].mxu0
  %488 = vmatprep.mubr.f32.mxu0 0.0
  %489 = vmatmul.mubr.f32.gmra.mrb[0].mxu0 %v347
  %v490 = vpop.f32.mrb[0].mxu0
  %v491 = vadd.f32 %v299, %v490
  %v492 = vpop.f32.mrb[0].mxu0
  %493 = vdwg.mxu0
  %vm494 = vcmask 392192
  %495 = vst.msk [vmem:[%s5] sm:$0xff] %vm494, %v416
  %496 = vst.msk [vmem:[%s5 + $0x8] sm:$0xff] %vm494, %v421
  %497 = vst.msk [vmem:[%s5 + $0x10] sm:$0xff] %vm494, %v426
  %498 = vst.msk [vmem:[%s5 + $0x18] sm:$0xff] %vm494, %v431
  %499 = vst.msk [vmem:[%s5 + $0x20] sm:$0xff] %vm494, %v436
  %500 = vst.msk [vmem:[%s5 + $0x28] sm:$0xff] %vm494, %v441
  %501 = vst.msk [vmem:[%s5 + $0x30] sm:$0xff] %vm494, %v446
  %502 = vst.msk [vmem:[%s5 + $0x38] sm:$0xff] %vm494, %v451
  %503 = vst.msk [vmem:[%s5 + $0x40] sm:$0xff] %vm494, %v456
  %504 = vst.msk [vmem:[%s5 + $0x48] sm:$0xff] %vm494, %v461
  %505 = vst.msk [vmem:[%s5 + $0x50] sm:$0xff] %vm494, %v466
  %506 = vst.msk [vmem:[%s5 + $0x58] sm:$0xff] %vm494, %v471
  %507 = vst.msk [vmem:[%s5 + $0x60] sm:$0xff] %vm494, %v476
  %508 = vst.msk [vmem:[%s5 + $0x68] sm:$0xff] %vm494, %v481
  %509 = vst.msk [vmem:[%s5 + $0x70] sm:$0xff] %vm494, %v486
  %510 = vst.msk [vmem:[%s5 + $0x78] sm:$0xff] %vm494, %v491
  // Predicated region
  $region22: #{_lambda_.22} parent=0 // pred_check
    _
  $region23: #{_lambda_.22} parent=0 // pred_check_branch
    %512 = sbr.rel (0) target = $region25
  $region24: #{_lambda_.22} parent=0 // pred_region
    _
  $region25: #{_lambda_.22} parent=0 // pred_fallthru
    _
  // Predicated region
  $region26: #{_lambda_.22} parent=0 // pred_check
    _
  $region27: #{_lambda_.22} parent=0 // pred_check_branch
    %514 = sbr.rel (0) target = $region29
  $region28: #{_lambda_.22} parent=0 // pred_region
    _
  $region29: #{_lambda_.22} parent=0 // pred_fallthru
    _

// kernel: _lambda_.24
$region0: #{_lambda_.24}
  #allocation0 [shape = 'u32[]', space=smem, size = 0x4, offset = 0x4, fixed_abs, tag = 'smem constant byte address 0x4 - core index']
  #allocation1 [shape = 'u32[144,128]{1,0:T(1,128)}', space=vmem, size = 0x12000, scoped, tag = 'internal scratch']
  %s0 = inlined_call_operand.vmem [shape: f32[128,16], index: 0, kind: input, shape index: {}]
  %s1 = inlined_call_operand.vmem [shape: f32[16,16], index: 1, kind: input, shape index: {}]
  %s2 = inlined_call_operand.vmem [shape: f32[1,16], index: 2, kind: input, shape index: {}]
  %s3 = inlined_call_operand.vmem [shape: f32[128,16], index: 3, kind: input, shape index: {}]
  %s4 = inlined_call_operand.vmem [shape: f32[128,16], index: 4, kind: output, shape index: {}]
  %s5 = sld [smem:[#allocation0]]
  $region26: #{_lambda_.24} parent=0
    _
  %s7 = ssub.s32 1, %s5
  %s8 = scalar_select 0, %s7, %s5
  // Predicated region
  $region2: #{_lambda_.24} parent=0 // pred_check
    _
  $region3: #{_lambda_.24} parent=0 // pred_check_branch
    %10 = sbr.rel (0) target = $region5
  $region4: #{_lambda_.24} parent=0 // pred_region
    _
  $region5: #{_lambda_.24} parent=0 // pred_fallthru
    _
  // Predicated region
  $region6: #{_lambda_.24} parent=0 // pred_check
    _
  $region7: #{_lambda_.24} parent=0 // pred_check_branch
    %12 = sbr.rel (0) target = $region9
  $region8: #{_lambda_.24} parent=0 // pred_region
    _
  $region9: #{_lambda_.24} parent=0 // pred_fallthru
    _
  // Predicated region
  $region10: #{_lambda_.24} parent=0 // pred_check
    _
  $region11: #{_lambda_.24} parent=0 // pred_check_branch
    %14 = sbr.rel (0) target = $region13
  $region12: #{_lambda_.24} parent=0 // pred_region
    _
  $region13: #{_lambda_.24} parent=0 // pred_fallthru
    _
  // Predicated region
  $region14: #{_lambda_.24} parent=0 // pred_check
    _
  $region15: #{_lambda_.24} parent=0 // pred_check_branch
    %16 = sbr.rel (0) target = $region17
  $region16: #{_lambda_.24} parent=0 // pred_region
    _
  $region17: #{_lambda_.24} parent=0 // pred_fallthru
    _
  %v17 = vld [vmem:[%s0] sm:$0xff]
  %v18 = vld [vmem:[%s0 + $0x8] sm:$0xff]
  %v19 = vld [vmem:[%s0 + $0x10] sm:$0xff]
  %v20 = vld [vmem:[%s0 + $0x18] sm:$0xff]
  %v21 = vld [vmem:[%s0 + $0x20] sm:$0xff]
  %v22 = vld [vmem:[%s0 + $0x28] sm:$0xff]
  %v23 = vld [vmem:[%s0 + $0x30] sm:$0xff]
  %v24 = vld [vmem:[%s0 + $0x38] sm:$0xff]
  %v25 = vld [vmem:[%s0 + $0x40] sm:$0xff]
  %v26 = vld [vmem:[%s0 + $0x48] sm:$0xff]
  %v27 = vld [vmem:[%s0 + $0x50] sm:$0xff]
  %v28 = vld [vmem:[%s0 + $0x58] sm:$0xff]
  %v29 = vld [vmem:[%s0 + $0x60] sm:$0xff]
  %v30 = vld [vmem:[%s0 + $0x68] sm:$0xff]
  %v31 = vld [vmem:[%s0 + $0x70] sm:$0xff]
  %v32 = vld [vmem:[%s0 + $0x78] sm:$0xff]
  %v33 = vld [vmem:[%s1] sm:$0xff]
  %v34 = vld [vmem:[%s1 + $0x8] sm:$0xff]
  %v35 = vld [vmem:[%s2] sm:$0x1]
  %v37 = vlaneseq
  %v38 = vshrl.u32 %v37, 7
  %v39 = vsub.s32 0, %v38
  %v40 = vrot.slane %v35, %v39
  %vm42 = vcmask 130048
  %v44 = vsel %vm42, %v17, 0
  %v47 = vsel %vm42, %v18, 0
  %v50 = vsel %vm42, %v19, 0
  %v53 = vsel %vm42, %v20, 0
  %v56 = vsel %vm42, %v21, 0
  %v59 = vsel %vm42, %v22, 0
  %v62 = vsel %vm42, %v23, 0
  %v65 = vsel %vm42, %v24, 0
  %v68 = vsel %vm42, %v25, 0
  %v71 = vsel %vm42, %v26, 0
  %v74 = vsel %vm42, %v27, 0
  %v77 = vsel %vm42, %v28, 0
  %v80 = vsel %vm42, %v29, 0
  %v83 = vsel %vm42, %v30, 0
  %v86 = vsel %vm42, %v31, 0
  %v89 = vsel %vm42, %v32, 0
  %91 = vmatprep.subr.mxu0 0.0
  %92 = vmatpush1.msra.mxu0 %v33
  %93 = vmatprep.subr.mxu0 0.0
  %94 = vmatpush1.msra.mxu0 %v34
  %95 = vmatprep.subr.mxu0 0.0
  %96 = vmatpush1.msra.mxu0 0.0
  %97 = vmatprep.subr.mxu0 0.0
  %98 = vmatpush1.msra.mxu0 0.0
  %99 = vmatprep.subr.mxu0 0.0
  %100 = vmatpush1.msra.mxu0 0.0
  %101 = vmatprep.subr.mxu0 0.0
  %102 = vmatpush1.msra.mxu0 0.0
  %103 = vmatprep.subr.mxu0 0.0
  %104 = vmatpush1.msra.mxu0 0.0
  %105 = vmatprep.subr.mxu0 0.0
  %106 = vmatpush1.msra.mxu0 0.0
  %107 = vmatprep.subr.mxu0 0.0
  %108 = vmatpush1.msra.mxu0 0.0
  %109 = vmatprep.subr.mxu0 0.0
  %110 = vmatpush1.msra.mxu0 0.0
  %111 = vmatprep.subr.mxu0 0.0
  %112 = vmatpush1.msra.mxu0 0.0
  %113 = vmatprep.subr.mxu0 0.0
  %114 = vmatpush1.msra.mxu0 0.0
  %115 = vmatprep.subr.mxu0 0.0
  %116 = vmatpush1.msra.mxu0 0.0
  %117 = vmatprep.subr.mxu0 0.0
  %118 = vmatpush1.msra.mxu0 0.0
  %119 = vmatprep.subr.mxu0 0.0
  %120 = vmatpush1.msra.mxu0 0.0
  %121 = vmatprep.subr.mxu0 0.0
  %122 = vmatpush1.msra.mxu0 0.0
  %123 = vmatprep.subr.mxu0 0.0
  %124 = vmatpush1.msra.mxu0 0.0
  %125 = vmatprep.subr.mxu0 0.0
  %126 = vmatpush1.msra.mxu0 0.0
  %127 = vmatprep.subr.mxu0 0.0
  %128 = vmatpush1.msra.mxu0 0.0
  %129 = vmatprep.subr.mxu0 0.0
  %130 = vmatpush1.msra.mxu0 0.0
  %131 = vmatprep.subr.mxu0 0.0
  %132 = vmatpush1.msra.mxu0 0.0
  %133 = vmatprep.subr.mxu0 0.0
  %134 = vmatpush1.msra.mxu0 0.0
  %135 = vmatprep.subr.mxu0 0.0
  %136 = vmatpush1.msra.mxu0 0.0
  %137 = vmatprep.subr.mxu0 0.0
  %138 = vmatpush1.msra.mxu0 0.0
  %139 = vmatprep.subr.mxu0 0.0
  %140 = vmatpush1.msra.mxu0 0.0
  %141 = vmatprep.subr.mxu0 0.0
  %142 = vmatpush1.msra.mxu0 0.0
  %143 = vmatprep.subr.mxu0 0.0
  %144 = vmatpush1.msra.mxu0 0.0
  %145 = vmatprep.subr.mxu0 0.0
  %146 = vmatpush1.msra.mxu0 0.0
  %147 = vmatprep.subr.mxu0 0.0
  %148 = vmatpush1.msra.mxu0 0.0
  %149 = vmatprep.subr.mxu0 0.0
  %150 = vmatpush1.msra.mxu0 0.0
  %151 = vmatprep.subr.mxu0 0.0
  %152 = vmatpush1.msra.mxu0 0.0
  %153 = vmatprep.subr.mxu0 0.0
  %154 = vmatpush1.msra.mxu0 0.0
  %155 = vmatprep.mubr.f32.mxu0 0.0
  %156 = vmatmul.mubr.f32.gmra.mrb[0].mxu0 %v44
  %v157 = vpop.f32.mrb[0].mxu0
  %v158 = vadd.f32 %v40, %v157
  %v159 = vpop.f32.mrb[0].mxu0
  %160 = vmatprep.mubr.f32.mxu0 0.0
  %161 = vmatmul.mubr.f32.gmra.mrb[0].mxu0 %v47
  %v162 = vpop.f32.mrb[0].mxu0
  %v163 = vadd.f32 %v40, %v162
  %v164 = vpop.f32.mrb[0].mxu0
  %165 = vmatprep.mubr.f32.mxu0 0.0
  %166 = vmatmul.mubr.f32.gmra.mrb[0].mxu0 %v50
  %v167 = vpop.f32.mrb[0].mxu0
  %v168 = vadd.f32 %v40, %v167
  %v169 = vpop.f32.mrb[0].mxu0
  %170 = vmatprep.mubr.f32.mxu0 0.0
  %171 = vmatmul.mubr.f32.gmra.mrb[0].mxu0 %v53
  %v172 = vpop.f32.mrb[0].mxu0
  %v173 = vadd.f32 %v40, %v172
  %v174 = vpop.f32.mrb[0].mxu0
  %175 = vmatprep.mubr.f32.mxu0 0.0
  %176 = vmatmul.mubr.f32.gmra.mrb[0].mxu0 %v56
  %v177 = vpop.f32.mrb[0].mxu0
  %v178 = vadd.f32 %v40, %v177
  %v179 = vpop.f32.mrb[0].mxu0
  %180 = vmatprep.mubr.f32.mxu0 0.0
  %181 = vmatmul.mubr.f32.gmra.mrb[0].mxu0 %v59
  %v182 = vpop.f32.mrb[0].mxu0
  %v183 = vadd.f32 %v40, %v182
  %v184 = vpop.f32.mrb[0].mxu0
  %185 = vmatprep.mubr.f32.mxu0 0.0
  %186 = vmatmul.mubr.f32.gmra.mrb[0].mxu0 %v62
  %v187 = vpop.f32.mrb[0].mxu0
  %v188 = vadd.f32 %v40, %v187
  %v189 = vpop.f32.mrb[0].mxu0
  %190 = vmatprep.mubr.f32.mxu0 0.0
  %191 = vmatmul.mubr.f32.gmra.mrb[0].mxu0 %v65
  %v192 = vpop.f32.mrb[0].mxu0
  %v193 = vadd.f32 %v40, %v192
  %v194 = vpop.f32.mrb[0].mxu0
  %195 = vmatprep.mubr.f32.mxu0 0.0
  %196 = vmatmul.mubr.f32.gmra.mrb[0].mxu0 %v68
  %v197 = vpop.f32.mrb[0].mxu0
  %v198 = vadd.f32 %v40, %v197
  %v199 = vpop.f32.mrb[0].mxu0
  %200 = vmatprep.mubr.f32.mxu0 0.0
  %201 = vmatmul.mubr.f32.gmra.mrb[0].mxu0 %v71
  %v202 = vpop.f32.mrb[0].mxu0
  %v203 = vadd.f32 %v40, %v202
  %v204 = vpop.f32.mrb[0].mxu0
  %205 = vmatprep.mubr.f32.mxu0 0.0
  %206 = vmatmul.mubr.f32.gmra.mrb[0].mxu0 %v74
  %v207 = vpop.f32.mrb[0].mxu0
  %v208 = vadd.f32 %v40, %v207
  %v209 = vpop.f32.mrb[0].mxu0
  %210 = vmatprep.mubr.f32.mxu0 0.0
  %211 = vmatmul.mubr.f32.gmra.mrb[0].mxu0 %v77
  %v212 = vpop.f32.mrb[0].mxu0
  %v213 = vadd.f32 %v40, %v212
  %v214 = vpop.f32.mrb[0].mxu0
  %215 = vmatprep.mubr.f32.mxu0 0.0
  %216 = vmatmul.mubr.f32.gmra.mrb[0].mxu0 %v80
  %v217 = vpop.f32.mrb[0].mxu0
  %v218 = vadd.f32 %v40, %v217
  %v219 = vpop.f32.mrb[0].mxu0
  %220 = vmatprep.mubr.f32.mxu0 0.0
  %221 = vmatmul.mubr.f32.gmra.mrb[0].mxu0 %v83
  %v222 = vpop.f32.mrb[0].mxu0
  %v223 = vadd.f32 %v40, %v222
  %v224 = vpop.f32.mrb[0].mxu0
  %225 = vmatprep.mubr.f32.mxu0 0.0
  %226 = vmatmul.mubr.f32.gmra.mrb[0].mxu0 %v86
  %v227 = vpop.f32.mrb[0].mxu0
  %v228 = vadd.f32 %v40, %v227
  %v229 = vpop.f32.mrb[0].mxu0
  %230 = vmatprep.mubr.f32.mxu0 0.0
  %231 = vmatmul.mubr.f32.gmra.mrb[0].mxu0 %v89
  %v232 = vpop.f32.mrb[0].mxu0
  %v233 = vadd.f32 %v40, %v232
  %v234 = vpop.f32.mrb[0].mxu0
  %235 = vdwg.mxu0
  %v236 = vld [vmem:[%s3] sm:$0xff]
  %v237 = vld [vmem:[%s3 + $0x8] sm:$0xff]
  %v238 = vld [vmem:[%s3 + $0x10] sm:$0xff]
  %v239 = vld [vmem:[%s3 + $0x18] sm:$0xff]
  %v240 = vld [vmem:[%s3 + $0x20] sm:$0xff]
  %v241 = vld [vmem:[%s3 + $0x28] sm:$0xff]
  %v242 = vld [vmem:[%s3 + $0x30] sm:$0xff]
  %v243 = vld [vmem:[%s3 + $0x38] sm:$0xff]
  %v244 = vld [vmem:[%s3 + $0x40] sm:$0xff]
  %v245 = vld [vmem:[%s3 + $0x48] sm:$0xff]
  %v246 = vld [vmem:[%s3 + $0x50] sm:$0xff]
  %v247 = vld [vmem:[%s3 + $0x58] sm:$0xff]
  %v248 = vld [vmem:[%s3 + $0x60] sm:$0xff]
  %v249 = vld [vmem:[%s3 + $0x68] sm:$0xff]
  %v250 = vld [vmem:[%s3 + $0x70] sm:$0xff]
  %v251 = vld [vmem:[%s3 + $0x78] sm:$0xff]
  %v252 = vadd.f32 %v158, %v236
  %v253 = vadd.f32 %v163, %v237
  %v254 = vadd.f32 %v168, %v238
  %v255 = vadd.f32 %v173, %v239
  %v256 = vadd.f32 %v178, %v240
  %v257 = vadd.f32 %v183, %v241
  %v258 = vadd.f32 %v188, %v242
  %v259 = vadd.f32 %v193, %v243
  %v260 = vadd.f32 %v198, %v244
  %v261 = vadd.f32 %v203, %v245
  %v262 = vadd.f32 %v208, %v246
  %v263 = vadd.f32 %v213, %v247
  %v264 = vadd.f32 %v218, %v248
  %v265 = vadd.f32 %v223, %v249
  %v266 = vadd.f32 %v228, %v250
  %v267 = vadd.f32 %v233, %v251
  %268 = vst.msk [vmem:[%s4] sm:$0xff] %vm42, %v252
  %269 = vst.msk [vmem:[%s4 + $0x8] sm:$0xff] %vm42, %v253
  %270 = vst.msk [vmem:[%s4 + $0x10] sm:$0xff] %vm42, %v254
  %271 = vst.msk [vmem:[%s4 + $0x18] sm:$0xff] %vm42, %v255
  %272 = vst.msk [vmem:[%s4 + $0x20] sm:$0xff] %vm42, %v256
  %273 = vst.msk [vmem:[%s4 + $0x28] sm:$0xff] %vm42, %v257
  %274 = vst.msk [vmem:[%s4 + $0x30] sm:$0xff] %vm42, %v258
  %275 = vst.msk [vmem:[%s4 + $0x38] sm:$0xff] %vm42, %v259
  %276 = vst.msk [vmem:[%s4 + $0x40] sm:$0xff] %vm42, %v260
  %277 = vst.msk [vmem:[%s4 + $0x48] sm:$0xff] %vm42, %v261
  %278 = vst.msk [vmem:[%s4 + $0x50] sm:$0xff] %vm42, %v262
  %279 = vst.msk [vmem:[%s4 + $0x58] sm:$0xff] %vm42, %v263
  %280 = vst.msk [vmem:[%s4 + $0x60] sm:$0xff] %vm42, %v264
  %281 = vst.msk [vmem:[%s4 + $0x68] sm:$0xff] %vm42, %v265
  %282 = vst.msk [vmem:[%s4 + $0x70] sm:$0xff] %vm42, %v266
  %283 = vst.msk [vmem:[%s4 + $0x78] sm:$0xff] %vm42, %v267
  // Predicated region
  $region18: #{_lambda_.24} parent=0 // pred_check
    _
  $region19: #{_lambda_.24} parent=0 // pred_check_branch
    %285 = sbr.rel (0) target = $region21
  $region20: #{_lambda_.24} parent=0 // pred_region
    _
  $region21: #{_lambda_.24} parent=0 // pred_fallthru
    _
  // Predicated region
  $region22: #{_lambda_.24} parent=0 // pred_check
    _
  $region23: #{_lambda_.24} parent=0 // pred_check_branch
    %287 = sbr.rel (0) target = $region25
  $region24: #{_lambda_.24} parent=0 // pred_region
    _
  $region25: #{_lambda_.24} parent=0 // pred_fallthru
    _

// kernel: _lambda_.26
$region0: #{_lambda_.26}
  #allocation0 [shape = 'u32[]', space=smem, size = 0x4, offset = 0x4, fixed_abs, tag = 'smem constant byte address 0x4 - core index']
  #allocation1 [shape = 'u32[144,128]{1,0:T(1,128)}', space=vmem, size = 0x12000, scoped, tag = 'internal scratch']
  %s0 = inlined_call_operand.vmem [shape: f32[128,32], index: 0, kind: input, shape index: {}]
  %s1 = inlined_call_operand.vmem [shape: f32[32,16], index: 1, kind: input, shape index: {}]
  %s2 = inlined_call_operand.vmem [shape: f32[1,16], index: 2, kind: input, shape index: {}]
  %s3 = inlined_call_operand.vmem [shape: f32[128,16], index: 3, kind: input, shape index: {}]
  %s4 = inlined_call_operand.vmem [shape: f32[128,16], index: 4, kind: output, shape index: {}]
  %s5 = sld [smem:[#allocation0]]
  $region26: #{_lambda_.26} parent=0
    _
  %s7 = ssub.s32 1, %s5
  %s8 = scalar_select 0, %s7, %s5
  // Predicated region
  $region2: #{_lambda_.26} parent=0 // pred_check
    _
  $region3: #{_lambda_.26} parent=0 // pred_check_branch
    %10 = sbr.rel (0) target = $region5
  $region4: #{_lambda_.26} parent=0 // pred_region
    _
  $region5: #{_lambda_.26} parent=0 // pred_fallthru
    _
  // Predicated region
  $region6: #{_lambda_.26} parent=0 // pred_check
    _
  $region7: #{_lambda_.26} parent=0 // pred_check_branch
    %12 = sbr.rel (0) target = $region9
  $region8: #{_lambda_.26} parent=0 // pred_region
    _
  $region9: #{_lambda_.26} parent=0 // pred_fallthru
    _
  // Predicated region
  $region10: #{_lambda_.26} parent=0 // pred_check
    _
  $region11: #{_lambda_.26} parent=0 // pred_check_branch
    %14 = sbr.rel (0) target = $region13
  $region12: #{_lambda_.26} parent=0 // pred_region
    _
  $region13: #{_lambda_.26} parent=0 // pred_fallthru
    _
  // Predicated region
  $region14: #{_lambda_.26} parent=0 // pred_check
    _
  $region15: #{_lambda_.26} parent=0 // pred_check_branch
    %16 = sbr.rel (0) target = $region17
  $region16: #{_lambda_.26} parent=0 // pred_region
    _
  $region17: #{_lambda_.26} parent=0 // pred_fallthru
    _
  %v17 = vld [vmem:[%s0] sm:$0xff]
  %v18 = vld [vmem:[%s0 + $0x8] sm:$0xff]
  %v19 = vld [vmem:[%s0 + $0x10] sm:$0xff]
  %v20 = vld [vmem:[%s0 + $0x18] sm:$0xff]
  %v21 = vld [vmem:[%s0 + $0x20] sm:$0xff]
  %v22 = vld [vmem:[%s0 + $0x28] sm:$0xff]
  %v23 = vld [vmem:[%s0 + $0x30] sm:$0xff]
  %v24 = vld [vmem:[%s0 + $0x38] sm:$0xff]
  %v25 = vld [vmem:[%s0 + $0x40] sm:$0xff]
  %v26 = vld [vmem:[%s0 + $0x48] sm:$0xff]
  %v27 = vld [vmem:[%s0 + $0x50] sm:$0xff]
  %v28 = vld [vmem:[%s0 + $0x58] sm:$0xff]
  %v29 = vld [vmem:[%s0 + $0x60] sm:$0xff]
  %v30 = vld [vmem:[%s0 + $0x68] sm:$0xff]
  %v31 = vld [vmem:[%s0 + $0x70] sm:$0xff]
  %v32 = vld [vmem:[%s0 + $0x78] sm:$0xff]
  %v33 = vld [vmem:[%s1] sm:$0xff]
  %v34 = vld [vmem:[%s1 + $0x8] sm:$0xff]
  %v35 = vld [vmem:[%s1 + $0x10] sm:$0xff]
  %v36 = vld [vmem:[%s1 + $0x18] sm:$0xff]
  %v37 = vld [vmem:[%s2] sm:$0x1]
  %v39 = vlaneseq
  %v40 = vshrl.u32 %v39, 7
  %v41 = vsub.s32 0, %v40
  %v42 = vrot.slane %v37, %v41
  %vm44 = vcmask 261120
  %v46 = vsel %vm44, %v17, 0
  %v49 = vsel %vm44, %v18, 0
  %v52 = vsel %vm44, %v19, 0
  %v55 = vsel %vm44, %v20, 0
  %v58 = vsel %vm44, %v21, 0
  %v61 = vsel %vm44, %v22, 0
  %v64 = vsel %vm44, %v23, 0
  %v67 = vsel %vm44, %v24, 0
  %v70 = vsel %vm44, %v25, 0
  %v73 = vsel %vm44, %v26, 0
  %v76 = vsel %vm44, %v27, 0
  %v79 = vsel %vm44, %v28, 0
  %v82 = vsel %vm44, %v29, 0
  %v85 = vsel %vm44, %v30, 0
  %v88 = vsel %vm44, %v31, 0
  %v91 = vsel %vm44, %v32, 0
  %93 = vmatprep.subr.mxu0 0.0
  %94 = vmatpush1.msra.mxu0 %v33
  %95 = vmatprep.subr.mxu0 0.0
  %96 = vmatpush1.msra.mxu0 %v34
  %97 = vmatprep.subr.mxu0 0.0
  %98 = vmatpush1.msra.mxu0 %v35
  %99 = vmatprep.subr.mxu0 0.0
  %100 = vmatpush1.msra.mxu0 %v36
  %101 = vmatprep.subr.mxu0 0.0
  %102 = vmatpush1.msra.mxu0 0.0
  %103 = vmatprep.subr.mxu0 0.0
  %104 = vmatpush1.msra.mxu0 0.0
  %105 = vmatprep.subr.mxu0 0.0
  %106 = vmatpush1.msra.mxu0 0.0
  %107 = vmatprep.subr.mxu0 0.0
  %108 = vmatpush1.msra.mxu0 0.0
  %109 = vmatprep.subr.mxu0 0.0
  %110 = vmatpush1.msra.mxu0 0.0
  %111 = vmatprep.subr.mxu0 0.0
  %112 = vmatpush1.msra.mxu0 0.0
  %113 = vmatprep.subr.mxu0 0.0
  %114 = vmatpush1.msra.mxu0 0.0
  %115 = vmatprep.subr.mxu0 0.0
  %116 = vmatpush1.msra.mxu0 0.0
  %117 = vmatprep.subr.mxu0 0.0
  %118 = vmatpush1.msra.mxu0 0.0
  %119 = vmatprep.subr.mxu0 0.0
  %120 = vmatpush1.msra.mxu0 0.0
  %121 = vmatprep.subr.mxu0 0.0
  %122 = vmatpush1.msra.mxu0 0.0
  %123 = vmatprep.subr.mxu0 0.0
  %124 = vmatpush1.msra.mxu0 0.0
  %125 = vmatprep.subr.mxu0 0.0
  %126 = vmatpush1.msra.mxu0 0.0
  %127 = vmatprep.subr.mxu0 0.0
  %128 = vmatpush1.msra.mxu0 0.0
  %129 = vmatprep.subr.mxu0 0.0
  %130 = vmatpush1.msra.mxu0 0.0
  %131 = vmatprep.subr.mxu0 0.0
  %132 = vmatpush1.msra.mxu0 0.0
  %133 = vmatprep.subr.mxu0 0.0
  %134 = vmatpush1.msra.mxu0 0.0
  %135 = vmatprep.subr.mxu0 0.0
  %136 = vmatpush1.msra.mxu0 0.0
  %137 = vmatprep.subr.mxu0 0.0
  %138 = vmatpush1.msra.mxu0 0.0
  %139 = vmatprep.subr.mxu0 0.0
  %140 = vmatpush1.msra.mxu0 0.0
  %141 = vmatprep.subr.mxu0 0.0
  %142 = vmatpush1.msra.mxu0 0.0
  %143 = vmatprep.subr.mxu0 0.0
  %144 = vmatpush1.msra.mxu0 0.0
  %145 = vmatprep.subr.mxu0 0.0
  %146 = vmatpush1.msra.mxu0 0.0
  %147 = vmatprep.subr.mxu0 0.0
  %148 = vmatpush1.msra.mxu0 0.0
  %149 = vmatprep.subr.mxu0 0.0
  %150 = vmatpush1.msra.mxu0 0.0
  %151 = vmatprep.subr.mxu0 0.0
  %152 = vmatpush1.msra.mxu0 0.0
  %153 = vmatprep.subr.mxu0 0.0
  %154 = vmatpush1.msra.mxu0 0.0
  %155 = vmatprep.subr.mxu0 0.0
  %156 = vmatpush1.msra.mxu0 0.0
  %157 = vmatprep.mubr.f32.mxu0 0.0
  %158 = vmatmul.mubr.f32.gmra.mrb[0].mxu0 %v46
  %v159 = vpop.f32.mrb[0].mxu0
  %v160 = vadd.f32 %v42, %v159
  %v161 = vpop.f32.mrb[0].mxu0
  %162 = vmatprep.mubr.f32.mxu0 0.0
  %163 = vmatmul.mubr.f32.gmra.mrb[0].mxu0 %v49
  %v164 = vpop.f32.mrb[0].mxu0
  %v165 = vadd.f32 %v42, %v164
  %v166 = vpop.f32.mrb[0].mxu0
  %167 = vmatprep.mubr.f32.mxu0 0.0
  %168 = vmatmul.mubr.f32.gmra.mrb[0].mxu0 %v52
  %v169 = vpop.f32.mrb[0].mxu0
  %v170 = vadd.f32 %v42, %v169
  %v171 = vpop.f32.mrb[0].mxu0
  %172 = vmatprep.mubr.f32.mxu0 0.0
  %173 = vmatmul.mubr.f32.gmra.mrb[0].mxu0 %v55
  %v174 = vpop.f32.mrb[0].mxu0
  %v175 = vadd.f32 %v42, %v174
  %v176 = vpop.f32.mrb[0].mxu0
  %177 = vmatprep.mubr.f32.mxu0 0.0
  %178 = vmatmul.mubr.f32.gmra.mrb[0].mxu0 %v58
  %v179 = vpop.f32.mrb[0].mxu0
  %v180 = vadd.f32 %v42, %v179
  %v181 = vpop.f32.mrb[0].mxu0
  %182 = vmatprep.mubr.f32.mxu0 0.0
  %183 = vmatmul.mubr.f32.gmra.mrb[0].mxu0 %v61
  %v184 = vpop.f32.mrb[0].mxu0
  %v185 = vadd.f32 %v42, %v184
  %v186 = vpop.f32.mrb[0].mxu0
  %187 = vmatprep.mubr.f32.mxu0 0.0
  %188 = vmatmul.mubr.f32.gmra.mrb[0].mxu0 %v64
  %v189 = vpop.f32.mrb[0].mxu0
  %v190 = vadd.f32 %v42, %v189
  %v191 = vpop.f32.mrb[0].mxu0
  %192 = vmatprep.mubr.f32.mxu0 0.0
  %193 = vmatmul.mubr.f32.gmra.mrb[0].mxu0 %v67
  %v194 = vpop.f32.mrb[0].mxu0
  %v195 = vadd.f32 %v42, %v194
  %v196 = vpop.f32.mrb[0].mxu0
  %197 = vmatprep.mubr.f32.mxu0 0.0
  %198 = vmatmul.mubr.f32.gmra.mrb[0].mxu0 %v70
  %v199 = vpop.f32.mrb[0].mxu0
  %v200 = vadd.f32 %v42, %v199
  %v201 = vpop.f32.mrb[0].mxu0
  %202 = vmatprep.mubr.f32.mxu0 0.0
  %203 = vmatmul.mubr.f32.gmra.mrb[0].mxu0 %v73
  %v204 = vpop.f32.mrb[0].mxu0
  %v205 = vadd.f32 %v42, %v204
  %v206 = vpop.f32.mrb[0].mxu0
  %207 = vmatprep.mubr.f32.mxu0 0.0
  %208 = vmatmul.mubr.f32.gmra.mrb[0].mxu0 %v76
  %v209 = vpop.f32.mrb[0].mxu0
  %v210 = vadd.f32 %v42, %v209
  %v211 = vpop.f32.mrb[0].mxu0
  %212 = vmatprep.mubr.f32.mxu0 0.0
  %213 = vmatmul.mubr.f32.gmra.mrb[0].mxu0 %v79
  %v214 = vpop.f32.mrb[0].mxu0
  %v215 = vadd.f32 %v42, %v214
  %v216 = vpop.f32.mrb[0].mxu0
  %217 = vmatprep.mubr.f32.mxu0 0.0
  %218 = vmatmul.mubr.f32.gmra.mrb[0].mxu0 %v82
  %v219 = vpop.f32.mrb[0].mxu0
  %v220 = vadd.f32 %v42, %v219
  %v221 = vpop.f32.mrb[0].mxu0
  %222 = vmatprep.mubr.f32.mxu0 0.0
  %223 = vmatmul.mubr.f32.gmra.mrb[0].mxu0 %v85
  %v224 = vpop.f32.mrb[0].mxu0
  %v225 = vadd.f32 %v42, %v224
  %v226 = vpop.f32.mrb[0].mxu0
  %227 = vmatprep.mubr.f32.mxu0 0.0
  %228 = vmatmul.mubr.f32.gmra.mrb[0].mxu0 %v88
  %v229 = vpop.f32.mrb[0].mxu0
  %v230 = vadd.f32 %v42, %v229
  %v231 = vpop.f32.mrb[0].mxu0
  %232 = vmatprep.mubr.f32.mxu0 0.0
  %233 = vmatmul.mubr.f32.gmra.mrb[0].mxu0 %v91
  %v234 = vpop.f32.mrb[0].mxu0
  %v235 = vadd.f32 %v42, %v234
  %v236 = vpop.f32.mrb[0].mxu0
  %237 = vdwg.mxu0
  %v238 = vld [vmem:[%s3] sm:$0xff]
  %v239 = vld [vmem:[%s3 + $0x8] sm:$0xff]
  %v240 = vld [vmem:[%s3 + $0x10] sm:$0xff]
  %v241 = vld [vmem:[%s3 + $0x18] sm:$0xff]
  %v242 = vld [vmem:[%s3 + $0x20] sm:$0xff]
  %v243 = vld [vmem:[%s3 + $0x28] sm:$0xff]
  %v244 = vld [vmem:[%s3 + $0x30] sm:$0xff]
  %v245 = vld [vmem:[%s3 + $0x38] sm:$0xff]
  %v246 = vld [vmem:[%s3 + $0x40] sm:$0xff]
  %v247 = vld [vmem:[%s3 + $0x48] sm:$0xff]
  %v248 = vld [vmem:[%s3 + $0x50] sm:$0xff]
  %v249 = vld [vmem:[%s3 + $0x58] sm:$0xff]
  %v250 = vld [vmem:[%s3 + $0x60] sm:$0xff]
  %v251 = vld [vmem:[%s3 + $0x68] sm:$0xff]
  %v252 = vld [vmem:[%s3 + $0x70] sm:$0xff]
  %v253 = vld [vmem:[%s3 + $0x78] sm:$0xff]
  %v254 = vadd.f32 %v160, %v238
  %v255 = vadd.f32 %v165, %v239
  %v256 = vadd.f32 %v170, %v240
  %v257 = vadd.f32 %v175, %v241
  %v258 = vadd.f32 %v180, %v242
  %v259 = vadd.f32 %v185, %v243
  %v260 = vadd.f32 %v190, %v244
  %v261 = vadd.f32 %v195, %v245
  %v262 = vadd.f32 %v200, %v246
  %v263 = vadd.f32 %v205, %v247
  %v264 = vadd.f32 %v210, %v248
  %v265 = vadd.f32 %v215, %v249
  %v266 = vadd.f32 %v220, %v250
  %v267 = vadd.f32 %v225, %v251
  %v268 = vadd.f32 %v230, %v252
  %v269 = vadd.f32 %v235, %v253
  %vm270 = vcmask 130048
  %271 = vst.msk [vmem:[%s4] sm:$0xff] %vm270, %v254
  %272 = vst.msk [vmem:[%s4 + $0x8] sm:$0xff] %vm270, %v255
  %273 = vst.msk [vmem:[%s4 + $0x10] sm:$0xff] %vm270, %v256
  %274 = vst.msk [vmem:[%s4 + $0x18] sm:$0xff] %vm270, %v257
  %275 = vst.msk [vmem:[%s4 + $0x20] sm:$0xff] %vm270, %v258
  %276 = vst.msk [vmem:[%s4 + $0x28] sm:$0xff] %vm270, %v259
  %277 = vst.msk [vmem:[%s4 + $0x30] sm:$0xff] %vm270, %v260
  %278 = vst.msk [vmem:[%s4 + $0x38] sm:$0xff] %vm270, %v261
  %279 = vst.msk [vmem:[%s4 + $0x40] sm:$0xff] %vm270, %v262
  %280 = vst.msk [vmem:[%s4 + $0x48] sm:$0xff] %vm270, %v263
  %281 = vst.msk [vmem:[%s4 + $0x50] sm:$0xff] %vm270, %v264
  %282 = vst.msk [vmem:[%s4 + $0x58] sm:$0xff] %vm270, %v265
  %283 = vst.msk [vmem:[%s4 + $0x60] sm:$0xff] %vm270, %v266
  %284 = vst.msk [vmem:[%s4 + $0x68] sm:$0xff] %vm270, %v267
  %285 = vst.msk [vmem:[%s4 + $0x70] sm:$0xff] %vm270, %v268
  %286 = vst.msk [vmem:[%s4 + $0x78] sm:$0xff] %vm270, %v269
  // Predicated region
  $region18: #{_lambda_.26} parent=0 // pred_check
    _
  $region19: #{_lambda_.26} parent=0 // pred_check_branch
    %288 = sbr.rel (0) target = $region21
  $region20: #{_lambda_.26} parent=0 // pred_region
    _
  $region21: #{_lambda_.26} parent=0 // pred_fallthru
    _
  // Predicated region
  $region22: #{_lambda_.26} parent=0 // pred_check
    _
  $region23: #{_lambda_.26} parent=0 // pred_check_branch
    %290 = sbr.rel (0) target = $region25
  $region24: #{_lambda_.26} parent=0 // pred_region
    _
  $region25: #{_lambda_.26} parent=0 // pred_fallthru
    _

// kernel: _lambda_.25
$region0: #{_lambda_.25}
  #allocation0 [shape = 'u32[]', space=smem, size = 0x4, offset = 0x4, fixed_abs, tag = 'smem constant byte address 0x4 - core index']
  #allocation1 [shape = 'u32[144,128]{1,0:T(1,128)}', space=vmem, size = 0x12000, scoped, tag = 'internal scratch']
  %s0 = inlined_call_operand.vmem [shape: f32[128,16], index: 0, kind: input, shape index: {}]
  %s1 = inlined_call_operand.vmem [shape: f32[1,16], index: 1, kind: input, shape index: {}]
  %s2 = inlined_call_operand.vmem [shape: f32[1,16], index: 2, kind: input, shape index: {}]
  %s3 = inlined_call_operand.vmem [shape: f32[16,32], index: 3, kind: input, shape index: {}]
  %s4 = inlined_call_operand.vmem [shape: f32[1,32], index: 4, kind: input, shape index: {}]
  %s5 = inlined_call_operand.vmem [shape: f32[128,32], index: 5, kind: output, shape index: {}]
  %s6 = sld [smem:[#allocation0]]
  $region30: #{_lambda_.25} parent=0
    _
  %s8 = ssub.s32 1, %s6
  %s9 = scalar_select 0, %s8, %s6
  // Predicated region
  $region2: #{_lambda_.25} parent=0 // pred_check
    _
  $region3: #{_lambda_.25} parent=0 // pred_check_branch
    %11 = sbr.rel (0) target = $region5
  $region4: #{_lambda_.25} parent=0 // pred_region
    _
  $region5: #{_lambda_.25} parent=0 // pred_fallthru
    _
  // Predicated region
  $region6: #{_lambda_.25} parent=0 // pred_check
    _
  $region7: #{_lambda_.25} parent=0 // pred_check_branch
    %13 = sbr.rel (0) target = $region9
  $region8: #{_lambda_.25} parent=0 // pred_region
    _
  $region9: #{_lambda_.25} parent=0 // pred_fallthru
    _
  // Predicated region
  $region10: #{_lambda_.25} parent=0 // pred_check
    _
  $region11: #{_lambda_.25} parent=0 // pred_check_branch
    %15 = sbr.rel (0) target = $region13
  $region12: #{_lambda_.25} parent=0 // pred_region
    _
  $region13: #{_lambda_.25} parent=0 // pred_fallthru
    _
  // Predicated region
  $region14: #{_lambda_.25} parent=0 // pred_check
    _
  $region15: #{_lambda_.25} parent=0 // pred_check_branch
    %17 = sbr.rel (0) target = $region17
  $region16: #{_lambda_.25} parent=0 // pred_region
    _
  $region17: #{_lambda_.25} parent=0 // pred_fallthru
    _
  // Predicated region
  $region18: #{_lambda_.25} parent=0 // pred_check
    _
  $region19: #{_lambda_.25} parent=0 // pred_check_branch
    %19 = sbr.rel (0) target = $region21
  $region20: #{_lambda_.25} parent=0 // pred_region
    _
  $region21: #{_lambda_.25} parent=0 // pred_fallthru
    _
  %v20 = vld [vmem:[%s0] sm:$0xff]
  %v21 = vld [vmem:[%s0 + $0x8] sm:$0xff]
  %v22 = vld [vmem:[%s0 + $0x10] sm:$0xff]
  %v23 = vld [vmem:[%s0 + $0x18] sm:$0xff]
  %v24 = vld [vmem:[%s0 + $0x20] sm:$0xff]
  %v25 = vld [vmem:[%s0 + $0x28] sm:$0xff]
  %v26 = vld [vmem:[%s0 + $0x30] sm:$0xff]
  %v27 = vld [vmem:[%s0 + $0x38] sm:$0xff]
  %v28 = vld [vmem:[%s0 + $0x40] sm:$0xff]
  %v29 = vld [vmem:[%s0 + $0x48] sm:$0xff]
  %v30 = vld [vmem:[%s0 + $0x50] sm:$0xff]
  %v31 = vld [vmem:[%s0 + $0x58] sm:$0xff]
  %v32 = vld [vmem:[%s0 + $0x60] sm:$0xff]
  %v33 = vld [vmem:[%s0 + $0x68] sm:$0xff]
  %v34 = vld [vmem:[%s0 + $0x70] sm:$0xff]
  %v35 = vld [vmem:[%s0 + $0x78] sm:$0xff]
  %vm36 = vcmask 130048
  %v37 = vsel %vm36, %v20, 0.0
  %38 = vadd.xlane.f32.xlu0 %v37
  %v39 = vpop.xlane.xlu0 %38
  %v40 = vsel %vm36, %v21, 0.0
  %41 = vadd.xlane.f32.xlu0 %v40
  %v42 = vpop.xlane.xlu0 %41
  %v43 = vsel %vm36, %v22, 0.0
  %44 = vadd.xlane.f32.xlu0 %v43
  %v45 = vpop.xlane.xlu0 %44
  %v46 = vsel %vm36, %v23, 0.0
  %47 = vadd.xlane.f32.xlu0 %v46
  %v48 = vpop.xlane.xlu0 %47
  %v49 = vsel %vm36, %v24, 0.0
  %50 = vadd.xlane.f32.xlu0 %v49
  %v51 = vpop.xlane.xlu0 %50
  %v52 = vsel %vm36, %v25, 0.0
  %53 = vadd.xlane.f32.xlu0 %v52
  %v54 = vpop.xlane.xlu0 %53
  %v55 = vsel %vm36, %v26, 0.0
  %56 = vadd.xlane.f32.xlu0 %v55
  %v57 = vpop.xlane.xlu0 %56
  %v58 = vsel %vm36, %v27, 0.0
  %59 = vadd.xlane.f32.xlu0 %v58
  %v60 = vpop.xlane.xlu0 %59
  %v61 = vsel %vm36, %v28, 0.0
  %62 = vadd.xlane.f32.xlu0 %v61
  %v63 = vpop.xlane.xlu0 %62
  %v64 = vsel %vm36, %v29, 0.0
  %65 = vadd.xlane.f32.xlu0 %v64
  %v66 = vpop.xlane.xlu0 %65
  %v67 = vsel %vm36, %v30, 0.0
  %68 = vadd.xlane.f32.xlu0 %v67
  %v69 = vpop.xlane.xlu0 %68
  %v70 = vsel %vm36, %v31, 0.0
  %71 = vadd.xlane.f32.xlu0 %v70
  %v72 = vpop.xlane.xlu0 %71
  %v73 = vsel %vm36, %v32, 0.0
  %74 = vadd.xlane.f32.xlu0 %v73
  %v75 = vpop.xlane.xlu0 %74
  %v76 = vsel %vm36, %v33, 0.0
  %77 = vadd.xlane.f32.xlu0 %v76
  %v78 = vpop.xlane.xlu0 %77
  %v79 = vsel %vm36, %v34, 0.0
  %80 = vadd.xlane.f32.xlu0 %v79
  %v81 = vpop.xlane.xlu0 %80
  %v82 = vsel %vm36, %v35, 0.0
  %83 = vadd.xlane.f32.xlu0 %v82
  %v84 = vpop.xlane.xlu0 %83
  %v85 = vrcp.pop 16.0
  %v86 = vmul.f32 %v39, %v85
  %v87 = vmul.f32 %v42, %v85
  %v88 = vmul.f32 %v45, %v85
  %v89 = vmul.f32 %v48, %v85
  %v90 = vmul.f32 %v51, %v85
  %v91 = vmul.f32 %v54, %v85
  %v92 = vmul.f32 %v57, %v85
  %v93 = vmul.f32 %v60, %v85
  %v94 = vmul.f32 %v63, %v85
  %v95 = vmul.f32 %v66, %v85
  %v96 = vmul.f32 %v69, %v85
  %v97 = vmul.f32 %v72, %v85
  %v98 = vmul.f32 %v75, %v85
  %v99 = vmul.f32 %v78, %v85
  %v100 = vmul.f32 %v81, %v85
  %v101 = vmul.f32 %v84, %v85
  %v102 = vsub.f32 %v20, %v86
  %v103 = vsub.f32 %v21, %v87
  %v104 = vsub.f32 %v22, %v88
  %v105 = vsub.f32 %v23, %v89
  %v106 = vsub.f32 %v24, %v90
  %v107 = vsub.f32 %v25, %v91
  %v108 = vsub.f32 %v26, %v92
  %v109 = vsub.f32 %v27, %v93
  %v110 = vsub.f32 %v28, %v94
  %v111 = vsub.f32 %v29, %v95
  %v112 = vsub.f32 %v30, %v96
  %v113 = vsub.f32 %v31, %v97
  %v114 = vsub.f32 %v32, %v98
  %v115 = vsub.f32 %v33, %v99
  %v116 = vsub.f32 %v34, %v100
  %v117 = vsub.f32 %v35, %v101
  %v118 = vmul.f32 %v102, %v102
  %v119 = vmul.f32 %v103, %v103
  %v120 = vmul.f32 %v104, %v104
  %v121 = vmul.f32 %v105, %v105
  %v122 = vmul.f32 %v106, %v106
  %v123 = vmul.f32 %v107, %v107
  %v124 = vmul.f32 %v108, %v108
  %v125 = vmul.f32 %v109, %v109
  %v126 = vmul.f32 %v110, %v110
  %v127 = vmul.f32 %v111, %v111
  %v128 = vmul.f32 %v112, %v112
  %v129 = vmul.f32 %v113, %v113
  %v130 = vmul.f32 %v114, %v114
  %v131 = vmul.f32 %v115, %v115
  %v132 = vmul.f32 %v116, %v116
  %v133 = vmul.f32 %v117, %v117
  %v134 = vsel %vm36, %v118, 0.0
  %135 = vadd.xlane.f32.xlu0 %v134
  %v136 = vpop.xlane.xlu0 %135
  %v137 = vsel %vm36, %v119, 0.0
  %138 = vadd.xlane.f32.xlu0 %v137
  %v139 = vpop.xlane.xlu0 %138
  %v140 = vsel %vm36, %v120, 0.0
  %141 = vadd.xlane.f32.xlu0 %v140
  %v142 = vpop.xlane.xlu0 %141
  %v143 = vsel %vm36, %v121, 0.0
  %144 = vadd.xlane.f32.xlu0 %v143
  %v145 = vpop.xlane.xlu0 %144
  %v146 = vsel %vm36, %v122, 0.0
  %147 = vadd.xlane.f32.xlu0 %v146
  %v148 = vpop.xlane.xlu0 %147
  %v149 = vsel %vm36, %v123, 0.0
  %150 = vadd.xlane.f32.xlu0 %v149
  %v151 = vpop.xlane.xlu0 %150
  %v152 = vsel %vm36, %v124, 0.0
  %153 = vadd.xlane.f32.xlu0 %v152
  %v154 = vpop.xlane.xlu0 %153
  %v155 = vsel %vm36, %v125, 0.0
  %156 = vadd.xlane.f32.xlu0 %v155
  %v157 = vpop.xlane.xlu0 %156
  %v158 = vsel %vm36, %v126, 0.0
  %159 = vadd.xlane.f32.xlu0 %v158
  %v160 = vpop.xlane.xlu0 %159
  %v161 = vsel %vm36, %v127, 0.0
  %162 = vadd.xlane.f32.xlu0 %v161
  %v163 = vpop.xlane.xlu0 %162
  %v164 = vsel %vm36, %v128, 0.0
  %165 = vadd.xlane.f32.xlu0 %v164
  %v166 = vpop.xlane.xlu0 %165
  %v167 = vsel %vm36, %v129, 0.0
  %168 = vadd.xlane.f32.xlu0 %v167
  %v169 = vpop.xlane.xlu0 %168
  %v170 = vsel %vm36, %v130, 0.0
  %171 = vadd.xlane.f32.xlu0 %v170
  %v172 = vpop.xlane.xlu0 %171
  %v173 = vsel %vm36, %v131, 0.0
  %174 = vadd.xlane.f32.xlu0 %v173
  %v175 = vpop.xlane.xlu0 %174
  %v176 = vsel %vm36, %v132, 0.0
  %177 = vadd.xlane.f32.xlu0 %v176
  %v178 = vpop.xlane.xlu0 %177
  %v179 = vsel %vm36, %v133, 0.0
  %180 = vadd.xlane.f32.xlu0 %v179
  %v181 = vpop.xlane.xlu0 %180
  %v182 = vmul.f32 %v136, %v85
  %v183 = vmul.f32 %v139, %v85
  %v184 = vmul.f32 %v142, %v85
  %v185 = vmul.f32 %v145, %v85
  %v186 = vmul.f32 %v148, %v85
  %v187 = vmul.f32 %v151, %v85
  %v188 = vmul.f32 %v154, %v85
  %v189 = vmul.f32 %v157, %v85
  %v190 = vmul.f32 %v160, %v85
  %v191 = vmul.f32 %v163, %v85
  %v192 = vmul.f32 %v166, %v85
  %v193 = vmul.f32 %v169, %v85
  %v194 = vmul.f32 %v172, %v85
  %v195 = vmul.f32 %v175, %v85
  %v196 = vmul.f32 %v178, %v85
  %v197 = vmul.f32 %v181, %v85
  %v198 = vadd.f32 %v182, 1e-05
  %v199 = vadd.f32 %v183, 1e-05
  %v200 = vadd.f32 %v184, 1e-05
  %v201 = vadd.f32 %v185, 1e-05
  %v202 = vadd.f32 %v186, 1e-05
  %v203 = vadd.f32 %v187, 1e-05
  %v204 = vadd.f32 %v188, 1e-05
  %v205 = vadd.f32 %v189, 1e-05
  %v206 = vadd.f32 %v190, 1e-05
  %v207 = vadd.f32 %v191, 1e-05
  %v208 = vadd.f32 %v192, 1e-05
  %v209 = vadd.f32 %v193, 1e-05
  %v210 = vadd.f32 %v194, 1e-05
  %v211 = vadd.f32 %v195, 1e-05
  %v212 = vadd.f32 %v196, 1e-05
  %v213 = vadd.f32 %v197, 1e-05
  %v214 = vrsqrt.pop %v198
  %v215 = vrsqrt.pop %v199
  %v216 = vrsqrt.pop %v200
  %v217 = vrsqrt.pop %v201
  %v218 = vrsqrt.pop %v202
  %v219 = vrsqrt.pop %v203
  %v220 = vrsqrt.pop %v204
  %v221 = vrsqrt.pop %v205
  %v222 = vrsqrt.pop %v206
  %v223 = vrsqrt.pop %v207
  %v224 = vrsqrt.pop %v208
  %v225 = vrsqrt.pop %v209
  %v226 = vrsqrt.pop %v210
  %v227 = vrsqrt.pop %v211
  %v228 = vrsqrt.pop %v212
  %v229 = vrsqrt.pop %v213
  %v230 = vmul.f32 %v102, %v214
  %v231 = vmul.f32 %v103, %v215
  %v232 = vmul.f32 %v104, %v216
  %v233 = vmul.f32 %v105, %v217
  %v234 = vmul.f32 %v106, %v218
  %v235 = vmul.f32 %v107, %v219
  %v236 = vmul.f32 %v108, %v220
  %v237 = vmul.f32 %v109, %v221
  %v238 = vmul.f32 %v110, %v222
  %v239 = vmul.f32 %v111, %v223
  %v240 = vmul.f32 %v112, %v224
  %v241 = vmul.f32 %v113, %v225
  %v242 = vmul.f32 %v114, %v226
  %v243 = vmul.f32 %v115, %v227
  %v244 = vmul.f32 %v116, %v228
  %v245 = vmul.f32 %v117, %v229
  %v246 = vld [vmem:[%s1] sm:$0x1]
  %v248 = vlaneseq
  %v249 = vshrl.u32 %v248, 7
  %v250 = vsub.s32 0, %v249
  %v251 = vrot.slane %v246, %v250
  %v253 = vmul.f32 %v230, %v251
  %v254 = vmul.f32 %v231, %v251
  %v255 = vmul.f32 %v232, %v251
  %v256 = vmul.f32 %v233, %v251
  %v257 = vmul.f32 %v234, %v251
  %v258 = vmul.f32 %v235, %v251
  %v259 = vmul.f32 %v236, %v251
  %v260 = vmul.f32 %v237, %v251
  %v261 = vmul.f32 %v238, %v251
  %v262 = vmul.f32 %v239, %v251
  %v263 = vmul.f32 %v240, %v251
  %v264 = vmul.f32 %v241, %v251
  %v265 = vmul.f32 %v242, %v251
  %v266 = vmul.f32 %v243, %v251
  %v267 = vmul.f32 %v244, %v251
  %v268 = vmul.f32 %v245, %v251
  %v269 = vld [vmem:[%s2] sm:$0x1]
  %v271 = vlaneseq
  %v272 = vshrl.u32 %v271, 7
  %v273 = vsub.s32 0, %v272
  %v274 = vrot.slane %v269, %v273
  %v276 = vadd.f32 %v253, %v274
  %v277 = vadd.f32 %v254, %v274
  %v278 = vadd.f32 %v255, %v274
  %v279 = vadd.f32 %v256, %v274
  %v280 = vadd.f32 %v257, %v274
  %v281 = vadd.f32 %v258, %v274
  %v282 = vadd.f32 %v259, %v274
  %v283 = vadd.f32 %v260, %v274
  %v284 = vadd.f32 %v261, %v274
  %v285 = vadd.f32 %v262, %v274
  %v286 = vadd.f32 %v263, %v274
  %v287 = vadd.f32 %v264, %v274
  %v288 = vadd.f32 %v265, %v274
  %v289 = vadd.f32 %v266, %v274
  %v290 = vadd.f32 %v267, %v274
  %v291 = vadd.f32 %v268, %v274
  %v292 = vld [vmem:[%s3] sm:$0xff]
  %v293 = vld [vmem:[%s3 + $0x8] sm:$0xff]
  %v294 = vld [vmem:[%s4] sm:$0x1]
  %v296 = vlaneseq
  %v297 = vshrl.u32 %v296, 7
  %v298 = vsub.s32 0, %v297
  %v299 = vrot.slane %v294, %v298
  %v302 = vsel %vm36, %v276, 0
  %v305 = vsel %vm36, %v277, 0
  %v308 = vsel %vm36, %v278, 0
  %v311 = vsel %vm36, %v279, 0
  %v314 = vsel %vm36, %v280, 0
  %v317 = vsel %vm36, %v281, 0
  %v320 = vsel %vm36, %v282, 0
  %v323 = vsel %vm36, %v283, 0
  %v326 = vsel %vm36, %v284, 0
  %v329 = vsel %vm36, %v285, 0
  %v332 = vsel %vm36, %v286, 0
  %v335 = vsel %vm36, %v287, 0
  %v338 = vsel %vm36, %v288, 0
  %v341 = vsel %vm36, %v289, 0
  %v344 = vsel %vm36, %v290, 0
  %v347 = vsel %vm36, %v291, 0
  %349 = vmatprep.subr.mxu0 0.0
  %350 = vmatpush1.msra.mxu0 %v292
  %351 = vmatprep.subr.mxu0 0.0
  %352 = vmatpush1.msra.mxu0 %v293
  %353 = vmatprep.subr.mxu0 0.0
  %354 = vmatpush1.msra.mxu0 0.0
  %355 = vmatprep.subr.mxu0 0.0
  %356 = vmatpush1.msra.mxu0 0.0
  %357 = vmatprep.subr.mxu0 0.0
  %358 = vmatpush1.msra.mxu0 0.0
  %359 = vmatprep.subr.mxu0 0.0
  %360 = vmatpush1.msra.mxu0 0.0
  %361 = vmatprep.subr.mxu0 0.0
  %362 = vmatpush1.msra.mxu0 0.0
  %363 = vmatprep.subr.mxu0 0.0
  %364 = vmatpush1.msra.mxu0 0.0
  %365 = vmatprep.subr.mxu0 0.0
  %366 = vmatpush1.msra.mxu0 0.0
  %367 = vmatprep.subr.mxu0 0.0
  %368 = vmatpush1.msra.mxu0 0.0
  %369 = vmatprep.subr.mxu0 0.0
  %370 = vmatpush1.msra.mxu0 0.0
  %371 = vmatprep.subr.mxu0 0.0
  %372 = vmatpush1.msra.mxu0 0.0
  %373 = vmatprep.subr.mxu0 0.0
  %374 = vmatpush1.msra.mxu0 0.0
  %375 = vmatprep.subr.mxu0 0.0
  %376 = vmatpush1.msra.mxu0 0.0
  %377 = vmatprep.subr.mxu0 0.0
  %378 = vmatpush1.msra.mxu0 0.0
  %379 = vmatprep.subr.mxu0 0.0
  %380 = vmatpush1.msra.mxu0 0.0
  %381 = vmatprep.subr.mxu0 0.0
  %382 = vmatpush1.msra.mxu0 0.0
  %383 = vmatprep.subr.mxu0 0.0
  %384 = vmatpush1.msra.mxu0 0.0
  %385 = vmatprep.subr.mxu0 0.0
  %386 = vmatpush1.msra.mxu0 0.0
  %387 = vmatprep.subr.mxu0 0.0
  %388 = vmatpush1.msra.mxu0 0.0
  %389 = vmatprep.subr.mxu0 0.0
  %390 = vmatpush1.msra.mxu0 0.0
  %391 = vmatprep.subr.mxu0 0.0
  %392 = vmatpush1.msra.mxu0 0.0
  %393 = vmatprep.subr.mxu0 0.0
  %394 = vmatpush1.msra.mxu0 0.0
  %395 = vmatprep.subr.mxu0 0.0
  %396 = vmatpush1.msra.mxu0 0.0
  %397 = vmatprep.subr.mxu0 0.0
  %398 = vmatpush1.msra.mxu0 0.0
  %399 = vmatprep.subr.mxu0 0.0
  %400 = vmatpush1.msra.mxu0 0.0
  %401 = vmatprep.subr.mxu0 0.0
  %402 = vmatpush1.msra.mxu0 0.0
  %403 = vmatprep.subr.mxu0 0.0
  %404 = vmatpush1.msra.mxu0 0.0
  %405 = vmatprep.subr.mxu0 0.0
  %406 = vmatpush1.msra.mxu0 0.0
  %407 = vmatprep.subr.mxu0 0.0
  %408 = vmatpush1.msra.mxu0 0.0
  %409 = vmatprep.subr.mxu0 0.0
  %410 = vmatpush1.msra.mxu0 0.0
  %411 = vmatprep.subr.mxu0 0.0
  %412 = vmatpush1.msra.mxu0 0.0
  %413 = vmatprep.mubr.f32.mxu0 0.0
  %414 = vmatmul.mubr.f32.gmra.mrb[0].mxu0 %v302
  %v415 = vpop.f32.mrb[0].mxu0
  %v416 = vadd.f32 %v299, %v415
  %v417 = vpop.f32.mrb[0].mxu0
  %418 = vmatprep.mubr.f32.mxu0 0.0
  %419 = vmatmul.mubr.f32.gmra.mrb[0].mxu0 %v305
  %v420 = vpop.f32.mrb[0].mxu0
  %v421 = vadd.f32 %v299, %v420
  %v422 = vpop.f32.mrb[0].mxu0
  %423 = vmatprep.mubr.f32.mxu0 0.0
  %424 = vmatmul.mubr.f32.gmra.mrb[0].mxu0 %v308
  %v425 = vpop.f32.mrb[0].mxu0
  %v426 = vadd.f32 %v299, %v425
  %v427 = vpop.f32.mrb[0].mxu0
  %428 = vmatprep.mubr.f32.mxu0 0.0
  %429 = vmatmul.mubr.f32.gmra.mrb[0].mxu0 %v311
  %v430 = vpop.f32.mrb[0].mxu0
  %v431 = vadd.f32 %v299, %v430
  %v432 = vpop.f32.mrb[0].mxu0
  %433 = vmatprep.mubr.f32.mxu0 0.0
  %434 = vmatmul.mubr.f32.gmra.mrb[0].mxu0 %v314
  %v435 = vpop.f32.mrb[0].mxu0
  %v436 = vadd.f32 %v299, %v435
  %v437 = vpop.f32.mrb[0].mxu0
  %438 = vmatprep.mubr.f32.mxu0 0.0
  %439 = vmatmul.mubr.f32.gmra.mrb[0].mxu0 %v317
  %v440 = vpop.f32.mrb[0].mxu0
  %v441 = vadd.f32 %v299, %v440
  %v442 = vpop.f32.mrb[0].mxu0
  %443 = vmatprep.mubr.f32.mxu0 0.0
  %444 = vmatmul.mubr.f32.gmra.mrb[0].mxu0 %v320
  %v445 = vpop.f32.mrb[0].mxu0
  %v446 = vadd.f32 %v299, %v445
  %v447 = vpop.f32.mrb[0].mxu0
  %448 = vmatprep.mubr.f32.mxu0 0.0
  %449 = vmatmul.mubr.f32.gmra.mrb[0].mxu0 %v323
  %v450 = vpop.f32.mrb[0].mxu0
  %v451 = vadd.f32 %v299, %v450
  %v452 = vpop.f32.mrb[0].mxu0
  %453 = vmatprep.mubr.f32.mxu0 0.0
  %454 = vmatmul.mubr.f32.gmra.mrb[0].mxu0 %v326
  %v455 = vpop.f32.mrb[0].mxu0
  %v456 = vadd.f32 %v299, %v455
  %v457 = vpop.f32.mrb[0].mxu0
  %458 = vmatprep.mubr.f32.mxu0 0.0
  %459 = vmatmul.mubr.f32.gmra.mrb[0].mxu0 %v329
  %v460 = vpop.f32.mrb[0].mxu0
  %v461 = vadd.f32 %v299, %v460
  %v462 = vpop.f32.mrb[0].mxu0
  %463 = vmatprep.mubr.f32.mxu0 0.0
  %464 = vmatmul.mubr.f32.gmra.mrb[0].mxu0 %v332
  %v465 = vpop.f32.mrb[0].mxu0
  %v466 = vadd.f32 %v299, %v465
  %v467 = vpop.f32.mrb[0].mxu0
  %468 = vmatprep.mubr.f32.mxu0 0.0
  %469 = vmatmul.mubr.f32.gmra.mrb[0].mxu0 %v335
  %v470 = vpop.f32.mrb[0].mxu0
  %v471 = vadd.f32 %v299, %v470
  %v472 = vpop.f32.mrb[0].mxu0
  %473 = vmatprep.mubr.f32.mxu0 0.0
  %474 = vmatmul.mubr.f32.gmra.mrb[0].mxu0 %v338
  %v475 = vpop.f32.mrb[0].mxu0
  %v476 = vadd.f32 %v299, %v475
  %v477 = vpop.f32.mrb[0].mxu0
  %478 = vmatprep.mubr.f32.mxu0 0.0
  %479 = vmatmul.mubr.f32.gmra.mrb[0].mxu0 %v341
  %v480 = vpop.f32.mrb[0].mxu0
  %v481 = vadd.f32 %v299, %v480
  %v482 = vpop.f32.mrb[0].mxu0
  %483 = vmatprep.mubr.f32.mxu0 0.0
  %484 = vmatmul.mubr.f32.gmra.mrb[0].mxu0 %v344
  %v485 = vpop.f32.mrb[0].mxu0
  %v486 = vadd.f32 %v299, %v485
  %v487 = vpop.f32.mrb[0].mxu0
  %488 = vmatprep.mubr.f32.mxu0 0.0
  %489 = vmatmul.mubr.f32.gmra.mrb[0].mxu0 %v347
  %v490 = vpop.f32.mrb[0].mxu0
  %v491 = vadd.f32 %v299, %v490
  %v492 = vpop.f32.mrb[0].mxu0
  %493 = vdwg.mxu0
  %v494 = vmul.f32 %v416, 0.5
  %v495 = vmul.f32 %v421, 0.5
  %v496 = vmul.f32 %v426, 0.5
  %v497 = vmul.f32 %v431, 0.5
  %v498 = vmul.f32 %v436, 0.5
  %v499 = vmul.f32 %v441, 0.5
  %v500 = vmul.f32 %v446, 0.5
  %v501 = vmul.f32 %v451, 0.5
  %v502 = vmul.f32 %v456, 0.5
  %v503 = vmul.f32 %v461, 0.5
  %v504 = vmul.f32 %v466, 0.5
  %v505 = vmul.f32 %v471, 0.5
  %v506 = vmul.f32 %v476, 0.5
  %v507 = vmul.f32 %v481, 0.5
  %v508 = vmul.f32 %v486, 0.5
  %v509 = vmul.f32 %v491, 0.5
  %v510 = vmul.f32 %v416, 0.70710677
  %v511 = vmul.f32 %v421, 0.70710677
  %v512 = vmul.f32 %v426, 0.70710677
  %v513 = vmul.f32 %v431, 0.70710677
  %v514 = vmul.f32 %v436, 0.70710677
  %v515 = vmul.f32 %v441, 0.70710677
  %v516 = vmul.f32 %v446, 0.70710677
  %v517 = vmul.f32 %v451, 0.70710677
  %v518 = vmul.f32 %v456, 0.70710677
  %v519 = vmul.f32 %v461, 0.70710677
  %v520 = vmul.f32 %v466, 0.70710677
  %v521 = vmul.f32 %v471, 0.70710677
  %v522 = vmul.f32 %v476, 0.70710677
  %v523 = vmul.f32 %v481, 0.70710677
  %v524 = vmul.f32 %v486, 0.70710677
  %v525 = vmul.f32 %v491, 0.70710677
  %v526 = verf.f32.pop %v510
  %v527 = verf.f32.pop %v511
  %v528 = verf.f32.pop %v512
  %v529 = verf.f32.pop %v513
  %v530 = verf.f32.pop %v514
  %v531 = verf.f32.pop %v515
  %v532 = verf.f32.pop %v516
  %v533 = verf.f32.pop %v517
  %v534 = verf.f32.pop %v518
  %v535 = verf.f32.pop %v519
  %v536 = verf.f32.pop %v520
  %v537 = verf.f32.pop %v521
  %v538 = verf.f32.pop %v522
  %v539 = verf.f32.pop %v523
  %v540 = verf.f32.pop %v524
  %v541 = verf.f32.pop %v525
  %v542 = vadd.f32 %v526, 1.0
  %v543 = vadd.f32 %v527, 1.0
  %v544 = vadd.f32 %v528, 1.0
  %v545 = vadd.f32 %v529, 1.0
  %v546 = vadd.f32 %v530, 1.0
  %v547 = vadd.f32 %v531, 1.0
  %v548 = vadd.f32 %v532, 1.0
  %v549 = vadd.f32 %v533, 1.0
  %v550 = vadd.f32 %v534, 1.0
  %v551 = vadd.f32 %v535, 1.0
  %v552 = vadd.f32 %v536, 1.0
  %v553 = vadd.f32 %v537, 1.0
  %v554 = vadd.f32 %v538, 1.0
  %v555 = vadd.f32 %v539, 1.0
  %v556 = vadd.f32 %v540, 1.0
  %v557 = vadd.f32 %v541, 1.0
  %v558 = vmul.f32 %v494, %v542
  %v559 = vmul.f32 %v495, %v543
  %v560 = vmul.f32 %v496, %v544
  %v561 = vmul.f32 %v497, %v545
  %v562 = vmul.f32 %v498, %v546
  %v563 = vmul.f32 %v499, %v547
  %v564 = vmul.f32 %v500, %v548
  %v565 = vmul.f32 %v501, %v549
  %v566 = vmul.f32 %v502, %v550
  %v567 = vmul.f32 %v503, %v551
  %v568 = vmul.f32 %v504, %v552
  %v569 = vmul.f32 %v505, %v553
  %v570 = vmul.f32 %v506, %v554
  %v571 = vmul.f32 %v507, %v555
  %v572 = vmul.f32 %v508, %v556
  %v573 = vmul.f32 %v509, %v557
  %vm574 = vcmask 261120
  %575 = vst.msk [vmem:[%s5] sm:$0xff] %vm574, %v558
  %576 = vst.msk [vmem:[%s5 + $0x8] sm:$0xff] %vm574, %v559
  %577 = vst.msk [vmem:[%s5 + $0x10] sm:$0xff] %vm574, %v560
  %578 = vst.msk [vmem:[%s5 + $0x18] sm:$0xff] %vm574, %v561
  %579 = vst.msk [vmem:[%s5 + $0x20] sm:$0xff] %vm574, %v562
  %580 = vst.msk [vmem:[%s5 + $0x28] sm:$0xff] %vm574, %v563
  %581 = vst.msk [vmem:[%s5 + $0x30] sm:$0xff] %vm574, %v564
  %582 = vst.msk [vmem:[%s5 + $0x38] sm:$0xff] %vm574, %v565
  %583 = vst.msk [vmem:[%s5 + $0x40] sm:$0xff] %vm574, %v566
  %584 = vst.msk [vmem:[%s5 + $0x48] sm:$0xff] %vm574, %v567
  %585 = vst.msk [vmem:[%s5 + $0x50] sm:$0xff] %vm574, %v568
  %586 = vst.msk [vmem:[%s5 + $0x58] sm:$0xff] %vm574, %v569
  %587 = vst.msk [vmem:[%s5 + $0x60] sm:$0xff] %vm574, %v570
  %588 = vst.msk [vmem:[%s5 + $0x68] sm:$0xff] %vm574, %v571
  %589 = vst.msk [vmem:[%s5 + $0x70] sm:$0xff] %vm574, %v572
  %590 = vst.msk [vmem:[%s5 + $0x78] sm:$0xff] %vm574, %v573
  // Predicated region
  $region22: #{_lambda_.25} parent=0 // pred_check
    _
  $region23: #{_lambda_.25} parent=0 // pred_check_branch
    %592 = sbr.rel (0) target = $region25
  $region24: #{_lambda_.25} parent=0 // pred_region
    _
  $region25: #{_lambda_.25} parent=0 // pred_fallthru
    _
  // Predicated region
  $region26: #{_lambda_.25} parent=0 // pred_check
    _
  $region27: #{_lambda_.25} parent=0 // pred_check_branch
    %594 = sbr.rel (0) target = $region29
  $region28: #{_lambda_.25} parent=0 // pred_region
    _
  $region29: #{_lambda_.25} parent=0 // pred_fallthru
    _

// kernel: _lambda_.23
$region0: #{_lambda_.23}
  #allocation0 [shape = 'u32[]', space=smem, size = 0x4, offset = 0x4, fixed_abs, tag = 'smem constant byte address 0x4 - core index']
  #allocation1 [shape = 'u32[144,128]{1,0:T(1,128)}', space=vmem, size = 0x12000, scoped, tag = 'internal scratch']
  %s0 = inlined_call_operand.vmem [shape: f32[64,4,8], index: 0, kind: input, shape index: {}]
  %s1 = inlined_call_operand.vmem [shape: f32[64,4,8], index: 1, kind: input, shape index: {}]
  %s2 = inlined_call_operand.vmem [shape: f32[64,4,8], index: 2, kind: input, shape index: {}]
  %s3 = inlined_call_operand.vmem [shape: f32[32,4,4], index: 3, kind: input, shape index: {}]
  %s4 = inlined_call_operand.vmem [shape: f32[64,4,8], index: 4, kind: output, shape index: {}]
  %s5 = sld [smem:[#allocation0]]
  $region49: #{_lambda_.23} parent=0
    _
  %s7 = ssub.s32 1, %s5
  %s8 = scalar_select 0, %s7, %s5
  loop: start=0, step=1, limit=4
  $region2: #{_lambda_.23} parent=0 // loop_pre_header
    _
  $region3: #{_lambda_.23} parent=0 // loop_header
    %s10 = sphi 0, %s14
    %p11 = scmp.ge.s32.totalorder %s10, 4
    %s20 = sphi 0, %s22
    %s23 = sphi 0, %s20
    %s24 = sphi 0, %s23
    %s40 = sphi 0, %s24
    %s46 = sphi 0, %s48
    %s49 = sphi 0, %s46
    %s50 = sphi 0, %s49
    %s66 = sphi 0, %s50
    %s72 = sphi 0, %s74
    %s75 = sphi 0, %s72
    %s76 = sphi 0, %s75
    %s92 = sphi 0, %s76
    %s96 = sphi 0, %s96
    %s98 = sphi 0, %s96
    %s99 = sphi 0, %s98
    %s113 = sphi 0, %s99
    %s119 = sphi 0, %s121
    %s122 = sphi 0, %s119
    %s123 = sphi 0, %s122
    %s139 = sphi 0, %s123
  $region4: #{_lambda_.23} parent=0 // loop_header_branch
    %13 = sbr.rel (%p11) target = $region8
  $region5: #{_lambda_.23} parent=0 // loop_body
    %s15 = ssub.s32 %s10, 1
    %s16 = ssub.s32 %s10, 2
    %s17 = sadd.s32 %s10, 1
    %s18 = ssub.s32 %s10, %s17
    %p19 = scmp.eq.s32.totalorder %s18, 0
    %s21 = sadd.s32 %s20, 1
    %s22 = scalar_select %p19, %s20, %s21
    %p25 = pneg %p19
    %p26 = scmp.eq.s32.totalorder %s10, 1
    %p27 = por %p25, %p26
    %p28 = scmp.ne.s32.totalorder %s20, %s23
    %p29 = scmp.eq.s32.totalorder %s10, 0
    %p30 = por %p28, %p29
    %p31 = scmp.ne.s32.totalorder %s20, %s23
    %p32 = scmp.eq.s32.totalorder %s15, 1
    %p33 = por %p31, %p32
    %p34 = scmp.ne.s32.totalorder %s23, %s24
    %p35 = scmp.eq.s32.totalorder %s15, 0
    %p36 = por %p34, %p35
    %p37 = scmp.ne.s32.totalorder %s23, %s24
    %p38 = scmp.eq.s32.totalorder %s16, 1
    %p39 = por %p37, %p38
    %p41 = scmp.ne.s32.totalorder %s24, %s40
    %p42 = scmp.eq.s32.totalorder %s16, 0
    %p43 = por %p41, %p42
    %s44 = ssub.s32 %s10, %s17
    %p45 = scmp.eq.s32.totalorder %s44, 0
    %s47 = sadd.s32 %s46, 1
    %s48 = scalar_select %p45, %s46, %s47
    %p51 = pneg %p45
    %p52 = scmp.eq.s32.totalorder %s10, 1
    %p53 = por %p51, %p52
    %p54 = scmp.ne.s32.totalorder %s46, %s49
    %p55 = scmp.eq.s32.totalorder %s10, 0
    %p56 = por %p54, %p55
    %p57 = scmp.ne.s32.totalorder %s46, %s49
    %p58 = scmp.eq.s32.totalorder %s15, 1
    %p59 = por %p57, %p58
    %p60 = scmp.ne.s32.totalorder %s49, %s50
    %p61 = scmp.eq.s32.totalorder %s15, 0
    %p62 = por %p60, %p61
    %p63 = scmp.ne.s32.totalorder %s49, %s50
    %p64 = scmp.eq.s32.totalorder %s16, 1
    %p65 = por %p63, %p64
    %p67 = scmp.ne.s32.totalorder %s50, %s66
    %p68 = scmp.eq.s32.totalorder %s16, 0
    %p69 = por %p67, %p68
    %s70 = ssub.s32 %s10, %s17
    %p71 = scmp.eq.s32.totalorder %s70, 0
    %s73 = sadd.s32 %s72, 1
    %s74 = scalar_select %p71, %s72, %s73
    %p77 = pneg %p71
    %p78 = scmp.eq.s32.totalorder %s10, 1
    %p79 = por %p77, %p78
    %p80 = scmp.ne.s32.totalorder %s72, %s75
    %p81 = scmp.eq.s32.totalorder %s10, 0
    %p82 = por %p80, %p81
    %p83 = scmp.ne.s32.totalorder %s72, %s75
    %p84 = scmp.eq.s32.totalorder %s15, 1
    %p85 = por %p83, %p84
    %p86 = scmp.ne.s32.totalorder %s75, %s76
    %p87 = scmp.eq.s32.totalorder %s15, 0
    %p88 = por %p86, %p87
    %p89 = scmp.ne.s32.totalorder %s75, %s76
    %p90 = scmp.eq.s32.totalorder %s16, 1
    %p91 = por %p89, %p90
    %p93 = scmp.ne.s32.totalorder %s76, %s92
    %p94 = scmp.eq.s32.totalorder %s16, 0
    %p95 = por %p93, %p94
    %s97 = sadd.s32 %s96, 1
    %p100 = scmp.eq.s32.totalorder %s10, 1
    %p101 = scmp.ne.s32.totalorder %s96, %s98
    %p102 = scmp.eq.s32.totalorder %s10, 0
    %p103 = por %p101, %p102
    %p104 = scmp.ne.s32.totalorder %s96, %s98
    %p105 = scmp.eq.s32.totalorder %s15, 1
    %p106 = por %p104, %p105
    %p107 = scmp.ne.s32.totalorder %s98, %s99
    %p108 = scmp.eq.s32.totalorder %s15, 0
    %p109 = por %p107, %p108
    %p110 = scmp.ne.s32.totalorder %s98, %s99
    %p111 = scmp.eq.s32.totalorder %s16, 1
    %p112 = por %p110, %p111
    %p114 = scmp.ne.s32.totalorder %s99, %s113
    %p115 = scmp.eq.s32.totalorder %s16, 0
    %p116 = por %p114, %p115
    %s117 = ssub.s32 %s10, %s17
    %p118 = scmp.eq.s32.totalorder %s117, 0
    %s120 = sadd.s32 %s119, 1
    %s121 = scalar_select %p118, %s119, %s120
    %p124 = pneg %p118
    %p125 = scmp.eq.s32.totalorder %s10, 1
    %p126 = por %p124, %p125
    %p127 = scmp.ne.s32.totalorder %s119, %s122
    %p128 = scmp.eq.s32.totalorder %s10, 0
    %p129 = por %p127, %p128
    %p130 = scmp.ne.s32.totalorder %s119, %s122
    %p131 = scmp.eq.s32.totalorder %s15, 1
    %p132 = por %p130, %p131
    %p133 = scmp.ne.s32.totalorder %s122, %s123
    %p134 = scmp.eq.s32.totalorder %s15, 0
    %p135 = por %p133, %p134
    %p136 = scmp.ne.s32.totalorder %s122, %s123
    %p137 = scmp.eq.s32.totalorder %s16, 1
    %p138 = por %p136, %p137
    %p140 = scmp.ne.s32.totalorder %s123, %s139
    %p141 = scmp.eq.s32.totalorder %s16, 0
    %p142 = por %p140, %p141
    %p143 = scmp.le.s32.totalorder 1, %s10
    %p144 = scmp.lt.s32.totalorder %s10, 3
    %p145 = pnand %p143, %p144
    %p146 = pneg %p145
    // Predicated region
    $region9: #{_lambda_.23} parent=5 // pred_check
      _
    $region10: #{_lambda_.23} parent=5 // pred_check_branch
      %148 = sbr.rel (%p145) target = $region12
    $region11: #{_lambda_.23} parent=5 // pred_region
      %s149 = ssub.s32 %s10, 1
      // Predicated region
      $region13: #{_lambda_.23} parent=11 // pred_check
        %p150 = pneg %p109
      $region14: #{_lambda_.23} parent=11 // pred_check_branch
        %152 = sbr.rel (%p150) target = $region16
      $region15: #{_lambda_.23} parent=11 // pred_region
        _
      $region16: #{_lambda_.23} parent=11 // pred_fallthru
        _
    $region12: #{_lambda_.23} parent=5 // pred_fallthru
      _
    %p153 = scmp.lt.s32.totalorder %s10, 2
    // Predicated region
    $region17: #{_lambda_.23} parent=5 // pred_check
      %p154 = pneg %p153
    $region18: #{_lambda_.23} parent=5 // pred_check_branch
      %156 = sbr.rel (%p154) target = $region20
    $region19: #{_lambda_.23} parent=5 // pred_region
      // Predicated region
      $region21: #{_lambda_.23} parent=19 // pred_check
        %p157 = pneg %p30
      $region22: #{_lambda_.23} parent=19 // pred_check_branch
        %159 = sbr.rel (%p157) target = $region24
      $region23: #{_lambda_.23} parent=19 // pred_region
        %s160 = smul.u32 32, %s10
        %p161 = scmp.lt.s32.totalorder %s160, 63
        %s162 = scalar_select %p161, %s160, 63
        %s163 = smul.addr %s162, 4
        %s164 = scalar_lea.vmem %s0, %s163
        %s165 = smul.u32 32, %s10
      $region24: #{_lambda_.23} parent=19 // pred_fallthru
        _
      // Predicated region
      $region25: #{_lambda_.23} parent=19 // pred_check
        %p166 = pneg %p56
      $region26: #{_lambda_.23} parent=19 // pred_check_branch
        %168 = sbr.rel (%p166) target = $region28
      $region27: #{_lambda_.23} parent=19 // pred_region
        %s169 = smul.u32 32, %s10
        %p170 = scmp.lt.s32.totalorder %s169, 63
        %s171 = scalar_select %p170, %s169, 63
        %s172 = smul.addr %s171, 4
        %s173 = scalar_lea.vmem %s1, %s172
        %s174 = smul.u32 32, %s10
      $region28: #{_lambda_.23} parent=19 // pred_fallthru
        _
      // Predicated region
      $region29: #{_lambda_.23} parent=19 // pred_check
        %p175 = pneg %p82
      $region30: #{_lambda_.23} parent=19 // pred_check_branch
        %177 = sbr.rel (%p175) target = $region32
      $region31: #{_lambda_.23} parent=19 // pred_region
        %s178 = smul.u32 32, %s10
        %p179 = scmp.lt.s32.totalorder %s178, 63
        %s180 = scalar_select %p179, %s178, 63
        %s181 = smul.addr %s180, 4
        %s182 = scalar_lea.vmem %s2, %s181
        %s183 = smul.u32 32, %s10
      $region32: #{_lambda_.23} parent=19 // pred_fallthru
        _
    $region20: #{_lambda_.23} parent=5 // pred_fallthru
      _
    %p184 = scmp.le.s32.totalorder 1, %s10
    %p185 = scmp.lt.s32.totalorder %s10, 3
    %p186 = pnand %p184, %p185
    %p187 = pneg %p186
    // Predicated region
    $region33: #{_lambda_.23} parent=5 // pred_check
      _
    $region34: #{_lambda_.23} parent=5 // pred_check_branch
      %189 = sbr.rel (%p186) target = $region36
    $region35: #{_lambda_.23} parent=5 // pred_region
      %s190 = ssub.s32 %s10, 1
      %s191 = smul.u32 32, %s15
      %p192 = scmp.lt.s32.totalorder %s191, 63
      %s193 = scalar_select %p192, %s191, 63
      %s194 = smul.addr %s193, 4
      %s195 = scalar_lea.vmem %s0, %s194
      %p196 = pneg %p36
      %p197 = pneg %p33
      %s198 = smul.u32 32, %s15
      %p199 = scmp.lt.s32.totalorder %s198, 63
      %s200 = scalar_select %p199, %s198, 63
      %s201 = smul.addr %s200, 4
      %s202 = scalar_lea.vmem %s1, %s201
      %p203 = pneg %p62
      %p204 = pneg %p59
      %s205 = smul.u32 32, %s15
      %p206 = scmp.lt.s32.totalorder %s205, 63
      %s207 = scalar_select %p206, %s205, 63
      %s208 = smul.addr %s207, 4
      %s209 = scalar_lea.vmem %s2, %s208
      %p210 = pneg %p88
      %p211 = pneg %p85
      %p212 = pneg %p109
      %p213 = pneg %p106
      %p214 = pneg %p135
      %p215 = pneg %p132
      %s216 = smul.u32 32, %s15
      %p217 = scmp.lt.s32.totalorder %s216, 63
      %s218 = scalar_select %p217, %s216, 63
      %s219 = smul.addr %s218, 4
      %s220 = scalar_lea.vmem %s4, %s219
      %s221 = smul.u32 32, %s15
      %p222 = scmp.lt.s32.totalorder %s221, 63
      %s223 = scalar_select %p222, %s221, 63
      %s224 = smul.addr %s223, 4
      %s225 = scalar_lea.vmem %s0, %s224
      %s226 = smul.u32 32, %s15
      %s227 = smul.u32 32, %s15
      %p228 = scmp.lt.s32.totalorder %s227, 63
      %s229 = scalar_select %p228, %s227, 63
      %s230 = smul.addr %s229, 4
      %s231 = scalar_lea.vmem %s1, %s230
      %s232 = smul.u32 32, %s15
      %s233 = smul.u32 32, %s15
      %p234 = scmp.lt.s32.totalorder %s233, 63
      %s235 = scalar_select %p234, %s233, 63
      %s236 = smul.addr %s235, 4
      %s237 = scalar_lea.vmem %s2, %s236
      %s238 = smul.u32 32, %s15
      %s239 = smul.u32 32, %s15
      %p240 = scmp.lt.s32.totalorder %s239, 63
      %s241 = scalar_select %p240, %s239, 63
      %s242 = smul.addr %s241, 4
      %s243 = scalar_lea.vmem %s4, %s242
      %s244 = smul.u32 32, %s15
      %v245 = vld [vmem:[%s225] sm:$0xf]
      %v246 = vld [vmem:[%s225 + $0x4] sm:$0xf]
      %v247 = vld [vmem:[%s225 + $0x8] sm:$0xf]
      %v248 = vld [vmem:[%s225 + $0xc] sm:$0xf]
      %v249 = vld [vmem:[%s225 + $0x10] sm:$0xf]
      %v250 = vld [vmem:[%s225 + $0x14] sm:$0xf]
      %v251 = vld [vmem:[%s225 + $0x18] sm:$0xf]
      %v252 = vld [vmem:[%s225 + $0x1c] sm:$0xf]
      %v253 = vld [vmem:[%s225 + $0x20] sm:$0xf]
      %v254 = vld [vmem:[%s225 + $0x24] sm:$0xf]
      %v255 = vld [vmem:[%s225 + $0x28] sm:$0xf]
      %v256 = vld [vmem:[%s225 + $0x2c] sm:$0xf]
      %v257 = vld [vmem:[%s225 + $0x30] sm:$0xf]
      %v258 = vld [vmem:[%s225 + $0x34] sm:$0xf]
      %v259 = vld [vmem:[%s225 + $0x38] sm:$0xf]
      %v260 = vld [vmem:[%s225 + $0x3c] sm:$0xf]
      %v261 = vld [vmem:[%s225 + $0x40] sm:$0xf]
      %v262 = vld [vmem:[%s225 + $0x44] sm:$0xf]
      %v263 = vld [vmem:[%s225 + $0x48] sm:$0xf]
      %v264 = vld [vmem:[%s225 + $0x4c] sm:$0xf]
      %v265 = vld [vmem:[%s225 + $0x50] sm:$0xf]
      %v266 = vld [vmem:[%s225 + $0x54] sm:$0xf]
      %v267 = vld [vmem:[%s225 + $0x58] sm:$0xf]
      %v268 = vld [vmem:[%s225 + $0x5c] sm:$0xf]
      %v269 = vld [vmem:[%s225 + $0x60] sm:$0xf]
      %v270 = vld [vmem:[%s225 + $0x64] sm:$0xf]
      %v271 = vld [vmem:[%s225 + $0x68] sm:$0xf]
      %v272 = vld [vmem:[%s225 + $0x6c] sm:$0xf]
      %v273 = vld [vmem:[%s225 + $0x70] sm:$0xf]
      %v274 = vld [vmem:[%s225 + $0x74] sm:$0xf]
      %v275 = vld [vmem:[%s225 + $0x78] sm:$0xf]
      %v276 = vld [vmem:[%s225 + $0x7c] sm:$0xf]
      %v277 = vmul.f32 %v245, 0.35355338
      %v278 = vmul.f32 %v246, 0.35355338
      %v279 = vmul.f32 %v247, 0.35355338
      %v280 = vmul.f32 %v248, 0.35355338
      %v281 = vmul.f32 %v249, 0.35355338
      %v282 = vmul.f32 %v250, 0.35355338
      %v283 = vmul.f32 %v251, 0.35355338
      %v284 = vmul.f32 %v252, 0.35355338
      %v285 = vmul.f32 %v253, 0.35355338
      %v286 = vmul.f32 %v254, 0.35355338
      %v287 = vmul.f32 %v255, 0.35355338
      %v288 = vmul.f32 %v256, 0.35355338
      %v289 = vmul.f32 %v257, 0.35355338
      %v290 = vmul.f32 %v258, 0.35355338
      %v291 = vmul.f32 %v259, 0.35355338
      %v292 = vmul.f32 %v260, 0.35355338
      %v293 = vmul.f32 %v261, 0.35355338
      %v294 = vmul.f32 %v262, 0.35355338
      %v295 = vmul.f32 %v263, 0.35355338
      %v296 = vmul.f32 %v264, 0.35355338
      %v297 = vmul.f32 %v265, 0.35355338
      %v298 = vmul.f32 %v266, 0.35355338
      %v299 = vmul.f32 %v267, 0.35355338
      %v300 = vmul.f32 %v268, 0.35355338
      %v301 = vmul.f32 %v269, 0.35355338
      %v302 = vmul.f32 %v270, 0.35355338
      %v303 = vmul.f32 %v271, 0.35355338
      %v304 = vmul.f32 %v272, 0.35355338
      %v305 = vmul.f32 %v273, 0.35355338
      %v306 = vmul.f32 %v274, 0.35355338
      %v307 = vmul.f32 %v275, 0.35355338
      %v308 = vmul.f32 %v276, 0.35355338
      %v309 = vld [vmem:[%s231] sm:$0xf]
      %v310 = vld [vmem:[%s231 + $0x4] sm:$0xf]
      %v311 = vld [vmem:[%s231 + $0x8] sm:$0xf]
      %v312 = vld [vmem:[%s231 + $0xc] sm:$0xf]
      %v313 = vld [vmem:[%s231 + $0x10] sm:$0xf]
      %v314 = vld [vmem:[%s231 + $0x14] sm:$0xf]
      %v315 = vld [vmem:[%s231 + $0x18] sm:$0xf]
      %v316 = vld [vmem:[%s231 + $0x1c] sm:$0xf]
      %v317 = vld [vmem:[%s231 + $0x20] sm:$0xf]
      %v318 = vld [vmem:[%s231 + $0x24] sm:$0xf]
      %v319 = vld [vmem:[%s231 + $0x28] sm:$0xf]
      %v320 = vld [vmem:[%s231 + $0x2c] sm:$0xf]
      %v321 = vld [vmem:[%s231 + $0x30] sm:$0xf]
      %v322 = vld [vmem:[%s231 + $0x34] sm:$0xf]
      %v323 = vld [vmem:[%s231 + $0x38] sm:$0xf]
      %v324 = vld [vmem:[%s231 + $0x3c] sm:$0xf]
      %v325 = vld [vmem:[%s231 + $0x40] sm:$0xf]
      %v326 = vld [vmem:[%s231 + $0x44] sm:$0xf]
      %v327 = vld [vmem:[%s231 + $0x48] sm:$0xf]
      %v328 = vld [vmem:[%s231 + $0x4c] sm:$0xf]
      %v329 = vld [vmem:[%s231 + $0x50] sm:$0xf]
      %v330 = vld [vmem:[%s231 + $0x54] sm:$0xf]
      %v331 = vld [vmem:[%s231 + $0x58] sm:$0xf]
      %v332 = vld [vmem:[%s231 + $0x5c] sm:$0xf]
      %v333 = vld [vmem:[%s231 + $0x60] sm:$0xf]
      %v334 = vld [vmem:[%s231 + $0x64] sm:$0xf]
      %v335 = vld [vmem:[%s231 + $0x68] sm:$0xf]
      %v336 = vld [vmem:[%s231 + $0x6c] sm:$0xf]
      %v337 = vld [vmem:[%s231 + $0x70] sm:$0xf]
      %v338 = vld [vmem:[%s231 + $0x74] sm:$0xf]
      %v339 = vld [vmem:[%s231 + $0x78] sm:$0xf]
      %v340 = vld [vmem:[%s231 + $0x7c] sm:$0xf]
      %v341 = vld [vmem:[%s237] sm:$0xf]
      %v342 = vld [vmem:[%s237 + $0x4] sm:$0xf]
      %v343 = vld [vmem:[%s237 + $0x8] sm:$0xf]
      %v344 = vld [vmem:[%s237 + $0xc] sm:$0xf]
      %v345 = vld [vmem:[%s237 + $0x10] sm:$0xf]
      %v346 = vld [vmem:[%s237 + $0x14] sm:$0xf]
      %v347 = vld [vmem:[%s237 + $0x18] sm:$0xf]
      %v348 = vld [vmem:[%s237 + $0x1c] sm:$0xf]
      %v349 = vld [vmem:[%s237 + $0x20] sm:$0xf]
      %v350 = vld [vmem:[%s237 + $0x24] sm:$0xf]
      %v351 = vld [vmem:[%s237 + $0x28] sm:$0xf]
      %v352 = vld [vmem:[%s237 + $0x2c] sm:$0xf]
      %v353 = vld [vmem:[%s237 + $0x30] sm:$0xf]
      %v354 = vld [vmem:[%s237 + $0x34] sm:$0xf]
      %v355 = vld [vmem:[%s237 + $0x38] sm:$0xf]
      %v356 = vld [vmem:[%s237 + $0x3c] sm:$0xf]
      %v357 = vld [vmem:[%s237 + $0x40] sm:$0xf]
      %v358 = vld [vmem:[%s237 + $0x44] sm:$0xf]
      %v359 = vld [vmem:[%s237 + $0x48] sm:$0xf]
      %v360 = vld [vmem:[%s237 + $0x4c] sm:$0xf]
      %v361 = vld [vmem:[%s237 + $0x50] sm:$0xf]
      %v362 = vld [vmem:[%s237 + $0x54] sm:$0xf]
      %v363 = vld [vmem:[%s237 + $0x58] sm:$0xf]
      %v364 = vld [vmem:[%s237 + $0x5c] sm:$0xf]
      %v365 = vld [vmem:[%s237 + $0x60] sm:$0xf]
      %v366 = vld [vmem:[%s237 + $0x64] sm:$0xf]
      %v367 = vld [vmem:[%s237 + $0x68] sm:$0xf]
      %v368 = vld [vmem:[%s237 + $0x6c] sm:$0xf]
      %v369 = vld [vmem:[%s237 + $0x70] sm:$0xf]
      %v370 = vld [vmem:[%s237 + $0x74] sm:$0xf]
      %v371 = vld [vmem:[%s237 + $0x78] sm:$0xf]
      %v372 = vld [vmem:[%s237 + $0x7c] sm:$0xf]
      %v373 = vld [vmem:[%s3] sm:$0xf]
      %v374 = vld [vmem:[%s3 + $0x4] sm:$0xf]
      %v375 = vld [vmem:[%s3 + $0x8] sm:$0xf]
      %v376 = vld [vmem:[%s3 + $0xc] sm:$0xf]
      %v377 = vld [vmem:[%s3 + $0x10] sm:$0xf]
      %v378 = vld [vmem:[%s3 + $0x14] sm:$0xf]
      %v379 = vld [vmem:[%s3 + $0x18] sm:$0xf]
      %v380 = vld [vmem:[%s3 + $0x1c] sm:$0xf]
      %v381 = vld [vmem:[%s3 + $0x20] sm:$0xf]
      %v382 = vld [vmem:[%s3 + $0x24] sm:$0xf]
      %v383 = vld [vmem:[%s3 + $0x28] sm:$0xf]
      %v384 = vld [vmem:[%s3 + $0x2c] sm:$0xf]
      %v385 = vld [vmem:[%s3 + $0x30] sm:$0xf]
      %v386 = vld [vmem:[%s3 + $0x34] sm:$0xf]
      %v387 = vld [vmem:[%s3 + $0x38] sm:$0xf]
      %v388 = vld [vmem:[%s3 + $0x3c] sm:$0xf]
      %v389 = vld [vmem:[%s3 + $0x40] sm:$0xf]
      %v390 = vld [vmem:[%s3 + $0x44] sm:$0xf]
      %v391 = vld [vmem:[%s3 + $0x48] sm:$0xf]
      %v392 = vld [vmem:[%s3 + $0x4c] sm:$0xf]
      %v393 = vld [vmem:[%s3 + $0x50] sm:$0xf]
      %v394 = vld [vmem:[%s3 + $0x54] sm:$0xf]
      %v395 = vld [vmem:[%s3 + $0x58] sm:$0xf]
      %v396 = vld [vmem:[%s3 + $0x5c] sm:$0xf]
      %v397 = vld [vmem:[%s3 + $0x60] sm:$0xf]
      %v398 = vld [vmem:[%s3 + $0x64] sm:$0xf]
      %v399 = vld [vmem:[%s3 + $0x68] sm:$0xf]
      %v400 = vld [vmem:[%s3 + $0x6c] sm:$0xf]
      %v401 = vld [vmem:[%s3 + $0x70] sm:$0xf]
      %v402 = vld [vmem:[%s3 + $0x74] sm:$0xf]
      %v403 = vld [vmem:[%s3 + $0x78] sm:$0xf]
      %v404 = vld [vmem:[%s3 + $0x7c] sm:$0xf]
      %vm405 = vcmask 64512
      %v407 = vsel %vm405, %v277, 0
      %v410 = vsel %vm405, %v309, 0
      %412 = vmatprep.subr.mxu0 0.0
      %413 = vmatpush1.xpose.msra.mxu0 %v410
      %414 = vmatprep.subr.mxu0 0.0
      %415 = vmatpush1.xpose.msra.mxu0 0.0
      %416 = vmatprep.subr.mxu0 0.0
      %417 = vmatpush1.xpose.msra.mxu0 0.0
      %418 = vmatprep.subr.mxu0 0.0
      %419 = vmatpush1.xpose.msra.mxu0 0.0
      %420 = vmatprep.subr.mxu0 0.0
      %421 = vmatpush1.xpose.msra.mxu0 0.0
      %422 = vmatprep.subr.mxu0 0.0
      %423 = vmatpush1.xpose.msra.mxu0 0.0
      %424 = vmatprep.subr.mxu0 0.0
      %425 = vmatpush1.xpose.msra.mxu0 0.0
      %426 = vmatprep.subr.mxu0 0.0
      %427 = vmatpush1.xpose.msra.mxu0 0.0
      %428 = vmatprep.subr.mxu0 0.0
      %429 = vmatpush1.xpose.msra.mxu0 0.0
      %430 = vmatprep.subr.mxu0 0.0
      %431 = vmatpush1.xpose.msra.mxu0 0.0
      %432 = vmatprep.subr.mxu0 0.0
      %433 = vmatpush1.xpose.msra.mxu0 0.0
      %434 = vmatprep.subr.mxu0 0.0
      %435 = vmatpush1.xpose.msra.mxu0 0.0
      %436 = vmatprep.subr.mxu0 0.0
      %437 = vmatpush1.xpose.msra.mxu0 0.0
      %438 = vmatprep.subr.mxu0 0.0
      %439 = vmatpush1.xpose.msra.mxu0 0.0
      %440 = vmatprep.subr.mxu0 0.0
      %441 = vmatpush1.xpose.msra.mxu0 0.0
      %442 = vmatprep.subr.mxu0 0.0
      %443 = vmatpush1.xpose.msra.mxu0 0.0
      %444 = vmatprep.subr.mxu0 0.0
      %445 = vmatpush1.xpose.msra.mxu0 0.0
      %446 = vmatprep.subr.mxu0 0.0
      %447 = vmatpush1.xpose.msra.mxu0 0.0
      %448 = vmatprep.subr.mxu0 0.0
      %449 = vmatpush1.xpose.msra.mxu0 0.0
      %450 = vmatprep.subr.mxu0 0.0
      %451 = vmatpush1.xpose.msra.mxu0 0.0
      %452 = vmatprep.subr.mxu0 0.0
      %453 = vmatpush1.xpose.msra.mxu0 0.0
      %454 = vmatprep.subr.mxu0 0.0
      %455 = vmatpush1.xpose.msra.mxu0 0.0
      %456 = vmatprep.subr.mxu0 0.0
      %457 = vmatpush1.xpose.msra.mxu0 0.0
      %458 = vmatprep.subr.mxu0 0.0
      %459 = vmatpush1.xpose.msra.mxu0 0.0
      %460 = vmatprep.subr.mxu0 0.0
      %461 = vmatpush1.xpose.msra.mxu0 0.0
      %462 = vmatprep.subr.mxu0 0.0
      %463 = vmatpush1.xpose.msra.mxu0 0.0
      %464 = vmatprep.subr.mxu0 0.0
      %465 = vmatpush1.xpose.msra.mxu0 0.0
      %466 = vmatprep.subr.mxu0 0.0
      %467 = vmatpush1.xpose.msra.mxu0 0.0
      %468 = vmatprep.subr.mxu0 0.0
      %469 = vmatpush1.xpose.msra.mxu0 0.0
      %470 = vmatprep.subr.mxu0 0.0
      %471 = vmatpush1.xpose.msra.mxu0 0.0
      %472 = vmatprep.subr.mxu0 0.0
      %473 = vmatpush1.xpose.msra.mxu0 0.0
      %474 = vmatprep.subr.mxu0 0.0
      %475 = vmatpush1.xpose.msra.mxu0 0.0
      %476 = vmatprep.mubr.f32.mxu0 0.0
      %477 = vmatmul.mubr.f32.gmra.mrb[0].mxu0 %v407
      %v478 = vpop.f32.mrb[0].mxu0
      %v479 = vadd.f32 %v373, %v478
      %v480 = vpop.f32.mrb[0].mxu0
      %481 = vdwg.mxu0
      %v483 = vsel %vm405, %v278, 0
      %v486 = vsel %vm405, %v310, 0
      %488 = vmatprep.subr.mxu0 0.0
      %489 = vmatpush1.xpose.msra.mxu0 %v486
      %490 = vmatprep.subr.mxu0 0.0
      %491 = vmatpush1.xpose.msra.mxu0 0.0
      %492 = vmatprep.subr.mxu0 0.0
      %493 = vmatpush1.xpose.msra.mxu0 0.0
      %494 = vmatprep.subr.mxu0 0.0
      %495 = vmatpush1.xpose.msra.mxu0 0.0
      %496 = vmatprep.subr.mxu0 0.0
      %497 = vmatpush1.xpose.msra.mxu0 0.0
      %498 = vmatprep.subr.mxu0 0.0
      %499 = vmatpush1.xpose.msra.mxu0 0.0
      %500 = vmatprep.subr.mxu0 0.0
      %501 = vmatpush1.xpose.msra.mxu0 0.0
      %502 = vmatprep.subr.mxu0 0.0
      %503 = vmatpush1.xpose.msra.mxu0 0.0
      %504 = vmatprep.subr.mxu0 0.0
      %505 = vmatpush1.xpose.msra.mxu0 0.0
      %506 = vmatprep.subr.mxu0 0.0
      %507 = vmatpush1.xpose.msra.mxu0 0.0
      %508 = vmatprep.subr.mxu0 0.0
      %509 = vmatpush1.xpose.msra.mxu0 0.0
      %510 = vmatprep.subr.mxu0 0.0
      %511 = vmatpush1.xpose.msra.mxu0 0.0
      %512 = vmatprep.subr.mxu0 0.0
      %513 = vmatpush1.xpose.msra.mxu0 0.0
      %514 = vmatprep.subr.mxu0 0.0
      %515 = vmatpush1.xpose.msra.mxu0 0.0
      %516 = vmatprep.subr.mxu0 0.0
      %517 = vmatpush1.xpose.msra.mxu0 0.0
      %518 = vmatprep.subr.mxu0 0.0
      %519 = vmatpush1.xpose.msra.mxu0 0.0
      %520 = vmatprep.subr.mxu0 0.0
      %521 = vmatpush1.xpose.msra.mxu0 0.0
      %522 = vmatprep.subr.mxu0 0.0
      %523 = vmatpush1.xpose.msra.mxu0 0.0
      %524 = vmatprep.subr.mxu0 0.0
      %525 = vmatpush1.xpose.msra.mxu0 0.0
      %526 = vmatprep.subr.mxu0 0.0
      %527 = vmatpush1.xpose.msra.mxu0 0.0
      %528 = vmatprep.subr.mxu0 0.0
      %529 = vmatpush1.xpose.msra.mxu0 0.0
      %530 = vmatprep.subr.mxu0 0.0
      %531 = vmatpush1.xpose.msra.mxu0 0.0
      %532 = vmatprep.subr.mxu0 0.0
      %533 = vmatpush1.xpose.msra.mxu0 0.0
      %534 = vmatprep.subr.mxu0 0.0
      %535 = vmatpush1.xpose.msra.mxu0 0.0
      %536 = vmatprep.subr.mxu0 0.0
      %537 = vmatpush1.xpose.msra.mxu0 0.0
      %538 = vmatprep.subr.mxu0 0.0
      %539 = vmatpush1.xpose.msra.mxu0 0.0
      %540 = vmatprep.subr.mxu0 0.0
      %541 = vmatpush1.xpose.msra.mxu0 0.0
      %542 = vmatprep.subr.mxu0 0.0
      %543 = vmatpush1.xpose.msra.mxu0 0.0
      %544 = vmatprep.subr.mxu0 0.0
      %545 = vmatpush1.xpose.msra.mxu0 0.0
      %546 = vmatprep.subr.mxu0 0.0
      %547 = vmatpush1.xpose.msra.mxu0 0.0
      %548 = vmatprep.subr.mxu0 0.0
      %549 = vmatpush1.xpose.msra.mxu0 0.0
      %550 = vmatprep.subr.mxu0 0.0
      %551 = vmatpush1.xpose.msra.mxu0 0.0
      %552 = vmatprep.mubr.f32.mxu0 0.0
      %553 = vmatmul.mubr.f32.gmra.mrb[0].mxu0 %v483
      %v554 = vpop.f32.mrb[0].mxu0
      %v555 = vadd.f32 %v374, %v554
      %v556 = vpop.f32.mrb[0].mxu0
      %557 = vdwg.mxu0
      %v559 = vsel %vm405, %v279, 0
      %v562 = vsel %vm405, %v311, 0
      %564 = vmatprep.subr.mxu0 0.0
      %565 = vmatpush1.xpose.msra.mxu0 %v562
      %566 = vmatprep.subr.mxu0 0.0
      %567 = vmatpush1.xpose.msra.mxu0 0.0
      %568 = vmatprep.subr.mxu0 0.0
      %569 = vmatpush1.xpose.msra.mxu0 0.0
      %570 = vmatprep.subr.mxu0 0.0
      %571 = vmatpush1.xpose.msra.mxu0 0.0
      %572 = vmatprep.subr.mxu0 0.0
      %573 = vmatpush1.xpose.msra.mxu0 0.0
      %574 = vmatprep.subr.mxu0 0.0
      %575 = vmatpush1.xpose.msra.mxu0 0.0
      %576 = vmatprep.subr.mxu0 0.0
      %577 = vmatpush1.xpose.msra.mxu0 0.0
      %578 = vmatprep.subr.mxu0 0.0
      %579 = vmatpush1.xpose.msra.mxu0 0.0
      %580 = vmatprep.subr.mxu0 0.0
      %581 = vmatpush1.xpose.msra.mxu0 0.0
      %582 = vmatprep.subr.mxu0 0.0
      %583 = vmatpush1.xpose.msra.mxu0 0.0
      %584 = vmatprep.subr.mxu0 0.0
      %585 = vmatpush1.xpose.msra.mxu0 0.0
      %586 = vmatprep.subr.mxu0 0.0
      %587 = vmatpush1.xpose.msra.mxu0 0.0
      %588 = vmatprep.subr.mxu0 0.0
      %589 = vmatpush1.xpose.msra.mxu0 0.0
      %590 = vmatprep.subr.mxu0 0.0
      %591 = vmatpush1.xpose.msra.mxu0 0.0
      %592 = vmatprep.subr.mxu0 0.0
      %593 = vmatpush1.xpose.msra.mxu0 0.0
      %594 = vmatprep.subr.mxu0 0.0
      %595 = vmatpush1.xpose.msra.mxu0 0.0
      %596 = vmatprep.subr.mxu0 0.0
      %597 = vmatpush1.xpose.msra.mxu0 0.0
      %598 = vmatprep.subr.mxu0 0.0
      %599 = vmatpush1.xpose.msra.mxu0 0.0
      %600 = vmatprep.subr.mxu0 0.0
      %601 = vmatpush1.xpose.msra.mxu0 0.0
      %602 = vmatprep.subr.mxu0 0.0
      %603 = vmatpush1.xpose.msra.mxu0 0.0
      %604 = vmatprep.subr.mxu0 0.0
      %605 = vmatpush1.xpose.msra.mxu0 0.0
      %606 = vmatprep.subr.mxu0 0.0
      %607 = vmatpush1.xpose.msra.mxu0 0.0
      %608 = vmatprep.subr.mxu0 0.0
      %609 = vmatpush1.xpose.msra.mxu0 0.0
      %610 = vmatprep.subr.mxu0 0.0
      %611 = vmatpush1.xpose.msra.mxu0 0.0
      %612 = vmatprep.subr.mxu0 0.0
      %613 = vmatpush1.xpose.msra.mxu0 0.0
      %614 = vmatprep.subr.mxu0 0.0
      %615 = vmatpush1.xpose.msra.mxu0 0.0
      %616 = vmatprep.subr.mxu0 0.0
      %617 = vmatpush1.xpose.msra.mxu0 0.0
      %618 = vmatprep.subr.mxu0 0.0
      %619 = vmatpush1.xpose.msra.mxu0 0.0
      %620 = vmatprep.subr.mxu0 0.0
      %621 = vmatpush1.xpose.msra.mxu0 0.0
      %622 = vmatprep.subr.mxu0 0.0
      %623 = vmatpush1.xpose.msra.mxu0 0.0
      %624 = vmatprep.subr.mxu0 0.0
      %625 = vmatpush1.xpose.msra.mxu0 0.0
      %626 = vmatprep.subr.mxu0 0.0
      %627 = vmatpush1.xpose.msra.mxu0 0.0
      %628 = vmatprep.mubr.f32.mxu0 0.0
      %629 = vmatmul.mubr.f32.gmra.mrb[0].mxu0 %v559
      %v630 = vpop.f32.mrb[0].mxu0
      %v631 = vadd.f32 %v375, %v630
      %v632 = vpop.f32.mrb[0].mxu0
      %633 = vdwg.mxu0
      %v635 = vsel %vm405, %v280, 0
      %v638 = vsel %vm405, %v312, 0
      %640 = vmatprep.subr.mxu0 0.0
      %641 = vmatpush1.xpose.msra.mxu0 %v638
      %642 = vmatprep.subr.mxu0 0.0
      %643 = vmatpush1.xpose.msra.mxu0 0.0
      %644 = vmatprep.subr.mxu0 0.0
      %645 = vmatpush1.xpose.msra.mxu0 0.0
      %646 = vmatprep.subr.mxu0 0.0
      %647 = vmatpush1.xpose.msra.mxu0 0.0
      %648 = vmatprep.subr.mxu0 0.0
      %649 = vmatpush1.xpose.msra.mxu0 0.0
      %650 = vmatprep.subr.mxu0 0.0
      %651 = vmatpush1.xpose.msra.mxu0 0.0
      %652 = vmatprep.subr.mxu0 0.0
      %653 = vmatpush1.xpose.msra.mxu0 0.0
      %654 = vmatprep.subr.mxu0 0.0
      %655 = vmatpush1.xpose.msra.mxu0 0.0
      %656 = vmatprep.subr.mxu0 0.0
      %657 = vmatpush1.xpose.msra.mxu0 0.0
      %658 = vmatprep.subr.mxu0 0.0
      %659 = vmatpush1.xpose.msra.mxu0 0.0
      %660 = vmatprep.subr.mxu0 0.0
      %661 = vmatpush1.xpose.msra.mxu0 0.0
      %662 = vmatprep.subr.mxu0 0.0
      %663 = vmatpush1.xpose.msra.mxu0 0.0
      %664 = vmatprep.subr.mxu0 0.0
      %665 = vmatpush1.xpose.msra.mxu0 0.0
      %666 = vmatprep.subr.mxu0 0.0
      %667 = vmatpush1.xpose.msra.mxu0 0.0
      %668 = vmatprep.subr.mxu0 0.0
      %669 = vmatpush1.xpose.msra.mxu0 0.0
      %670 = vmatprep.subr.mxu0 0.0
      %671 = vmatpush1.xpose.msra.mxu0 0.0
      %672 = vmatprep.subr.mxu0 0.0
      %673 = vmatpush1.xpose.msra.mxu0 0.0
      %674 = vmatprep.subr.mxu0 0.0
      %675 = vmatpush1.xpose.msra.mxu0 0.0
      %676 = vmatprep.subr.mxu0 0.0
      %677 = vmatpush1.xpose.msra.mxu0 0.0
      %678 = vmatprep.subr.mxu0 0.0
      %679 = vmatpush1.xpose.msra.mxu0 0.0
      %680 = vmatprep.subr.mxu0 0.0
      %681 = vmatpush1.xpose.msra.mxu0 0.0
      %682 = vmatprep.subr.mxu0 0.0
      %683 = vmatpush1.xpose.msra.mxu0 0.0
      %684 = vmatprep.subr.mxu0 0.0
      %685 = vmatpush1.xpose.msra.mxu0 0.0
      %686 = vmatprep.subr.mxu0 0.0
      %687 = vmatpush1.xpose.msra.mxu0 0.0
      %688 = vmatprep.subr.mxu0 0.0
      %689 = vmatpush1.xpose.msra.mxu0 0.0
      %690 = vmatprep.subr.mxu0 0.0
      %691 = vmatpush1.xpose.msra.mxu0 0.0
      %692 = vmatprep.subr.mxu0 0.0
      %693 = vmatpush1.xpose.msra.mxu0 0.0
      %694 = vmatprep.subr.mxu0 0.0
      %695 = vmatpush1.xpose.msra.mxu0 0.0
      %696 = vmatprep.subr.mxu0 0.0
      %697 = vmatpush1.xpose.msra.mxu0 0.0
      %698 = vmatprep.subr.mxu0 0.0
      %699 = vmatpush1.xpose.msra.mxu0 0.0
      %700 = vmatprep.subr.mxu0 0.0
      %701 = vmatpush1.xpose.msra.mxu0 0.0
      %702 = vmatprep.subr.mxu0 0.0
      %703 = vmatpush1.xpose.msra.mxu0 0.0
      %704 = vmatprep.mubr.f32.mxu0 0.0
      %705 = vmatmul.mubr.f32.gmra.mrb[0].mxu0 %v635
      %v706 = vpop.f32.mrb[0].mxu0
      %v707 = vadd.f32 %v376, %v706
      %v708 = vpop.f32.mrb[0].mxu0
      %709 = vdwg.mxu0
      %v711 = vsel %vm405, %v281, 0
      %v714 = vsel %vm405, %v313, 0
      %716 = vmatprep.subr.mxu0 0.0
      %717 = vmatpush1.xpose.msra.mxu0 %v714
      %718 = vmatprep.subr.mxu0 0.0
      %719 = vmatpush1.xpose.msra.mxu0 0.0
      %720 = vmatprep.subr.mxu0 0.0
      %721 = vmatpush1.xpose.msra.mxu0 0.0
      %722 = vmatprep.subr.mxu0 0.0
      %723 = vmatpush1.xpose.msra.mxu0 0.0
      %724 = vmatprep.subr.mxu0 0.0
      %725 = vmatpush1.xpose.msra.mxu0 0.0
      %726 = vmatprep.subr.mxu0 0.0
      %727 = vmatpush1.xpose.msra.mxu0 0.0
      %728 = vmatprep.subr.mxu0 0.0
      %729 = vmatpush1.xpose.msra.mxu0 0.0
      %730 = vmatprep.subr.mxu0 0.0
      %731 = vmatpush1.xpose.msra.mxu0 0.0
      %732 = vmatprep.subr.mxu0 0.0
      %733 = vmatpush1.xpose.msra.mxu0 0.0
      %734 = vmatprep.subr.mxu0 0.0
      %735 = vmatpush1.xpose.msra.mxu0 0.0
      %736 = vmatprep.subr.mxu0 0.0
      %737 = vmatpush1.xpose.msra.mxu0 0.0
      %738 = vmatprep.subr.mxu0 0.0
      %739 = vmatpush1.xpose.msra.mxu0 0.0
      %740 = vmatprep.subr.mxu0 0.0
      %741 = vmatpush1.xpose.msra.mxu0 0.0
      %742 = vmatprep.subr.mxu0 0.0
      %743 = vmatpush1.xpose.msra.mxu0 0.0
      %744 = vmatprep.subr.mxu0 0.0
      %745 = vmatpush1.xpose.msra.mxu0 0.0
      %746 = vmatprep.subr.mxu0 0.0
      %747 = vmatpush1.xpose.msra.mxu0 0.0
      %748 = vmatprep.subr.mxu0 0.0
      %749 = vmatpush1.xpose.msra.mxu0 0.0
      %750 = vmatprep.subr.mxu0 0.0
      %751 = vmatpush1.xpose.msra.mxu0 0.0
      %752 = vmatprep.subr.mxu0 0.0
      %753 = vmatpush1.xpose.msra.mxu0 0.0
      %754 = vmatprep.subr.mxu0 0.0
      %755 = vmatpush1.xpose.msra.mxu0 0.0
      %756 = vmatprep.subr.mxu0 0.0
      %757 = vmatpush1.xpose.msra.mxu0 0.0
      %758 = vmatprep.subr.mxu0 0.0
      %759 = vmatpush1.xpose.msra.mxu0 0.0
      %760 = vmatprep.subr.mxu0 0.0
      %761 = vmatpush1.xpose.msra.mxu0 0.0
      %762 = vmatprep.subr.mxu0 0.0
      %763 = vmatpush1.xpose.msra.mxu0 0.0
      %764 = vmatprep.subr.mxu0 0.0
      %765 = vmatpush1.xpose.msra.mxu0 0.0
      %766 = vmatprep.subr.mxu0 0.0
      %767 = vmatpush1.xpose.msra.mxu0 0.0
      %768 = vmatprep.subr.mxu0 0.0
      %769 = vmatpush1.xpose.msra.mxu0 0.0
      %770 = vmatprep.subr.mxu0 0.0
      %771 = vmatpush1.xpose.msra.mxu0 0.0
      %772 = vmatprep.subr.mxu0 0.0
      %773 = vmatpush1.xpose.msra.mxu0 0.0
      %774 = vmatprep.subr.mxu0 0.0
      %775 = vmatpush1.xpose.msra.mxu0 0.0
      %776 = vmatprep.subr.mxu0 0.0
      %777 = vmatpush1.xpose.msra.mxu0 0.0
      %778 = vmatprep.subr.mxu0 0.0
      %779 = vmatpush1.xpose.msra.mxu0 0.0
      %780 = vmatprep.mubr.f32.mxu0 0.0
      %781 = vmatmul.mubr.f32.gmra.mrb[0].mxu0 %v711
      %v782 = vpop.f32.mrb[0].mxu0
      %v783 = vadd.f32 %v377, %v782
      %v784 = vpop.f32.mrb[0].mxu0
      %785 = vdwg.mxu0
      %v787 = vsel %vm405, %v282, 0
      %v790 = vsel %vm405, %v314, 0
      %792 = vmatprep.subr.mxu0 0.0
      %793 = vmatpush1.xpose.msra.mxu0 %v790
      %794 = vmatprep.subr.mxu0 0.0
      %795 = vmatpush1.xpose.msra.mxu0 0.0
      %796 = vmatprep.subr.mxu0 0.0
      %797 = vmatpush1.xpose.msra.mxu0 0.0
      %798 = vmatprep.subr.mxu0 0.0
      %799 = vmatpush1.xpose.msra.mxu0 0.0
      %800 = vmatprep.subr.mxu0 0.0
      %801 = vmatpush1.xpose.msra.mxu0 0.0
      %802 = vmatprep.subr.mxu0 0.0
      %803 = vmatpush1.xpose.msra.mxu0 0.0
      %804 = vmatprep.subr.mxu0 0.0
      %805 = vmatpush1.xpose.msra.mxu0 0.0
      %806 = vmatprep.subr.mxu0 0.0
      %807 = vmatpush1.xpose.msra.mxu0 0.0
      %808 = vmatprep.subr.mxu0 0.0
      %809 = vmatpush1.xpose.msra.mxu0 0.0
      %810 = vmatprep.subr.mxu0 0.0
      %811 = vmatpush1.xpose.msra.mxu0 0.0
      %812 = vmatprep.subr.mxu0 0.0
      %813 = vmatpush1.xpose.msra.mxu0 0.0
      %814 = vmatprep.subr.mxu0 0.0
      %815 = vmatpush1.xpose.msra.mxu0 0.0
      %816 = vmatprep.subr.mxu0 0.0
      %817 = vmatpush1.xpose.msra.mxu0 0.0
      %818 = vmatprep.subr.mxu0 0.0
      %819 = vmatpush1.xpose.msra.mxu0 0.0
      %820 = vmatprep.subr.mxu0 0.0
      %821 = vmatpush1.xpose.msra.mxu0 0.0
      %822 = vmatprep.subr.mxu0 0.0
      %823 = vmatpush1.xpose.msra.mxu0 0.0
      %824 = vmatprep.subr.mxu0 0.0
      %825 = vmatpush1.xpose.msra.mxu0 0.0
      %826 = vmatprep.subr.mxu0 0.0
      %827 = vmatpush1.xpose.msra.mxu0 0.0
      %828 = vmatprep.subr.mxu0 0.0
      %829 = vmatpush1.xpose.msra.mxu0 0.0
      %830 = vmatprep.subr.mxu0 0.0
      %831 = vmatpush1.xpose.msra.mxu0 0.0
      %832 = vmatprep.subr.mxu0 0.0
      %833 = vmatpush1.xpose.msra.mxu0 0.0
      %834 = vmatprep.subr.mxu0 0.0
      %835 = vmatpush1.xpose.msra.mxu0 0.0
      %836 = vmatprep.subr.mxu0 0.0
      %837 = vmatpush1.xpose.msra.mxu0 0.0
      %838 = vmatprep.subr.mxu0 0.0
      %839 = vmatpush1.xpose.msra.mxu0 0.0
      %840 = vmatprep.subr.mxu0 0.0
      %841 = vmatpush1.xpose.msra.mxu0 0.0
      %842 = vmatprep.subr.mxu0 0.0
      %843 = vmatpush1.xpose.msra.mxu0 0.0
      %844 = vmatprep.subr.mxu0 0.0
      %845 = vmatpush1.xpose.msra.mxu0 0.0
      %846 = vmatprep.subr.mxu0 0.0
      %847 = vmatpush1.xpose.msra.mxu0 0.0
      %848 = vmatprep.subr.mxu0 0.0
      %849 = vmatpush1.xpose.msra.mxu0 0.0
      %850 = vmatprep.subr.mxu0 0.0
      %851 = vmatpush1.xpose.msra.mxu0 0.0
      %852 = vmatprep.subr.mxu0 0.0
      %853 = vmatpush1.xpose.msra.mxu0 0.0
      %854 = vmatprep.subr.mxu0 0.0
      %855 = vmatpush1.xpose.msra.mxu0 0.0
      %856 = vmatprep.mubr.f32.mxu0 0.0
      %857 = vmatmul.mubr.f32.gmra.mrb[0].mxu0 %v787
      %v858 = vpop.f32.mrb[0].mxu0
      %v859 = vadd.f32 %v378, %v858
      %v860 = vpop.f32.mrb[0].mxu0
      %861 = vdwg.mxu0
      %v863 = vsel %vm405, %v283, 0
      %v866 = vsel %vm405, %v315, 0
      %868 = vmatprep.subr.mxu0 0.0
      %869 = vmatpush1.xpose.msra.mxu0 %v866
      %870 = vmatprep.subr.mxu0 0.0
      %871 = vmatpush1.xpose.msra.mxu0 0.0
      %872 = vmatprep.subr.mxu0 0.0
      %873 = vmatpush1.xpose.msra.mxu0 0.0
      %874 = vmatprep.subr.mxu0 0.0
      %875 = vmatpush1.xpose.msra.mxu0 0.0
      %876 = vmatprep.subr.mxu0 0.0
      %877 = vmatpush1.xpose.msra.mxu0 0.0
      %878 = vmatprep.subr.mxu0 0.0
      %879 = vmatpush1.xpose.msra.mxu0 0.0
      %880 = vmatprep.subr.mxu0 0.0
      %881 = vmatpush1.xpose.msra.mxu0 0.0
      %882 = vmatprep.subr.mxu0 0.0
      %883 = vmatpush1.xpose.msra.mxu0 0.0
      %884 = vmatprep.subr.mxu0 0.0
      %885 = vmatpush1.xpose.msra.mxu0 0.0
      %886 = vmatprep.subr.mxu0 0.0
      %887 = vmatpush1.xpose.msra.mxu0 0.0
      %888 = vmatprep.subr.mxu0 0.0
      %889 = vmatpush1.xpose.msra.mxu0 0.0
      %890 = vmatprep.subr.mxu0 0.0
      %891 = vmatpush1.xpose.msra.mxu0 0.0
      %892 = vmatprep.subr.mxu0 0.0
      %893 = vmatpush1.xpose.msra.mxu0 0.0
      %894 = vmatprep.subr.mxu0 0.0
      %895 = vmatpush1.xpose.msra.mxu0 0.0
      %896 = vmatprep.subr.mxu0 0.0
      %897 = vmatpush1.xpose.msra.mxu0 0.0
      %898 = vmatprep.subr.mxu0 0.0
      %899 = vmatpush1.xpose.msra.mxu0 0.0
      %900 = vmatprep.subr.mxu0 0.0
      %901 = vmatpush1.xpose.msra.mxu0 0.0
      %902 = vmatprep.subr.mxu0 0.0
      %903 = vmatpush1.xpose.msra.mxu0 0.0
      %904 = vmatprep.subr.mxu0 0.0
      %905 = vmatpush1.xpose.msra.mxu0 0.0
      %906 = vmatprep.subr.mxu0 0.0
      %907 = vmatpush1.xpose.msra.mxu0 0.0
      %908 = vmatprep.subr.mxu0 0.0
      %909 = vmatpush1.xpose.msra.mxu0 0.0
      %910 = vmatprep.subr.mxu0 0.0
      %911 = vmatpush1.xpose.msra.mxu0 0.0
      %912 = vmatprep.subr.mxu0 0.0
      %913 = vmatpush1.xpose.msra.mxu0 0.0
      %914 = vmatprep.subr.mxu0 0.0
      %915 = vmatpush1.xpose.msra.mxu0 0.0
      %916 = vmatprep.subr.mxu0 0.0
      %917 = vmatpush1.xpose.msra.mxu0 0.0
      %918 = vmatprep.subr.mxu0 0.0
      %919 = vmatpush1.xpose.msra.mxu0 0.0
      %920 = vmatprep.subr.mxu0 0.0
      %921 = vmatpush1.xpose.msra.mxu0 0.0
      %922 = vmatprep.subr.mxu0 0.0
      %923 = vmatpush1.xpose.msra.mxu0 0.0
      %924 = vmatprep.subr.mxu0 0.0
      %925 = vmatpush1.xpose.msra.mxu0 0.0
      %926 = vmatprep.subr.mxu0 0.0
      %927 = vmatpush1.xpose.msra.mxu0 0.0
      %928 = vmatprep.subr.mxu0 0.0
      %929 = vmatpush1.xpose.msra.mxu0 0.0
      %930 = vmatprep.subr.mxu0 0.0
      %931 = vmatpush1.xpose.msra.mxu0 0.0
      %932 = vmatprep.mubr.f32.mxu0 0.0
      %933 = vmatmul.mubr.f32.gmra.mrb[0].mxu0 %v863
      %v934 = vpop.f32.mrb[0].mxu0
      %v935 = vadd.f32 %v379, %v934
      %v936 = vpop.f32.mrb[0].mxu0
      %937 = vdwg.mxu0
      %v939 = vsel %vm405, %v284, 0
      %v942 = vsel %vm405, %v316, 0
      %944 = vmatprep.subr.mxu0 0.0
      %945 = vmatpush1.xpose.msra.mxu0 %v942
      %946 = vmatprep.subr.mxu0 0.0
      %947 = vmatpush1.xpose.msra.mxu0 0.0
      %948 = vmatprep.subr.mxu0 0.0
      %949 = vmatpush1.xpose.msra.mxu0 0.0
      %950 = vmatprep.subr.mxu0 0.0
      %951 = vmatpush1.xpose.msra.mxu0 0.0
      %952 = vmatprep.subr.mxu0 0.0
      %953 = vmatpush1.xpose.msra.mxu0 0.0
      %954 = vmatprep.subr.mxu0 0.0
      %955 = vmatpush1.xpose.msra.mxu0 0.0
      %956 = vmatprep.subr.mxu0 0.0
      %957 = vmatpush1.xpose.msra.mxu0 0.0
      %958 = vmatprep.subr.mxu0 0.0
      %959 = vmatpush1.xpose.msra.mxu0 0.0
      %960 = vmatprep.subr.mxu0 0.0
      %961 = vmatpush1.xpose.msra.mxu0 0.0
      %962 = vmatprep.subr.mxu0 0.0
      %963 = vmatpush1.xpose.msra.mxu0 0.0
      %964 = vmatprep.subr.mxu0 0.0
      %965 = vmatpush1.xpose.msra.mxu0 0.0
      %966 = vmatprep.subr.mxu0 0.0
      %967 = vmatpush1.xpose.msra.mxu0 0.0
      %968 = vmatprep.subr.mxu0 0.0
      %969 = vmatpush1.xpose.msra.mxu0 0.0
      %970 = vmatprep.subr.mxu0 0.0
      %971 = vmatpush1.xpose.msra.mxu0 0.0
      %972 = vmatprep.subr.mxu0 0.0
      %973 = vmatpush1.xpose.msra.mxu0 0.0
      %974 = vmatprep.subr.mxu0 0.0
      %975 = vmatpush1.xpose.msra.mxu0 0.0
      %976 = vmatprep.subr.mxu0 0.0
      %977 = vmatpush1.xpose.msra.mxu0 0.0
      %978 = vmatprep.subr.mxu0 0.0
      %979 = vmatpush1.xpose.msra.mxu0 0.0
      %980 = vmatprep.subr.mxu0 0.0
      %981 = vmatpush1.xpose.msra.mxu0 0.0
      %982 = vmatprep.subr.mxu0 0.0
      %983 = vmatpush1.xpose.msra.mxu0 0.0
      %984 = vmatprep.subr.mxu0 0.0
      %985 = vmatpush1.xpose.msra.mxu0 0.0
      %986 = vmatprep.subr.mxu0 0.0
      %987 = vmatpush1.xpose.msra.mxu0 0.0
      %988 = vmatprep.subr.mxu0 0.0
      %989 = vmatpush1.xpose.msra.mxu0 0.0
      %990 = vmatprep.subr.mxu0 0.0
      %991 = vmatpush1.xpose.msra.mxu0 0.0
      %992 = vmatprep.subr.mxu0 0.0
      %993 = vmatpush1.xpose.msra.mxu0 0.0
      %994 = vmatprep.subr.mxu0 0.0
      %995 = vmatpush1.xpose.msra.mxu0 0.0
      %996 = vmatprep.subr.mxu0 0.0
      %997 = vmatpush1.xpose.msra.mxu0 0.0
      %998 = vmatprep.subr.mxu0 0.0
      %999 = vmatpush1.xpose.msra.mxu0 0.0
      %1000 = vmatprep.subr.mxu0 0.0
      %1001 = vmatpush1.xpose.msra.mxu0 0.0
      %1002 = vmatprep.subr.mxu0 0.0
      %1003 = vmatpush1.xpose.msra.mxu0 0.0
      %1004 = vmatprep.subr.mxu0 0.0
      %1005 = vmatpush1.xpose.msra.mxu0 0.0
      %1006 = vmatprep.subr.mxu0 0.0
      %1007 = vmatpush1.xpose.msra.mxu0 0.0
      %1008 = vmatprep.mubr.f32.mxu0 0.0
      %1009 = vmatmul.mubr.f32.gmra.mrb[0].mxu0 %v939
      %v1010 = vpop.f32.mrb[0].mxu0
      %v1011 = vadd.f32 %v380, %v1010
      %v1012 = vpop.f32.mrb[0].mxu0
      %1013 = vdwg.mxu0
      %v1015 = vsel %vm405, %v285, 0
      %v1018 = vsel %vm405, %v317, 0
      %1020 = vmatprep.subr.mxu0 0.0
      %1021 = vmatpush1.xpose.msra.mxu0 %v1018
      %1022 = vmatprep.subr.mxu0 0.0
      %1023 = vmatpush1.xpose.msra.mxu0 0.0
      %1024 = vmatprep.subr.mxu0 0.0
      %1025 = vmatpush1.xpose.msra.mxu0 0.0
      %1026 = vmatprep.subr.mxu0 0.0
      %1027 = vmatpush1.xpose.msra.mxu0 0.0
      %1028 = vmatprep.subr.mxu0 0.0
      %1029 = vmatpush1.xpose.msra.mxu0 0.0
      %1030 = vmatprep.subr.mxu0 0.0
      %1031 = vmatpush1.xpose.msra.mxu0 0.0
      %1032 = vmatprep.subr.mxu0 0.0
      %1033 = vmatpush1.xpose.msra.mxu0 0.0
      %1034 = vmatprep.subr.mxu0 0.0
      %1035 = vmatpush1.xpose.msra.mxu0 0.0
      %1036 = vmatprep.subr.mxu0 0.0
      %1037 = vmatpush1.xpose.msra.mxu0 0.0
      %1038 = vmatprep.subr.mxu0 0.0
      %1039 = vmatpush1.xpose.msra.mxu0 0.0
      %1040 = vmatprep.subr.mxu0 0.0
      %1041 = vmatpush1.xpose.msra.mxu0 0.0
      %1042 = vmatprep.subr.mxu0 0.0
      %1043 = vmatpush1.xpose.msra.mxu0 0.0
      %1044 = vmatprep.subr.mxu0 0.0
      %1045 = vmatpush1.xpose.msra.mxu0 0.0
      %1046 = vmatprep.subr.mxu0 0.0
      %1047 = vmatpush1.xpose.msra.mxu0 0.0
      %1048 = vmatprep.subr.mxu0 0.0
      %1049 = vmatpush1.xpose.msra.mxu0 0.0
      %1050 = vmatprep.subr.mxu0 0.0
      %1051 = vmatpush1.xpose.msra.mxu0 0.0
      %1052 = vmatprep.subr.mxu0 0.0
      %1053 = vmatpush1.xpose.msra.mxu0 0.0
      %1054 = vmatprep.subr.mxu0 0.0
      %1055 = vmatpush1.xpose.msra.mxu0 0.0
      %1056 = vmatprep.subr.mxu0 0.0
      %1057 = vmatpush1.xpose.msra.mxu0 0.0
      %1058 = vmatprep.subr.mxu0 0.0
      %1059 = vmatpush1.xpose.msra.mxu0 0.0
      %1060 = vmatprep.subr.mxu0 0.0
      %1061 = vmatpush1.xpose.msra.mxu0 0.0
      %1062 = vmatprep.subr.mxu0 0.0
      %1063 = vmatpush1.xpose.msra.mxu0 0.0
      %1064 = vmatprep.subr.mxu0 0.0
      %1065 = vmatpush1.xpose.msra.mxu0 0.0
      %1066 = vmatprep.subr.mxu0 0.0
      %1067 = vmatpush1.xpose.msra.mxu0 0.0
      %1068 = vmatprep.subr.mxu0 0.0
      %1069 = vmatpush1.xpose.msra.mxu0 0.0
      %1070 = vmatprep.subr.mxu0 0.0
      %1071 = vmatpush1.xpose.msra.mxu0 0.0
      %1072 = vmatprep.subr.mxu0 0.0
      %1073 = vmatpush1.xpose.msra.mxu0 0.0
      %1074 = vmatprep.subr.mxu0 0.0
      %1075 = vmatpush1.xpose.msra.mxu0 0.0
      %1076 = vmatprep.subr.mxu0 0.0
      %1077 = vmatpush1.xpose.msra.mxu0 0.0
      %1078 = vmatprep.subr.mxu0 0.0
      %1079 = vmatpush1.xpose.msra.mxu0 0.0
      %1080 = vmatprep.subr.mxu0 0.0
      %1081 = vmatpush1.xpose.msra.mxu0 0.0
      %1082 = vmatprep.subr.mxu0 0.0
      %1083 = vmatpush1.xpose.msra.mxu0 0.0
      %1084 = vmatprep.mubr.f32.mxu0 0.0
      %1085 = vmatmul.mubr.f32.gmra.mrb[0].mxu0 %v1015
      %v1086 = vpop.f32.mrb[0].mxu0
      %v1087 = vadd.f32 %v381, %v1086
      %v1088 = vpop.f32.mrb[0].mxu0
      %1089 = vdwg.mxu0
      %v1091 = vsel %vm405, %v286, 0
      %v1094 = vsel %vm405, %v318, 0
      %1096 = vmatprep.subr.mxu0 0.0
      %1097 = vmatpush1.xpose.msra.mxu0 %v1094
      %1098 = vmatprep.subr.mxu0 0.0
      %1099 = vmatpush1.xpose.msra.mxu0 0.0
      %1100 = vmatprep.subr.mxu0 0.0
      %1101 = vmatpush1.xpose.msra.mxu0 0.0
      %1102 = vmatprep.subr.mxu0 0.0
      %1103 = vmatpush1.xpose.msra.mxu0 0.0
      %1104 = vmatprep.subr.mxu0 0.0
      %1105 = vmatpush1.xpose.msra.mxu0 0.0
      %1106 = vmatprep.subr.mxu0 0.0
      %1107 = vmatpush1.xpose.msra.mxu0 0.0
      %1108 = vmatprep.subr.mxu0 0.0
      %1109 = vmatpush1.xpose.msra.mxu0 0.0
      %1110 = vmatprep.subr.mxu0 0.0
      %1111 = vmatpush1.xpose.msra.mxu0 0.0
      %1112 = vmatprep.subr.mxu0 0.0
      %1113 = vmatpush1.xpose.msra.mxu0 0.0
      %1114 = vmatprep.subr.mxu0 0.0
      %1115 = vmatpush1.xpose.msra.mxu0 0.0
      %1116 = vmatprep.subr.mxu0 0.0
      %1117 = vmatpush1.xpose.msra.mxu0 0.0
      %1118 = vmatprep.subr.mxu0 0.0
      %1119 = vmatpush1.xpose.msra.mxu0 0.0
      %1120 = vmatprep.subr.mxu0 0.0
      %1121 = vmatpush1.xpose.msra.mxu0 0.0
      %1122 = vmatprep.subr.mxu0 0.0
      %1123 = vmatpush1.xpose.msra.mxu0 0.0
      %1124 = vmatprep.subr.mxu0 0.0
      %1125 = vmatpush1.xpose.msra.mxu0 0.0
      %1126 = vmatprep.subr.mxu0 0.0
      %1127 = vmatpush1.xpose.msra.mxu0 0.0
      %1128 = vmatprep.subr.mxu0 0.0
      %1129 = vmatpush1.xpose.msra.mxu0 0.0
      %1130 = vmatprep.subr.mxu0 0.0
      %1131 = vmatpush1.xpose.msra.mxu0 0.0
      %1132 = vmatprep.subr.mxu0 0.0
      %1133 = vmatpush1.xpose.msra.mxu0 0.0
      %1134 = vmatprep.subr.mxu0 0.0
      %1135 = vmatpush1.xpose.msra.mxu0 0.0
      %1136 = vmatprep.subr.mxu0 0.0
      %1137 = vmatpush1.xpose.msra.mxu0 0.0
      %1138 = vmatprep.subr.mxu0 0.0
      %1139 = vmatpush1.xpose.msra.mxu0 0.0
      %1140 = vmatprep.subr.mxu0 0.0
      %1141 = vmatpush1.xpose.msra.mxu0 0.0
      %1142 = vmatprep.subr.mxu0 0.0
      %1143 = vmatpush1.xpose.msra.mxu0 0.0
      %1144 = vmatprep.subr.mxu0 0.0
      %1145 = vmatpush1.xpose.msra.mxu0 0.0
      %1146 = vmatprep.subr.mxu0 0.0
      %1147 = vmatpush1.xpose.msra.mxu0 0.0
      %1148 = vmatprep.subr.mxu0 0.0
      %1149 = vmatpush1.xpose.msra.mxu0 0.0
      %1150 = vmatprep.subr.mxu0 0.0
      %1151 = vmatpush1.xpose.msra.mxu0 0.0
      %1152 = vmatprep.subr.mxu0 0.0
      %1153 = vmatpush1.xpose.msra.mxu0 0.0
      %1154 = vmatprep.subr.mxu0 0.0
      %1155 = vmatpush1.xpose.msra.mxu0 0.0
      %1156 = vmatprep.subr.mxu0 0.0
      %1157 = vmatpush1.xpose.msra.mxu0 0.0
      %1158 = vmatprep.subr.mxu0 0.0
      %1159 = vmatpush1.xpose.msra.mxu0 0.0
      %1160 = vmatprep.mubr.f32.mxu0 0.0
      %1161 = vmatmul.mubr.f32.gmra.mrb[0].mxu0 %v1091
      %v1162 = vpop.f32.mrb[0].mxu0
      %v1163 = vadd.f32 %v382, %v1162
      %v1164 = vpop.f32.mrb[0].mxu0
      %1165 = vdwg.mxu0
      %v1167 = vsel %vm405, %v287, 0
      %v1170 = vsel %vm405, %v319, 0
      %1172 = vmatprep.subr.mxu0 0.0
      %1173 = vmatpush1.xpose.msra.mxu0 %v1170
      %1174 = vmatprep.subr.mxu0 0.0
      %1175 = vmatpush1.xpose.msra.mxu0 0.0
      %1176 = vmatprep.subr.mxu0 0.0
      %1177 = vmatpush1.xpose.msra.mxu0 0.0
      %1178 = vmatprep.subr.mxu0 0.0
      %1179 = vmatpush1.xpose.msra.mxu0 0.0
      %1180 = vmatprep.subr.mxu0 0.0
      %1181 = vmatpush1.xpose.msra.mxu0 0.0
      %1182 = vmatprep.subr.mxu0 0.0
      %1183 = vmatpush1.xpose.msra.mxu0 0.0
      %1184 = vmatprep.subr.mxu0 0.0
      %1185 = vmatpush1.xpose.msra.mxu0 0.0
      %1186 = vmatprep.subr.mxu0 0.0
      %1187 = vmatpush1.xpose.msra.mxu0 0.0
      %1188 = vmatprep.subr.mxu0 0.0
      %1189 = vmatpush1.xpose.msra.mxu0 0.0
      %1190 = vmatprep.subr.mxu0 0.0
      %1191 = vmatpush1.xpose.msra.mxu0 0.0
      %1192 = vmatprep.subr.mxu0 0.0
      %1193 = vmatpush1.xpose.msra.mxu0 0.0
      %1194 = vmatprep.subr.mxu0 0.0
      %1195 = vmatpush1.xpose.msra.mxu0 0.0
      %1196 = vmatprep.subr.mxu0 0.0
      %1197 = vmatpush1.xpose.msra.mxu0 0.0
      %1198 = vmatprep.subr.mxu0 0.0
      %1199 = vmatpush1.xpose.msra.mxu0 0.0
      %1200 = vmatprep.subr.mxu0 0.0
      %1201 = vmatpush1.xpose.msra.mxu0 0.0
      %1202 = vmatprep.subr.mxu0 0.0
      %1203 = vmatpush1.xpose.msra.mxu0 0.0
      %1204 = vmatprep.subr.mxu0 0.0
      %1205 = vmatpush1.xpose.msra.mxu0 0.0
      %1206 = vmatprep.subr.mxu0 0.0
      %1207 = vmatpush1.xpose.msra.mxu0 0.0
      %1208 = vmatprep.subr.mxu0 0.0
      %1209 = vmatpush1.xpose.msra.mxu0 0.0
      %1210 = vmatprep.subr.mxu0 0.0
      %1211 = vmatpush1.xpose.msra.mxu0 0.0
      %1212 = vmatprep.subr.mxu0 0.0
      %1213 = vmatpush1.xpose.msra.mxu0 0.0
      %1214 = vmatprep.subr.mxu0 0.0
      %1215 = vmatpush1.xpose.msra.mxu0 0.0
      %1216 = vmatprep.subr.mxu0 0.0
      %1217 = vmatpush1.xpose.msra.mxu0 0.0
      %1218 = vmatprep.subr.mxu0 0.0
      %1219 = vmatpush1.xpose.msra.mxu0 0.0
      %1220 = vmatprep.subr.mxu0 0.0
      %1221 = vmatpush1.xpose.msra.mxu0 0.0
      %1222 = vmatprep.subr.mxu0 0.0
      %1223 = vmatpush1.xpose.msra.mxu0 0.0
      %1224 = vmatprep.subr.mxu0 0.0
      %1225 = vmatpush1.xpose.msra.mxu0 0.0
      %1226 = vmatprep.subr.mxu0 0.0
      %1227 = vmatpush1.xpose.msra.mxu0 0.0
      %1228 = vmatprep.subr.mxu0 0.0
      %1229 = vmatpush1.xpose.msra.mxu0 0.0
      %1230 = vmatprep.subr.mxu0 0.0
      %1231 = vmatpush1.xpose.msra.mxu0 0.0
      %1232 = vmatprep.subr.mxu0 0.0
      %1233 = vmatpush1.xpose.msra.mxu0 0.0
      %1234 = vmatprep.subr.mxu0 0.0
      %1235 = vmatpush1.xpose.msra.mxu0 0.0
      %1236 = vmatprep.mubr.f32.mxu0 0.0
      %1237 = vmatmul.mubr.f32.gmra.mrb[0].mxu0 %v1167
      %v1238 = vpop.f32.mrb[0].mxu0
      %v1239 = vadd.f32 %v383, %v1238
      %v1240 = vpop.f32.mrb[0].mxu0
      %1241 = vdwg.mxu0
      %v1243 = vsel %vm405, %v288, 0
      %v1246 = vsel %vm405, %v320, 0
      %1248 = vmatprep.subr.mxu0 0.0
      %1249 = vmatpush1.xpose.msra.mxu0 %v1246
      %1250 = vmatprep.subr.mxu0 0.0
      %1251 = vmatpush1.xpose.msra.mxu0 0.0
      %1252 = vmatprep.subr.mxu0 0.0
      %1253 = vmatpush1.xpose.msra.mxu0 0.0
      %1254 = vmatprep.subr.mxu0 0.0
      %1255 = vmatpush1.xpose.msra.mxu0 0.0
      %1256 = vmatprep.subr.mxu0 0.0
      %1257 = vmatpush1.xpose.msra.mxu0 0.0
      %1258 = vmatprep.subr.mxu0 0.0
      %1259 = vmatpush1.xpose.msra.mxu0 0.0
      %1260 = vmatprep.subr.mxu0 0.0
      %1261 = vmatpush1.xpose.msra.mxu0 0.0
      %1262 = vmatprep.subr.mxu0 0.0
      %1263 = vmatpush1.xpose.msra.mxu0 0.0
      %1264 = vmatprep.subr.mxu0 0.0
      %1265 = vmatpush1.xpose.msra.mxu0 0.0
      %1266 = vmatprep.subr.mxu0 0.0
      %1267 = vmatpush1.xpose.msra.mxu0 0.0
      %1268 = vmatprep.subr.mxu0 0.0
      %1269 = vmatpush1.xpose.msra.mxu0 0.0
      %1270 = vmatprep.subr.mxu0 0.0
      %1271 = vmatpush1.xpose.msra.mxu0 0.0
      %1272 = vmatprep.subr.mxu0 0.0
      %1273 = vmatpush1.xpose.msra.mxu0 0.0
      %1274 = vmatprep.subr.mxu0 0.0
      %1275 = vmatpush1.xpose.msra.mxu0 0.0
      %1276 = vmatprep.subr.mxu0 0.0
      %1277 = vmatpush1.xpose.msra.mxu0 0.0
      %1278 = vmatprep.subr.mxu0 0.0
      %1279 = vmatpush1.xpose.msra.mxu0 0.0
      %1280 = vmatprep.subr.mxu0 0.0
      %1281 = vmatpush1.xpose.msra.mxu0 0.0
      %1282 = vmatprep.subr.mxu0 0.0
      %1283 = vmatpush1.xpose.msra.mxu0 0.0
      %1284 = vmatprep.subr.mxu0 0.0
      %1285 = vmatpush1.xpose.msra.mxu0 0.0
      %1286 = vmatprep.subr.mxu0 0.0
      %1287 = vmatpush1.xpose.msra.mxu0 0.0
      %1288 = vmatprep.subr.mxu0 0.0
      %1289 = vmatpush1.xpose.msra.mxu0 0.0
      %1290 = vmatprep.subr.mxu0 0.0
      %1291 = vmatpush1.xpose.msra.mxu0 0.0
      %1292 = vmatprep.subr.mxu0 0.0
      %1293 = vmatpush1.xpose.msra.mxu0 0.0
      %1294 = vmatprep.subr.mxu0 0.0
      %1295 = vmatpush1.xpose.msra.mxu0 0.0
      %1296 = vmatprep.subr.mxu0 0.0
      %1297 = vmatpush1.xpose.msra.mxu0 0.0
      %1298 = vmatprep.subr.mxu0 0.0
      %1299 = vmatpush1.xpose.msra.mxu0 0.0
      %1300 = vmatprep.subr.mxu0 0.0
      %1301 = vmatpush1.xpose.msra.mxu0 0.0
      %1302 = vmatprep.subr.mxu0 0.0
      %1303 = vmatpush1.xpose.msra.mxu0 0.0
      %1304 = vmatprep.subr.mxu0 0.0
      %1305 = vmatpush1.xpose.msra.mxu0 0.0
      %1306 = vmatprep.subr.mxu0 0.0
      %1307 = vmatpush1.xpose.msra.mxu0 0.0
      %1308 = vmatprep.subr.mxu0 0.0
      %1309 = vmatpush1.xpose.msra.mxu0 0.0
      %1310 = vmatprep.subr.mxu0 0.0
      %1311 = vmatpush1.xpose.msra.mxu0 0.0
      %1312 = vmatprep.mubr.f32.mxu0 0.0
      %1313 = vmatmul.mubr.f32.gmra.mrb[0].mxu0 %v1243
      %v1314 = vpop.f32.mrb[0].mxu0
      %v1315 = vadd.f32 %v384, %v1314
      %v1316 = vpop.f32.mrb[0].mxu0
      %1317 = vdwg.mxu0
      %v1319 = vsel %vm405, %v289, 0
      %v1322 = vsel %vm405, %v321, 0
      %1324 = vmatprep.subr.mxu0 0.0
      %1325 = vmatpush1.xpose.msra.mxu0 %v1322
      %1326 = vmatprep.subr.mxu0 0.0
      %1327 = vmatpush1.xpose.msra.mxu0 0.0
      %1328 = vmatprep.subr.mxu0 0.0
      %1329 = vmatpush1.xpose.msra.mxu0 0.0
      %1330 = vmatprep.subr.mxu0 0.0
      %1331 = vmatpush1.xpose.msra.mxu0 0.0
      %1332 = vmatprep.subr.mxu0 0.0
      %1333 = vmatpush1.xpose.msra.mxu0 0.0
      %1334 = vmatprep.subr.mxu0 0.0
      %1335 = vmatpush1.xpose.msra.mxu0 0.0
      %1336 = vmatprep.subr.mxu0 0.0
      %1337 = vmatpush1.xpose.msra.mxu0 0.0
      %1338 = vmatprep.subr.mxu0 0.0
      %1339 = vmatpush1.xpose.msra.mxu0 0.0
      %1340 = vmatprep.subr.mxu0 0.0
      %1341 = vmatpush1.xpose.msra.mxu0 0.0
      %1342 = vmatprep.subr.mxu0 0.0
      %1343 = vmatpush1.xpose.msra.mxu0 0.0
      %1344 = vmatprep.subr.mxu0 0.0
      %1345 = vmatpush1.xpose.msra.mxu0 0.0
      %1346 = vmatprep.subr.mxu0 0.0
      %1347 = vmatpush1.xpose.msra.mxu0 0.0
      %1348 = vmatprep.subr.mxu0 0.0
      %1349 = vmatpush1.xpose.msra.mxu0 0.0
      %1350 = vmatprep.subr.mxu0 0.0
      %1351 = vmatpush1.xpose.msra.mxu0 0.0
      %1352 = vmatprep.subr.mxu0 0.0
      %1353 = vmatpush1.xpose.msra.mxu0 0.0
      %1354 = vmatprep.subr.mxu0 0.0
      %1355 = vmatpush1.xpose.msra.mxu0 0.0
      %1356 = vmatprep.subr.mxu0 0.0
      %1357 = vmatpush1.xpose.msra.mxu0 0.0
      %1358 = vmatprep.subr.mxu0 0.0
      %1359 = vmatpush1.xpose.msra.mxu0 0.0
      %1360 = vmatprep.subr.mxu0 0.0
      %1361 = vmatpush1.xpose.msra.mxu0 0.0
      %1362 = vmatprep.subr.mxu0 0.0
      %1363 = vmatpush1.xpose.msra.mxu0 0.0
      %1364 = vmatprep.subr.mxu0 0.0
      %1365 = vmatpush1.xpose.msra.mxu0 0.0
      %1366 = vmatprep.subr.mxu0 0.0
      %1367 = vmatpush1.xpose.msra.mxu0 0.0
      %1368 = vmatprep.subr.mxu0 0.0
      %1369 = vmatpush1.xpose.msra.mxu0 0.0
      %1370 = vmatprep.subr.mxu0 0.0
      %1371 = vmatpush1.xpose.msra.mxu0 0.0
      %1372 = vmatprep.subr.mxu0 0.0
      %1373 = vmatpush1.xpose.msra.mxu0 0.0
      %1374 = vmatprep.subr.mxu0 0.0
      %1375 = vmatpush1.xpose.msra.mxu0 0.0
      %1376 = vmatprep.subr.mxu0 0.0
      %1377 = vmatpush1.xpose.msra.mxu0 0.0
      %1378 = vmatprep.subr.mxu0 0.0
      %1379 = vmatpush1.xpose.msra.mxu0 0.0
      %1380 = vmatprep.subr.mxu0 0.0
      %1381 = vmatpush1.xpose.msra.mxu0 0.0
      %1382 = vmatprep.subr.mxu0 0.0
      %1383 = vmatpush1.xpose.msra.mxu0 0.0
      %1384 = vmatprep.subr.mxu0 0.0
      %1385 = vmatpush1.xpose.msra.mxu0 0.0
      %1386 = vmatprep.subr.mxu0 0.0
      %1387 = vmatpush1.xpose.msra.mxu0 0.0
      %1388 = vmatprep.mubr.f32.mxu0 0.0
      %1389 = vmatmul.mubr.f32.gmra.mrb[0].mxu0 %v1319
      %v1390 = vpop.f32.mrb[0].mxu0
      %v1391 = vadd.f32 %v385, %v1390
      %v1392 = vpop.f32.mrb[0].mxu0
      %1393 = vdwg.mxu0
      %v1395 = vsel %vm405, %v290, 0
      %v1398 = vsel %vm405, %v322, 0
      %1400 = vmatprep.subr.mxu0 0.0
      %1401 = vmatpush1.xpose.msra.mxu0 %v1398
      %1402 = vmatprep.subr.mxu0 0.0
      %1403 = vmatpush1.xpose.msra.mxu0 0.0
      %1404 = vmatprep.subr.mxu0 0.0
      %1405 = vmatpush1.xpose.msra.mxu0 0.0
      %1406 = vmatprep.subr.mxu0 0.0
      %1407 = vmatpush1.xpose.msra.mxu0 0.0
      %1408 = vmatprep.subr.mxu0 0.0
      %1409 = vmatpush1.xpose.msra.mxu0 0.0
      %1410 = vmatprep.subr.mxu0 0.0
      %1411 = vmatpush1.xpose.msra.mxu0 0.0
      %1412 = vmatprep.subr.mxu0 0.0
      %1413 = vmatpush1.xpose.msra.mxu0 0.0
      %1414 = vmatprep.subr.mxu0 0.0
      %1415 = vmatpush1.xpose.msra.mxu0 0.0
      %1416 = vmatprep.subr.mxu0 0.0
      %1417 = vmatpush1.xpose.msra.mxu0 0.0
      %1418 = vmatprep.subr.mxu0 0.0
      %1419 = vmatpush1.xpose.msra.mxu0 0.0
      %1420 = vmatprep.subr.mxu0 0.0
      %1421 = vmatpush1.xpose.msra.mxu0 0.0
      %1422 = vmatprep.subr.mxu0 0.0
      %1423 = vmatpush1.xpose.msra.mxu0 0.0
      %1424 = vmatprep.subr.mxu0 0.0
      %1425 = vmatpush1.xpose.msra.mxu0 0.0
      %1426 = vmatprep.subr.mxu0 0.0
      %1427 = vmatpush1.xpose.msra.mxu0 0.0
      %1428 = vmatprep.subr.mxu0 0.0
      %1429 = vmatpush1.xpose.msra.mxu0 0.0
      %1430 = vmatprep.subr.mxu0 0.0
      %1431 = vmatpush1.xpose.msra.mxu0 0.0
      %1432 = vmatprep.subr.mxu0 0.0
      %1433 = vmatpush1.xpose.msra.mxu0 0.0
      %1434 = vmatprep.subr.mxu0 0.0
      %1435 = vmatpush1.xpose.msra.mxu0 0.0
      %1436 = vmatprep.subr.mxu0 0.0
      %1437 = vmatpush1.xpose.msra.mxu0 0.0
      %1438 = vmatprep.subr.mxu0 0.0
      %1439 = vmatpush1.xpose.msra.mxu0 0.0
      %1440 = vmatprep.subr.mxu0 0.0
      %1441 = vmatpush1.xpose.msra.mxu0 0.0
      %1442 = vmatprep.subr.mxu0 0.0
      %1443 = vmatpush1.xpose.msra.mxu0 0.0
      %1444 = vmatprep.subr.mxu0 0.0
      %1445 = vmatpush1.xpose.msra.mxu0 0.0
      %1446 = vmatprep.subr.mxu0 0.0
      %1447 = vmatpush1.xpose.msra.mxu0 0.0
      %1448 = vmatprep.subr.mxu0 0.0
      %1449 = vmatpush1.xpose.msra.mxu0 0.0
      %1450 = vmatprep.subr.mxu0 0.0
      %1451 = vmatpush1.xpose.msra.mxu0 0.0
      %1452 = vmatprep.subr.mxu0 0.0
      %1453 = vmatpush1.xpose.msra.mxu0 0.0
      %1454 = vmatprep.subr.mxu0 0.0
      %1455 = vmatpush1.xpose.msra.mxu0 0.0
      %1456 = vmatprep.subr.mxu0 0.0
      %1457 = vmatpush1.xpose.msra.mxu0 0.0
      %1458 = vmatprep.subr.mxu0 0.0
      %1459 = vmatpush1.xpose.msra.mxu0 0.0
      %1460 = vmatprep.subr.mxu0 0.0
      %1461 = vmatpush1.xpose.msra.mxu0 0.0
      %1462 = vmatprep.subr.mxu0 0.0
      %1463 = vmatpush1.xpose.msra.mxu0 0.0
      %1464 = vmatprep.mubr.f32.mxu0 0.0
      %1465 = vmatmul.mubr.f32.gmra.mrb[0].mxu0 %v1395
      %v1466 = vpop.f32.mrb[0].mxu0
      %v1467 = vadd.f32 %v386, %v1466
      %v1468 = vpop.f32.mrb[0].mxu0
      %1469 = vdwg.mxu0
      %v1471 = vsel %vm405, %v291, 0
      %v1474 = vsel %vm405, %v323, 0
      %1476 = vmatprep.subr.mxu0 0.0
      %1477 = vmatpush1.xpose.msra.mxu0 %v1474
      %1478 = vmatprep.subr.mxu0 0.0
      %1479 = vmatpush1.xpose.msra.mxu0 0.0
      %1480 = vmatprep.subr.mxu0 0.0
      %1481 = vmatpush1.xpose.msra.mxu0 0.0
      %1482 = vmatprep.subr.mxu0 0.0
      %1483 = vmatpush1.xpose.msra.mxu0 0.0
      %1484 = vmatprep.subr.mxu0 0.0
      %1485 = vmatpush1.xpose.msra.mxu0 0.0
      %1486 = vmatprep.subr.mxu0 0.0
      %1487 = vmatpush1.xpose.msra.mxu0 0.0
      %1488 = vmatprep.subr.mxu0 0.0
      %1489 = vmatpush1.xpose.msra.mxu0 0.0
      %1490 = vmatprep.subr.mxu0 0.0
      %1491 = vmatpush1.xpose.msra.mxu0 0.0
      %1492 = vmatprep.subr.mxu0 0.0
      %1493 = vmatpush1.xpose.msra.mxu0 0.0
      %1494 = vmatprep.subr.mxu0 0.0
      %1495 = vmatpush1.xpose.msra.mxu0 0.0
      %1496 = vmatprep.subr.mxu0 0.0
      %1497 = vmatpush1.xpose.msra.mxu0 0.0
      %1498 = vmatprep.subr.mxu0 0.0
      %1499 = vmatpush1.xpose.msra.mxu0 0.0
      %1500 = vmatprep.subr.mxu0 0.0
      %1501 = vmatpush1.xpose.msra.mxu0 0.0
      %1502 = vmatprep.subr.mxu0 0.0
      %1503 = vmatpush1.xpose.msra.mxu0 0.0
      %1504 = vmatprep.subr.mxu0 0.0
      %1505 = vmatpush1.xpose.msra.mxu0 0.0
      %1506 = vmatprep.subr.mxu0 0.0
      %1507 = vmatpush1.xpose.msra.mxu0 0.0
      %1508 = vmatprep.subr.mxu0 0.0
      %1509 = vmatpush1.xpose.msra.mxu0 0.0
      %1510 = vmatprep.subr.mxu0 0.0
      %1511 = vmatpush1.xpose.msra.mxu0 0.0
      %1512 = vmatprep.subr.mxu0 0.0
      %1513 = vmatpush1.xpose.msra.mxu0 0.0
      %1514 = vmatprep.subr.mxu0 0.0
      %1515 = vmatpush1.xpose.msra.mxu0 0.0
      %1516 = vmatprep.subr.mxu0 0.0
      %1517 = vmatpush1.xpose.msra.mxu0 0.0
      %1518 = vmatprep.subr.mxu0 0.0
      %1519 = vmatpush1.xpose.msra.mxu0 0.0
      %1520 = vmatprep.subr.mxu0 0.0
      %1521 = vmatpush1.xpose.msra.mxu0 0.0
      %1522 = vmatprep.subr.mxu0 0.0
      %1523 = vmatpush1.xpose.msra.mxu0 0.0
      %1524 = vmatprep.subr.mxu0 0.0
      %1525 = vmatpush1.xpose.msra.mxu0 0.0
      %1526 = vmatprep.subr.mxu0 0.0
      %1527 = vmatpush1.xpose.msra.mxu0 0.0
      %1528 = vmatprep.subr.mxu0 0.0
      %1529 = vmatpush1.xpose.msra.mxu0 0.0
      %1530 = vmatprep.subr.mxu0 0.0
      %1531 = vmatpush1.xpose.msra.mxu0 0.0
      %1532 = vmatprep.subr.mxu0 0.0
      %1533 = vmatpush1.xpose.msra.mxu0 0.0
      %1534 = vmatprep.subr.mxu0 0.0
      %1535 = vmatpush1.xpose.msra.mxu0 0.0
      %1536 = vmatprep.subr.mxu0 0.0
      %1537 = vmatpush1.xpose.msra.mxu0 0.0
      %1538 = vmatprep.subr.mxu0 0.0
      %1539 = vmatpush1.xpose.msra.mxu0 0.0
      %1540 = vmatprep.mubr.f32.mxu0 0.0
      %1541 = vmatmul.mubr.f32.gmra.mrb[0].mxu0 %v1471
      %v1542 = vpop.f32.mrb[0].mxu0
      %v1543 = vadd.f32 %v387, %v1542
      %v1544 = vpop.f32.mrb[0].mxu0
      %1545 = vdwg.mxu0
      %v1547 = vsel %vm405, %v292, 0
      %v1550 = vsel %vm405, %v324, 0
      %1552 = vmatprep.subr.mxu0 0.0
      %1553 = vmatpush1.xpose.msra.mxu0 %v1550
      %1554 = vmatprep.subr.mxu0 0.0
      %1555 = vmatpush1.xpose.msra.mxu0 0.0
      %1556 = vmatprep.subr.mxu0 0.0
      %1557 = vmatpush1.xpose.msra.mxu0 0.0
      %1558 = vmatprep.subr.mxu0 0.0
      %1559 = vmatpush1.xpose.msra.mxu0 0.0
      %1560 = vmatprep.subr.mxu0 0.0
      %1561 = vmatpush1.xpose.msra.mxu0 0.0
      %1562 = vmatprep.subr.mxu0 0.0
      %1563 = vmatpush1.xpose.msra.mxu0 0.0
      %1564 = vmatprep.subr.mxu0 0.0
      %1565 = vmatpush1.xpose.msra.mxu0 0.0
      %1566 = vmatprep.subr.mxu0 0.0
      %1567 = vmatpush1.xpose.msra.mxu0 0.0
      %1568 = vmatprep.subr.mxu0 0.0
      %1569 = vmatpush1.xpose.msra.mxu0 0.0
      %1570 = vmatprep.subr.mxu0 0.0
      %1571 = vmatpush1.xpose.msra.mxu0 0.0
      %1572 = vmatprep.subr.mxu0 0.0
      %1573 = vmatpush1.xpose.msra.mxu0 0.0
      %1574 = vmatprep.subr.mxu0 0.0
      %1575 = vmatpush1.xpose.msra.mxu0 0.0
      %1576 = vmatprep.subr.mxu0 0.0
      %1577 = vmatpush1.xpose.msra.mxu0 0.0
      %1578 = vmatprep.subr.mxu0 0.0
      %1579 = vmatpush1.xpose.msra.mxu0 0.0
      %1580 = vmatprep.subr.mxu0 0.0
      %1581 = vmatpush1.xpose.msra.mxu0 0.0
      %1582 = vmatprep.subr.mxu0 0.0
      %1583 = vmatpush1.xpose.msra.mxu0 0.0
      %1584 = vmatprep.subr.mxu0 0.0
      %1585 = vmatpush1.xpose.msra.mxu0 0.0
      %1586 = vmatprep.subr.mxu0 0.0
      %1587 = vmatpush1.xpose.msra.mxu0 0.0
      %1588 = vmatprep.subr.mxu0 0.0
      %1589 = vmatpush1.xpose.msra.mxu0 0.0
      %1590 = vmatprep.subr.mxu0 0.0
      %1591 = vmatpush1.xpose.msra.mxu0 0.0
      %1592 = vmatprep.subr.mxu0 0.0
      %1593 = vmatpush1.xpose.msra.mxu0 0.0
      %1594 = vmatprep.subr.mxu0 0.0
      %1595 = vmatpush1.xpose.msra.mxu0 0.0
      %1596 = vmatprep.subr.mxu0 0.0
      %1597 = vmatpush1.xpose.msra.mxu0 0.0
      %1598 = vmatprep.subr.mxu0 0.0
      %1599 = vmatpush1.xpose.msra.mxu0 0.0
      %1600 = vmatprep.subr.mxu0 0.0
      %1601 = vmatpush1.xpose.msra.mxu0 0.0
      %1602 = vmatprep.subr.mxu0 0.0
      %1603 = vmatpush1.xpose.msra.mxu0 0.0
      %1604 = vmatprep.subr.mxu0 0.0
      %1605 = vmatpush1.xpose.msra.mxu0 0.0
      %1606 = vmatprep.subr.mxu0 0.0
      %1607 = vmatpush1.xpose.msra.mxu0 0.0
      %1608 = vmatprep.subr.mxu0 0.0
      %1609 = vmatpush1.xpose.msra.mxu0 0.0
      %1610 = vmatprep.subr.mxu0 0.0
      %1611 = vmatpush1.xpose.msra.mxu0 0.0
      %1612 = vmatprep.subr.mxu0 0.0
      %1613 = vmatpush1.xpose.msra.mxu0 0.0
      %1614 = vmatprep.subr.mxu0 0.0
      %1615 = vmatpush1.xpose.msra.mxu0 0.0
      %1616 = vmatprep.mubr.f32.mxu0 0.0
      %1617 = vmatmul.mubr.f32.gmra.mrb[0].mxu0 %v1547
      %v1618 = vpop.f32.mrb[0].mxu0
      %v1619 = vadd.f32 %v388, %v1618
      %v1620 = vpop.f32.mrb[0].mxu0
      %1621 = vdwg.mxu0
      %v1623 = vsel %vm405, %v293, 0
      %v1626 = vsel %vm405, %v325, 0
      %1628 = vmatprep.subr.mxu0 0.0
      %1629 = vmatpush1.xpose.msra.mxu0 %v1626
      %1630 = vmatprep.subr.mxu0 0.0
      %1631 = vmatpush1.xpose.msra.mxu0 0.0
      %1632 = vmatprep.subr.mxu0 0.0
      %1633 = vmatpush1.xpose.msra.mxu0 0.0
      %1634 = vmatprep.subr.mxu0 0.0
      %1635 = vmatpush1.xpose.msra.mxu0 0.0
      %1636 = vmatprep.subr.mxu0 0.0
      %1637 = vmatpush1.xpose.msra.mxu0 0.0
      %1638 = vmatprep.subr.mxu0 0.0
      %1639 = vmatpush1.xpose.msra.mxu0 0.0
      %1640 = vmatprep.subr.mxu0 0.0
      %1641 = vmatpush1.xpose.msra.mxu0 0.0
      %1642 = vmatprep.subr.mxu0 0.0
      %1643 = vmatpush1.xpose.msra.mxu0 0.0
      %1644 = vmatprep.subr.mxu0 0.0
      %1645 = vmatpush1.xpose.msra.mxu0 0.0
      %1646 = vmatprep.subr.mxu0 0.0
      %1647 = vmatpush1.xpose.msra.mxu0 0.0
      %1648 = vmatprep.subr.mxu0 0.0
      %1649 = vmatpush1.xpose.msra.mxu0 0.0
      %1650 = vmatprep.subr.mxu0 0.0
      %1651 = vmatpush1.xpose.msra.mxu0 0.0
      %1652 = vmatprep.subr.mxu0 0.0
      %1653 = vmatpush1.xpose.msra.mxu0 0.0
      %1654 = vmatprep.subr.mxu0 0.0
      %1655 = vmatpush1.xpose.msra.mxu0 0.0
      %1656 = vmatprep.subr.mxu0 0.0
      %1657 = vmatpush1.xpose.msra.mxu0 0.0
      %1658 = vmatprep.subr.mxu0 0.0
      %1659 = vmatpush1.xpose.msra.mxu0 0.0
      %1660 = vmatprep.subr.mxu0 0.0
      %1661 = vmatpush1.xpose.msra.mxu0 0.0
      %1662 = vmatprep.subr.mxu0 0.0
      %1663 = vmatpush1.xpose.msra.mxu0 0.0
      %1664 = vmatprep.subr.mxu0 0.0
      %1665 = vmatpush1.xpose.msra.mxu0 0.0
      %1666 = vmatprep.subr.mxu0 0.0
      %1667 = vmatpush1.xpose.msra.mxu0 0.0
      %1668 = vmatprep.subr.mxu0 0.0
      %1669 = vmatpush1.xpose.msra.mxu0 0.0
      %1670 = vmatprep.subr.mxu0 0.0
      %1671 = vmatpush1.xpose.msra.mxu0 0.0
      %1672 = vmatprep.subr.mxu0 0.0
      %1673 = vmatpush1.xpose.msra.mxu0 0.0
      %1674 = vmatprep.subr.mxu0 0.0
      %1675 = vmatpush1.xpose.msra.mxu0 0.0
      %1676 = vmatprep.subr.mxu0 0.0
      %1677 = vmatpush1.xpose.msra.mxu0 0.0
      %1678 = vmatprep.subr.mxu0 0.0
      %1679 = vmatpush1.xpose.msra.mxu0 0.0
      %1680 = vmatprep.subr.mxu0 0.0
      %1681 = vmatpush1.xpose.msra.mxu0 0.0
      %1682 = vmatprep.subr.mxu0 0.0
      %1683 = vmatpush1.xpose.msra.mxu0 0.0
      %1684 = vmatprep.subr.mxu0 0.0
      %1685 = vmatpush1.xpose.msra.mxu0 0.0
      %1686 = vmatprep.subr.mxu0 0.0
      %1687 = vmatpush1.xpose.msra.mxu0 0.0
      %1688 = vmatprep.subr.mxu0 0.0
      %1689 = vmatpush1.xpose.msra.mxu0 0.0
      %1690 = vmatprep.subr.mxu0 0.0
      %1691 = vmatpush1.xpose.msra.mxu0 0.0
      %1692 = vmatprep.mubr.f32.mxu0 0.0
      %1693 = vmatmul.mubr.f32.gmra.mrb[0].mxu0 %v1623
      %v1694 = vpop.f32.mrb[0].mxu0
      %v1695 = vadd.f32 %v389, %v1694
      %v1696 = vpop.f32.mrb[0].mxu0
      %1697 = vdwg.mxu0
      %v1699 = vsel %vm405, %v294, 0
      %v1702 = vsel %vm405, %v326, 0
      %1704 = vmatprep.subr.mxu0 0.0
      %1705 = vmatpush1.xpose.msra.mxu0 %v1702
      %1706 = vmatprep.subr.mxu0 0.0
      %1707 = vmatpush1.xpose.msra.mxu0 0.0
      %1708 = vmatprep.subr.mxu0 0.0
      %1709 = vmatpush1.xpose.msra.mxu0 0.0
      %1710 = vmatprep.subr.mxu0 0.0
      %1711 = vmatpush1.xpose.msra.mxu0 0.0
      %1712 = vmatprep.subr.mxu0 0.0
      %1713 = vmatpush1.xpose.msra.mxu0 0.0
      %1714 = vmatprep.subr.mxu0 0.0
      %1715 = vmatpush1.xpose.msra.mxu0 0.0
      %1716 = vmatprep.subr.mxu0 0.0
      %1717 = vmatpush1.xpose.msra.mxu0 0.0
      %1718 = vmatprep.subr.mxu0 0.0
      %1719 = vmatpush1.xpose.msra.mxu0 0.0
      %1720 = vmatprep.subr.mxu0 0.0
      %1721 = vmatpush1.xpose.msra.mxu0 0.0
      %1722 = vmatprep.subr.mxu0 0.0
      %1723 = vmatpush1.xpose.msra.mxu0 0.0
      %1724 = vmatprep.subr.mxu0 0.0
      %1725 = vmatpush1.xpose.msra.mxu0 0.0
      %1726 = vmatprep.subr.mxu0 0.0
      %1727 = vmatpush1.xpose.msra.mxu0 0.0
      %1728 = vmatprep.subr.mxu0 0.0
      %1729 = vmatpush1.xpose.msra.mxu0 0.0
      %1730 = vmatprep.subr.mxu0 0.0
      %1731 = vmatpush1.xpose.msra.mxu0 0.0
      %1732 = vmatprep.subr.mxu0 0.0
      %1733 = vmatpush1.xpose.msra.mxu0 0.0
      %1734 = vmatprep.subr.mxu0 0.0
      %1735 = vmatpush1.xpose.msra.mxu0 0.0
      %1736 = vmatprep.subr.mxu0 0.0
      %1737 = vmatpush1.xpose.msra.mxu0 0.0
      %1738 = vmatprep.subr.mxu0 0.0
      %1739 = vmatpush1.xpose.msra.mxu0 0.0
      %1740 = vmatprep.subr.mxu0 0.0
      %1741 = vmatpush1.xpose.msra.mxu0 0.0
      %1742 = vmatprep.subr.mxu0 0.0
      %1743 = vmatpush1.xpose.msra.mxu0 0.0
      %1744 = vmatprep.subr.mxu0 0.0
      %1745 = vmatpush1.xpose.msra.mxu0 0.0
      %1746 = vmatprep.subr.mxu0 0.0
      %1747 = vmatpush1.xpose.msra.mxu0 0.0
      %1748 = vmatprep.subr.mxu0 0.0
      %1749 = vmatpush1.xpose.msra.mxu0 0.0
      %1750 = vmatprep.subr.mxu0 0.0
      %1751 = vmatpush1.xpose.msra.mxu0 0.0
      %1752 = vmatprep.subr.mxu0 0.0
      %1753 = vmatpush1.xpose.msra.mxu0 0.0
      %1754 = vmatprep.subr.mxu0 0.0
      %1755 = vmatpush1.xpose.msra.mxu0 0.0
      %1756 = vmatprep.subr.mxu0 0.0
      %1757 = vmatpush1.xpose.msra.mxu0 0.0
      %1758 = vmatprep.subr.mxu0 0.0
      %1759 = vmatpush1.xpose.msra.mxu0 0.0
      %1760 = vmatprep.subr.mxu0 0.0
      %1761 = vmatpush1.xpose.msra.mxu0 0.0
      %1762 = vmatprep.subr.mxu0 0.0
      %1763 = vmatpush1.xpose.msra.mxu0 0.0
      %1764 = vmatprep.subr.mxu0 0.0
      %1765 = vmatpush1.xpose.msra.mxu0 0.0
      %1766 = vmatprep.subr.mxu0 0.0
      %1767 = vmatpush1.xpose.msra.mxu0 0.0
      %1768 = vmatprep.mubr.f32.mxu0 0.0
      %1769 = vmatmul.mubr.f32.gmra.mrb[0].mxu0 %v1699
      %v1770 = vpop.f32.mrb[0].mxu0
      %v1771 = vadd.f32 %v390, %v1770
      %v1772 = vpop.f32.mrb[0].mxu0
      %1773 = vdwg.mxu0
      %v1775 = vsel %vm405, %v295, 0
      %v1778 = vsel %vm405, %v327, 0
      %1780 = vmatprep.subr.mxu0 0.0
      %1781 = vmatpush1.xpose.msra.mxu0 %v1778
      %1782 = vmatprep.subr.mxu0 0.0
      %1783 = vmatpush1.xpose.msra.mxu0 0.0
      %1784 = vmatprep.subr.mxu0 0.0
      %1785 = vmatpush1.xpose.msra.mxu0 0.0
      %1786 = vmatprep.subr.mxu0 0.0
      %1787 = vmatpush1.xpose.msra.mxu0 0.0
      %1788 = vmatprep.subr.mxu0 0.0
      %1789 = vmatpush1.xpose.msra.mxu0 0.0
      %1790 = vmatprep.subr.mxu0 0.0
      %1791 = vmatpush1.xpose.msra.mxu0 0.0
      %1792 = vmatprep.subr.mxu0 0.0
      %1793 = vmatpush1.xpose.msra.mxu0 0.0
      %1794 = vmatprep.subr.mxu0 0.0
      %1795 = vmatpush1.xpose.msra.mxu0 0.0
      %1796 = vmatprep.subr.mxu0 0.0
      %1797 = vmatpush1.xpose.msra.mxu0 0.0
      %1798 = vmatprep.subr.mxu0 0.0
      %1799 = vmatpush1.xpose.msra.mxu0 0.0
      %1800 = vmatprep.subr.mxu0 0.0
      %1801 = vmatpush1.xpose.msra.mxu0 0.0
      %1802 = vmatprep.subr.mxu0 0.0
      %1803 = vmatpush1.xpose.msra.mxu0 0.0
      %1804 = vmatprep.subr.mxu0 0.0
      %1805 = vmatpush1.xpose.msra.mxu0 0.0
      %1806 = vmatprep.subr.mxu0 0.0
      %1807 = vmatpush1.xpose.msra.mxu0 0.0
      %1808 = vmatprep.subr.mxu0 0.0
      %1809 = vmatpush1.xpose.msra.mxu0 0.0
      %1810 = vmatprep.subr.mxu0 0.0
      %1811 = vmatpush1.xpose.msra.mxu0 0.0
      %1812 = vmatprep.subr.mxu0 0.0
      %1813 = vmatpush1.xpose.msra.mxu0 0.0
      %1814 = vmatprep.subr.mxu0 0.0
      %1815 = vmatpush1.xpose.msra.mxu0 0.0
      %1816 = vmatprep.subr.mxu0 0.0
      %1817 = vmatpush1.xpose.msra.mxu0 0.0
      %1818 = vmatprep.subr.mxu0 0.0
      %1819 = vmatpush1.xpose.msra.mxu0 0.0
      %1820 = vmatprep.subr.mxu0 0.0
      %1821 = vmatpush1.xpose.msra.mxu0 0.0
      %1822 = vmatprep.subr.mxu0 0.0
      %1823 = vmatpush1.xpose.msra.mxu0 0.0
      %1824 = vmatprep.subr.mxu0 0.0
      %1825 = vmatpush1.xpose.msra.mxu0 0.0
      %1826 = vmatprep.subr.mxu0 0.0
      %1827 = vmatpush1.xpose.msra.mxu0 0.0
      %1828 = vmatprep.subr.mxu0 0.0
      %1829 = vmatpush1.xpose.msra.mxu0 0.0
      %1830 = vmatprep.subr.mxu0 0.0
      %1831 = vmatpush1.xpose.msra.mxu0 0.0
      %1832 = vmatprep.subr.mxu0 0.0
      %1833 = vmatpush1.xpose.msra.mxu0 0.0
      %1834 = vmatprep.subr.mxu0 0.0
      %1835 = vmatpush1.xpose.msra.mxu0 0.0
      %1836 = vmatprep.subr.mxu0 0.0
      %1837 = vmatpush1.xpose.msra.mxu0 0.0
      %1838 = vmatprep.subr.mxu0 0.0
      %1839 = vmatpush1.xpose.msra.mxu0 0.0
      %1840 = vmatprep.subr.mxu0 0.0
      %1841 = vmatpush1.xpose.msra.mxu0 0.0
      %1842 = vmatprep.subr.mxu0 0.0
      %1843 = vmatpush1.xpose.msra.mxu0 0.0
      %1844 = vmatprep.mubr.f32.mxu0 0.0
      %1845 = vmatmul.mubr.f32.gmra.mrb[0].mxu0 %v1775
      %v1846 = vpop.f32.mrb[0].mxu0
      %v1847 = vadd.f32 %v391, %v1846
      %v1848 = vpop.f32.mrb[0].mxu0
      %1849 = vdwg.mxu0
      %v1851 = vsel %vm405, %v296, 0
      %v1854 = vsel %vm405, %v328, 0
      %1856 = vmatprep.subr.mxu0 0.0
      %1857 = vmatpush1.xpose.msra.mxu0 %v1854
      %1858 = vmatprep.subr.mxu0 0.0
      %1859 = vmatpush1.xpose.msra.mxu0 0.0
      %1860 = vmatprep.subr.mxu0 0.0
      %1861 = vmatpush1.xpose.msra.mxu0 0.0
      %1862 = vmatprep.subr.mxu0 0.0
      %1863 = vmatpush1.xpose.msra.mxu0 0.0
      %1864 = vmatprep.subr.mxu0 0.0
      %1865 = vmatpush1.xpose.msra.mxu0 0.0
      %1866 = vmatprep.subr.mxu0 0.0
      %1867 = vmatpush1.xpose.msra.mxu0 0.0
      %1868 = vmatprep.subr.mxu0 0.0
      %1869 = vmatpush1.xpose.msra.mxu0 0.0
      %1870 = vmatprep.subr.mxu0 0.0
      %1871 = vmatpush1.xpose.msra.mxu0 0.0
      %1872 = vmatprep.subr.mxu0 0.0
      %1873 = vmatpush1.xpose.msra.mxu0 0.0
      %1874 = vmatprep.subr.mxu0 0.0
      %1875 = vmatpush1.xpose.msra.mxu0 0.0
      %1876 = vmatprep.subr.mxu0 0.0
      %1877 = vmatpush1.xpose.msra.mxu0 0.0
      %1878 = vmatprep.subr.mxu0 0.0
      %1879 = vmatpush1.xpose.msra.mxu0 0.0
      %1880 = vmatprep.subr.mxu0 0.0
      %1881 = vmatpush1.xpose.msra.mxu0 0.0
      %1882 = vmatprep.subr.mxu0 0.0
      %1883 = vmatpush1.xpose.msra.mxu0 0.0
      %1884 = vmatprep.subr.mxu0 0.0
      %1885 = vmatpush1.xpose.msra.mxu0 0.0
      %1886 = vmatprep.subr.mxu0 0.0
      %1887 = vmatpush1.xpose.msra.mxu0 0.0
      %1888 = vmatprep.subr.mxu0 0.0
      %1889 = vmatpush1.xpose.msra.mxu0 0.0
      %1890 = vmatprep.subr.mxu0 0.0
      %1891 = vmatpush1.xpose.msra.mxu0 0.0
      %1892 = vmatprep.subr.mxu0 0.0
      %1893 = vmatpush1.xpose.msra.mxu0 0.0
      %1894 = vmatprep.subr.mxu0 0.0
      %1895 = vmatpush1.xpose.msra.mxu0 0.0
      %1896 = vmatprep.subr.mxu0 0.0
      %1897 = vmatpush1.xpose.msra.mxu0 0.0
      %1898 = vmatprep.subr.mxu0 0.0
      %1899 = vmatpush1.xpose.msra.mxu0 0.0
      %1900 = vmatprep.subr.mxu0 0.0
      %1901 = vmatpush1.xpose.msra.mxu0 0.0
      %1902 = vmatprep.subr.mxu0 0.0
      %1903 = vmatpush1.xpose.msra.mxu0 0.0
      %1904 = vmatprep.subr.mxu0 0.0
      %1905 = vmatpush1.xpose.msra.mxu0 0.0
      %1906 = vmatprep.subr.mxu0 0.0
      %1907 = vmatpush1.xpose.msra.mxu0 0.0
      %1908 = vmatprep.subr.mxu0 0.0
      %1909 = vmatpush1.xpose.msra.mxu0 0.0
      %1910 = vmatprep.subr.mxu0 0.0
      %1911 = vmatpush1.xpose.msra.mxu0 0.0
      %1912 = vmatprep.subr.mxu0 0.0
      %1913 = vmatpush1.xpose.msra.mxu0 0.0
      %1914 = vmatprep.subr.mxu0 0.0
      %1915 = vmatpush1.xpose.msra.mxu0 0.0
      %1916 = vmatprep.subr.mxu0 0.0
      %1917 = vmatpush1.xpose.msra.mxu0 0.0
      %1918 = vmatprep.subr.mxu0 0.0
      %1919 = vmatpush1.xpose.msra.mxu0 0.0
      %1920 = vmatprep.mubr.f32.mxu0 0.0
      %1921 = vmatmul.mubr.f32.gmra.mrb[0].mxu0 %v1851
      %v1922 = vpop.f32.mrb[0].mxu0
      %v1923 = vadd.f32 %v392, %v1922
      %v1924 = vpop.f32.mrb[0].mxu0
      %1925 = vdwg.mxu0
      %v1927 = vsel %vm405, %v297, 0
      %v1930 = vsel %vm405, %v329, 0
      %1932 = vmatprep.subr.mxu0 0.0
      %1933 = vmatpush1.xpose.msra.mxu0 %v1930
      %1934 = vmatprep.subr.mxu0 0.0
      %1935 = vmatpush1.xpose.msra.mxu0 0.0
      %1936 = vmatprep.subr.mxu0 0.0
      %1937 = vmatpush1.xpose.msra.mxu0 0.0
      %1938 = vmatprep.subr.mxu0 0.0
      %1939 = vmatpush1.xpose.msra.mxu0 0.0
      %1940 = vmatprep.subr.mxu0 0.0
      %1941 = vmatpush1.xpose.msra.mxu0 0.0
      %1942 = vmatprep.subr.mxu0 0.0
      %1943 = vmatpush1.xpose.msra.mxu0 0.0
      %1944 = vmatprep.subr.mxu0 0.0
      %1945 = vmatpush1.xpose.msra.mxu0 0.0
      %1946 = vmatprep.subr.mxu0 0.0
      %1947 = vmatpush1.xpose.msra.mxu0 0.0
      %1948 = vmatprep.subr.mxu0 0.0
      %1949 = vmatpush1.xpose.msra.mxu0 0.0
      %1950 = vmatprep.subr.mxu0 0.0
      %1951 = vmatpush1.xpose.msra.mxu0 0.0
      %1952 = vmatprep.subr.mxu0 0.0
      %1953 = vmatpush1.xpose.msra.mxu0 0.0
      %1954 = vmatprep.subr.mxu0 0.0
      %1955 = vmatpush1.xpose.msra.mxu0 0.0
      %1956 = vmatprep.subr.mxu0 0.0
      %1957 = vmatpush1.xpose.msra.mxu0 0.0
      %1958 = vmatprep.subr.mxu0 0.0
      %1959 = vmatpush1.xpose.msra.mxu0 0.0
      %1960 = vmatprep.subr.mxu0 0.0
      %1961 = vmatpush1.xpose.msra.mxu0 0.0
      %1962 = vmatprep.subr.mxu0 0.0
      %1963 = vmatpush1.xpose.msra.mxu0 0.0
      %1964 = vmatprep.subr.mxu0 0.0
      %1965 = vmatpush1.xpose.msra.mxu0 0.0
      %1966 = vmatprep.subr.mxu0 0.0
      %1967 = vmatpush1.xpose.msra.mxu0 0.0
      %1968 = vmatprep.subr.mxu0 0.0
      %1969 = vmatpush1.xpose.msra.mxu0 0.0
      %1970 = vmatprep.subr.mxu0 0.0
      %1971 = vmatpush1.xpose.msra.mxu0 0.0
      %1972 = vmatprep.subr.mxu0 0.0
      %1973 = vmatpush1.xpose.msra.mxu0 0.0
      %1974 = vmatprep.subr.mxu0 0.0
      %1975 = vmatpush1.xpose.msra.mxu0 0.0
      %1976 = vmatprep.subr.mxu0 0.0
      %1977 = vmatpush1.xpose.msra.mxu0 0.0
      %1978 = vmatprep.subr.mxu0 0.0
      %1979 = vmatpush1.xpose.msra.mxu0 0.0
      %1980 = vmatprep.subr.mxu0 0.0
      %1981 = vmatpush1.xpose.msra.mxu0 0.0
      %1982 = vmatprep.subr.mxu0 0.0
      %1983 = vmatpush1.xpose.msra.mxu0 0.0
      %1984 = vmatprep.subr.mxu0 0.0
      %1985 = vmatpush1.xpose.msra.mxu0 0.0
      %1986 = vmatprep.subr.mxu0 0.0
      %1987 = vmatpush1.xpose.msra.mxu0 0.0
      %1988 = vmatprep.subr.mxu0 0.0
      %1989 = vmatpush1.xpose.msra.mxu0 0.0
      %1990 = vmatprep.subr.mxu0 0.0
      %1991 = vmatpush1.xpose.msra.mxu0 0.0
      %1992 = vmatprep.subr.mxu0 0.0
      %1993 = vmatpush1.xpose.msra.mxu0 0.0
      %1994 = vmatprep.subr.mxu0 0.0
      %1995 = vmatpush1.xpose.msra.mxu0 0.0
      %1996 = vmatprep.mubr.f32.mxu0 0.0
      %1997 = vmatmul.mubr.f32.gmra.mrb[0].mxu0 %v1927
      %v1998 = vpop.f32.mrb[0].mxu0
      %v1999 = vadd.f32 %v393, %v1998
      %v2000 = vpop.f32.mrb[0].mxu0
      %2001 = vdwg.mxu0
      %v2003 = vsel %vm405, %v298, 0
      %v2006 = vsel %vm405, %v330, 0
      %2008 = vmatprep.subr.mxu0 0.0
      %2009 = vmatpush1.xpose.msra.mxu0 %v2006
      %2010 = vmatprep.subr.mxu0 0.0
      %2011 = vmatpush1.xpose.msra.mxu0 0.0
      %2012 = vmatprep.subr.mxu0 0.0
      %2013 = vmatpush1.xpose.msra.mxu0 0.0
      %2014 = vmatprep.subr.mxu0 0.0
      %2015 = vmatpush1.xpose.msra.mxu0 0.0
      %2016 = vmatprep.subr.mxu0 0.0
      %2017 = vmatpush1.xpose.msra.mxu0 0.0
      %2018 = vmatprep.subr.mxu0 0.0
      %2019 = vmatpush1.xpose.msra.mxu0 0.0
      %2020 = vmatprep.subr.mxu0 0.0
      %2021 = vmatpush1.xpose.msra.mxu0 0.0
      %2022 = vmatprep.subr.mxu0 0.0
      %2023 = vmatpush1.xpose.msra.mxu0 0.0
      %2024 = vmatprep.subr.mxu0 0.0
      %2025 = vmatpush1.xpose.msra.mxu0 0.0
      %2026 = vmatprep.subr.mxu0 0.0
      %2027 = vmatpush1.xpose.msra.mxu0 0.0
      %2028 = vmatprep.subr.mxu0 0.0
      %2029 = vmatpush1.xpose.msra.mxu0 0.0
      %2030 = vmatprep.subr.mxu0 0.0
      %2031 = vmatpush1.xpose.msra.mxu0 0.0
      %2032 = vmatprep.subr.mxu0 0.0
      %2033 = vmatpush1.xpose.msra.mxu0 0.0
      %2034 = vmatprep.subr.mxu0 0.0
      %2035 = vmatpush1.xpose.msra.mxu0 0.0
      %2036 = vmatprep.subr.mxu0 0.0
      %2037 = vmatpush1.xpose.msra.mxu0 0.0
      %2038 = vmatprep.subr.mxu0 0.0
      %2039 = vmatpush1.xpose.msra.mxu0 0.0
      %2040 = vmatprep.subr.mxu0 0.0
      %2041 = vmatpush1.xpose.msra.mxu0 0.0
      %2042 = vmatprep.subr.mxu0 0.0
      %2043 = vmatpush1.xpose.msra.mxu0 0.0
      %2044 = vmatprep.subr.mxu0 0.0
      %2045 = vmatpush1.xpose.msra.mxu0 0.0
      %2046 = vmatprep.subr.mxu0 0.0
      %2047 = vmatpush1.xpose.msra.mxu0 0.0
      %2048 = vmatprep.subr.mxu0 0.0
      %2049 = vmatpush1.xpose.msra.mxu0 0.0
      %2050 = vmatprep.subr.mxu0 0.0
      %2051 = vmatpush1.xpose.msra.mxu0 0.0
      %2052 = vmatprep.subr.mxu0 0.0
      %2053 = vmatpush1.xpose.msra.mxu0 0.0
      %2054 = vmatprep.subr.mxu0 0.0
      %2055 = vmatpush1.xpose.msra.mxu0 0.0
      %2056 = vmatprep.subr.mxu0 0.0
      %2057 = vmatpush1.xpose.msra.mxu0 0.0
      %2058 = vmatprep.subr.mxu0 0.0
      %2059 = vmatpush1.xpose.msra.mxu0 0.0
      %2060 = vmatprep.subr.mxu0 0.0
      %2061 = vmatpush1.xpose.msra.mxu0 0.0
      %2062 = vmatprep.subr.mxu0 0.0
      %2063 = vmatpush1.xpose.msra.mxu0 0.0
      %2064 = vmatprep.subr.mxu0 0.0
      %2065 = vmatpush1.xpose.msra.mxu0 0.0
      %2066 = vmatprep.subr.mxu0 0.0
      %2067 = vmatpush1.xpose.msra.mxu0 0.0
      %2068 = vmatprep.subr.mxu0 0.0
      %2069 = vmatpush1.xpose.msra.mxu0 0.0
      %2070 = vmatprep.subr.mxu0 0.0
      %2071 = vmatpush1.xpose.msra.mxu0 0.0
      %2072 = vmatprep.mubr.f32.mxu0 0.0
      %2073 = vmatmul.mubr.f32.gmra.mrb[0].mxu0 %v2003
      %v2074 = vpop.f32.mrb[0].mxu0
      %v2075 = vadd.f32 %v394, %v2074
      %v2076 = vpop.f32.mrb[0].mxu0
      %2077 = vdwg.mxu0
      %v2079 = vsel %vm405, %v299, 0
      %v2082 = vsel %vm405, %v331, 0
      %2084 = vmatprep.subr.mxu0 0.0
      %2085 = vmatpush1.xpose.msra.mxu0 %v2082
      %2086 = vmatprep.subr.mxu0 0.0
      %2087 = vmatpush1.xpose.msra.mxu0 0.0
      %2088 = vmatprep.subr.mxu0 0.0
      %2089 = vmatpush1.xpose.msra.mxu0 0.0
      %2090 = vmatprep.subr.mxu0 0.0
      %2091 = vmatpush1.xpose.msra.mxu0 0.0
      %2092 = vmatprep.subr.mxu0 0.0
      %2093 = vmatpush1.xpose.msra.mxu0 0.0
      %2094 = vmatprep.subr.mxu0 0.0
      %2095 = vmatpush1.xpose.msra.mxu0 0.0
      %2096 = vmatprep.subr.mxu0 0.0
      %2097 = vmatpush1.xpose.msra.mxu0 0.0
      %2098 = vmatprep.subr.mxu0 0.0
      %2099 = vmatpush1.xpose.msra.mxu0 0.0
      %2100 = vmatprep.subr.mxu0 0.0
      %2101 = vmatpush1.xpose.msra.mxu0 0.0
      %2102 = vmatprep.subr.mxu0 0.0
      %2103 = vmatpush1.xpose.msra.mxu0 0.0
      %2104 = vmatprep.subr.mxu0 0.0
      %2105 = vmatpush1.xpose.msra.mxu0 0.0
      %2106 = vmatprep.subr.mxu0 0.0
      %2107 = vmatpush1.xpose.msra.mxu0 0.0
      %2108 = vmatprep.subr.mxu0 0.0
      %2109 = vmatpush1.xpose.msra.mxu0 0.0
      %2110 = vmatprep.subr.mxu0 0.0
      %2111 = vmatpush1.xpose.msra.mxu0 0.0
      %2112 = vmatprep.subr.mxu0 0.0
      %2113 = vmatpush1.xpose.msra.mxu0 0.0
      %2114 = vmatprep.subr.mxu0 0.0
      %2115 = vmatpush1.xpose.msra.mxu0 0.0
      %2116 = vmatprep.subr.mxu0 0.0
      %2117 = vmatpush1.xpose.msra.mxu0 0.0
      %2118 = vmatprep.subr.mxu0 0.0
      %2119 = vmatpush1.xpose.msra.mxu0 0.0
      %2120 = vmatprep.subr.mxu0 0.0
      %2121 = vmatpush1.xpose.msra.mxu0 0.0
      %2122 = vmatprep.subr.mxu0 0.0
      %2123 = vmatpush1.xpose.msra.mxu0 0.0
      %2124 = vmatprep.subr.mxu0 0.0
      %2125 = vmatpush1.xpose.msra.mxu0 0.0
      %2126 = vmatprep.subr.mxu0 0.0
      %2127 = vmatpush1.xpose.msra.mxu0 0.0
      %2128 = vmatprep.subr.mxu0 0.0
      %2129 = vmatpush1.xpose.msra.mxu0 0.0
      %2130 = vmatprep.subr.mxu0 0.0
      %2131 = vmatpush1.xpose.msra.mxu0 0.0
      %2132 = vmatprep.subr.mxu0 0.0
      %2133 = vmatpush1.xpose.msra.mxu0 0.0
      %2134 = vmatprep.subr.mxu0 0.0
      %2135 = vmatpush1.xpose.msra.mxu0 0.0
      %2136 = vmatprep.subr.mxu0 0.0
      %2137 = vmatpush1.xpose.msra.mxu0 0.0
      %2138 = vmatprep.subr.mxu0 0.0
      %2139 = vmatpush1.xpose.msra.mxu0 0.0
      %2140 = vmatprep.subr.mxu0 0.0
      %2141 = vmatpush1.xpose.msra.mxu0 0.0
      %2142 = vmatprep.subr.mxu0 0.0
      %2143 = vmatpush1.xpose.msra.mxu0 0.0
      %2144 = vmatprep.subr.mxu0 0.0
      %2145 = vmatpush1.xpose.msra.mxu0 0.0
      %2146 = vmatprep.subr.mxu0 0.0
      %2147 = vmatpush1.xpose.msra.mxu0 0.0
      %2148 = vmatprep.mubr.f32.mxu0 0.0
      %2149 = vmatmul.mubr.f32.gmra.mrb[0].mxu0 %v2079
      %v2150 = vpop.f32.mrb[0].mxu0
      %v2151 = vadd.f32 %v395, %v2150
      %v2152 = vpop.f32.mrb[0].mxu0
      %2153 = vdwg.mxu0
      %v2155 = vsel %vm405, %v300, 0
      %v2158 = vsel %vm405, %v332, 0
      %2160 = vmatprep.subr.mxu0 0.0
      %2161 = vmatpush1.xpose.msra.mxu0 %v2158
      %2162 = vmatprep.subr.mxu0 0.0
      %2163 = vmatpush1.xpose.msra.mxu0 0.0
      %2164 = vmatprep.subr.mxu0 0.0
      %2165 = vmatpush1.xpose.msra.mxu0 0.0
      %2166 = vmatprep.subr.mxu0 0.0
      %2167 = vmatpush1.xpose.msra.mxu0 0.0
      %2168 = vmatprep.subr.mxu0 0.0
      %2169 = vmatpush1.xpose.msra.mxu0 0.0
      %2170 = vmatprep.subr.mxu0 0.0
      %2171 = vmatpush1.xpose.msra.mxu0 0.0
      %2172 = vmatprep.subr.mxu0 0.0
      %2173 = vmatpush1.xpose.msra.mxu0 0.0
      %2174 = vmatprep.subr.mxu0 0.0
      %2175 = vmatpush1.xpose.msra.mxu0 0.0
      %2176 = vmatprep.subr.mxu0 0.0
      %2177 = vmatpush1.xpose.msra.mxu0 0.0
      %2178 = vmatprep.subr.mxu0 0.0
      %2179 = vmatpush1.xpose.msra.mxu0 0.0
      %2180 = vmatprep.subr.mxu0 0.0
      %2181 = vmatpush1.xpose.msra.mxu0 0.0
      %2182 = vmatprep.subr.mxu0 0.0
      %2183 = vmatpush1.xpose.msra.mxu0 0.0
      %2184 = vmatprep.subr.mxu0 0.0
      %2185 = vmatpush1.xpose.msra.mxu0 0.0
      %2186 = vmatprep.subr.mxu0 0.0
      %2187 = vmatpush1.xpose.msra.mxu0 0.0
      %2188 = vmatprep.subr.mxu0 0.0
      %2189 = vmatpush1.xpose.msra.mxu0 0.0
      %2190 = vmatprep.subr.mxu0 0.0
      %2191 = vmatpush1.xpose.msra.mxu0 0.0
      %2192 = vmatprep.subr.mxu0 0.0
      %2193 = vmatpush1.xpose.msra.mxu0 0.0
      %2194 = vmatprep.subr.mxu0 0.0
      %2195 = vmatpush1.xpose.msra.mxu0 0.0
      %2196 = vmatprep.subr.mxu0 0.0
      %2197 = vmatpush1.xpose.msra.mxu0 0.0
      %2198 = vmatprep.subr.mxu0 0.0
      %2199 = vmatpush1.xpose.msra.mxu0 0.0
      %2200 = vmatprep.subr.mxu0 0.0
      %2201 = vmatpush1.xpose.msra.mxu0 0.0
      %2202 = vmatprep.subr.mxu0 0.0
      %2203 = vmatpush1.xpose.msra.mxu0 0.0
      %2204 = vmatprep.subr.mxu0 0.0
      %2205 = vmatpush1.xpose.msra.mxu0 0.0
      %2206 = vmatprep.subr.mxu0 0.0
      %2207 = vmatpush1.xpose.msra.mxu0 0.0
      %2208 = vmatprep.subr.mxu0 0.0
      %2209 = vmatpush1.xpose.msra.mxu0 0.0
      %2210 = vmatprep.subr.mxu0 0.0
      %2211 = vmatpush1.xpose.msra.mxu0 0.0
      %2212 = vmatprep.subr.mxu0 0.0
      %2213 = vmatpush1.xpose.msra.mxu0 0.0
      %2214 = vmatprep.subr.mxu0 0.0
      %2215 = vmatpush1.xpose.msra.mxu0 0.0
      %2216 = vmatprep.subr.mxu0 0.0
      %2217 = vmatpush1.xpose.msra.mxu0 0.0
      %2218 = vmatprep.subr.mxu0 0.0
      %2219 = vmatpush1.xpose.msra.mxu0 0.0
      %2220 = vmatprep.subr.mxu0 0.0
      %2221 = vmatpush1.xpose.msra.mxu0 0.0
      %2222 = vmatprep.subr.mxu0 0.0
      %2223 = vmatpush1.xpose.msra.mxu0 0.0
      %2224 = vmatprep.mubr.f32.mxu0 0.0
      %2225 = vmatmul.mubr.f32.gmra.mrb[0].mxu0 %v2155
      %v2226 = vpop.f32.mrb[0].mxu0
      %v2227 = vadd.f32 %v396, %v2226
      %v2228 = vpop.f32.mrb[0].mxu0
      %2229 = vdwg.mxu0
      %v2231 = vsel %vm405, %v301, 0
      %v2234 = vsel %vm405, %v333, 0
      %2236 = vmatprep.subr.mxu0 0.0
      %2237 = vmatpush1.xpose.msra.mxu0 %v2234
      %2238 = vmatprep.subr.mxu0 0.0
      %2239 = vmatpush1.xpose.msra.mxu0 0.0
      %2240 = vmatprep.subr.mxu0 0.0
      %2241 = vmatpush1.xpose.msra.mxu0 0.0
      %2242 = vmatprep.subr.mxu0 0.0
      %2243 = vmatpush1.xpose.msra.mxu0 0.0
      %2244 = vmatprep.subr.mxu0 0.0
      %2245 = vmatpush1.xpose.msra.mxu0 0.0
      %2246 = vmatprep.subr.mxu0 0.0
      %2247 = vmatpush1.xpose.msra.mxu0 0.0
      %2248 = vmatprep.subr.mxu0 0.0
      %2249 = vmatpush1.xpose.msra.mxu0 0.0
      %2250 = vmatprep.subr.mxu0 0.0
      %2251 = vmatpush1.xpose.msra.mxu0 0.0
      %2252 = vmatprep.subr.mxu0 0.0
      %2253 = vmatpush1.xpose.msra.mxu0 0.0
      %2254 = vmatprep.subr.mxu0 0.0
      %2255 = vmatpush1.xpose.msra.mxu0 0.0
      %2256 = vmatprep.subr.mxu0 0.0
      %2257 = vmatpush1.xpose.msra.mxu0 0.0
      %2258 = vmatprep.subr.mxu0 0.0
      %2259 = vmatpush1.xpose.msra.mxu0 0.0
      %2260 = vmatprep.subr.mxu0 0.0
      %2261 = vmatpush1.xpose.msra.mxu0 0.0
      %2262 = vmatprep.subr.mxu0 0.0
      %2263 = vmatpush1.xpose.msra.mxu0 0.0
      %2264 = vmatprep.subr.mxu0 0.0
      %2265 = vmatpush1.xpose.msra.mxu0 0.0
      %2266 = vmatprep.subr.mxu0 0.0
      %2267 = vmatpush1.xpose.msra.mxu0 0.0
      %2268 = vmatprep.subr.mxu0 0.0
      %2269 = vmatpush1.xpose.msra.mxu0 0.0
      %2270 = vmatprep.subr.mxu0 0.0
      %2271 = vmatpush1.xpose.msra.mxu0 0.0
      %2272 = vmatprep.subr.mxu0 0.0
      %2273 = vmatpush1.xpose.msra.mxu0 0.0
      %2274 = vmatprep.subr.mxu0 0.0
      %2275 = vmatpush1.xpose.msra.mxu0 0.0
      %2276 = vmatprep.subr.mxu0 0.0
      %2277 = vmatpush1.xpose.msra.mxu0 0.0
      %2278 = vmatprep.subr.mxu0 0.0
      %2279 = vmatpush1.xpose.msra.mxu0 0.0
      %2280 = vmatprep.subr.mxu0 0.0
      %2281 = vmatpush1.xpose.msra.mxu0 0.0
      %2282 = vmatprep.subr.mxu0 0.0
      %2283 = vmatpush1.xpose.msra.mxu0 0.0
      %2284 = vmatprep.subr.mxu0 0.0
      %2285 = vmatpush1.xpose.msra.mxu0 0.0
      %2286 = vmatprep.subr.mxu0 0.0
      %2287 = vmatpush1.xpose.msra.mxu0 0.0
      %2288 = vmatprep.subr.mxu0 0.0
      %2289 = vmatpush1.xpose.msra.mxu0 0.0
      %2290 = vmatprep.subr.mxu0 0.0
      %2291 = vmatpush1.xpose.msra.mxu0 0.0
      %2292 = vmatprep.subr.mxu0 0.0
      %2293 = vmatpush1.xpose.msra.mxu0 0.0
      %2294 = vmatprep.subr.mxu0 0.0
      %2295 = vmatpush1.xpose.msra.mxu0 0.0
      %2296 = vmatprep.subr.mxu0 0.0
      %2297 = vmatpush1.xpose.msra.mxu0 0.0
      %2298 = vmatprep.subr.mxu0 0.0
      %2299 = vmatpush1.xpose.msra.mxu0 0.0
      %2300 = vmatprep.mubr.f32.mxu0 0.0
      %2301 = vmatmul.mubr.f32.gmra.mrb[0].mxu0 %v2231
      %v2302 = vpop.f32.mrb[0].mxu0
      %v2303 = vadd.f32 %v397, %v2302
      %v2304 = vpop.f32.mrb[0].mxu0
      %2305 = vdwg.mxu0
      %v2307 = vsel %vm405, %v302, 0
      %v2310 = vsel %vm405, %v334, 0
      %2312 = vmatprep.subr.mxu0 0.0
      %2313 = vmatpush1.xpose.msra.mxu0 %v2310
      %2314 = vmatprep.subr.mxu0 0.0
      %2315 = vmatpush1.xpose.msra.mxu0 0.0
      %2316 = vmatprep.subr.mxu0 0.0
      %2317 = vmatpush1.xpose.msra.mxu0 0.0
      %2318 = vmatprep.subr.mxu0 0.0
      %2319 = vmatpush1.xpose.msra.mxu0 0.0
      %2320 = vmatprep.subr.mxu0 0.0
      %2321 = vmatpush1.xpose.msra.mxu0 0.0
      %2322 = vmatprep.subr.mxu0 0.0
      %2323 = vmatpush1.xpose.msra.mxu0 0.0
      %2324 = vmatprep.subr.mxu0 0.0
      %2325 = vmatpush1.xpose.msra.mxu0 0.0
      %2326 = vmatprep.subr.mxu0 0.0
      %2327 = vmatpush1.xpose.msra.mxu0 0.0
      %2328 = vmatprep.subr.mxu0 0.0
      %2329 = vmatpush1.xpose.msra.mxu0 0.0
      %2330 = vmatprep.subr.mxu0 0.0
      %2331 = vmatpush1.xpose.msra.mxu0 0.0
      %2332 = vmatprep.subr.mxu0 0.0
      %2333 = vmatpush1.xpose.msra.mxu0 0.0
      %2334 = vmatprep.subr.mxu0 0.0
      %2335 = vmatpush1.xpose.msra.mxu0 0.0
      %2336 = vmatprep.subr.mxu0 0.0
      %2337 = vmatpush1.xpose.msra.mxu0 0.0
      %2338 = vmatprep.subr.mxu0 0.0
      %2339 = vmatpush1.xpose.msra.mxu0 0.0
      %2340 = vmatprep.subr.mxu0 0.0
      %2341 = vmatpush1.xpose.msra.mxu0 0.0
      %2342 = vmatprep.subr.mxu0 0.0
      %2343 = vmatpush1.xpose.msra.mxu0 0.0
      %2344 = vmatprep.subr.mxu0 0.0
      %2345 = vmatpush1.xpose.msra.mxu0 0.0
      %2346 = vmatprep.subr.mxu0 0.0
      %2347 = vmatpush1.xpose.msra.mxu0 0.0
      %2348 = vmatprep.subr.mxu0 0.0
      %2349 = vmatpush1.xpose.msra.mxu0 0.0
      %2350 = vmatprep.subr.mxu0 0.0
      %2351 = vmatpush1.xpose.msra.mxu0 0.0
      %2352 = vmatprep.subr.mxu0 0.0
      %2353 = vmatpush1.xpose.msra.mxu0 0.0
      %2354 = vmatprep.subr.mxu0 0.0
      %2355 = vmatpush1.xpose.msra.mxu0 0.0
      %2356 = vmatprep.subr.mxu0 0.0
      %2357 = vmatpush1.xpose.msra.mxu0 0.0
      %2358 = vmatprep.subr.mxu0 0.0
      %2359 = vmatpush1.xpose.msra.mxu0 0.0
      %2360 = vmatprep.subr.mxu0 0.0
      %2361 = vmatpush1.xpose.msra.mxu0 0.0
      %2362 = vmatprep.subr.mxu0 0.0
      %2363 = vmatpush1.xpose.msra.mxu0 0.0
      %2364 = vmatprep.subr.mxu0 0.0
      %2365 = vmatpush1.xpose.msra.mxu0 0.0
      %2366 = vmatprep.subr.mxu0 0.0
      %2367 = vmatpush1.xpose.msra.mxu0 0.0
      %2368 = vmatprep.subr.mxu0 0.0
      %2369 = vmatpush1.xpose.msra.mxu0 0.0
      %2370 = vmatprep.subr.mxu0 0.0
      %2371 = vmatpush1.xpose.msra.mxu0 0.0
      %2372 = vmatprep.subr.mxu0 0.0
      %2373 = vmatpush1.xpose.msra.mxu0 0.0
      %2374 = vmatprep.subr.mxu0 0.0
      %2375 = vmatpush1.xpose.msra.mxu0 0.0
      %2376 = vmatprep.mubr.f32.mxu0 0.0
      %2377 = vmatmul.mubr.f32.gmra.mrb[0].mxu0 %v2307
      %v2378 = vpop.f32.mrb[0].mxu0
      %v2379 = vadd.f32 %v398, %v2378
      %v2380 = vpop.f32.mrb[0].mxu0
      %2381 = vdwg.mxu0
      %v2383 = vsel %vm405, %v303, 0
      %v2386 = vsel %vm405, %v335, 0
      %2388 = vmatprep.subr.mxu0 0.0
      %2389 = vmatpush1.xpose.msra.mxu0 %v2386
      %2390 = vmatprep.subr.mxu0 0.0
      %2391 = vmatpush1.xpose.msra.mxu0 0.0
      %2392 = vmatprep.subr.mxu0 0.0
      %2393 = vmatpush1.xpose.msra.mxu0 0.0
      %2394 = vmatprep.subr.mxu0 0.0
      %2395 = vmatpush1.xpose.msra.mxu0 0.0
      %2396 = vmatprep.subr.mxu0 0.0
      %2397 = vmatpush1.xpose.msra.mxu0 0.0
      %2398 = vmatprep.subr.mxu0 0.0
      %2399 = vmatpush1.xpose.msra.mxu0 0.0
      %2400 = vmatprep.subr.mxu0 0.0
      %2401 = vmatpush1.xpose.msra.mxu0 0.0
      %2402 = vmatprep.subr.mxu0 0.0
      %2403 = vmatpush1.xpose.msra.mxu0 0.0
      %2404 = vmatprep.subr.mxu0 0.0
      %2405 = vmatpush1.xpose.msra.mxu0 0.0
      %2406 = vmatprep.subr.mxu0 0.0
      %2407 = vmatpush1.xpose.msra.mxu0 0.0
      %2408 = vmatprep.subr.mxu0 0.0
      %2409 = vmatpush1.xpose.msra.mxu0 0.0
      %2410 = vmatprep.subr.mxu0 0.0
      %2411 = vmatpush1.xpose.msra.mxu0 0.0
      %2412 = vmatprep.subr.mxu0 0.0
      %2413 = vmatpush1.xpose.msra.mxu0 0.0
      %2414 = vmatprep.subr.mxu0 0.0
      %2415 = vmatpush1.xpose.msra.mxu0 0.0
      %2416 = vmatprep.subr.mxu0 0.0
      %2417 = vmatpush1.xpose.msra.mxu0 0.0
      %2418 = vmatprep.subr.mxu0 0.0
      %2419 = vmatpush1.xpose.msra.mxu0 0.0
      %2420 = vmatprep.subr.mxu0 0.0
      %2421 = vmatpush1.xpose.msra.mxu0 0.0
      %2422 = vmatprep.subr.mxu0 0.0
      %2423 = vmatpush1.xpose.msra.mxu0 0.0
      %2424 = vmatprep.subr.mxu0 0.0
      %2425 = vmatpush1.xpose.msra.mxu0 0.0
      %2426 = vmatprep.subr.mxu0 0.0
      %2427 = vmatpush1.xpose.msra.mxu0 0.0
      %2428 = vmatprep.subr.mxu0 0.0
      %2429 = vmatpush1.xpose.msra.mxu0 0.0
      %2430 = vmatprep.subr.mxu0 0.0
      %2431 = vmatpush1.xpose.msra.mxu0 0.0
      %2432 = vmatprep.subr.mxu0 0.0
      %2433 = vmatpush1.xpose.msra.mxu0 0.0
      %2434 = vmatprep.subr.mxu0 0.0
      %2435 = vmatpush1.xpose.msra.mxu0 0.0
      %2436 = vmatprep.subr.mxu0 0.0
      %2437 = vmatpush1.xpose.msra.mxu0 0.0
      %2438 = vmatprep.subr.mxu0 0.0
      %2439 = vmatpush1.xpose.msra.mxu0 0.0
      %2440 = vmatprep.subr.mxu0 0.0
      %2441 = vmatpush1.xpose.msra.mxu0 0.0
      %2442 = vmatprep.subr.mxu0 0.0
      %2443 = vmatpush1.xpose.msra.mxu0 0.0
      %2444 = vmatprep.subr.mxu0 0.0
      %2445 = vmatpush1.xpose.msra.mxu0 0.0
      %2446 = vmatprep.subr.mxu0 0.0
      %2447 = vmatpush1.xpose.msra.mxu0 0.0
      %2448 = vmatprep.subr.mxu0 0.0
      %2449 = vmatpush1.xpose.msra.mxu0 0.0
      %2450 = vmatprep.subr.mxu0 0.0
      %2451 = vmatpush1.xpose.msra.mxu0 0.0
      %2452 = vmatprep.mubr.f32.mxu0 0.0
      %2453 = vmatmul.mubr.f32.gmra.mrb[0].mxu0 %v2383
      %v2454 = vpop.f32.mrb[0].mxu0
      %v2455 = vadd.f32 %v399, %v2454
      %v2456 = vpop.f32.mrb[0].mxu0
      %2457 = vdwg.mxu0
      %v2459 = vsel %vm405, %v304, 0
      %v2462 = vsel %vm405, %v336, 0
      %2464 = vmatprep.subr.mxu0 0.0
      %2465 = vmatpush1.xpose.msra.mxu0 %v2462
      %2466 = vmatprep.subr.mxu0 0.0
      %2467 = vmatpush1.xpose.msra.mxu0 0.0
      %2468 = vmatprep.subr.mxu0 0.0
      %2469 = vmatpush1.xpose.msra.mxu0 0.0
      %2470 = vmatprep.subr.mxu0 0.0
      %2471 = vmatpush1.xpose.msra.mxu0 0.0
      %2472 = vmatprep.subr.mxu0 0.0
      %2473 = vmatpush1.xpose.msra.mxu0 0.0
      %2474 = vmatprep.subr.mxu0 0.0
      %2475 = vmatpush1.xpose.msra.mxu0 0.0
      %2476 = vmatprep.subr.mxu0 0.0
      %2477 = vmatpush1.xpose.msra.mxu0 0.0
      %2478 = vmatprep.subr.mxu0 0.0
      %2479 = vmatpush1.xpose.msra.mxu0 0.0
      %2480 = vmatprep.subr.mxu0 0.0
      %2481 = vmatpush1.xpose.msra.mxu0 0.0
      %2482 = vmatprep.subr.mxu0 0.0
      %2483 = vmatpush1.xpose.msra.mxu0 0.0
      %2484 = vmatprep.subr.mxu0 0.0
      %2485 = vmatpush1.xpose.msra.mxu0 0.0
      %2486 = vmatprep.subr.mxu0 0.0
      %2487 = vmatpush1.xpose.msra.mxu0 0.0
      %2488 = vmatprep.subr.mxu0 0.0
      %2489 = vmatpush1.xpose.msra.mxu0 0.0
      %2490 = vmatprep.subr.mxu0 0.0
      %2491 = vmatpush1.xpose.msra.mxu0 0.0
      %2492 = vmatprep.subr.mxu0 0.0
      %2493 = vmatpush1.xpose.msra.mxu0 0.0
      %2494 = vmatprep.subr.mxu0 0.0
      %2495 = vmatpush1.xpose.msra.mxu0 0.0
      %2496 = vmatprep.subr.mxu0 0.0
      %2497 = vmatpush1.xpose.msra.mxu0 0.0
      %2498 = vmatprep.subr.mxu0 0.0
      %2499 = vmatpush1.xpose.msra.mxu0 0.0
      %2500 = vmatprep.subr.mxu0 0.0
      %2501 = vmatpush1.xpose.msra.mxu0 0.0
      %2502 = vmatprep.subr.mxu0 0.0
      %2503 = vmatpush1.xpose.msra.mxu0 0.0
      %2504 = vmatprep.subr.mxu0 0.0
      %2505 = vmatpush1.xpose.msra.mxu0 0.0
      %2506 = vmatprep.subr.mxu0 0.0
      %2507 = vmatpush1.xpose.msra.mxu0 0.0
      %2508 = vmatprep.subr.mxu0 0.0
      %2509 = vmatpush1.xpose.msra.mxu0 0.0
      %2510 = vmatprep.subr.mxu0 0.0
      %2511 = vmatpush1.xpose.msra.mxu0 0.0
      %2512 = vmatprep.subr.mxu0 0.0
      %2513 = vmatpush1.xpose.msra.mxu0 0.0
      %2514 = vmatprep.subr.mxu0 0.0
      %2515 = vmatpush1.xpose.msra.mxu0 0.0
      %2516 = vmatprep.subr.mxu0 0.0
      %2517 = vmatpush1.xpose.msra.mxu0 0.0
      %2518 = vmatprep.subr.mxu0 0.0
      %2519 = vmatpush1.xpose.msra.mxu0 0.0
      %2520 = vmatprep.subr.mxu0 0.0
      %2521 = vmatpush1.xpose.msra.mxu0 0.0
      %2522 = vmatprep.subr.mxu0 0.0
      %2523 = vmatpush1.xpose.msra.mxu0 0.0
      %2524 = vmatprep.subr.mxu0 0.0
      %2525 = vmatpush1.xpose.msra.mxu0 0.0
      %2526 = vmatprep.subr.mxu0 0.0
      %2527 = vmatpush1.xpose.msra.mxu0 0.0
      %2528 = vmatprep.mubr.f32.mxu0 0.0
      %2529 = vmatmul.mubr.f32.gmra.mrb[0].mxu0 %v2459
      %v2530 = vpop.f32.mrb[0].mxu0
      %v2531 = vadd.f32 %v400, %v2530
      %v2532 = vpop.f32.mrb[0].mxu0
      %2533 = vdwg.mxu0
      %v2535 = vsel %vm405, %v305, 0
      %v2538 = vsel %vm405, %v337, 0
      %2540 = vmatprep.subr.mxu0 0.0
      %2541 = vmatpush1.xpose.msra.mxu0 %v2538
      %2542 = vmatprep.subr.mxu0 0.0
      %2543 = vmatpush1.xpose.msra.mxu0 0.0
      %2544 = vmatprep.subr.mxu0 0.0
      %2545 = vmatpush1.xpose.msra.mxu0 0.0
      %2546 = vmatprep.subr.mxu0 0.0
      %2547 = vmatpush1.xpose.msra.mxu0 0.0
      %2548 = vmatprep.subr.mxu0 0.0
      %2549 = vmatpush1.xpose.msra.mxu0 0.0
      %2550 = vmatprep.subr.mxu0 0.0
      %2551 = vmatpush1.xpose.msra.mxu0 0.0
      %2552 = vmatprep.subr.mxu0 0.0
      %2553 = vmatpush1.xpose.msra.mxu0 0.0
      %2554 = vmatprep.subr.mxu0 0.0
      %2555 = vmatpush1.xpose.msra.mxu0 0.0
      %2556 = vmatprep.subr.mxu0 0.0
      %2557 = vmatpush1.xpose.msra.mxu0 0.0
      %2558 = vmatprep.subr.mxu0 0.0
      %2559 = vmatpush1.xpose.msra.mxu0 0.0
      %2560 = vmatprep.subr.mxu0 0.0
      %2561 = vmatpush1.xpose.msra.mxu0 0.0
      %2562 = vmatprep.subr.mxu0 0.0
      %2563 = vmatpush1.xpose.msra.mxu0 0.0
      %2564 = vmatprep.subr.mxu0 0.0
      %2565 = vmatpush1.xpose.msra.mxu0 0.0
      %2566 = vmatprep.subr.mxu0 0.0
      %2567 = vmatpush1.xpose.msra.mxu0 0.0
      %2568 = vmatprep.subr.mxu0 0.0
      %2569 = vmatpush1.xpose.msra.mxu0 0.0
      %2570 = vmatprep.subr.mxu0 0.0
      %2571 = vmatpush1.xpose.msra.mxu0 0.0
      %2572 = vmatprep.subr.mxu0 0.0
      %2573 = vmatpush1.xpose.msra.mxu0 0.0
      %2574 = vmatprep.subr.mxu0 0.0
      %2575 = vmatpush1.xpose.msra.mxu0 0.0
      %2576 = vmatprep.subr.mxu0 0.0
      %2577 = vmatpush1.xpose.msra.mxu0 0.0
      %2578 = vmatprep.subr.mxu0 0.0
      %2579 = vmatpush1.xpose.msra.mxu0 0.0
      %2580 = vmatprep.subr.mxu0 0.0
      %2581 = vmatpush1.xpose.msra.mxu0 0.0
      %2582 = vmatprep.subr.mxu0 0.0
      %2583 = vmatpush1.xpose.msra.mxu0 0.0
      %2584 = vmatprep.subr.mxu0 0.0
      %2585 = vmatpush1.xpose.msra.mxu0 0.0
      %2586 = vmatprep.subr.mxu0 0.0
      %2587 = vmatpush1.xpose.msra.mxu0 0.0
      %2588 = vmatprep.subr.mxu0 0.0
      %2589 = vmatpush1.xpose.msra.mxu0 0.0
      %2590 = vmatprep.subr.mxu0 0.0
      %2591 = vmatpush1.xpose.msra.mxu0 0.0
      %2592 = vmatprep.subr.mxu0 0.0
      %2593 = vmatpush1.xpose.msra.mxu0 0.0
      %2594 = vmatprep.subr.mxu0 0.0
      %2595 = vmatpush1.xpose.msra.mxu0 0.0
      %2596 = vmatprep.subr.mxu0 0.0
      %2597 = vmatpush1.xpose.msra.mxu0 0.0
      %2598 = vmatprep.subr.mxu0 0.0
      %2599 = vmatpush1.xpose.msra.mxu0 0.0
      %2600 = vmatprep.subr.mxu0 0.0
      %2601 = vmatpush1.xpose.msra.mxu0 0.0
      %2602 = vmatprep.subr.mxu0 0.0
      %2603 = vmatpush1.xpose.msra.mxu0 0.0
      %2604 = vmatprep.mubr.f32.mxu0 0.0
      %2605 = vmatmul.mubr.f32.gmra.mrb[0].mxu0 %v2535
      %v2606 = vpop.f32.mrb[0].mxu0
      %v2607 = vadd.f32 %v401, %v2606
      %v2608 = vpop.f32.mrb[0].mxu0
      %2609 = vdwg.mxu0
      %v2611 = vsel %vm405, %v306, 0
      %v2614 = vsel %vm405, %v338, 0
      %2616 = vmatprep.subr.mxu0 0.0
      %2617 = vmatpush1.xpose.msra.mxu0 %v2614
      %2618 = vmatprep.subr.mxu0 0.0
      %2619 = vmatpush1.xpose.msra.mxu0 0.0
      %2620 = vmatprep.subr.mxu0 0.0
      %2621 = vmatpush1.xpose.msra.mxu0 0.0
      %2622 = vmatprep.subr.mxu0 0.0
      %2623 = vmatpush1.xpose.msra.mxu0 0.0
      %2624 = vmatprep.subr.mxu0 0.0
      %2625 = vmatpush1.xpose.msra.mxu0 0.0
      %2626 = vmatprep.subr.mxu0 0.0
      %2627 = vmatpush1.xpose.msra.mxu0 0.0
      %2628 = vmatprep.subr.mxu0 0.0
      %2629 = vmatpush1.xpose.msra.mxu0 0.0
      %2630 = vmatprep.subr.mxu0 0.0
      %2631 = vmatpush1.xpose.msra.mxu0 0.0
      %2632 = vmatprep.subr.mxu0 0.0
      %2633 = vmatpush1.xpose.msra.mxu0 0.0
      %2634 = vmatprep.subr.mxu0 0.0
      %2635 = vmatpush1.xpose.msra.mxu0 0.0
      %2636 = vmatprep.subr.mxu0 0.0
      %2637 = vmatpush1.xpose.msra.mxu0 0.0
      %2638 = vmatprep.subr.mxu0 0.0
      %2639 = vmatpush1.xpose.msra.mxu0 0.0
      %2640 = vmatprep.subr.mxu0 0.0
      %2641 = vmatpush1.xpose.msra.mxu0 0.0
      %2642 = vmatprep.subr.mxu0 0.0
      %2643 = vmatpush1.xpose.msra.mxu0 0.0
      %2644 = vmatprep.subr.mxu0 0.0
      %2645 = vmatpush1.xpose.msra.mxu0 0.0
      %2646 = vmatprep.subr.mxu0 0.0
      %2647 = vmatpush1.xpose.msra.mxu0 0.0
      %2648 = vmatprep.subr.mxu0 0.0
      %2649 = vmatpush1.xpose.msra.mxu0 0.0
      %2650 = vmatprep.subr.mxu0 0.0
      %2651 = vmatpush1.xpose.msra.mxu0 0.0
      %2652 = vmatprep.subr.mxu0 0.0
      %2653 = vmatpush1.xpose.msra.mxu0 0.0
      %2654 = vmatprep.subr.mxu0 0.0
      %2655 = vmatpush1.xpose.msra.mxu0 0.0
      %2656 = vmatprep.subr.mxu0 0.0
      %2657 = vmatpush1.xpose.msra.mxu0 0.0
      %2658 = vmatprep.subr.mxu0 0.0
      %2659 = vmatpush1.xpose.msra.mxu0 0.0
      %2660 = vmatprep.subr.mxu0 0.0
      %2661 = vmatpush1.xpose.msra.mxu0 0.0
      %2662 = vmatprep.subr.mxu0 0.0
      %2663 = vmatpush1.xpose.msra.mxu0 0.0
      %2664 = vmatprep.subr.mxu0 0.0
      %2665 = vmatpush1.xpose.msra.mxu0 0.0
      %2666 = vmatprep.subr.mxu0 0.0
      %2667 = vmatpush1.xpose.msra.mxu0 0.0
      %2668 = vmatprep.subr.mxu0 0.0
      %2669 = vmatpush1.xpose.msra.mxu0 0.0
      %2670 = vmatprep.subr.mxu0 0.0
      %2671 = vmatpush1.xpose.msra.mxu0 0.0
      %2672 = vmatprep.subr.mxu0 0.0
      %2673 = vmatpush1.xpose.msra.mxu0 0.0
      %2674 = vmatprep.subr.mxu0 0.0
      %2675 = vmatpush1.xpose.msra.mxu0 0.0
      %2676 = vmatprep.subr.mxu0 0.0
      %2677 = vmatpush1.xpose.msra.mxu0 0.0
      %2678 = vmatprep.subr.mxu0 0.0
      %2679 = vmatpush1.xpose.msra.mxu0 0.0
      %2680 = vmatprep.mubr.f32.mxu0 0.0
      %2681 = vmatmul.mubr.f32.gmra.mrb[0].mxu0 %v2611
      %v2682 = vpop.f32.mrb[0].mxu0
      %v2683 = vadd.f32 %v402, %v2682
      %v2684 = vpop.f32.mrb[0].mxu0
      %2685 = vdwg.mxu0
      %v2687 = vsel %vm405, %v307, 0
      %v2690 = vsel %vm405, %v339, 0
      %2692 = vmatprep.subr.mxu0 0.0
      %2693 = vmatpush1.xpose.msra.mxu0 %v2690
      %2694 = vmatprep.subr.mxu0 0.0
      %2695 = vmatpush1.xpose.msra.mxu0 0.0
      %2696 = vmatprep.subr.mxu0 0.0
      %2697 = vmatpush1.xpose.msra.mxu0 0.0
      %2698 = vmatprep.subr.mxu0 0.0
      %2699 = vmatpush1.xpose.msra.mxu0 0.0
      %2700 = vmatprep.subr.mxu0 0.0
      %2701 = vmatpush1.xpose.msra.mxu0 0.0
      %2702 = vmatprep.subr.mxu0 0.0
      %2703 = vmatpush1.xpose.msra.mxu0 0.0
      %2704 = vmatprep.subr.mxu0 0.0
      %2705 = vmatpush1.xpose.msra.mxu0 0.0
      %2706 = vmatprep.subr.mxu0 0.0
      %2707 = vmatpush1.xpose.msra.mxu0 0.0
      %2708 = vmatprep.subr.mxu0 0.0
      %2709 = vmatpush1.xpose.msra.mxu0 0.0
      %2710 = vmatprep.subr.mxu0 0.0
      %2711 = vmatpush1.xpose.msra.mxu0 0.0
      %2712 = vmatprep.subr.mxu0 0.0
      %2713 = vmatpush1.xpose.msra.mxu0 0.0
      %2714 = vmatprep.subr.mxu0 0.0
      %2715 = vmatpush1.xpose.msra.mxu0 0.0
      %2716 = vmatprep.subr.mxu0 0.0
      %2717 = vmatpush1.xpose.msra.mxu0 0.0
      %2718 = vmatprep.subr.mxu0 0.0
      %2719 = vmatpush1.xpose.msra.mxu0 0.0
      %2720 = vmatprep.subr.mxu0 0.0
      %2721 = vmatpush1.xpose.msra.mxu0 0.0
      %2722 = vmatprep.subr.mxu0 0.0
      %2723 = vmatpush1.xpose.msra.mxu0 0.0
      %2724 = vmatprep.subr.mxu0 0.0
      %2725 = vmatpush1.xpose.msra.mxu0 0.0
      %2726 = vmatprep.subr.mxu0 0.0
      %2727 = vmatpush1.xpose.msra.mxu0 0.0
      %2728 = vmatprep.subr.mxu0 0.0
      %2729 = vmatpush1.xpose.msra.mxu0 0.0
      %2730 = vmatprep.subr.mxu0 0.0
      %2731 = vmatpush1.xpose.msra.mxu0 0.0
      %2732 = vmatprep.subr.mxu0 0.0
      %2733 = vmatpush1.xpose.msra.mxu0 0.0
      %2734 = vmatprep.subr.mxu0 0.0
      %2735 = vmatpush1.xpose.msra.mxu0 0.0
      %2736 = vmatprep.subr.mxu0 0.0
      %2737 = vmatpush1.xpose.msra.mxu0 0.0
      %2738 = vmatprep.subr.mxu0 0.0
      %2739 = vmatpush1.xpose.msra.mxu0 0.0
      %2740 = vmatprep.subr.mxu0 0.0
      %2741 = vmatpush1.xpose.msra.mxu0 0.0
      %2742 = vmatprep.subr.mxu0 0.0
      %2743 = vmatpush1.xpose.msra.mxu0 0.0
      %2744 = vmatprep.subr.mxu0 0.0
      %2745 = vmatpush1.xpose.msra.mxu0 0.0
      %2746 = vmatprep.subr.mxu0 0.0
      %2747 = vmatpush1.xpose.msra.mxu0 0.0
      %2748 = vmatprep.subr.mxu0 0.0
      %2749 = vmatpush1.xpose.msra.mxu0 0.0
      %2750 = vmatprep.subr.mxu0 0.0
      %2751 = vmatpush1.xpose.msra.mxu0 0.0
      %2752 = vmatprep.subr.mxu0 0.0
      %2753 = vmatpush1.xpose.msra.mxu0 0.0
      %2754 = vmatprep.subr.mxu0 0.0
      %2755 = vmatpush1.xpose.msra.mxu0 0.0
      %2756 = vmatprep.mubr.f32.mxu0 0.0
      %2757 = vmatmul.mubr.f32.gmra.mrb[0].mxu0 %v2687
      %v2758 = vpop.f32.mrb[0].mxu0
      %v2759 = vadd.f32 %v403, %v2758
      %v2760 = vpop.f32.mrb[0].mxu0
      %2761 = vdwg.mxu0
      %v2763 = vsel %vm405, %v308, 0
      %v2766 = vsel %vm405, %v340, 0
      %2768 = vmatprep.subr.mxu0 0.0
      %2769 = vmatpush1.xpose.msra.mxu0 %v2766
      %2770 = vmatprep.subr.mxu0 0.0
      %2771 = vmatpush1.xpose.msra.mxu0 0.0
      %2772 = vmatprep.subr.mxu0 0.0
      %2773 = vmatpush1.xpose.msra.mxu0 0.0
      %2774 = vmatprep.subr.mxu0 0.0
      %2775 = vmatpush1.xpose.msra.mxu0 0.0
      %2776 = vmatprep.subr.mxu0 0.0
      %2777 = vmatpush1.xpose.msra.mxu0 0.0
      %2778 = vmatprep.subr.mxu0 0.0
      %2779 = vmatpush1.xpose.msra.mxu0 0.0
      %2780 = vmatprep.subr.mxu0 0.0
      %2781 = vmatpush1.xpose.msra.mxu0 0.0
      %2782 = vmatprep.subr.mxu0 0.0
      %2783 = vmatpush1.xpose.msra.mxu0 0.0
      %2784 = vmatprep.subr.mxu0 0.0
      %2785 = vmatpush1.xpose.msra.mxu0 0.0
      %2786 = vmatprep.subr.mxu0 0.0
      %2787 = vmatpush1.xpose.msra.mxu0 0.0
      %2788 = vmatprep.subr.mxu0 0.0
      %2789 = vmatpush1.xpose.msra.mxu0 0.0
      %2790 = vmatprep.subr.mxu0 0.0
      %2791 = vmatpush1.xpose.msra.mxu0 0.0
      %2792 = vmatprep.subr.mxu0 0.0
      %2793 = vmatpush1.xpose.msra.mxu0 0.0
      %2794 = vmatprep.subr.mxu0 0.0
      %2795 = vmatpush1.xpose.msra.mxu0 0.0
      %2796 = vmatprep.subr.mxu0 0.0
      %2797 = vmatpush1.xpose.msra.mxu0 0.0
      %2798 = vmatprep.subr.mxu0 0.0
      %2799 = vmatpush1.xpose.msra.mxu0 0.0
      %2800 = vmatprep.subr.mxu0 0.0
      %2801 = vmatpush1.xpose.msra.mxu0 0.0
      %2802 = vmatprep.subr.mxu0 0.0
      %2803 = vmatpush1.xpose.msra.mxu0 0.0
      %2804 = vmatprep.subr.mxu0 0.0
      %2805 = vmatpush1.xpose.msra.mxu0 0.0
      %2806 = vmatprep.subr.mxu0 0.0
      %2807 = vmatpush1.xpose.msra.mxu0 0.0
      %2808 = vmatprep.subr.mxu0 0.0
      %2809 = vmatpush1.xpose.msra.mxu0 0.0
      %2810 = vmatprep.subr.mxu0 0.0
      %2811 = vmatpush1.xpose.msra.mxu0 0.0
      %2812 = vmatprep.subr.mxu0 0.0
      %2813 = vmatpush1.xpose.msra.mxu0 0.0
      %2814 = vmatprep.subr.mxu0 0.0
      %2815 = vmatpush1.xpose.msra.mxu0 0.0
      %2816 = vmatprep.subr.mxu0 0.0
      %2817 = vmatpush1.xpose.msra.mxu0 0.0
      %2818 = vmatprep.subr.mxu0 0.0
      %2819 = vmatpush1.xpose.msra.mxu0 0.0
      %2820 = vmatprep.subr.mxu0 0.0
      %2821 = vmatpush1.xpose.msra.mxu0 0.0
      %2822 = vmatprep.subr.mxu0 0.0
      %2823 = vmatpush1.xpose.msra.mxu0 0.0
      %2824 = vmatprep.subr.mxu0 0.0
      %2825 = vmatpush1.xpose.msra.mxu0 0.0
      %2826 = vmatprep.subr.mxu0 0.0
      %2827 = vmatpush1.xpose.msra.mxu0 0.0
      %2828 = vmatprep.subr.mxu0 0.0
      %2829 = vmatpush1.xpose.msra.mxu0 0.0
      %2830 = vmatprep.subr.mxu0 0.0
      %2831 = vmatpush1.xpose.msra.mxu0 0.0
      %2832 = vmatprep.mubr.f32.mxu0 0.0
      %2833 = vmatmul.mubr.f32.gmra.mrb[0].mxu0 %v2763
      %v2834 = vpop.f32.mrb[0].mxu0
      %v2835 = vadd.f32 %v404, %v2834
      %v2836 = vpop.f32.mrb[0].mxu0
      %2837 = vdwg.mxu0
      %vm2838 = vcmask 27648
      %v2839 = vsel %vm2838, %v479, -inf
      %2840 = vmax.xlane.f32.xlu0 %v2839
      %v2841 = vpop.xlane.xlu0 %2840
      %v2842 = vsel %vm2838, %v555, -inf
      %2843 = vmax.xlane.f32.xlu0 %v2842
      %v2844 = vpop.xlane.xlu0 %2843
      %v2845 = vsel %vm2838, %v631, -inf
      %2846 = vmax.xlane.f32.xlu0 %v2845
      %v2847 = vpop.xlane.xlu0 %2846
      %v2848 = vsel %vm2838, %v707, -inf
      %2849 = vmax.xlane.f32.xlu0 %v2848
      %v2850 = vpop.xlane.xlu0 %2849
      %v2851 = vsel %vm2838, %v783, -inf
      %2852 = vmax.xlane.f32.xlu0 %v2851
      %v2853 = vpop.xlane.xlu0 %2852
      %v2854 = vsel %vm2838, %v859, -inf
      %2855 = vmax.xlane.f32.xlu0 %v2854
      %v2856 = vpop.xlane.xlu0 %2855
      %v2857 = vsel %vm2838, %v935, -inf
      %2858 = vmax.xlane.f32.xlu0 %v2857
      %v2859 = vpop.xlane.xlu0 %2858
      %v2860 = vsel %vm2838, %v1011, -inf
      %2861 = vmax.xlane.f32.xlu0 %v2860
      %v2862 = vpop.xlane.xlu0 %2861
      %v2863 = vsel %vm2838, %v1087, -inf
      %2864 = vmax.xlane.f32.xlu0 %v2863
      %v2865 = vpop.xlane.xlu0 %2864
      %v2866 = vsel %vm2838, %v1163, -inf
      %2867 = vmax.xlane.f32.xlu0 %v2866
      %v2868 = vpop.xlane.xlu0 %2867
      %v2869 = vsel %vm2838, %v1239, -inf
      %2870 = vmax.xlane.f32.xlu0 %v2869
      %v2871 = vpop.xlane.xlu0 %2870
      %v2872 = vsel %vm2838, %v1315, -inf
      %2873 = vmax.xlane.f32.xlu0 %v2872
      %v2874 = vpop.xlane.xlu0 %2873
      %v2875 = vsel %vm2838, %v1391, -inf
      %2876 = vmax.xlane.f32.xlu0 %v2875
      %v2877 = vpop.xlane.xlu0 %2876
      %v2878 = vsel %vm2838, %v1467, -inf
      %2879 = vmax.xlane.f32.xlu0 %v2878
      %v2880 = vpop.xlane.xlu0 %2879
      %v2881 = vsel %vm2838, %v1543, -inf
      %2882 = vmax.xlane.f32.xlu0 %v2881
      %v2883 = vpop.xlane.xlu0 %2882
      %v2884 = vsel %vm2838, %v1619, -inf
      %2885 = vmax.xlane.f32.xlu0 %v2884
      %v2886 = vpop.xlane.xlu0 %2885
      %v2887 = vsel %vm2838, %v1695, -inf
      %2888 = vmax.xlane.f32.xlu0 %v2887
      %v2889 = vpop.xlane.xlu0 %2888
      %v2890 = vsel %vm2838, %v1771, -inf
      %2891 = vmax.xlane.f32.xlu0 %v2890
      %v2892 = vpop.xlane.xlu0 %2891
      %v2893 = vsel %vm2838, %v1847, -inf
      %2894 = vmax.xlane.f32.xlu0 %v2893
      %v2895 = vpop.xlane.xlu0 %2894
      %v2896 = vsel %vm2838, %v1923, -inf
      %2897 = vmax.xlane.f32.xlu0 %v2896
      %v2898 = vpop.xlane.xlu0 %2897
      %v2899 = vsel %vm2838, %v1999, -inf
      %2900 = vmax.xlane.f32.xlu0 %v2899
      %v2901 = vpop.xlane.xlu0 %2900
      %v2902 = vsel %vm2838, %v2075, -inf
      %2903 = vmax.xlane.f32.xlu0 %v2902
      %v2904 = vpop.xlane.xlu0 %2903
      %v2905 = vsel %vm2838, %v2151, -inf
      %2906 = vmax.xlane.f32.xlu0 %v2905
      %v2907 = vpop.xlane.xlu0 %2906
      %v2908 = vsel %vm2838, %v2227, -inf
      %2909 = vmax.xlane.f32.xlu0 %v2908
      %v2910 = vpop.xlane.xlu0 %2909
      %v2911 = vsel %vm2838, %v2303, -inf
      %2912 = vmax.xlane.f32.xlu0 %v2911
      %v2913 = vpop.xlane.xlu0 %2912
      %v2914 = vsel %vm2838, %v2379, -inf
      %2915 = vmax.xlane.f32.xlu0 %v2914
      %v2916 = vpop.xlane.xlu0 %2915
      %v2917 = vsel %vm2838, %v2455, -inf
      %2918 = vmax.xlane.f32.xlu0 %v2917
      %v2919 = vpop.xlane.xlu0 %2918
      %v2920 = vsel %vm2838, %v2531, -inf
      %2921 = vmax.xlane.f32.xlu0 %v2920
      %v2922 = vpop.xlane.xlu0 %2921
      %v2923 = vsel %vm2838, %v2607, -inf
      %2924 = vmax.xlane.f32.xlu0 %v2923
      %v2925 = vpop.xlane.xlu0 %2924
      %v2926 = vsel %vm2838, %v2683, -inf
      %2927 = vmax.xlane.f32.xlu0 %v2926
      %v2928 = vpop.xlane.xlu0 %2927
      %v2929 = vsel %vm2838, %v2759, -inf
      %2930 = vmax.xlane.f32.xlu0 %v2929
      %v2931 = vpop.xlane.xlu0 %2930
      %v2932 = vsel %vm2838, %v2835, -inf
      %2933 = vmax.xlane.f32.xlu0 %v2932
      %v2934 = vpop.xlane.xlu0 %2933
      %v2935 = vsub.f32 %v479, %v2841
      %v2936 = vsub.f32 %v555, %v2844
      %v2937 = vsub.f32 %v631, %v2847
      %v2938 = vsub.f32 %v707, %v2850
      %v2939 = vsub.f32 %v783, %v2853
      %v2940 = vsub.f32 %v859, %v2856
      %v2941 = vsub.f32 %v935, %v2859
      %v2942 = vsub.f32 %v1011, %v2862
      %v2943 = vsub.f32 %v1087, %v2865
      %v2944 = vsub.f32 %v1163, %v2868
      %v2945 = vsub.f32 %v1239, %v2871
      %v2946 = vsub.f32 %v1315, %v2874
      %v2947 = vsub.f32 %v1391, %v2877
      %v2948 = vsub.f32 %v1467, %v2880
      %v2949 = vsub.f32 %v1543, %v2883
      %v2950 = vsub.f32 %v1619, %v2886
      %v2951 = vsub.f32 %v1695, %v2889
      %v2952 = vsub.f32 %v1771, %v2892
      %v2953 = vsub.f32 %v1847, %v2895
      %v2954 = vsub.f32 %v1923, %v2898
      %v2955 = vsub.f32 %v1999, %v2901
      %v2956 = vsub.f32 %v2075, %v2904
      %v2957 = vsub.f32 %v2151, %v2907
      %v2958 = vsub.f32 %v2227, %v2910
      %v2959 = vsub.f32 %v2303, %v2913
      %v2960 = vsub.f32 %v2379, %v2916
      %v2961 = vsub.f32 %v2455, %v2919
      %v2962 = vsub.f32 %v2531, %v2922
      %v2963 = vsub.f32 %v2607, %v2925
      %v2964 = vsub.f32 %v2683, %v2928
      %v2965 = vsub.f32 %v2759, %v2931
      %v2966 = vsub.f32 %v2835, %v2934
      %v2967 = vmul.f32 %v2935, 1.442695
      %v2968 = vpow.pop %v2967
      %v2969 = vmul.f32 %v2936, 1.442695
      %v2970 = vpow.pop %v2969
      %v2971 = vmul.f32 %v2937, 1.442695
      %v2972 = vpow.pop %v2971
      %v2973 = vmul.f32 %v2938, 1.442695
      %v2974 = vpow.pop %v2973
      %v2975 = vmul.f32 %v2939, 1.442695
      %v2976 = vpow.pop %v2975
      %v2977 = vmul.f32 %v2940, 1.442695
      %v2978 = vpow.pop %v2977
      %v2979 = vmul.f32 %v2941, 1.442695
      %v2980 = vpow.pop %v2979
      %v2981 = vmul.f32 %v2942, 1.442695
      %v2982 = vpow.pop %v2981
      %v2983 = vmul.f32 %v2943, 1.442695
      %v2984 = vpow.pop %v2983
      %v2985 = vmul.f32 %v2944, 1.442695
      %v2986 = vpow.pop %v2985
      %v2987 = vmul.f32 %v2945, 1.442695
      %v2988 = vpow.pop %v2987
      %v2989 = vmul.f32 %v2946, 1.442695
      %v2990 = vpow.pop %v2989
      %v2991 = vmul.f32 %v2947, 1.442695
      %v2992 = vpow.pop %v2991
      %v2993 = vmul.f32 %v2948, 1.442695
      %v2994 = vpow.pop %v2993
      %v2995 = vmul.f32 %v2949, 1.442695
      %v2996 = vpow.pop %v2995
      %v2997 = vmul.f32 %v2950, 1.442695
      %v2998 = vpow.pop %v2997
      %v2999 = vmul.f32 %v2951, 1.442695
      %v3000 = vpow.pop %v2999
      %v3001 = vmul.f32 %v2952, 1.442695
      %v3002 = vpow.pop %v3001
      %v3003 = vmul.f32 %v2953, 1.442695
      %v3004 = vpow.pop %v3003
      %v3005 = vmul.f32 %v2954, 1.442695
      %v3006 = vpow.pop %v3005
      %v3007 = vmul.f32 %v2955, 1.442695
      %v3008 = vpow.pop %v3007
      %v3009 = vmul.f32 %v2956, 1.442695
      %v3010 = vpow.pop %v3009
      %v3011 = vmul.f32 %v2957, 1.442695
      %v3012 = vpow.pop %v3011
      %v3013 = vmul.f32 %v2958, 1.442695
      %v3014 = vpow.pop %v3013
      %v3015 = vmul.f32 %v2959, 1.442695
      %v3016 = vpow.pop %v3015
      %v3017 = vmul.f32 %v2960, 1.442695
      %v3018 = vpow.pop %v3017
      %v3019 = vmul.f32 %v2961, 1.442695
      %v3020 = vpow.pop %v3019
      %v3021 = vmul.f32 %v2962, 1.442695
      %v3022 = vpow.pop %v3021
      %v3023 = vmul.f32 %v2963, 1.442695
      %v3024 = vpow.pop %v3023
      %v3025 = vmul.f32 %v2964, 1.442695
      %v3026 = vpow.pop %v3025
      %v3027 = vmul.f32 %v2965, 1.442695
      %v3028 = vpow.pop %v3027
      %v3029 = vmul.f32 %v2966, 1.442695
      %v3030 = vpow.pop %v3029
      %v3031 = vsel %vm2838, %v2968, 0.0
      %3032 = vadd.xlane.f32.xlu0 %v3031
      %v3033 = vpop.xlane.xlu0 %3032
      %v3034 = vsel %vm2838, %v2970, 0.0
      %3035 = vadd.xlane.f32.xlu0 %v3034
      %v3036 = vpop.xlane.xlu0 %3035
      %v3037 = vsel %vm2838, %v2972, 0.0
      %3038 = vadd.xlane.f32.xlu0 %v3037
      %v3039 = vpop.xlane.xlu0 %3038
      %v3040 = vsel %vm2838, %v2974, 0.0
      %3041 = vadd.xlane.f32.xlu0 %v3040
      %v3042 = vpop.xlane.xlu0 %3041
      %v3043 = vsel %vm2838, %v2976, 0.0
      %3044 = vadd.xlane.f32.xlu0 %v3043
      %v3045 = vpop.xlane.xlu0 %3044
      %v3046 = vsel %vm2838, %v2978, 0.0
      %3047 = vadd.xlane.f32.xlu0 %v3046
      %v3048 = vpop.xlane.xlu0 %3047
      %v3049 = vsel %vm2838, %v2980, 0.0
      %3050 = vadd.xlane.f32.xlu0 %v3049
      %v3051 = vpop.xlane.xlu0 %3050
      %v3052 = vsel %vm2838, %v2982, 0.0
      %3053 = vadd.xlane.f32.xlu0 %v3052
      %v3054 = vpop.xlane.xlu0 %3053
      %v3055 = vsel %vm2838, %v2984, 0.0
      %3056 = vadd.xlane.f32.xlu0 %v3055
      %v3057 = vpop.xlane.xlu0 %3056
      %v3058 = vsel %vm2838, %v2986, 0.0
      %3059 = vadd.xlane.f32.xlu0 %v3058
      %v3060 = vpop.xlane.xlu0 %3059
      %v3061 = vsel %vm2838, %v2988, 0.0
      %3062 = vadd.xlane.f32.xlu0 %v3061
      %v3063 = vpop.xlane.xlu0 %3062
      %v3064 = vsel %vm2838, %v2990, 0.0
      %3065 = vadd.xlane.f32.xlu0 %v3064
      %v3066 = vpop.xlane.xlu0 %3065
      %v3067 = vsel %vm2838, %v2992, 0.0
      %3068 = vadd.xlane.f32.xlu0 %v3067
      %v3069 = vpop.xlane.xlu0 %3068
      %v3070 = vsel %vm2838, %v2994, 0.0
      %3071 = vadd.xlane.f32.xlu0 %v3070
      %v3072 = vpop.xlane.xlu0 %3071
      %v3073 = vsel %vm2838, %v2996, 0.0
      %3074 = vadd.xlane.f32.xlu0 %v3073
      %v3075 = vpop.xlane.xlu0 %3074
      %v3076 = vsel %vm2838, %v2998, 0.0
      %3077 = vadd.xlane.f32.xlu0 %v3076
      %v3078 = vpop.xlane.xlu0 %3077
      %v3079 = vsel %vm2838, %v3000, 0.0
      %3080 = vadd.xlane.f32.xlu0 %v3079
      %v3081 = vpop.xlane.xlu0 %3080
      %v3082 = vsel %vm2838, %v3002, 0.0
      %3083 = vadd.xlane.f32.xlu0 %v3082
      %v3084 = vpop.xlane.xlu0 %3083
      %v3085 = vsel %vm2838, %v3004, 0.0
      %3086 = vadd.xlane.f32.xlu0 %v3085
      %v3087 = vpop.xlane.xlu0 %3086
      %v3088 = vsel %vm2838, %v3006, 0.0
      %3089 = vadd.xlane.f32.xlu0 %v3088
      %v3090 = vpop.xlane.xlu0 %3089
      %v3091 = vsel %vm2838, %v3008, 0.0
      %3092 = vadd.xlane.f32.xlu0 %v3091
      %v3093 = vpop.xlane.xlu0 %3092
      %v3094 = vsel %vm2838, %v3010, 0.0
      %3095 = vadd.xlane.f32.xlu0 %v3094
      %v3096 = vpop.xlane.xlu0 %3095
      %v3097 = vsel %vm2838, %v3012, 0.0
      %3098 = vadd.xlane.f32.xlu0 %v3097
      %v3099 = vpop.xlane.xlu0 %3098
      %v3100 = vsel %vm2838, %v3014, 0.0
      %3101 = vadd.xlane.f32.xlu0 %v3100
      %v3102 = vpop.xlane.xlu0 %3101
      %v3103 = vsel %vm2838, %v3016, 0.0
      %3104 = vadd.xlane.f32.xlu0 %v3103
      %v3105 = vpop.xlane.xlu0 %3104
      %v3106 = vsel %vm2838, %v3018, 0.0
      %3107 = vadd.xlane.f32.xlu0 %v3106
      %v3108 = vpop.xlane.xlu0 %3107
      %v3109 = vsel %vm2838, %v3020, 0.0
      %3110 = vadd.xlane.f32.xlu0 %v3109
      %v3111 = vpop.xlane.xlu0 %3110
      %v3112 = vsel %vm2838, %v3022, 0.0
      %3113 = vadd.xlane.f32.xlu0 %v3112
      %v3114 = vpop.xlane.xlu0 %3113
      %v3115 = vsel %vm2838, %v3024, 0.0
      %3116 = vadd.xlane.f32.xlu0 %v3115
      %v3117 = vpop.xlane.xlu0 %3116
      %v3118 = vsel %vm2838, %v3026, 0.0
      %3119 = vadd.xlane.f32.xlu0 %v3118
      %v3120 = vpop.xlane.xlu0 %3119
      %v3121 = vsel %vm2838, %v3028, 0.0
      %3122 = vadd.xlane.f32.xlu0 %v3121
      %v3123 = vpop.xlane.xlu0 %3122
      %v3124 = vsel %vm2838, %v3030, 0.0
      %3125 = vadd.xlane.f32.xlu0 %v3124
      %v3126 = vpop.xlane.xlu0 %3125
      %v3127 = vrcp.pop %v3033
      %v3128 = vrcp.pop %v3036
      %v3129 = vrcp.pop %v3039
      %v3130 = vrcp.pop %v3042
      %v3131 = vrcp.pop %v3045
      %v3132 = vrcp.pop %v3048
      %v3133 = vrcp.pop %v3051
      %v3134 = vrcp.pop %v3054
      %v3135 = vrcp.pop %v3057
      %v3136 = vrcp.pop %v3060
      %v3137 = vrcp.pop %v3063
      %v3138 = vrcp.pop %v3066
      %v3139 = vrcp.pop %v3069
      %v3140 = vrcp.pop %v3072
      %v3141 = vrcp.pop %v3075
      %v3142 = vrcp.pop %v3078
      %v3143 = vrcp.pop %v3081
      %v3144 = vrcp.pop %v3084
      %v3145 = vrcp.pop %v3087
      %v3146 = vrcp.pop %v3090
      %v3147 = vrcp.pop %v3093
      %v3148 = vrcp.pop %v3096
      %v3149 = vrcp.pop %v3099
      %v3150 = vrcp.pop %v3102
      %v3151 = vrcp.pop %v3105
      %v3152 = vrcp.pop %v3108
      %v3153 = vrcp.pop %v3111
      %v3154 = vrcp.pop %v3114
      %v3155 = vrcp.pop %v3117
      %v3156 = vrcp.pop %v3120
      %v3157 = vrcp.pop %v3123
      %v3158 = vrcp.pop %v3126
      %v3159 = vmul.f32 %v2968, %v3127
      %v3160 = vmul.f32 %v2970, %v3128
      %v3161 = vmul.f32 %v2972, %v3129
      %v3162 = vmul.f32 %v2974, %v3130
      %v3163 = vmul.f32 %v2976, %v3131
      %v3164 = vmul.f32 %v2978, %v3132
      %v3165 = vmul.f32 %v2980, %v3133
      %v3166 = vmul.f32 %v2982, %v3134
      %v3167 = vmul.f32 %v2984, %v3135
      %v3168 = vmul.f32 %v2986, %v3136
      %v3169 = vmul.f32 %v2988, %v3137
      %v3170 = vmul.f32 %v2990, %v3138
      %v3171 = vmul.f32 %v2992, %v3139
      %v3172 = vmul.f32 %v2994, %v3140
      %v3173 = vmul.f32 %v2996, %v3141
      %v3174 = vmul.f32 %v2998, %v3142
      %v3175 = vmul.f32 %v3000, %v3143
      %v3176 = vmul.f32 %v3002, %v3144
      %v3177 = vmul.f32 %v3004, %v3145
      %v3178 = vmul.f32 %v3006, %v3146
      %v3179 = vmul.f32 %v3008, %v3147
      %v3180 = vmul.f32 %v3010, %v3148
      %v3181 = vmul.f32 %v3012, %v3149
      %v3182 = vmul.f32 %v3014, %v3150
      %v3183 = vmul.f32 %v3016, %v3151
      %v3184 = vmul.f32 %v3018, %v3152
      %v3185 = vmul.f32 %v3020, %v3153
      %v3186 = vmul.f32 %v3022, %v3154
      %v3187 = vmul.f32 %v3024, %v3155
      %v3188 = vmul.f32 %v3026, %v3156
      %v3189 = vmul.f32 %v3028, %v3157
      %v3190 = vmul.f32 %v3030, %v3158
      %vm3191 = vcmask 31744
      %v3193 = vsel %vm3191, %v3159, 0
      %vm3195 = vcmask 1043456
      %v3197 = vsel %vm3195, %v341, 0
      %3199 = vmatprep.subr.mxu0 0.0
      %3200 = vmatpush1.msra.mxu0 %v3197
      %3201 = vmatprep.subr.mxu0 0.0
      %3202 = vmatpush1.msra.mxu0 0.0
      %3203 = vmatprep.subr.mxu0 0.0
      %3204 = vmatpush1.msra.mxu0 0.0
      %3205 = vmatprep.subr.mxu0 0.0
      %3206 = vmatpush1.msra.mxu0 0.0
      %3207 = vmatprep.subr.mxu0 0.0
      %3208 = vmatpush1.msra.mxu0 0.0
      %3209 = vmatprep.subr.mxu0 0.0
      %3210 = vmatpush1.msra.mxu0 0.0
      %3211 = vmatprep.subr.mxu0 0.0
      %3212 = vmatpush1.msra.mxu0 0.0
      %3213 = vmatprep.subr.mxu0 0.0
      %3214 = vmatpush1.msra.mxu0 0.0
      %3215 = vmatprep.subr.mxu0 0.0
      %3216 = vmatpush1.msra.mxu0 0.0
      %3217 = vmatprep.subr.mxu0 0.0
      %3218 = vmatpush1.msra.mxu0 0.0
      %3219 = vmatprep.subr.mxu0 0.0
      %3220 = vmatpush1.msra.mxu0 0.0
      %3221 = vmatprep.subr.mxu0 0.0
      %3222 = vmatpush1.msra.mxu0 0.0
      %3223 = vmatprep.subr.mxu0 0.0
      %3224 = vmatpush1.msra.mxu0 0.0
      %3225 = vmatprep.subr.mxu0 0.0
      %3226 = vmatpush1.msra.mxu0 0.0
      %3227 = vmatprep.subr.mxu0 0.0
      %3228 = vmatpush1.msra.mxu0 0.0
      %3229 = vmatprep.subr.mxu0 0.0
      %3230 = vmatpush1.msra.mxu0 0.0
      %3231 = vmatprep.subr.mxu0 0.0
      %3232 = vmatpush1.msra.mxu0 0.0
      %3233 = vmatprep.subr.mxu0 0.0
      %3234 = vmatpush1.msra.mxu0 0.0
      %3235 = vmatprep.subr.mxu0 0.0
      %3236 = vmatpush1.msra.mxu0 0.0
      %3237 = vmatprep.subr.mxu0 0.0
      %3238 = vmatpush1.msra.mxu0 0.0
      %3239 = vmatprep.subr.mxu0 0.0
      %3240 = vmatpush1.msra.mxu0 0.0
      %3241 = vmatprep.subr.mxu0 0.0
      %3242 = vmatpush1.msra.mxu0 0.0
      %3243 = vmatprep.subr.mxu0 0.0
      %3244 = vmatpush1.msra.mxu0 0.0
      %3245 = vmatprep.subr.mxu0 0.0
      %3246 = vmatpush1.msra.mxu0 0.0
      %3247 = vmatprep.subr.mxu0 0.0
      %3248 = vmatpush1.msra.mxu0 0.0
      %3249 = vmatprep.subr.mxu0 0.0
      %3250 = vmatpush1.msra.mxu0 0.0
      %3251 = vmatprep.subr.mxu0 0.0
      %3252 = vmatpush1.msra.mxu0 0.0
      %3253 = vmatprep.subr.mxu0 0.0
      %3254 = vmatpush1.msra.mxu0 0.0
      %3255 = vmatprep.subr.mxu0 0.0
      %3256 = vmatpush1.msra.mxu0 0.0
      %3257 = vmatprep.subr.mxu0 0.0
      %3258 = vmatpush1.msra.mxu0 0.0
      %3259 = vmatprep.subr.mxu0 0.0
      %3260 = vmatpush1.msra.mxu0 0.0
      %3261 = vmatprep.subr.mxu0 0.0
      %3262 = vmatpush1.msra.mxu0 0.0
      %3263 = vmatprep.mubr.f32.mxu0 0.0
      %3264 = vmatmul.mubr.f32.gmra.mrb[0].mxu0 %v3193
      %v3265 = vpop.f32.mrb[0].mxu0
      %v3266 = vadd.f32 0.0, %v3265
      %v3267 = vpop.f32.mrb[0].mxu0
      %3268 = vdwg.mxu0
      %v3270 = vsel %vm3191, %v3160, 0
      %v3273 = vsel %vm3195, %v342, 0
      %3275 = vmatprep.subr.mxu0 0.0
      %3276 = vmatpush1.msra.mxu0 %v3273
      %3277 = vmatprep.subr.mxu0 0.0
      %3278 = vmatpush1.msra.mxu0 0.0
      %3279 = vmatprep.subr.mxu0 0.0
      %3280 = vmatpush1.msra.mxu0 0.0
      %3281 = vmatprep.subr.mxu0 0.0
      %3282 = vmatpush1.msra.mxu0 0.0
      %3283 = vmatprep.subr.mxu0 0.0
      %3284 = vmatpush1.msra.mxu0 0.0
      %3285 = vmatprep.subr.mxu0 0.0
      %3286 = vmatpush1.msra.mxu0 0.0
      %3287 = vmatprep.subr.mxu0 0.0
      %3288 = vmatpush1.msra.mxu0 0.0
      %3289 = vmatprep.subr.mxu0 0.0
      %3290 = vmatpush1.msra.mxu0 0.0
      %3291 = vmatprep.subr.mxu0 0.0
      %3292 = vmatpush1.msra.mxu0 0.0
      %3293 = vmatprep.subr.mxu0 0.0
      %3294 = vmatpush1.msra.mxu0 0.0
      %3295 = vmatprep.subr.mxu0 0.0
      %3296 = vmatpush1.msra.mxu0 0.0
      %3297 = vmatprep.subr.mxu0 0.0
      %3298 = vmatpush1.msra.mxu0 0.0
      %3299 = vmatprep.subr.mxu0 0.0
      %3300 = vmatpush1.msra.mxu0 0.0
      %3301 = vmatprep.subr.mxu0 0.0
      %3302 = vmatpush1.msra.mxu0 0.0
      %3303 = vmatprep.subr.mxu0 0.0
      %3304 = vmatpush1.msra.mxu0 0.0
      %3305 = vmatprep.subr.mxu0 0.0
      %3306 = vmatpush1.msra.mxu0 0.0
      %3307 = vmatprep.subr.mxu0 0.0
      %3308 = vmatpush1.msra.mxu0 0.0
      %3309 = vmatprep.subr.mxu0 0.0
      %3310 = vmatpush1.msra.mxu0 0.0
      %3311 = vmatprep.subr.mxu0 0.0
      %3312 = vmatpush1.msra.mxu0 0.0
      %3313 = vmatprep.subr.mxu0 0.0
      %3314 = vmatpush1.msra.mxu0 0.0
      %3315 = vmatprep.subr.mxu0 0.0
      %3316 = vmatpush1.msra.mxu0 0.0
      %3317 = vmatprep.subr.mxu0 0.0
      %3318 = vmatpush1.msra.mxu0 0.0
      %3319 = vmatprep.subr.mxu0 0.0
      %3320 = vmatpush1.msra.mxu0 0.0
      %3321 = vmatprep.subr.mxu0 0.0
      %3322 = vmatpush1.msra.mxu0 0.0
      %3323 = vmatprep.subr.mxu0 0.0
      %3324 = vmatpush1.msra.mxu0 0.0
      %3325 = vmatprep.subr.mxu0 0.0
      %3326 = vmatpush1.msra.mxu0 0.0
      %3327 = vmatprep.subr.mxu0 0.0
      %3328 = vmatpush1.msra.mxu0 0.0
      %3329 = vmatprep.subr.mxu0 0.0
      %3330 = vmatpush1.msra.mxu0 0.0
      %3331 = vmatprep.subr.mxu0 0.0
      %3332 = vmatpush1.msra.mxu0 0.0
      %3333 = vmatprep.subr.mxu0 0.0
      %3334 = vmatpush1.msra.mxu0 0.0
      %3335 = vmatprep.subr.mxu0 0.0
      %3336 = vmatpush1.msra.mxu0 0.0
      %3337 = vmatprep.subr.mxu0 0.0
      %3338 = vmatpush1.msra.mxu0 0.0
      %3339 = vmatprep.mubr.f32.mxu0 0.0
      %3340 = vmatmul.mubr.f32.gmra.mrb[0].mxu0 %v3270
      %v3341 = vpop.f32.mrb[0].mxu0
      %v3342 = vadd.f32 0.0, %v3341
      %v3343 = vpop.f32.mrb[0].mxu0
      %3344 = vdwg.mxu0
      %v3346 = vsel %vm3191, %v3161, 0
      %v3349 = vsel %vm3195, %v343, 0
      %3351 = vmatprep.subr.mxu0 0.0
      %3352 = vmatpush1.msra.mxu0 %v3349
      %3353 = vmatprep.subr.mxu0 0.0
      %3354 = vmatpush1.msra.mxu0 0.0
      %3355 = vmatprep.subr.mxu0 0.0
      %3356 = vmatpush1.msra.mxu0 0.0
      %3357 = vmatprep.subr.mxu0 0.0
      %3358 = vmatpush1.msra.mxu0 0.0
      %3359 = vmatprep.subr.mxu0 0.0
      %3360 = vmatpush1.msra.mxu0 0.0
      %3361 = vmatprep.subr.mxu0 0.0
      %3362 = vmatpush1.msra.mxu0 0.0
      %3363 = vmatprep.subr.mxu0 0.0
      %3364 = vmatpush1.msra.mxu0 0.0
      %3365 = vmatprep.subr.mxu0 0.0
      %3366 = vmatpush1.msra.mxu0 0.0
      %3367 = vmatprep.subr.mxu0 0.0
      %3368 = vmatpush1.msra.mxu0 0.0
      %3369 = vmatprep.subr.mxu0 0.0
      %3370 = vmatpush1.msra.mxu0 0.0
      %3371 = vmatprep.subr.mxu0 0.0
      %3372 = vmatpush1.msra.mxu0 0.0
      %3373 = vmatprep.subr.mxu0 0.0
      %3374 = vmatpush1.msra.mxu0 0.0
      %3375 = vmatprep.subr.mxu0 0.0
      %3376 = vmatpush1.msra.mxu0 0.0
      %3377 = vmatprep.subr.mxu0 0.0
      %3378 = vmatpush1.msra.mxu0 0.0
      %3379 = vmatprep.subr.mxu0 0.0
      %3380 = vmatpush1.msra.mxu0 0.0
      %3381 = vmatprep.subr.mxu0 0.0
      %3382 = vmatpush1.msra.mxu0 0.0
      %3383 = vmatprep.subr.mxu0 0.0
      %3384 = vmatpush1.msra.mxu0 0.0
      %3385 = vmatprep.subr.mxu0 0.0
      %3386 = vmatpush1.msra.mxu0 0.0
      %3387 = vmatprep.subr.mxu0 0.0
      %3388 = vmatpush1.msra.mxu0 0.0
      %3389 = vmatprep.subr.mxu0 0.0
      %3390 = vmatpush1.msra.mxu0 0.0
      %3391 = vmatprep.subr.mxu0 0.0
      %3392 = vmatpush1.msra.mxu0 0.0
      %3393 = vmatprep.subr.mxu0 0.0
      %3394 = vmatpush1.msra.mxu0 0.0
      %3395 = vmatprep.subr.mxu0 0.0
      %3396 = vmatpush1.msra.mxu0 0.0
      %3397 = vmatprep.subr.mxu0 0.0
      %3398 = vmatpush1.msra.mxu0 0.0
      %3399 = vmatprep.subr.mxu0 0.0
      %3400 = vmatpush1.msra.mxu0 0.0
      %3401 = vmatprep.subr.mxu0 0.0
      %3402 = vmatpush1.msra.mxu0 0.0
      %3403 = vmatprep.subr.mxu0 0.0
      %3404 = vmatpush1.msra.mxu0 0.0
      %3405 = vmatprep.subr.mxu0 0.0
      %3406 = vmatpush1.msra.mxu0 0.0
      %3407 = vmatprep.subr.mxu0 0.0
      %3408 = vmatpush1.msra.mxu0 0.0
      %3409 = vmatprep.subr.mxu0 0.0
      %3410 = vmatpush1.msra.mxu0 0.0
      %3411 = vmatprep.subr.mxu0 0.0
      %3412 = vmatpush1.msra.mxu0 0.0
      %3413 = vmatprep.subr.mxu0 0.0
      %3414 = vmatpush1.msra.mxu0 0.0
      %3415 = vmatprep.mubr.f32.mxu0 0.0
      %3416 = vmatmul.mubr.f32.gmra.mrb[0].mxu0 %v3346
      %v3417 = vpop.f32.mrb[0].mxu0
      %v3418 = vadd.f32 0.0, %v3417
      %v3419 = vpop.f32.mrb[0].mxu0
      %3420 = vdwg.mxu0
      %v3422 = vsel %vm3191, %v3162, 0
      %v3425 = vsel %vm3195, %v344, 0
      %3427 = vmatprep.subr.mxu0 0.0
      %3428 = vmatpush1.msra.mxu0 %v3425
      %3429 = vmatprep.subr.mxu0 0.0
      %3430 = vmatpush1.msra.mxu0 0.0
      %3431 = vmatprep.subr.mxu0 0.0
      %3432 = vmatpush1.msra.mxu0 0.0
      %3433 = vmatprep.subr.mxu0 0.0
      %3434 = vmatpush1.msra.mxu0 0.0
      %3435 = vmatprep.subr.mxu0 0.0
      %3436 = vmatpush1.msra.mxu0 0.0
      %3437 = vmatprep.subr.mxu0 0.0
      %3438 = vmatpush1.msra.mxu0 0.0
      %3439 = vmatprep.subr.mxu0 0.0
      %3440 = vmatpush1.msra.mxu0 0.0
      %3441 = vmatprep.subr.mxu0 0.0
      %3442 = vmatpush1.msra.mxu0 0.0
      %3443 = vmatprep.subr.mxu0 0.0
      %3444 = vmatpush1.msra.mxu0 0.0
      %3445 = vmatprep.subr.mxu0 0.0
      %3446 = vmatpush1.msra.mxu0 0.0
      %3447 = vmatprep.subr.mxu0 0.0
      %3448 = vmatpush1.msra.mxu0 0.0
      %3449 = vmatprep.subr.mxu0 0.0
      %3450 = vmatpush1.msra.mxu0 0.0
      %3451 = vmatprep.subr.mxu0 0.0
      %3452 = vmatpush1.msra.mxu0 0.0
      %3453 = vmatprep.subr.mxu0 0.0
      %3454 = vmatpush1.msra.mxu0 0.0
      %3455 = vmatprep.subr.mxu0 0.0
      %3456 = vmatpush1.msra.mxu0 0.0
      %3457 = vmatprep.subr.mxu0 0.0
      %3458 = vmatpush1.msra.mxu0 0.0
      %3459 = vmatprep.subr.mxu0 0.0
      %3460 = vmatpush1.msra.mxu0 0.0
      %3461 = vmatprep.subr.mxu0 0.0
      %3462 = vmatpush1.msra.mxu0 0.0
      %3463 = vmatprep.subr.mxu0 0.0
      %3464 = vmatpush1.msra.mxu0 0.0
      %3465 = vmatprep.subr.mxu0 0.0
      %3466 = vmatpush1.msra.mxu0 0.0
      %3467 = vmatprep.subr.mxu0 0.0
      %3468 = vmatpush1.msra.mxu0 0.0
      %3469 = vmatprep.subr.mxu0 0.0
      %3470 = vmatpush1.msra.mxu0 0.0
      %3471 = vmatprep.subr.mxu0 0.0
      %3472 = vmatpush1.msra.mxu0 0.0
      %3473 = vmatprep.subr.mxu0 0.0
      %3474 = vmatpush1.msra.mxu0 0.0
      %3475 = vmatprep.subr.mxu0 0.0
      %3476 = vmatpush1.msra.mxu0 0.0
      %3477 = vmatprep.subr.mxu0 0.0
      %3478 = vmatpush1.msra.mxu0 0.0
      %3479 = vmatprep.subr.mxu0 0.0
      %3480 = vmatpush1.msra.mxu0 0.0
      %3481 = vmatprep.subr.mxu0 0.0
      %3482 = vmatpush1.msra.mxu0 0.0
      %3483 = vmatprep.subr.mxu0 0.0
      %3484 = vmatpush1.msra.mxu0 0.0
      %3485 = vmatprep.subr.mxu0 0.0
      %3486 = vmatpush1.msra.mxu0 0.0
      %3487 = vmatprep.subr.mxu0 0.0
      %3488 = vmatpush1.msra.mxu0 0.0
      %3489 = vmatprep.subr.mxu0 0.0
      %3490 = vmatpush1.msra.mxu0 0.0
      %3491 = vmatprep.mubr.f32.mxu0 0.0
      %3492 = vmatmul.mubr.f32.gmra.mrb[0].mxu0 %v3422
      %v3493 = vpop.f32.mrb[0].mxu0
      %v3494 = vadd.f32 0.0, %v3493
      %v3495 = vpop.f32.mrb[0].mxu0
      %3496 = vdwg.mxu0
      %v3498 = vsel %vm3191, %v3163, 0
      %v3501 = vsel %vm3195, %v345, 0
      %3503 = vmatprep.subr.mxu0 0.0
      %3504 = vmatpush1.msra.mxu0 %v3501
      %3505 = vmatprep.subr.mxu0 0.0
      %3506 = vmatpush1.msra.mxu0 0.0
      %3507 = vmatprep.subr.mxu0 0.0
      %3508 = vmatpush1.msra.mxu0 0.0
      %3509 = vmatprep.subr.mxu0 0.0
      %3510 = vmatpush1.msra.mxu0 0.0
      %3511 = vmatprep.subr.mxu0 0.0
      %3512 = vmatpush1.msra.mxu0 0.0
      %3513 = vmatprep.subr.mxu0 0.0
      %3514 = vmatpush1.msra.mxu0 0.0
      %3515 = vmatprep.subr.mxu0 0.0
      %3516 = vmatpush1.msra.mxu0 0.0
      %3517 = vmatprep.subr.mxu0 0.0
      %3518 = vmatpush1.msra.mxu0 0.0
      %3519 = vmatprep.subr.mxu0 0.0
      %3520 = vmatpush1.msra.mxu0 0.0
      %3521 = vmatprep.subr.mxu0 0.0
      %3522 = vmatpush1.msra.mxu0 0.0
      %3523 = vmatprep.subr.mxu0 0.0
      %3524 = vmatpush1.msra.mxu0 0.0
      %3525 = vmatprep.subr.mxu0 0.0
      %3526 = vmatpush1.msra.mxu0 0.0
      %3527 = vmatprep.subr.mxu0 0.0
      %3528 = vmatpush1.msra.mxu0 0.0
      %3529 = vmatprep.subr.mxu0 0.0
      %3530 = vmatpush1.msra.mxu0 0.0
      %3531 = vmatprep.subr.mxu0 0.0
      %3532 = vmatpush1.msra.mxu0 0.0
      %3533 = vmatprep.subr.mxu0 0.0
      %3534 = vmatpush1.msra.mxu0 0.0
      %3535 = vmatprep.subr.mxu0 0.0
      %3536 = vmatpush1.msra.mxu0 0.0
      %3537 = vmatprep.subr.mxu0 0.0
      %3538 = vmatpush1.msra.mxu0 0.0
      %3539 = vmatprep.subr.mxu0 0.0
      %3540 = vmatpush1.msra.mxu0 0.0
      %3541 = vmatprep.subr.mxu0 0.0
      %3542 = vmatpush1.msra.mxu0 0.0
      %3543 = vmatprep.subr.mxu0 0.0
      %3544 = vmatpush1.msra.mxu0 0.0
      %3545 = vmatprep.subr.mxu0 0.0
      %3546 = vmatpush1.msra.mxu0 0.0
      %3547 = vmatprep.subr.mxu0 0.0
      %3548 = vmatpush1.msra.mxu0 0.0
      %3549 = vmatprep.subr.mxu0 0.0
      %3550 = vmatpush1.msra.mxu0 0.0
      %3551 = vmatprep.subr.mxu0 0.0
      %3552 = vmatpush1.msra.mxu0 0.0
      %3553 = vmatprep.subr.mxu0 0.0
      %3554 = vmatpush1.msra.mxu0 0.0
      %3555 = vmatprep.subr.mxu0 0.0
      %3556 = vmatpush1.msra.mxu0 0.0
      %3557 = vmatprep.subr.mxu0 0.0
      %3558 = vmatpush1.msra.mxu0 0.0
      %3559 = vmatprep.subr.mxu0 0.0
      %3560 = vmatpush1.msra.mxu0 0.0
      %3561 = vmatprep.subr.mxu0 0.0
      %3562 = vmatpush1.msra.mxu0 0.0
      %3563 = vmatprep.subr.mxu0 0.0
      %3564 = vmatpush1.msra.mxu0 0.0
      %3565 = vmatprep.subr.mxu0 0.0
      %3566 = vmatpush1.msra.mxu0 0.0
      %3567 = vmatprep.mubr.f32.mxu0 0.0
      %3568 = vmatmul.mubr.f32.gmra.mrb[0].mxu0 %v3498
      %v3569 = vpop.f32.mrb[0].mxu0
      %v3570 = vadd.f32 0.0, %v3569
      %v3571 = vpop.f32.mrb[0].mxu0
      %3572 = vdwg.mxu0
      %v3574 = vsel %vm3191, %v3164, 0
      %v3577 = vsel %vm3195, %v346, 0
      %3579 = vmatprep.subr.mxu0 0.0
      %3580 = vmatpush1.msra.mxu0 %v3577
      %3581 = vmatprep.subr.mxu0 0.0
      %3582 = vmatpush1.msra.mxu0 0.0
      %3583 = vmatprep.subr.mxu0 0.0
      %3584 = vmatpush1.msra.mxu0 0.0
      %3585 = vmatprep.subr.mxu0 0.0
      %3586 = vmatpush1.msra.mxu0 0.0
      %3587 = vmatprep.subr.mxu0 0.0
      %3588 = vmatpush1.msra.mxu0 0.0
      %3589 = vmatprep.subr.mxu0 0.0
      %3590 = vmatpush1.msra.mxu0 0.0
      %3591 = vmatprep.subr.mxu0 0.0
      %3592 = vmatpush1.msra.mxu0 0.0
      %3593 = vmatprep.subr.mxu0 0.0
      %3594 = vmatpush1.msra.mxu0 0.0
      %3595 = vmatprep.subr.mxu0 0.0
      %3596 = vmatpush1.msra.mxu0 0.0
      %3597 = vmatprep.subr.mxu0 0.0
      %3598 = vmatpush1.msra.mxu0 0.0
      %3599 = vmatprep.subr.mxu0 0.0
      %3600 = vmatpush1.msra.mxu0 0.0
      %3601 = vmatprep.subr.mxu0 0.0
      %3602 = vmatpush1.msra.mxu0 0.0
      %3603 = vmatprep.subr.mxu0 0.0
      %3604 = vmatpush1.msra.mxu0 0.0
      %3605 = vmatprep.subr.mxu0 0.0
      %3606 = vmatpush1.msra.mxu0 0.0
      %3607 = vmatprep.subr.mxu0 0.0
      %3608 = vmatpush1.msra.mxu0 0.0
      %3609 = vmatprep.subr.mxu0 0.0
      %3610 = vmatpush1.msra.mxu0 0.0
      %3611 = vmatprep.subr.mxu0 0.0
      %3612 = vmatpush1.msra.mxu0 0.0
      %3613 = vmatprep.subr.mxu0 0.0
      %3614 = vmatpush1.msra.mxu0 0.0
      %3615 = vmatprep.subr.mxu0 0.0
      %3616 = vmatpush1.msra.mxu0 0.0
      %3617 = vmatprep.subr.mxu0 0.0
      %3618 = vmatpush1.msra.mxu0 0.0
      %3619 = vmatprep.subr.mxu0 0.0
      %3620 = vmatpush1.msra.mxu0 0.0
      %3621 = vmatprep.subr.mxu0 0.0
      %3622 = vmatpush1.msra.mxu0 0.0
      %3623 = vmatprep.subr.mxu0 0.0
      %3624 = vmatpush1.msra.mxu0 0.0
      %3625 = vmatprep.subr.mxu0 0.0
      %3626 = vmatpush1.msra.mxu0 0.0
      %3627 = vmatprep.subr.mxu0 0.0
      %3628 = vmatpush1.msra.mxu0 0.0
      %3629 = vmatprep.subr.mxu0 0.0
      %3630 = vmatpush1.msra.mxu0 0.0
      %3631 = vmatprep.subr.mxu0 0.0
      %3632 = vmatpush1.msra.mxu0 0.0
      %3633 = vmatprep.subr.mxu0 0.0
      %3634 = vmatpush1.msra.mxu0 0.0
      %3635 = vmatprep.subr.mxu0 0.0
      %3636 = vmatpush1.msra.mxu0 0.0
      %3637 = vmatprep.subr.mxu0 0.0
      %3638 = vmatpush1.msra.mxu0 0.0
      %3639 = vmatprep.subr.mxu0 0.0
      %3640 = vmatpush1.msra.mxu0 0.0
      %3641 = vmatprep.subr.mxu0 0.0
      %3642 = vmatpush1.msra.mxu0 0.0
      %3643 = vmatprep.mubr.f32.mxu0 0.0
      %3644 = vmatmul.mubr.f32.gmra.mrb[0].mxu0 %v3574
      %v3645 = vpop.f32.mrb[0].mxu0
      %v3646 = vadd.f32 0.0, %v3645
      %v3647 = vpop.f32.mrb[0].mxu0
      %3648 = vdwg.mxu0
      %v3650 = vsel %vm3191, %v3165, 0
      %v3653 = vsel %vm3195, %v347, 0
      %3655 = vmatprep.subr.mxu0 0.0
      %3656 = vmatpush1.msra.mxu0 %v3653
      %3657 = vmatprep.subr.mxu0 0.0
      %3658 = vmatpush1.msra.mxu0 0.0
      %3659 = vmatprep.subr.mxu0 0.0
      %3660 = vmatpush1.msra.mxu0 0.0
      %3661 = vmatprep.subr.mxu0 0.0
      %3662 = vmatpush1.msra.mxu0 0.0
      %3663 = vmatprep.subr.mxu0 0.0
      %3664 = vmatpush1.msra.mxu0 0.0
      %3665 = vmatprep.subr.mxu0 0.0
      %3666 = vmatpush1.msra.mxu0 0.0
      %3667 = vmatprep.subr.mxu0 0.0
      %3668 = vmatpush1.msra.mxu0 0.0
      %3669 = vmatprep.subr.mxu0 0.0
      %3670 = vmatpush1.msra.mxu0 0.0
      %3671 = vmatprep.subr.mxu0 0.0
      %3672 = vmatpush1.msra.mxu0 0.0
      %3673 = vmatprep.subr.mxu0 0.0
      %3674 = vmatpush1.msra.mxu0 0.0
      %3675 = vmatprep.subr.mxu0 0.0
      %3676 = vmatpush1.msra.mxu0 0.0
      %3677 = vmatprep.subr.mxu0 0.0
      %3678 = vmatpush1.msra.mxu0 0.0
      %3679 = vmatprep.subr.mxu0 0.0
      %3680 = vmatpush1.msra.mxu0 0.0
      %3681 = vmatprep.subr.mxu0 0.0
      %3682 = vmatpush1.msra.mxu0 0.0
      %3683 = vmatprep.subr.mxu0 0.0
      %3684 = vmatpush1.msra.mxu0 0.0
      %3685 = vmatprep.subr.mxu0 0.0
      %3686 = vmatpush1.msra.mxu0 0.0
      %3687 = vmatprep.subr.mxu0 0.0
      %3688 = vmatpush1.msra.mxu0 0.0
      %3689 = vmatprep.subr.mxu0 0.0
      %3690 = vmatpush1.msra.mxu0 0.0
      %3691 = vmatprep.subr.mxu0 0.0
      %3692 = vmatpush1.msra.mxu0 0.0
      %3693 = vmatprep.subr.mxu0 0.0
      %3694 = vmatpush1.msra.mxu0 0.0
      %3695 = vmatprep.subr.mxu0 0.0
      %3696 = vmatpush1.msra.mxu0 0.0
      %3697 = vmatprep.subr.mxu0 0.0
      %3698 = vmatpush1.msra.mxu0 0.0
      %3699 = vmatprep.subr.mxu0 0.0
      %3700 = vmatpush1.msra.mxu0 0.0
      %3701 = vmatprep.subr.mxu0 0.0
      %3702 = vmatpush1.msra.mxu0 0.0
      %3703 = vmatprep.subr.mxu0 0.0
      %3704 = vmatpush1.msra.mxu0 0.0
      %3705 = vmatprep.subr.mxu0 0.0
      %3706 = vmatpush1.msra.mxu0 0.0
      %3707 = vmatprep.subr.mxu0 0.0
      %3708 = vmatpush1.msra.mxu0 0.0
      %3709 = vmatprep.subr.mxu0 0.0
      %3710 = vmatpush1.msra.mxu0 0.0
      %3711 = vmatprep.subr.mxu0 0.0
      %3712 = vmatpush1.msra.mxu0 0.0
      %3713 = vmatprep.subr.mxu0 0.0
      %3714 = vmatpush1.msra.mxu0 0.0
      %3715 = vmatprep.subr.mxu0 0.0
      %3716 = vmatpush1.msra.mxu0 0.0
      %3717 = vmatprep.subr.mxu0 0.0
      %3718 = vmatpush1.msra.mxu0 0.0
      %3719 = vmatprep.mubr.f32.mxu0 0.0
      %3720 = vmatmul.mubr.f32.gmra.mrb[0].mxu0 %v3650
      %v3721 = vpop.f32.mrb[0].mxu0
      %v3722 = vadd.f32 0.0, %v3721
      %v3723 = vpop.f32.mrb[0].mxu0
      %3724 = vdwg.mxu0
      %v3726 = vsel %vm3191, %v3166, 0
      %v3729 = vsel %vm3195, %v348, 0
      %3731 = vmatprep.subr.mxu0 0.0
      %3732 = vmatpush1.msra.mxu0 %v3729
      %3733 = vmatprep.subr.mxu0 0.0
      %3734 = vmatpush1.msra.mxu0 0.0
      %3735 = vmatprep.subr.mxu0 0.0
      %3736 = vmatpush1.msra.mxu0 0.0
      %3737 = vmatprep.subr.mxu0 0.0
      %3738 = vmatpush1.msra.mxu0 0.0
      %3739 = vmatprep.subr.mxu0 0.0
      %3740 = vmatpush1.msra.mxu0 0.0
      %3741 = vmatprep.subr.mxu0 0.0
      %3742 = vmatpush1.msra.mxu0 0.0
      %3743 = vmatprep.subr.mxu0 0.0
      %3744 = vmatpush1.msra.mxu0 0.0
      %3745 = vmatprep.subr.mxu0 0.0
      %3746 = vmatpush1.msra.mxu0 0.0
      %3747 = vmatprep.subr.mxu0 0.0
      %3748 = vmatpush1.msra.mxu0 0.0
      %3749 = vmatprep.subr.mxu0 0.0
      %3750 = vmatpush1.msra.mxu0 0.0
      %3751 = vmatprep.subr.mxu0 0.0
      %3752 = vmatpush1.msra.mxu0 0.0
      %3753 = vmatprep.subr.mxu0 0.0
      %3754 = vmatpush1.msra.mxu0 0.0
      %3755 = vmatprep.subr.mxu0 0.0
      %3756 = vmatpush1.msra.mxu0 0.0
      %3757 = vmatprep.subr.mxu0 0.0
      %3758 = vmatpush1.msra.mxu0 0.0
      %3759 = vmatprep.subr.mxu0 0.0
      %3760 = vmatpush1.msra.mxu0 0.0
      %3761 = vmatprep.subr.mxu0 0.0
      %3762 = vmatpush1.msra.mxu0 0.0
      %3763 = vmatprep.subr.mxu0 0.0
      %3764 = vmatpush1.msra.mxu0 0.0
      %3765 = vmatprep.subr.mxu0 0.0
      %3766 = vmatpush1.msra.mxu0 0.0
      %3767 = vmatprep.subr.mxu0 0.0
      %3768 = vmatpush1.msra.mxu0 0.0
      %3769 = vmatprep.subr.mxu0 0.0
      %3770 = vmatpush1.msra.mxu0 0.0
      %3771 = vmatprep.subr.mxu0 0.0
      %3772 = vmatpush1.msra.mxu0 0.0
      %3773 = vmatprep.subr.mxu0 0.0
      %3774 = vmatpush1.msra.mxu0 0.0
      %3775 = vmatprep.subr.mxu0 0.0
      %3776 = vmatpush1.msra.mxu0 0.0
      %3777 = vmatprep.subr.mxu0 0.0
      %3778 = vmatpush1.msra.mxu0 0.0
      %3779 = vmatprep.subr.mxu0 0.0
      %3780 = vmatpush1.msra.mxu0 0.0
      %3781 = vmatprep.subr.mxu0 0.0
      %3782 = vmatpush1.msra.mxu0 0.0
      %3783 = vmatprep.subr.mxu0 0.0
      %3784 = vmatpush1.msra.mxu0 0.0
      %3785 = vmatprep.subr.mxu0 0.0
      %3786 = vmatpush1.msra.mxu0 0.0
      %3787 = vmatprep.subr.mxu0 0.0
      %3788 = vmatpush1.msra.mxu0 0.0
      %3789 = vmatprep.subr.mxu0 0.0
      %3790 = vmatpush1.msra.mxu0 0.0
      %3791 = vmatprep.subr.mxu0 0.0
      %3792 = vmatpush1.msra.mxu0 0.0
      %3793 = vmatprep.subr.mxu0 0.0
      %3794 = vmatpush1.msra.mxu0 0.0
      %3795 = vmatprep.mubr.f32.mxu0 0.0
      %3796 = vmatmul.mubr.f32.gmra.mrb[0].mxu0 %v3726
      %v3797 = vpop.f32.mrb[0].mxu0
      %v3798 = vadd.f32 0.0, %v3797
      %v3799 = vpop.f32.mrb[0].mxu0
      %3800 = vdwg.mxu0
      %v3802 = vsel %vm3191, %v3167, 0
      %v3805 = vsel %vm3195, %v349, 0
      %3807 = vmatprep.subr.mxu0 0.0
      %3808 = vmatpush1.msra.mxu0 %v3805
      %3809 = vmatprep.subr.mxu0 0.0
      %3810 = vmatpush1.msra.mxu0 0.0
      %3811 = vmatprep.subr.mxu0 0.0
      %3812 = vmatpush1.msra.mxu0 0.0
      %3813 = vmatprep.subr.mxu0 0.0
      %3814 = vmatpush1.msra.mxu0 0.0
      %3815 = vmatprep.subr.mxu0 0.0
      %3816 = vmatpush1.msra.mxu0 0.0
      %3817 = vmatprep.subr.mxu0 0.0
      %3818 = vmatpush1.msra.mxu0 0.0
      %3819 = vmatprep.subr.mxu0 0.0
      %3820 = vmatpush1.msra.mxu0 0.0
      %3821 = vmatprep.subr.mxu0 0.0
      %3822 = vmatpush1.msra.mxu0 0.0
      %3823 = vmatprep.subr.mxu0 0.0
      %3824 = vmatpush1.msra.mxu0 0.0
      %3825 = vmatprep.subr.mxu0 0.0
      %3826 = vmatpush1.msra.mxu0 0.0
      %3827 = vmatprep.subr.mxu0 0.0
      %3828 = vmatpush1.msra.mxu0 0.0
      %3829 = vmatprep.subr.mxu0 0.0
      %3830 = vmatpush1.msra.mxu0 0.0
      %3831 = vmatprep.subr.mxu0 0.0
      %3832 = vmatpush1.msra.mxu0 0.0
      %3833 = vmatprep.subr.mxu0 0.0
      %3834 = vmatpush1.msra.mxu0 0.0
      %3835 = vmatprep.subr.mxu0 0.0
      %3836 = vmatpush1.msra.mxu0 0.0
      %3837 = vmatprep.subr.mxu0 0.0
      %3838 = vmatpush1.msra.mxu0 0.0
      %3839 = vmatprep.subr.mxu0 0.0
      %3840 = vmatpush1.msra.mxu0 0.0
      %3841 = vmatprep.subr.mxu0 0.0
      %3842 = vmatpush1.msra.mxu0 0.0
      %3843 = vmatprep.subr.mxu0 0.0
      %3844 = vmatpush1.msra.mxu0 0.0
      %3845 = vmatprep.subr.mxu0 0.0
      %3846 = vmatpush1.msra.mxu0 0.0
      %3847 = vmatprep.subr.mxu0 0.0
      %3848 = vmatpush1.msra.mxu0 0.0
      %3849 = vmatprep.subr.mxu0 0.0
      %3850 = vmatpush1.msra.mxu0 0.0
      %3851 = vmatprep.subr.mxu0 0.0
      %3852 = vmatpush1.msra.mxu0 0.0
      %3853 = vmatprep.subr.mxu0 0.0
      %3854 = vmatpush1.msra.mxu0 0.0
      %3855 = vmatprep.subr.mxu0 0.0
      %3856 = vmatpush1.msra.mxu0 0.0
      %3857 = vmatprep.subr.mxu0 0.0
      %3858 = vmatpush1.msra.mxu0 0.0
      %3859 = vmatprep.subr.mxu0 0.0
      %3860 = vmatpush1.msra.mxu0 0.0
      %3861 = vmatprep.subr.mxu0 0.0
      %3862 = vmatpush1.msra.mxu0 0.0
      %3863 = vmatprep.subr.mxu0 0.0
      %3864 = vmatpush1.msra.mxu0 0.0
      %3865 = vmatprep.subr.mxu0 0.0
      %3866 = vmatpush1.msra.mxu0 0.0
      %3867 = vmatprep.subr.mxu0 0.0
      %3868 = vmatpush1.msra.mxu0 0.0
      %3869 = vmatprep.subr.mxu0 0.0
      %3870 = vmatpush1.msra.mxu0 0.0
      %3871 = vmatprep.mubr.f32.mxu0 0.0
      %3872 = vmatmul.mubr.f32.gmra.mrb[0].mxu0 %v3802
      %v3873 = vpop.f32.mrb[0].mxu0
      %v3874 = vadd.f32 0.0, %v3873
      %v3875 = vpop.f32.mrb[0].mxu0
      %3876 = vdwg.mxu0
      %v3878 = vsel %vm3191, %v3168, 0
      %v3881 = vsel %vm3195, %v350, 0
      %3883 = vmatprep.subr.mxu0 0.0
      %3884 = vmatpush1.msra.mxu0 %v3881
      %3885 = vmatprep.subr.mxu0 0.0
      %3886 = vmatpush1.msra.mxu0 0.0
      %3887 = vmatprep.subr.mxu0 0.0
      %3888 = vmatpush1.msra.mxu0 0.0
      %3889 = vmatprep.subr.mxu0 0.0
      %3890 = vmatpush1.msra.mxu0 0.0
      %3891 = vmatprep.subr.mxu0 0.0
      %3892 = vmatpush1.msra.mxu0 0.0
      %3893 = vmatprep.subr.mxu0 0.0
      %3894 = vmatpush1.msra.mxu0 0.0
      %3895 = vmatprep.subr.mxu0 0.0
      %3896 = vmatpush1.msra.mxu0 0.0
      %3897 = vmatprep.subr.mxu0 0.0
      %3898 = vmatpush1.msra.mxu0 0.0
      %3899 = vmatprep.subr.mxu0 0.0
      %3900 = vmatpush1.msra.mxu0 0.0
      %3901 = vmatprep.subr.mxu0 0.0
      %3902 = vmatpush1.msra.mxu0 0.0
      %3903 = vmatprep.subr.mxu0 0.0
      %3904 = vmatpush1.msra.mxu0 0.0
      %3905 = vmatprep.subr.mxu0 0.0
      %3906 = vmatpush1.msra.mxu0 0.0
      %3907 = vmatprep.subr.mxu0 0.0
      %3908 = vmatpush1.msra.mxu0 0.0
      %3909 = vmatprep.subr.mxu0 0.0
      %3910 = vmatpush1.msra.mxu0 0.0
      %3911 = vmatprep.subr.mxu0 0.0
      %3912 = vmatpush1.msra.mxu0 0.0
      %3913 = vmatprep.subr.mxu0 0.0
      %3914 = vmatpush1.msra.mxu0 0.0
      %3915 = vmatprep.subr.mxu0 0.0
      %3916 = vmatpush1.msra.mxu0 0.0
      %3917 = vmatprep.subr.mxu0 0.0
      %3918 = vmatpush1.msra.mxu0 0.0
      %3919 = vmatprep.subr.mxu0 0.0
      %3920 = vmatpush1.msra.mxu0 0.0
      %3921 = vmatprep.subr.mxu0 0.0
      %3922 = vmatpush1.msra.mxu0 0.0
      %3923 = vmatprep.subr.mxu0 0.0
      %3924 = vmatpush1.msra.mxu0 0.0
      %3925 = vmatprep.subr.mxu0 0.0
      %3926 = vmatpush1.msra.mxu0 0.0
      %3927 = vmatprep.subr.mxu0 0.0
      %3928 = vmatpush1.msra.mxu0 0.0
      %3929 = vmatprep.subr.mxu0 0.0
      %3930 = vmatpush1.msra.mxu0 0.0
      %3931 = vmatprep.subr.mxu0 0.0
      %3932 = vmatpush1.msra.mxu0 0.0
      %3933 = vmatprep.subr.mxu0 0.0
      %3934 = vmatpush1.msra.mxu0 0.0
      %3935 = vmatprep.subr.mxu0 0.0
      %3936 = vmatpush1.msra.mxu0 0.0
      %3937 = vmatprep.subr.mxu0 0.0
      %3938 = vmatpush1.msra.mxu0 0.0
      %3939 = vmatprep.subr.mxu0 0.0
      %3940 = vmatpush1.msra.mxu0 0.0
      %3941 = vmatprep.subr.mxu0 0.0
      %3942 = vmatpush1.msra.mxu0 0.0
      %3943 = vmatprep.subr.mxu0 0.0
      %3944 = vmatpush1.msra.mxu0 0.0
      %3945 = vmatprep.subr.mxu0 0.0
      %3946 = vmatpush1.msra.mxu0 0.0
      %3947 = vmatprep.mubr.f32.mxu0 0.0
      %3948 = vmatmul.mubr.f32.gmra.mrb[0].mxu0 %v3878
      %v3949 = vpop.f32.mrb[0].mxu0
      %v3950 = vadd.f32 0.0, %v3949
      %v3951 = vpop.f32.mrb[0].mxu0
      %3952 = vdwg.mxu0
      %v3954 = vsel %vm3191, %v3169, 0
      %v3957 = vsel %vm3195, %v351, 0
      %3959 = vmatprep.subr.mxu0 0.0
      %3960 = vmatpush1.msra.mxu0 %v3957
      %3961 = vmatprep.subr.mxu0 0.0
      %3962 = vmatpush1.msra.mxu0 0.0
      %3963 = vmatprep.subr.mxu0 0.0
      %3964 = vmatpush1.msra.mxu0 0.0
      %3965 = vmatprep.subr.mxu0 0.0
      %3966 = vmatpush1.msra.mxu0 0.0
      %3967 = vmatprep.subr.mxu0 0.0
      %3968 = vmatpush1.msra.mxu0 0.0
      %3969 = vmatprep.subr.mxu0 0.0
      %3970 = vmatpush1.msra.mxu0 0.0
      %3971 = vmatprep.subr.mxu0 0.0
      %3972 = vmatpush1.msra.mxu0 0.0
      %3973 = vmatprep.subr.mxu0 0.0
      %3974 = vmatpush1.msra.mxu0 0.0
      %3975 = vmatprep.subr.mxu0 0.0
      %3976 = vmatpush1.msra.mxu0 0.0
      %3977 = vmatprep.subr.mxu0 0.0
      %3978 = vmatpush1.msra.mxu0 0.0
      %3979 = vmatprep.subr.mxu0 0.0
      %3980 = vmatpush1.msra.mxu0 0.0
      %3981 = vmatprep.subr.mxu0 0.0
      %3982 = vmatpush1.msra.mxu0 0.0
      %3983 = vmatprep.subr.mxu0 0.0
      %3984 = vmatpush1.msra.mxu0 0.0
      %3985 = vmatprep.subr.mxu0 0.0
      %3986 = vmatpush1.msra.mxu0 0.0
      %3987 = vmatprep.subr.mxu0 0.0
      %3988 = vmatpush1.msra.mxu0 0.0
      %3989 = vmatprep.subr.mxu0 0.0
      %3990 = vmatpush1.msra.mxu0 0.0
      %3991 = vmatprep.subr.mxu0 0.0
      %3992 = vmatpush1.msra.mxu0 0.0
      %3993 = vmatprep.subr.mxu0 0.0
      %3994 = vmatpush1.msra.mxu0 0.0
      %3995 = vmatprep.subr.mxu0 0.0
      %3996 = vmatpush1.msra.mxu0 0.0
      %3997 = vmatprep.subr.mxu0 0.0
      %3998 = vmatpush1.msra.mxu0 0.0
      %3999 = vmatprep.subr.mxu0 0.0
      %4000 = vmatpush1.msra.mxu0 0.0
      %4001 = vmatprep.subr.mxu0 0.0
      %4002 = vmatpush1.msra.mxu0 0.0
      %4003 = vmatprep.subr.mxu0 0.0
      %4004 = vmatpush1.msra.mxu0 0.0
      %4005 = vmatprep.subr.mxu0 0.0
      %4006 = vmatpush1.msra.mxu0 0.0
      %4007 = vmatprep.subr.mxu0 0.0
      %4008 = vmatpush1.msra.mxu0 0.0
      %4009 = vmatprep.subr.mxu0 0.0
      %4010 = vmatpush1.msra.mxu0 0.0
      %4011 = vmatprep.subr.mxu0 0.0
      %4012 = vmatpush1.msra.mxu0 0.0
      %4013 = vmatprep.subr.mxu0 0.0
      %4014 = vmatpush1.msra.mxu0 0.0
      %4015 = vmatprep.subr.mxu0 0.0
      %4016 = vmatpush1.msra.mxu0 0.0
      %4017 = vmatprep.subr.mxu0 0.0
      %4018 = vmatpush1.msra.mxu0 0.0
      %4019 = vmatprep.subr.mxu0 0.0
      %4020 = vmatpush1.msra.mxu0 0.0
      %4021 = vmatprep.subr.mxu0 0.0
      %4022 = vmatpush1.msra.mxu0 0.0
      %4023 = vmatprep.mubr.f32.mxu0 0.0
      %4024 = vmatmul.mubr.f32.gmra.mrb[0].mxu0 %v3954
      %v4025 = vpop.f32.mrb[0].mxu0
      %v4026 = vadd.f32 0.0, %v4025
      %v4027 = vpop.f32.mrb[0].mxu0
      %4028 = vdwg.mxu0
      %v4030 = vsel %vm3191, %v3170, 0
      %v4033 = vsel %vm3195, %v352, 0
      %4035 = vmatprep.subr.mxu0 0.0
      %4036 = vmatpush1.msra.mxu0 %v4033
      %4037 = vmatprep.subr.mxu0 0.0
      %4038 = vmatpush1.msra.mxu0 0.0
      %4039 = vmatprep.subr.mxu0 0.0
      %4040 = vmatpush1.msra.mxu0 0.0
      %4041 = vmatprep.subr.mxu0 0.0
      %4042 = vmatpush1.msra.mxu0 0.0
      %4043 = vmatprep.subr.mxu0 0.0
      %4044 = vmatpush1.msra.mxu0 0.0
      %4045 = vmatprep.subr.mxu0 0.0
      %4046 = vmatpush1.msra.mxu0 0.0
      %4047 = vmatprep.subr.mxu0 0.0
      %4048 = vmatpush1.msra.mxu0 0.0
      %4049 = vmatprep.subr.mxu0 0.0
      %4050 = vmatpush1.msra.mxu0 0.0
      %4051 = vmatprep.subr.mxu0 0.0
      %4052 = vmatpush1.msra.mxu0 0.0
      %4053 = vmatprep.subr.mxu0 0.0
      %4054 = vmatpush1.msra.mxu0 0.0
      %4055 = vmatprep.subr.mxu0 0.0
      %4056 = vmatpush1.msra.mxu0 0.0
      %4057 = vmatprep.subr.mxu0 0.0
      %4058 = vmatpush1.msra.mxu0 0.0
      %4059 = vmatprep.subr.mxu0 0.0
      %4060 = vmatpush1.msra.mxu0 0.0
      %4061 = vmatprep.subr.mxu0 0.0
      %4062 = vmatpush1.msra.mxu0 0.0
      %4063 = vmatprep.subr.mxu0 0.0
      %4064 = vmatpush1.msra.mxu0 0.0
      %4065 = vmatprep.subr.mxu0 0.0
      %4066 = vmatpush1.msra.mxu0 0.0
      %4067 = vmatprep.subr.mxu0 0.0
      %4068 = vmatpush1.msra.mxu0 0.0
      %4069 = vmatprep.subr.mxu0 0.0
      %4070 = vmatpush1.msra.mxu0 0.0
      %4071 = vmatprep.subr.mxu0 0.0
      %4072 = vmatpush1.msra.mxu0 0.0
      %4073 = vmatprep.subr.mxu0 0.0
      %4074 = vmatpush1.msra.mxu0 0.0
      %4075 = vmatprep.subr.mxu0 0.0
      %4076 = vmatpush1.msra.mxu0 0.0
      %4077 = vmatprep.subr.mxu0 0.0
      %4078 = vmatpush1.msra.mxu0 0.0
      %4079 = vmatprep.subr.mxu0 0.0
      %4080 = vmatpush1.msra.mxu0 0.0
      %4081 = vmatprep.subr.mxu0 0.0
      %4082 = vmatpush1.msra.mxu0 0.0
      %4083 = vmatprep.subr.mxu0 0.0
      %4084 = vmatpush1.msra.mxu0 0.0
      %4085 = vmatprep.subr.mxu0 0.0
      %4086 = vmatpush1.msra.mxu0 0.0
      %4087 = vmatprep.subr.mxu0 0.0
      %4088 = vmatpush1.msra.mxu0 0.0
      %4089 = vmatprep.subr.mxu0 0.0
      %4090 = vmatpush1.msra.mxu0 0.0
      %4091 = vmatprep.subr.mxu0 0.0
      %4092 = vmatpush1.msra.mxu0 0.0
      %4093 = vmatprep.subr.mxu0 0.0
      %4094 = vmatpush1.msra.mxu0 0.0
      %4095 = vmatprep.subr.mxu0 0.0
      %4096 = vmatpush1.msra.mxu0 0.0
      %4097 = vmatprep.subr.mxu0 0.0
      %4098 = vmatpush1.msra.mxu0 0.0
      %4099 = vmatprep.mubr.f32.mxu0 0.0
      %4100 = vmatmul.mubr.f32.gmra.mrb[0].mxu0 %v4030
      %v4101 = vpop.f32.mrb[0].mxu0
      %v4102 = vadd.f32 0.0, %v4101
      %v4103 = vpop.f32.mrb[0].mxu0
      %4104 = vdwg.mxu0
      %v4106 = vsel %vm3191, %v3171, 0
      %v4109 = vsel %vm3195, %v353, 0
      %4111 = vmatprep.subr.mxu0 0.0
      %4112 = vmatpush1.msra.mxu0 %v4109
      %4113 = vmatprep.subr.mxu0 0.0
      %4114 = vmatpush1.msra.mxu0 0.0
      %4115 = vmatprep.subr.mxu0 0.0
      %4116 = vmatpush1.msra.mxu0 0.0
      %4117 = vmatprep.subr.mxu0 0.0
      %4118 = vmatpush1.msra.mxu0 0.0
      %4119 = vmatprep.subr.mxu0 0.0
      %4120 = vmatpush1.msra.mxu0 0.0
      %4121 = vmatprep.subr.mxu0 0.0
      %4122 = vmatpush1.msra.mxu0 0.0
      %4123 = vmatprep.subr.mxu0 0.0
      %4124 = vmatpush1.msra.mxu0 0.0
      %4125 = vmatprep.subr.mxu0 0.0
      %4126 = vmatpush1.msra.mxu0 0.0
      %4127 = vmatprep.subr.mxu0 0.0
      %4128 = vmatpush1.msra.mxu0 0.0
      %4129 = vmatprep.subr.mxu0 0.0
      %4130 = vmatpush1.msra.mxu0 0.0
      %4131 = vmatprep.subr.mxu0 0.0
      %4132 = vmatpush1.msra.mxu0 0.0
      %4133 = vmatprep.subr.mxu0 0.0
      %4134 = vmatpush1.msra.mxu0 0.0
      %4135 = vmatprep.subr.mxu0 0.0
      %4136 = vmatpush1.msra.mxu0 0.0
      %4137 = vmatprep.subr.mxu0 0.0
      %4138 = vmatpush1.msra.mxu0 0.0
      %4139 = vmatprep.subr.mxu0 0.0
      %4140 = vmatpush1.msra.mxu0 0.0
      %4141 = vmatprep.subr.mxu0 0.0
      %4142 = vmatpush1.msra.mxu0 0.0
      %4143 = vmatprep.subr.mxu0 0.0
      %4144 = vmatpush1.msra.mxu0 0.0
      %4145 = vmatprep.subr.mxu0 0.0
      %4146 = vmatpush1.msra.mxu0 0.0
      %4147 = vmatprep.subr.mxu0 0.0
      %4148 = vmatpush1.msra.mxu0 0.0
      %4149 = vmatprep.subr.mxu0 0.0
      %4150 = vmatpush1.msra.mxu0 0.0
      %4151 = vmatprep.subr.mxu0 0.0
      %4152 = vmatpush1.msra.mxu0 0.0
      %4153 = vmatprep.subr.mxu0 0.0
      %4154 = vmatpush1.msra.mxu0 0.0
      %4155 = vmatprep.subr.mxu0 0.0
      %4156 = vmatpush1.msra.mxu0 0.0
      %4157 = vmatprep.subr.mxu0 0.0
      %4158 = vmatpush1.msra.mxu0 0.0
      %4159 = vmatprep.subr.mxu0 0.0
      %4160 = vmatpush1.msra.mxu0 0.0
      %4161 = vmatprep.subr.mxu0 0.0
      %4162 = vmatpush1.msra.mxu0 0.0
      %4163 = vmatprep.subr.mxu0 0.0
      %4164 = vmatpush1.msra.mxu0 0.0
      %4165 = vmatprep.subr.mxu0 0.0
      %4166 = vmatpush1.msra.mxu0 0.0
      %4167 = vmatprep.subr.mxu0 0.0
      %4168 = vmatpush1.msra.mxu0 0.0
      %4169 = vmatprep.subr.mxu0 0.0
      %4170 = vmatpush1.msra.mxu0 0.0
      %4171 = vmatprep.subr.mxu0 0.0
      %4172 = vmatpush1.msra.mxu0 0.0
      %4173 = vmatprep.subr.mxu0 0.0
      %4174 = vmatpush1.msra.mxu0 0.0
      %4175 = vmatprep.mubr.f32.mxu0 0.0
      %4176 = vmatmul.mubr.f32.gmra.mrb[0].mxu0 %v4106
      %v4177 = vpop.f32.mrb[0].mxu0
      %v4178 = vadd.f32 0.0, %v4177
      %v4179 = vpop.f32.mrb[0].mxu0
      %4180 = vdwg.mxu0
      %v4182 = vsel %vm3191, %v3172, 0
      %v4185 = vsel %vm3195, %v354, 0
      %4187 = vmatprep.subr.mxu0 0.0
      %4188 = vmatpush1.msra.mxu0 %v4185
      %4189 = vmatprep.subr.mxu0 0.0
      %4190 = vmatpush1.msra.mxu0 0.0
      %4191 = vmatprep.subr.mxu0 0.0
      %4192 = vmatpush1.msra.mxu0 0.0
      %4193 = vmatprep.subr.mxu0 0.0
      %4194 = vmatpush1.msra.mxu0 0.0
      %4195 = vmatprep.subr.mxu0 0.0
      %4196 = vmatpush1.msra.mxu0 0.0
      %4197 = vmatprep.subr.mxu0 0.0
      %4198 = vmatpush1.msra.mxu0 0.0
      %4199 = vmatprep.subr.mxu0 0.0
      %4200 = vmatpush1.msra.mxu0 0.0
      %4201 = vmatprep.subr.mxu0 0.0
      %4202 = vmatpush1.msra.mxu0 0.0
      %4203 = vmatprep.subr.mxu0 0.0
      %4204 = vmatpush1.msra.mxu0 0.0
      %4205 = vmatprep.subr.mxu0 0.0
      %4206 = vmatpush1.msra.mxu0 0.0
      %4207 = vmatprep.subr.mxu0 0.0
      %4208 = vmatpush1.msra.mxu0 0.0
      %4209 = vmatprep.subr.mxu0 0.0
      %4210 = vmatpush1.msra.mxu0 0.0
      %4211 = vmatprep.subr.mxu0 0.0
      %4212 = vmatpush1.msra.mxu0 0.0
      %4213 = vmatprep.subr.mxu0 0.0
      %4214 = vmatpush1.msra.mxu0 0.0
      %4215 = vmatprep.subr.mxu0 0.0
      %4216 = vmatpush1.msra.mxu0 0.0
      %4217 = vmatprep.subr.mxu0 0.0
      %4218 = vmatpush1.msra.mxu0 0.0
      %4219 = vmatprep.subr.mxu0 0.0
      %4220 = vmatpush1.msra.mxu0 0.0
      %4221 = vmatprep.subr.mxu0 0.0
      %4222 = vmatpush1.msra.mxu0 0.0
      %4223 = vmatprep.subr.mxu0 0.0
      %4224 = vmatpush1.msra.mxu0 0.0
      %4225 = vmatprep.subr.mxu0 0.0
      %4226 = vmatpush1.msra.mxu0 0.0
      %4227 = vmatprep.subr.mxu0 0.0
      %4228 = vmatpush1.msra.mxu0 0.0
      %4229 = vmatprep.subr.mxu0 0.0
      %4230 = vmatpush1.msra.mxu0 0.0
      %4231 = vmatprep.subr.mxu0 0.0
      %4232 = vmatpush1.msra.mxu0 0.0
      %4233 = vmatprep.subr.mxu0 0.0
      %4234 = vmatpush1.msra.mxu0 0.0
      %4235 = vmatprep.subr.mxu0 0.0
      %4236 = vmatpush1.msra.mxu0 0.0
      %4237 = vmatprep.subr.mxu0 0.0
      %4238 = vmatpush1.msra.mxu0 0.0
      %4239 = vmatprep.subr.mxu0 0.0
      %4240 = vmatpush1.msra.mxu0 0.0
      %4241 = vmatprep.subr.mxu0 0.0
      %4242 = vmatpush1.msra.mxu0 0.0
      %4243 = vmatprep.subr.mxu0 0.0
      %4244 = vmatpush1.msra.mxu0 0.0
      %4245 = vmatprep.subr.mxu0 0.0
      %4246 = vmatpush1.msra.mxu0 0.0
      %4247 = vmatprep.subr.mxu0 0.0
      %4248 = vmatpush1.msra.mxu0 0.0
      %4249 = vmatprep.subr.mxu0 0.0
      %4250 = vmatpush1.msra.mxu0 0.0
      %4251 = vmatprep.mubr.f32.mxu0 0.0
      %4252 = vmatmul.mubr.f32.gmra.mrb[0].mxu0 %v4182
      %v4253 = vpop.f32.mrb[0].mxu0
      %v4254 = vadd.f32 0.0, %v4253
      %v4255 = vpop.f32.mrb[0].mxu0
      %4256 = vdwg.mxu0
      %v4258 = vsel %vm3191, %v3173, 0
      %v4261 = vsel %vm3195, %v355, 0
      %4263 = vmatprep.subr.mxu0 0.0
      %4264 = vmatpush1.msra.mxu0 %v4261
      %4265 = vmatprep.subr.mxu0 0.0
      %4266 = vmatpush1.msra.mxu0 0.0
      %4267 = vmatprep.subr.mxu0 0.0
      %4268 = vmatpush1.msra.mxu0 0.0
      %4269 = vmatprep.subr.mxu0 0.0
      %4270 = vmatpush1.msra.mxu0 0.0
      %4271 = vmatprep.subr.mxu0 0.0
      %4272 = vmatpush1.msra.mxu0 0.0
      %4273 = vmatprep.subr.mxu0 0.0
      %4274 = vmatpush1.msra.mxu0 0.0
      %4275 = vmatprep.subr.mxu0 0.0
      %4276 = vmatpush1.msra.mxu0 0.0
      %4277 = vmatprep.subr.mxu0 0.0
      %4278 = vmatpush1.msra.mxu0 0.0
      %4279 = vmatprep.subr.mxu0 0.0
      %4280 = vmatpush1.msra.mxu0 0.0
      %4281 = vmatprep.subr.mxu0 0.0
      %4282 = vmatpush1.msra.mxu0 0.0
      %4283 = vmatprep.subr.mxu0 0.0
      %4284 = vmatpush1.msra.mxu0 0.0
      %4285 = vmatprep.subr.mxu0 0.0
      %4286 = vmatpush1.msra.mxu0 0.0
      %4287 = vmatprep.subr.mxu0 0.0
      %4288 = vmatpush1.msra.mxu0 0.0
      %4289 = vmatprep.subr.mxu0 0.0
      %4290 = vmatpush1.msra.mxu0 0.0
      %4291 = vmatprep.subr.mxu0 0.0
      %4292 = vmatpush1.msra.mxu0 0.0
      %4293 = vmatprep.subr.mxu0 0.0
      %4294 = vmatpush1.msra.mxu0 0.0
      %4295 = vmatprep.subr.mxu0 0.0
      %4296 = vmatpush1.msra.mxu0 0.0
      %4297 = vmatprep.subr.mxu0 0.0
      %4298 = vmatpush1.msra.mxu0 0.0
      %4299 = vmatprep.subr.mxu0 0.0
      %4300 = vmatpush1.msra.mxu0 0.0
      %4301 = vmatprep.subr.mxu0 0.0
      %4302 = vmatpush1.msra.mxu0 0.0
      %4303 = vmatprep.subr.mxu0 0.0
      %4304 = vmatpush1.msra.mxu0 0.0
      %4305 = vmatprep.subr.mxu0 0.0
      %4306 = vmatpush1.msra.mxu0 0.0
      %4307 = vmatprep.subr.mxu0 0.0
      %4308 = vmatpush1.msra.mxu0 0.0
      %4309 = vmatprep.subr.mxu0 0.0
      %4310 = vmatpush1.msra.mxu0 0.0
      %4311 = vmatprep.subr.mxu0 0.0
      %4312 = vmatpush1.msra.mxu0 0.0
      %4313 = vmatprep.subr.mxu0 0.0
      %4314 = vmatpush1.msra.mxu0 0.0
      %4315 = vmatprep.subr.mxu0 0.0
      %4316 = vmatpush1.msra.mxu0 0.0
      %4317 = vmatprep.subr.mxu0 0.0
      %4318 = vmatpush1.msra.mxu0 0.0
      %4319 = vmatprep.subr.mxu0 0.0
      %4320 = vmatpush1.msra.mxu0 0.0
      %4321 = vmatprep.subr.mxu0 0.0
      %4322 = vmatpush1.msra.mxu0 0.0
      %4323 = vmatprep.subr.mxu0 0.0
      %4324 = vmatpush1.msra.mxu0 0.0
      %4325 = vmatprep.subr.mxu0 0.0
      %4326 = vmatpush1.msra.mxu0 0.0
      %4327 = vmatprep.mubr.f32.mxu0 0.0
      %4328 = vmatmul.mubr.f32.gmra.mrb[0].mxu0 %v4258
      %v4329 = vpop.f32.mrb[0].mxu0
      %v4330 = vadd.f32 0.0, %v4329
      %v4331 = vpop.f32.mrb[0].mxu0
      %4332 = vdwg.mxu0
      %v4334 = vsel %vm3191, %v3174, 0
      %v4337 = vsel %vm3195, %v356, 0
      %4339 = vmatprep.subr.mxu0 0.0
      %4340 = vmatpush1.msra.mxu0 %v4337
      %4341 = vmatprep.subr.mxu0 0.0
      %4342 = vmatpush1.msra.mxu0 0.0
      %4343 = vmatprep.subr.mxu0 0.0
      %4344 = vmatpush1.msra.mxu0 0.0
      %4345 = vmatprep.subr.mxu0 0.0
      %4346 = vmatpush1.msra.mxu0 0.0
      %4347 = vmatprep.subr.mxu0 0.0
      %4348 = vmatpush1.msra.mxu0 0.0
      %4349 = vmatprep.subr.mxu0 0.0
      %4350 = vmatpush1.msra.mxu0 0.0
      %4351 = vmatprep.subr.mxu0 0.0
      %4352 = vmatpush1.msra.mxu0 0.0
      %4353 = vmatprep.subr.mxu0 0.0
      %4354 = vmatpush1.msra.mxu0 0.0
      %4355 = vmatprep.subr.mxu0 0.0
      %4356 = vmatpush1.msra.mxu0 0.0
      %4357 = vmatprep.subr.mxu0 0.0
      %4358 = vmatpush1.msra.mxu0 0.0
      %4359 = vmatprep.subr.mxu0 0.0
      %4360 = vmatpush1.msra.mxu0 0.0
      %4361 = vmatprep.subr.mxu0 0.0
      %4362 = vmatpush1.msra.mxu0 0.0
      %4363 = vmatprep.subr.mxu0 0.0
      %4364 = vmatpush1.msra.mxu0 0.0
      %4365 = vmatprep.subr.mxu0 0.0
      %4366 = vmatpush1.msra.mxu0 0.0
      %4367 = vmatprep.subr.mxu0 0.0
      %4368 = vmatpush1.msra.mxu0 0.0
      %4369 = vmatprep.subr.mxu0 0.0
      %4370 = vmatpush1.msra.mxu0 0.0
      %4371 = vmatprep.subr.mxu0 0.0
      %4372 = vmatpush1.msra.mxu0 0.0
      %4373 = vmatprep.subr.mxu0 0.0
      %4374 = vmatpush1.msra.mxu0 0.0
      %4375 = vmatprep.subr.mxu0 0.0
      %4376 = vmatpush1.msra.mxu0 0.0
      %4377 = vmatprep.subr.mxu0 0.0
      %4378 = vmatpush1.msra.mxu0 0.0
      %4379 = vmatprep.subr.mxu0 0.0
      %4380 = vmatpush1.msra.mxu0 0.0
      %4381 = vmatprep.subr.mxu0 0.0
      %4382 = vmatpush1.msra.mxu0 0.0
      %4383 = vmatprep.subr.mxu0 0.0
      %4384 = vmatpush1.msra.mxu0 0.0
      %4385 = vmatprep.subr.mxu0 0.0
      %4386 = vmatpush1.msra.mxu0 0.0
      %4387 = vmatprep.subr.mxu0 0.0
      %4388 = vmatpush1.msra.mxu0 0.0
      %4389 = vmatprep.subr.mxu0 0.0
      %4390 = vmatpush1.msra.mxu0 0.0
      %4391 = vmatprep.subr.mxu0 0.0
      %4392 = vmatpush1.msra.mxu0 0.0
      %4393 = vmatprep.subr.mxu0 0.0
      %4394 = vmatpush1.msra.mxu0 0.0
      %4395 = vmatprep.subr.mxu0 0.0
      %4396 = vmatpush1.msra.mxu0 0.0
      %4397 = vmatprep.subr.mxu0 0.0
      %4398 = vmatpush1.msra.mxu0 0.0
      %4399 = vmatprep.subr.mxu0 0.0
      %4400 = vmatpush1.msra.mxu0 0.0
      %4401 = vmatprep.subr.mxu0 0.0
      %4402 = vmatpush1.msra.mxu0 0.0
      %4403 = vmatprep.mubr.f32.mxu0 0.0
      %4404 = vmatmul.mubr.f32.gmra.mrb[0].mxu0 %v4334
      %v4405 = vpop.f32.mrb[0].mxu0
      %v4406 = vadd.f32 0.0, %v4405
      %v4407 = vpop.f32.mrb[0].mxu0
      %4408 = vdwg.mxu0
      %v4410 = vsel %vm3191, %v3175, 0
      %v4413 = vsel %vm3195, %v357, 0
      %4415 = vmatprep.subr.mxu0 0.0
      %4416 = vmatpush1.msra.mxu0 %v4413
      %4417 = vmatprep.subr.mxu0 0.0
      %4418 = vmatpush1.msra.mxu0 0.0
      %4419 = vmatprep.subr.mxu0 0.0
      %4420 = vmatpush1.msra.mxu0 0.0
      %4421 = vmatprep.subr.mxu0 0.0
      %4422 = vmatpush1.msra.mxu0 0.0
      %4423 = vmatprep.subr.mxu0 0.0
      %4424 = vmatpush1.msra.mxu0 0.0
      %4425 = vmatprep.subr.mxu0 0.0
      %4426 = vmatpush1.msra.mxu0 0.0
      %4427 = vmatprep.subr.mxu0 0.0
      %4428 = vmatpush1.msra.mxu0 0.0
      %4429 = vmatprep.subr.mxu0 0.0
      %4430 = vmatpush1.msra.mxu0 0.0
      %4431 = vmatprep.subr.mxu0 0.0
      %4432 = vmatpush1.msra.mxu0 0.0
      %4433 = vmatprep.subr.mxu0 0.0
      %4434 = vmatpush1.msra.mxu0 0.0
      %4435 = vmatprep.subr.mxu0 0.0
      %4436 = vmatpush1.msra.mxu0 0.0
      %4437 = vmatprep.subr.mxu0 0.0
      %4438 = vmatpush1.msra.mxu0 0.0
      %4439 = vmatprep.subr.mxu0 0.0
      %4440 = vmatpush1.msra.mxu0 0.0
      %4441 = vmatprep.subr.mxu0 0.0
      %4442 = vmatpush1.msra.mxu0 0.0
      %4443 = vmatprep.subr.mxu0 0.0
      %4444 = vmatpush1.msra.mxu0 0.0
      %4445 = vmatprep.subr.mxu0 0.0
      %4446 = vmatpush1.msra.mxu0 0.0
      %4447 = vmatprep.subr.mxu0 0.0
      %4448 = vmatpush1.msra.mxu0 0.0
      %4449 = vmatprep.subr.mxu0 0.0
      %4450 = vmatpush1.msra.mxu0 0.0
      %4451 = vmatprep.subr.mxu0 0.0
      %4452 = vmatpush1.msra.mxu0 0.0
      %4453 = vmatprep.subr.mxu0 0.0
      %4454 = vmatpush1.msra.mxu0 0.0
      %4455 = vmatprep.subr.mxu0 0.0
      %4456 = vmatpush1.msra.mxu0 0.0
      %4457 = vmatprep.subr.mxu0 0.0
      %4458 = vmatpush1.msra.mxu0 0.0
      %4459 = vmatprep.subr.mxu0 0.0
      %4460 = vmatpush1.msra.mxu0 0.0
      %4461 = vmatprep.subr.mxu0 0.0
      %4462 = vmatpush1.msra.mxu0 0.0
      %4463 = vmatprep.subr.mxu0 0.0
      %4464 = vmatpush1.msra.mxu0 0.0
      %4465 = vmatprep.subr.mxu0 0.0
      %4466 = vmatpush1.msra.mxu0 0.0
      %4467 = vmatprep.subr.mxu0 0.0
      %4468 = vmatpush1.msra.mxu0 0.0
      %4469 = vmatprep.subr.mxu0 0.0
      %4470 = vmatpush1.msra.mxu0 0.0
      %4471 = vmatprep.subr.mxu0 0.0
      %4472 = vmatpush1.msra.mxu0 0.0
      %4473 = vmatprep.subr.mxu0 0.0
      %4474 = vmatpush1.msra.mxu0 0.0
      %4475 = vmatprep.subr.mxu0 0.0
      %4476 = vmatpush1.msra.mxu0 0.0
      %4477 = vmatprep.subr.mxu0 0.0
      %4478 = vmatpush1.msra.mxu0 0.0
      %4479 = vmatprep.mubr.f32.mxu0 0.0
      %4480 = vmatmul.mubr.f32.gmra.mrb[0].mxu0 %v4410
      %v4481 = vpop.f32.mrb[0].mxu0
      %v4482 = vadd.f32 0.0, %v4481
      %v4483 = vpop.f32.mrb[0].mxu0
      %4484 = vdwg.mxu0
      %v4486 = vsel %vm3191, %v3176, 0
      %v4489 = vsel %vm3195, %v358, 0
      %4491 = vmatprep.subr.mxu0 0.0
      %4492 = vmatpush1.msra.mxu0 %v4489
      %4493 = vmatprep.subr.mxu0 0.0
      %4494 = vmatpush1.msra.mxu0 0.0
      %4495 = vmatprep.subr.mxu0 0.0
      %4496 = vmatpush1.msra.mxu0 0.0
      %4497 = vmatprep.subr.mxu0 0.0
      %4498 = vmatpush1.msra.mxu0 0.0
      %4499 = vmatprep.subr.mxu0 0.0
      %4500 = vmatpush1.msra.mxu0 0.0
      %4501 = vmatprep.subr.mxu0 0.0
      %4502 = vmatpush1.msra.mxu0 0.0
      %4503 = vmatprep.subr.mxu0 0.0
      %4504 = vmatpush1.msra.mxu0 0.0
      %4505 = vmatprep.subr.mxu0 0.0
      %4506 = vmatpush1.msra.mxu0 0.0
      %4507 = vmatprep.subr.mxu0 0.0
      %4508 = vmatpush1.msra.mxu0 0.0
      %4509 = vmatprep.subr.mxu0 0.0
      %4510 = vmatpush1.msra.mxu0 0.0
      %4511 = vmatprep.subr.mxu0 0.0
      %4512 = vmatpush1.msra.mxu0 0.0
      %4513 = vmatprep.subr.mxu0 0.0
      %4514 = vmatpush1.msra.mxu0 0.0
      %4515 = vmatprep.subr.mxu0 0.0
      %4516 = vmatpush1.msra.mxu0 0.0
      %4517 = vmatprep.subr.mxu0 0.0
      %4518 = vmatpush1.msra.mxu0 0.0
      %4519 = vmatprep.subr.mxu0 0.0
      %4520 = vmatpush1.msra.mxu0 0.0
      %4521 = vmatprep.subr.mxu0 0.0
      %4522 = vmatpush1.msra.mxu0 0.0
      %4523 = vmatprep.subr.mxu0 0.0
      %4524 = vmatpush1.msra.mxu0 0.0
      %4525 = vmatprep.subr.mxu0 0.0
      %4526 = vmatpush1.msra.mxu0 0.0
      %4527 = vmatprep.subr.mxu0 0.0
      %4528 = vmatpush1.msra.mxu0 0.0
      %4529 = vmatprep.subr.mxu0 0.0
      %4530 = vmatpush1.msra.mxu0 0.0
      %4531 = vmatprep.subr.mxu0 0.0
      %4532 = vmatpush1.msra.mxu0 0.0
      %4533 = vmatprep.subr.mxu0 0.0
      %4534 = vmatpush1.msra.mxu0 0.0
      %4535 = vmatprep.subr.mxu0 0.0
      %4536 = vmatpush1.msra.mxu0 0.0
      %4537 = vmatprep.subr.mxu0 0.0
      %4538 = vmatpush1.msra.mxu0 0.0
      %4539 = vmatprep.subr.mxu0 0.0
      %4540 = vmatpush1.msra.mxu0 0.0
      %4541 = vmatprep.subr.mxu0 0.0
      %4542 = vmatpush1.msra.mxu0 0.0
      %4543 = vmatprep.subr.mxu0 0.0
      %4544 = vmatpush1.msra.mxu0 0.0
      %4545 = vmatprep.subr.mxu0 0.0
      %4546 = vmatpush1.msra.mxu0 0.0
      %4547 = vmatprep.subr.mxu0 0.0
      %4548 = vmatpush1.msra.mxu0 0.0
      %4549 = vmatprep.subr.mxu0 0.0
      %4550 = vmatpush1.msra.mxu0 0.0
      %4551 = vmatprep.subr.mxu0 0.0
      %4552 = vmatpush1.msra.mxu0 0.0
      %4553 = vmatprep.subr.mxu0 0.0
      %4554 = vmatpush1.msra.mxu0 0.0
      %4555 = vmatprep.mubr.f32.mxu0 0.0
      %4556 = vmatmul.mubr.f32.gmra.mrb[0].mxu0 %v4486
      %v4557 = vpop.f32.mrb[0].mxu0
      %v4558 = vadd.f32 0.0, %v4557
      %v4559 = vpop.f32.mrb[0].mxu0
      %4560 = vdwg.mxu0
      %v4562 = vsel %vm3191, %v3177, 0
      %v4565 = vsel %vm3195, %v359, 0
      %4567 = vmatprep.subr.mxu0 0.0
      %4568 = vmatpush1.msra.mxu0 %v4565
      %4569 = vmatprep.subr.mxu0 0.0
      %4570 = vmatpush1.msra.mxu0 0.0
      %4571 = vmatprep.subr.mxu0 0.0
      %4572 = vmatpush1.msra.mxu0 0.0
      %4573 = vmatprep.subr.mxu0 0.0
      %4574 = vmatpush1.msra.mxu0 0.0
      %4575 = vmatprep.subr.mxu0 0.0
      %4576 = vmatpush1.msra.mxu0 0.0
      %4577 = vmatprep.subr.mxu0 0.0
      %4578 = vmatpush1.msra.mxu0 0.0
      %4579 = vmatprep.subr.mxu0 0.0
      %4580 = vmatpush1.msra.mxu0 0.0
      %4581 = vmatprep.subr.mxu0 0.0
      %4582 = vmatpush1.msra.mxu0 0.0
      %4583 = vmatprep.subr.mxu0 0.0
      %4584 = vmatpush1.msra.mxu0 0.0
      %4585 = vmatprep.subr.mxu0 0.0
      %4586 = vmatpush1.msra.mxu0 0.0
      %4587 = vmatprep.subr.mxu0 0.0
      %4588 = vmatpush1.msra.mxu0 0.0
      %4589 = vmatprep.subr.mxu0 0.0
      %4590 = vmatpush1.msra.mxu0 0.0
      %4591 = vmatprep.subr.mxu0 0.0
      %4592 = vmatpush1.msra.mxu0 0.0
      %4593 = vmatprep.subr.mxu0 0.0
      %4594 = vmatpush1.msra.mxu0 0.0
      %4595 = vmatprep.subr.mxu0 0.0
      %4596 = vmatpush1.msra.mxu0 0.0
      %4597 = vmatprep.subr.mxu0 0.0
      %4598 = vmatpush1.msra.mxu0 0.0
      %4599 = vmatprep.subr.mxu0 0.0
      %4600 = vmatpush1.msra.mxu0 0.0
      %4601 = vmatprep.subr.mxu0 0.0
      %4602 = vmatpush1.msra.mxu0 0.0
      %4603 = vmatprep.subr.mxu0 0.0
      %4604 = vmatpush1.msra.mxu0 0.0
      %4605 = vmatprep.subr.mxu0 0.0
      %4606 = vmatpush1.msra.mxu0 0.0
      %4607 = vmatprep.subr.mxu0 0.0
      %4608 = vmatpush1.msra.mxu0 0.0
      %4609 = vmatprep.subr.mxu0 0.0
      %4610 = vmatpush1.msra.mxu0 0.0
      %4611 = vmatprep.subr.mxu0 0.0
      %4612 = vmatpush1.msra.mxu0 0.0
      %4613 = vmatprep.subr.mxu0 0.0
      %4614 = vmatpush1.msra.mxu0 0.0
      %4615 = vmatprep.subr.mxu0 0.0
      %4616 = vmatpush1.msra.mxu0 0.0
      %4617 = vmatprep.subr.mxu0 0.0
      %4618 = vmatpush1.msra.mxu0 0.0
      %4619 = vmatprep.subr.mxu0 0.0
      %4620 = vmatpush1.msra.mxu0 0.0
      %4621 = vmatprep.subr.mxu0 0.0
      %4622 = vmatpush1.msra.mxu0 0.0
      %4623 = vmatprep.subr.mxu0 0.0
      %4624 = vmatpush1.msra.mxu0 0.0
      %4625 = vmatprep.subr.mxu0 0.0
      %4626 = vmatpush1.msra.mxu0 0.0
      %4627 = vmatprep.subr.mxu0 0.0
      %4628 = vmatpush1.msra.mxu0 0.0
      %4629 = vmatprep.subr.mxu0 0.0
      %4630 = vmatpush1.msra.mxu0 0.0
      %4631 = vmatprep.mubr.f32.mxu0 0.0
      %4632 = vmatmul.mubr.f32.gmra.mrb[0].mxu0 %v4562
      %v4633 = vpop.f32.mrb[0].mxu0
      %v4634 = vadd.f32 0.0, %v4633
      %v4635 = vpop.f32.mrb[0].mxu0
      %4636 = vdwg.mxu0
      %v4638 = vsel %vm3191, %v3178, 0
      %v4641 = vsel %vm3195, %v360, 0
      %4643 = vmatprep.subr.mxu0 0.0
      %4644 = vmatpush1.msra.mxu0 %v4641
      %4645 = vmatprep.subr.mxu0 0.0
      %4646 = vmatpush1.msra.mxu0 0.0
      %4647 = vmatprep.subr.mxu0 0.0
      %4648 = vmatpush1.msra.mxu0 0.0
      %4649 = vmatprep.subr.mxu0 0.0
      %4650 = vmatpush1.msra.mxu0 0.0
      %4651 = vmatprep.subr.mxu0 0.0
      %4652 = vmatpush1.msra.mxu0 0.0
      %4653 = vmatprep.subr.mxu0 0.0
      %4654 = vmatpush1.msra.mxu0 0.0
      %4655 = vmatprep.subr.mxu0 0.0
      %4656 = vmatpush1.msra.mxu0 0.0
      %4657 = vmatprep.subr.mxu0 0.0
      %4658 = vmatpush1.msra.mxu0 0.0
      %4659 = vmatprep.subr.mxu0 0.0
      %4660 = vmatpush1.msra.mxu0 0.0
      %4661 = vmatprep.subr.mxu0 0.0
      %4662 = vmatpush1.msra.mxu0 0.0
      %4663 = vmatprep.subr.mxu0 0.0
      %4664 = vmatpush1.msra.mxu0 0.0
      %4665 = vmatprep.subr.mxu0 0.0
      %4666 = vmatpush1.msra.mxu0 0.0
      %4667 = vmatprep.subr.mxu0 0.0
      %4668 = vmatpush1.msra.mxu0 0.0
      %4669 = vmatprep.subr.mxu0 0.0
      %4670 = vmatpush1.msra.mxu0 0.0
      %4671 = vmatprep.subr.mxu0 0.0
      %4672 = vmatpush1.msra.mxu0 0.0
      %4673 = vmatprep.subr.mxu0 0.0
      %4674 = vmatpush1.msra.mxu0 0.0
      %4675 = vmatprep.subr.mxu0 0.0
      %4676 = vmatpush1.msra.mxu0 0.0
      %4677 = vmatprep.subr.mxu0 0.0
      %4678 = vmatpush1.msra.mxu0 0.0
      %4679 = vmatprep.subr.mxu0 0.0
      %4680 = vmatpush1.msra.mxu0 0.0
      %4681 = vmatprep.subr.mxu0 0.0
      %4682 = vmatpush1.msra.mxu0 0.0
      %4683 = vmatprep.subr.mxu0 0.0
      %4684 = vmatpush1.msra.mxu0 0.0
      %4685 = vmatprep.subr.mxu0 0.0
      %4686 = vmatpush1.msra.mxu0 0.0
      %4687 = vmatprep.subr.mxu0 0.0
      %4688 = vmatpush1.msra.mxu0 0.0
      %4689 = vmatprep.subr.mxu0 0.0
      %4690 = vmatpush1.msra.mxu0 0.0
      %4691 = vmatprep.subr.mxu0 0.0
      %4692 = vmatpush1.msra.mxu0 0.0
      %4693 = vmatprep.subr.mxu0 0.0
      %4694 = vmatpush1.msra.mxu0 0.0
      %4695 = vmatprep.subr.mxu0 0.0
      %4696 = vmatpush1.msra.mxu0 0.0
      %4697 = vmatprep.subr.mxu0 0.0
      %4698 = vmatpush1.msra.mxu0 0.0
      %4699 = vmatprep.subr.mxu0 0.0
      %4700 = vmatpush1.msra.mxu0 0.0
      %4701 = vmatprep.subr.mxu0 0.0
      %4702 = vmatpush1.msra.mxu0 0.0
      %4703 = vmatprep.subr.mxu0 0.0
      %4704 = vmatpush1.msra.mxu0 0.0
      %4705 = vmatprep.subr.mxu0 0.0
      %4706 = vmatpush1.msra.mxu0 0.0
      %4707 = vmatprep.mubr.f32.mxu0 0.0
      %4708 = vmatmul.mubr.f32.gmra.mrb[0].mxu0 %v4638
      %v4709 = vpop.f32.mrb[0].mxu0
      %v4710 = vadd.f32 0.0, %v4709
      %v4711 = vpop.f32.mrb[0].mxu0
      %4712 = vdwg.mxu0
      %v4714 = vsel %vm3191, %v3179, 0
      %v4717 = vsel %vm3195, %v361, 0
      %4719 = vmatprep.subr.mxu0 0.0
      %4720 = vmatpush1.msra.mxu0 %v4717
      %4721 = vmatprep.subr.mxu0 0.0
      %4722 = vmatpush1.msra.mxu0 0.0
      %4723 = vmatprep.subr.mxu0 0.0
      %4724 = vmatpush1.msra.mxu0 0.0
      %4725 = vmatprep.subr.mxu0 0.0
      %4726 = vmatpush1.msra.mxu0 0.0
      %4727 = vmatprep.subr.mxu0 0.0
      %4728 = vmatpush1.msra.mxu0 0.0
      %4729 = vmatprep.subr.mxu0 0.0
      %4730 = vmatpush1.msra.mxu0 0.0
      %4731 = vmatprep.subr.mxu0 0.0
      %4732 = vmatpush1.msra.mxu0 0.0
      %4733 = vmatprep.subr.mxu0 0.0
      %4734 = vmatpush1.msra.mxu0 0.0
      %4735 = vmatprep.subr.mxu0 0.0
      %4736 = vmatpush1.msra.mxu0 0.0
      %4737 = vmatprep.subr.mxu0 0.0
      %4738 = vmatpush1.msra.mxu0 0.0
      %4739 = vmatprep.subr.mxu0 0.0
      %4740 = vmatpush1.msra.mxu0 0.0
      %4741 = vmatprep.subr.mxu0 0.0
      %4742 = vmatpush1.msra.mxu0 0.0
      %4743 = vmatprep.subr.mxu0 0.0
      %4744 = vmatpush1.msra.mxu0 0.0
      %4745 = vmatprep.subr.mxu0 0.0
      %4746 = vmatpush1.msra.mxu0 0.0
      %4747 = vmatprep.subr.mxu0 0.0
      %4748 = vmatpush1.msra.mxu0 0.0
      %4749 = vmatprep.subr.mxu0 0.0
      %4750 = vmatpush1.msra.mxu0 0.0
      %4751 = vmatprep.subr.mxu0 0.0
      %4752 = vmatpush1.msra.mxu0 0.0
      %4753 = vmatprep.subr.mxu0 0.0
      %4754 = vmatpush1.msra.mxu0 0.0
      %4755 = vmatprep.subr.mxu0 0.0
      %4756 = vmatpush1.msra.mxu0 0.0
      %4757 = vmatprep.subr.mxu0 0.0
      %4758 = vmatpush1.msra.mxu0 0.0
      %4759 = vmatprep.subr.mxu0 0.0
      %4760 = vmatpush1.msra.mxu0 0.0
      %4761 = vmatprep.subr.mxu0 0.0
      %4762 = vmatpush1.msra.mxu0 0.0
      %4763 = vmatprep.subr.mxu0 0.0
      %4764 = vmatpush1.msra.mxu0 0.0
      %4765 = vmatprep.subr.mxu0 0.0
      %4766 = vmatpush1.msra.mxu0 0.0
      %4767 = vmatprep.subr.mxu0 0.0
      %4768 = vmatpush1.msra.mxu0 0.0
      %4769 = vmatprep.subr.mxu0 0.0
      %4770 = vmatpush1.msra.mxu0 0.0
      %4771 = vmatprep.subr.mxu0 0.0
      %4772 = vmatpush1.msra.mxu0 0.0
      %4773 = vmatprep.subr.mxu0 0.0
      %4774 = vmatpush1.msra.mxu0 0.0
      %4775 = vmatprep.subr.mxu0 0.0
      %4776 = vmatpush1.msra.mxu0 0.0
      %4777 = vmatprep.subr.mxu0 0.0
      %4778 = vmatpush1.msra.mxu0 0.0
      %4779 = vmatprep.subr.mxu0 0.0
      %4780 = vmatpush1.msra.mxu0 0.0
      %4781 = vmatprep.subr.mxu0 0.0
      %4782 = vmatpush1.msra.mxu0 0.0
      %4783 = vmatprep.mubr.f32.mxu0 0.0
      %4784 = vmatmul.mubr.f32.gmra.mrb[0].mxu0 %v4714
      %v4785 = vpop.f32.mrb[0].mxu0
      %v4786 = vadd.f32 0.0, %v4785
      %v4787 = vpop.f32.mrb[0].mxu0
      %4788 = vdwg.mxu0
      %v4790 = vsel %vm3191, %v3180, 0
      %v4793 = vsel %vm3195, %v362, 0
      %4795 = vmatprep.subr.mxu0 0.0
      %4796 = vmatpush1.msra.mxu0 %v4793
      %4797 = vmatprep.subr.mxu0 0.0
      %4798 = vmatpush1.msra.mxu0 0.0
      %4799 = vmatprep.subr.mxu0 0.0
      %4800 = vmatpush1.msra.mxu0 0.0
      %4801 = vmatprep.subr.mxu0 0.0
      %4802 = vmatpush1.msra.mxu0 0.0
      %4803 = vmatprep.subr.mxu0 0.0
      %4804 = vmatpush1.msra.mxu0 0.0
      %4805 = vmatprep.subr.mxu0 0.0
      %4806 = vmatpush1.msra.mxu0 0.0
      %4807 = vmatprep.subr.mxu0 0.0
      %4808 = vmatpush1.msra.mxu0 0.0
      %4809 = vmatprep.subr.mxu0 0.0
      %4810 = vmatpush1.msra.mxu0 0.0
      %4811 = vmatprep.subr.mxu0 0.0
      %4812 = vmatpush1.msra.mxu0 0.0
      %4813 = vmatprep.subr.mxu0 0.0
      %4814 = vmatpush1.msra.mxu0 0.0
      %4815 = vmatprep.subr.mxu0 0.0
      %4816 = vmatpush1.msra.mxu0 0.0
      %4817 = vmatprep.subr.mxu0 0.0
      %4818 = vmatpush1.msra.mxu0 0.0
      %4819 = vmatprep.subr.mxu0 0.0
      %4820 = vmatpush1.msra.mxu0 0.0
      %4821 = vmatprep.subr.mxu0 0.0
      %4822 = vmatpush1.msra.mxu0 0.0
      %4823 = vmatprep.subr.mxu0 0.0
      %4824 = vmatpush1.msra.mxu0 0.0
      %4825 = vmatprep.subr.mxu0 0.0
      %4826 = vmatpush1.msra.mxu0 0.0
      %4827 = vmatprep.subr.mxu0 0.0
      %4828 = vmatpush1.msra.mxu0 0.0
      %4829 = vmatprep.subr.mxu0 0.0
      %4830 = vmatpush1.msra.mxu0 0.0
      %4831 = vmatprep.subr.mxu0 0.0
      %4832 = vmatpush1.msra.mxu0 0.0
      %4833 = vmatprep.subr.mxu0 0.0
      %4834 = vmatpush1.msra.mxu0 0.0
      %4835 = vmatprep.subr.mxu0 0.0
      %4836 = vmatpush1.msra.mxu0 0.0
      %4837 = vmatprep.subr.mxu0 0.0
      %4838 = vmatpush1.msra.mxu0 0.0
      %4839 = vmatprep.subr.mxu0 0.0
      %4840 = vmatpush1.msra.mxu0 0.0
      %4841 = vmatprep.subr.mxu0 0.0
      %4842 = vmatpush1.msra.mxu0 0.0
      %4843 = vmatprep.subr.mxu0 0.0
      %4844 = vmatpush1.msra.mxu0 0.0
      %4845 = vmatprep.subr.mxu0 0.0
      %4846 = vmatpush1.msra.mxu0 0.0
      %4847 = vmatprep.subr.mxu0 0.0
      %4848 = vmatpush1.msra.mxu0 0.0
      %4849 = vmatprep.subr.mxu0 0.0
      %4850 = vmatpush1.msra.mxu0 0.0
      %4851 = vmatprep.subr.mxu0 0.0
      %4852 = vmatpush1.msra.mxu0 0.0
      %4853 = vmatprep.subr.mxu0 0.0
      %4854 = vmatpush1.msra.mxu0 0.0
      %4855 = vmatprep.subr.mxu0 0.0
      %4856 = vmatpush1.msra.mxu0 0.0
      %4857 = vmatprep.subr.mxu0 0.0
      %4858 = vmatpush1.msra.mxu0 0.0
      %4859 = vmatprep.mubr.f32.mxu0 0.0
      %4860 = vmatmul.mubr.f32.gmra.mrb[0].mxu0 %v4790
      %v4861 = vpop.f32.mrb[0].mxu0
      %v4862 = vadd.f32 0.0, %v4861
      %v4863 = vpop.f32.mrb[0].mxu0
      %4864 = vdwg.mxu0
      %v4866 = vsel %vm3191, %v3181, 0
      %v4869 = vsel %vm3195, %v363, 0
      %4871 = vmatprep.subr.mxu0 0.0
      %4872 = vmatpush1.msra.mxu0 %v4869
      %4873 = vmatprep.subr.mxu0 0.0
      %4874 = vmatpush1.msra.mxu0 0.0
      %4875 = vmatprep.subr.mxu0 0.0
      %4876 = vmatpush1.msra.mxu0 0.0
      %4877 = vmatprep.subr.mxu0 0.0
      %4878 = vmatpush1.msra.mxu0 0.0
      %4879 = vmatprep.subr.mxu0 0.0
      %4880 = vmatpush1.msra.mxu0 0.0
      %4881 = vmatprep.subr.mxu0 0.0
      %4882 = vmatpush1.msra.mxu0 0.0
      %4883 = vmatprep.subr.mxu0 0.0
      %4884 = vmatpush1.msra.mxu0 0.0
      %4885 = vmatprep.subr.mxu0 0.0
      %4886 = vmatpush1.msra.mxu0 0.0
      %4887 = vmatprep.subr.mxu0 0.0
      %4888 = vmatpush1.msra.mxu0 0.0
      %4889 = vmatprep.subr.mxu0 0.0
      %4890 = vmatpush1.msra.mxu0 0.0
      %4891 = vmatprep.subr.mxu0 0.0
      %4892 = vmatpush1.msra.mxu0 0.0
      %4893 = vmatprep.subr.mxu0 0.0
      %4894 = vmatpush1.msra.mxu0 0.0
      %4895 = vmatprep.subr.mxu0 0.0
      %4896 = vmatpush1.msra.mxu0 0.0
      %4897 = vmatprep.subr.mxu0 0.0
      %4898 = vmatpush1.msra.mxu0 0.0
      %4899 = vmatprep.subr.mxu0 0.0
      %4900 = vmatpush1.msra.mxu0 0.0
      %4901 = vmatprep.subr.mxu0 0.0
      %4902 = vmatpush1.msra.mxu0 0.0
      %4903 = vmatprep.subr.mxu0 0.0
      %4904 = vmatpush1.msra.mxu0 0.0
      %4905 = vmatprep.subr.mxu0 0.0
      %4906 = vmatpush1.msra.mxu0 0.0
      %4907 = vmatprep.subr.mxu0 0.0
      %4908 = vmatpush1.msra.mxu0 0.0
      %4909 = vmatprep.subr.mxu0 0.0
      %4910 = vmatpush1.msra.mxu0 0.0
      %4911 = vmatprep.subr.mxu0 0.0
      %4912 = vmatpush1.msra.mxu0 0.0
      %4913 = vmatprep.subr.mxu0 0.0
      %4914 = vmatpush1.msra.mxu0 0.0
      %4915 = vmatprep.subr.mxu0 0.0
      %4916 = vmatpush1.msra.mxu0 0.0
      %4917 = vmatprep.subr.mxu0 0.0
      %4918 = vmatpush1.msra.mxu0 0.0
      %4919 = vmatprep.subr.mxu0 0.0
      %4920 = vmatpush1.msra.mxu0 0.0
      %4921 = vmatprep.subr.mxu0 0.0
      %4922 = vmatpush1.msra.mxu0 0.0
      %4923 = vmatprep.subr.mxu0 0.0
      %4924 = vmatpush1.msra.mxu0 0.0
      %4925 = vmatprep.subr.mxu0 0.0
      %4926 = vmatpush1.msra.mxu0 0.0
      %4927 = vmatprep.subr.mxu0 0.0
      %4928 = vmatpush1.msra.mxu0 0.0
      %4929 = vmatprep.subr.mxu0 0.0
      %4930 = vmatpush1.msra.mxu0 0.0
      %4931 = vmatprep.subr.mxu0 0.0
      %4932 = vmatpush1.msra.mxu0 0.0
      %4933 = vmatprep.subr.mxu0 0.0
      %4934 = vmatpush1.msra.mxu0 0.0
      %4935 = vmatprep.mubr.f32.mxu0 0.0
      %4936 = vmatmul.mubr.f32.gmra.mrb[0].mxu0 %v4866
      %v4937 = vpop.f32.mrb[0].mxu0
      %v4938 = vadd.f32 0.0, %v4937
      %v4939 = vpop.f32.mrb[0].mxu0
      %4940 = vdwg.mxu0
      %v4942 = vsel %vm3191, %v3182, 0
      %v4945 = vsel %vm3195, %v364, 0
      %4947 = vmatprep.subr.mxu0 0.0
      %4948 = vmatpush1.msra.mxu0 %v4945
      %4949 = vmatprep.subr.mxu0 0.0
      %4950 = vmatpush1.msra.mxu0 0.0
      %4951 = vmatprep.subr.mxu0 0.0
      %4952 = vmatpush1.msra.mxu0 0.0
      %4953 = vmatprep.subr.mxu0 0.0
      %4954 = vmatpush1.msra.mxu0 0.0
      %4955 = vmatprep.subr.mxu0 0.0
      %4956 = vmatpush1.msra.mxu0 0.0
      %4957 = vmatprep.subr.mxu0 0.0
      %4958 = vmatpush1.msra.mxu0 0.0
      %4959 = vmatprep.subr.mxu0 0.0
      %4960 = vmatpush1.msra.mxu0 0.0
      %4961 = vmatprep.subr.mxu0 0.0
      %4962 = vmatpush1.msra.mxu0 0.0
      %4963 = vmatprep.subr.mxu0 0.0
      %4964 = vmatpush1.msra.mxu0 0.0
      %4965 = vmatprep.subr.mxu0 0.0
      %4966 = vmatpush1.msra.mxu0 0.0
      %4967 = vmatprep.subr.mxu0 0.0
      %4968 = vmatpush1.msra.mxu0 0.0
      %4969 = vmatprep.subr.mxu0 0.0
      %4970 = vmatpush1.msra.mxu0 0.0
      %4971 = vmatprep.subr.mxu0 0.0
      %4972 = vmatpush1.msra.mxu0 0.0
      %4973 = vmatprep.subr.mxu0 0.0
      %4974 = vmatpush1.msra.mxu0 0.0
      %4975 = vmatprep.subr.mxu0 0.0
      %4976 = vmatpush1.msra.mxu0 0.0
      %4977 = vmatprep.subr.mxu0 0.0
      %4978 = vmatpush1.msra.mxu0 0.0
      %4979 = vmatprep.subr.mxu0 0.0
      %4980 = vmatpush1.msra.mxu0 0.0
      %4981 = vmatprep.subr.mxu0 0.0
      %4982 = vmatpush1.msra.mxu0 0.0
      %4983 = vmatprep.subr.mxu0 0.0
      %4984 = vmatpush1.msra.mxu0 0.0
      %4985 = vmatprep.subr.mxu0 0.0
      %4986 = vmatpush1.msra.mxu0 0.0
      %4987 = vmatprep.subr.mxu0 0.0
      %4988 = vmatpush1.msra.mxu0 0.0
      %4989 = vmatprep.subr.mxu0 0.0
      %4990 = vmatpush1.msra.mxu0 0.0
      %4991 = vmatprep.subr.mxu0 0.0
      %4992 = vmatpush1.msra.mxu0 0.0
      %4993 = vmatprep.subr.mxu0 0.0
      %4994 = vmatpush1.msra.mxu0 0.0
      %4995 = vmatprep.subr.mxu0 0.0
      %4996 = vmatpush1.msra.mxu0 0.0
      %4997 = vmatprep.subr.mxu0 0.0
      %4998 = vmatpush1.msra.mxu0 0.0
      %4999 = vmatprep.subr.mxu0 0.0
      %5000 = vmatpush1.msra.mxu0 0.0
      %5001 = vmatprep.subr.mxu0 0.0
      %5002 = vmatpush1.msra.mxu0 0.0
      %5003 = vmatprep.subr.mxu0 0.0
      %5004 = vmatpush1.msra.mxu0 0.0
      %5005 = vmatprep.subr.mxu0 0.0
      %5006 = vmatpush1.msra.mxu0 0.0
      %5007 = vmatprep.subr.mxu0 0.0
      %5008 = vmatpush1.msra.mxu0 0.0
      %5009 = vmatprep.subr.mxu0 0.0
      %5010 = vmatpush1.msra.mxu0 0.0
      %5011 = vmatprep.mubr.f32.mxu0 0.0
      %5012 = vmatmul.mubr.f32.gmra.mrb[0].mxu0 %v4942
      %v5013 = vpop.f32.mrb[0].mxu0
      %v5014 = vadd.f32 0.0, %v5013
      %v5015 = vpop.f32.mrb[0].mxu0
      %5016 = vdwg.mxu0
      %v5018 = vsel %vm3191, %v3183, 0
      %v5021 = vsel %vm3195, %v365, 0
      %5023 = vmatprep.subr.mxu0 0.0
      %5024 = vmatpush1.msra.mxu0 %v5021
      %5025 = vmatprep.subr.mxu0 0.0
      %5026 = vmatpush1.msra.mxu0 0.0
      %5027 = vmatprep.subr.mxu0 0.0
      %5028 = vmatpush1.msra.mxu0 0.0
      %5029 = vmatprep.subr.mxu0 0.0
      %5030 = vmatpush1.msra.mxu0 0.0
      %5031 = vmatprep.subr.mxu0 0.0
      %5032 = vmatpush1.msra.mxu0 0.0
      %5033 = vmatprep.subr.mxu0 0.0
      %5034 = vmatpush1.msra.mxu0 0.0
      %5035 = vmatprep.subr.mxu0 0.0
      %5036 = vmatpush1.msra.mxu0 0.0
      %5037 = vmatprep.subr.mxu0 0.0
      %5038 = vmatpush1.msra.mxu0 0.0
      %5039 = vmatprep.subr.mxu0 0.0
      %5040 = vmatpush1.msra.mxu0 0.0
      %5041 = vmatprep.subr.mxu0 0.0
      %5042 = vmatpush1.msra.mxu0 0.0
      %5043 = vmatprep.subr.mxu0 0.0
      %5044 = vmatpush1.msra.mxu0 0.0
      %5045 = vmatprep.subr.mxu0 0.0
      %5046 = vmatpush1.msra.mxu0 0.0
      %5047 = vmatprep.subr.mxu0 0.0
      %5048 = vmatpush1.msra.mxu0 0.0
      %5049 = vmatprep.subr.mxu0 0.0
      %5050 = vmatpush1.msra.mxu0 0.0
      %5051 = vmatprep.subr.mxu0 0.0
      %5052 = vmatpush1.msra.mxu0 0.0
      %5053 = vmatprep.subr.mxu0 0.0
      %5054 = vmatpush1.msra.mxu0 0.0
      %5055 = vmatprep.subr.mxu0 0.0
      %5056 = vmatpush1.msra.mxu0 0.0
      %5057 = vmatprep.subr.mxu0 0.0
      %5058 = vmatpush1.msra.mxu0 0.0
      %5059 = vmatprep.subr.mxu0 0.0
      %5060 = vmatpush1.msra.mxu0 0.0
      %5061 = vmatprep.subr.mxu0 0.0
      %5062 = vmatpush1.msra.mxu0 0.0
      %5063 = vmatprep.subr.mxu0 0.0
      %5064 = vmatpush1.msra.mxu0 0.0
      %5065 = vmatprep.subr.mxu0 0.0
      %5066 = vmatpush1.msra.mxu0 0.0
      %5067 = vmatprep.subr.mxu0 0.0
      %5068 = vmatpush1.msra.mxu0 0.0
      %5069 = vmatprep.subr.mxu0 0.0
      %5070 = vmatpush1.msra.mxu0 0.0
      %5071 = vmatprep.subr.mxu0 0.0
      %5072 = vmatpush1.msra.mxu0 0.0
      %5073 = vmatprep.subr.mxu0 0.0
      %5074 = vmatpush1.msra.mxu0 0.0
      %5075 = vmatprep.subr.mxu0 0.0
      %5076 = vmatpush1.msra.mxu0 0.0
      %5077 = vmatprep.subr.mxu0 0.0
      %5078 = vmatpush1.msra.mxu0 0.0
      %5079 = vmatprep.subr.mxu0 0.0
      %5080 = vmatpush1.msra.mxu0 0.0
      %5081 = vmatprep.subr.mxu0 0.0
      %5082 = vmatpush1.msra.mxu0 0.0
      %5083 = vmatprep.subr.mxu0 0.0
      %5084 = vmatpush1.msra.mxu0 0.0
      %5085 = vmatprep.subr.mxu0 0.0
      %5086 = vmatpush1.msra.mxu0 0.0
      %5087 = vmatprep.mubr.f32.mxu0 0.0
      %5088 = vmatmul.mubr.f32.gmra.mrb[0].mxu0 %v5018
      %v5089 = vpop.f32.mrb[0].mxu0
      %v5090 = vadd.f32 0.0, %v5089
      %v5091 = vpop.f32.mrb[0].mxu0
      %5092 = vdwg.mxu0
      %v5094 = vsel %vm3191, %v3184, 0
      %v5097 = vsel %vm3195, %v366, 0
      %5099 = vmatprep.subr.mxu0 0.0
      %5100 = vmatpush1.msra.mxu0 %v5097
      %5101 = vmatprep.subr.mxu0 0.0
      %5102 = vmatpush1.msra.mxu0 0.0
      %5103 = vmatprep.subr.mxu0 0.0
      %5104 = vmatpush1.msra.mxu0 0.0
      %5105 = vmatprep.subr.mxu0 0.0
      %5106 = vmatpush1.msra.mxu0 0.0
      %5107 = vmatprep.subr.mxu0 0.0
      %5108 = vmatpush1.msra.mxu0 0.0
      %5109 = vmatprep.subr.mxu0 0.0
      %5110 = vmatpush1.msra.mxu0 0.0
      %5111 = vmatprep.subr.mxu0 0.0
      %5112 = vmatpush1.msra.mxu0 0.0
      %5113 = vmatprep.subr.mxu0 0.0
      %5114 = vmatpush1.msra.mxu0 0.0
      %5115 = vmatprep.subr.mxu0 0.0
      %5116 = vmatpush1.msra.mxu0 0.0
      %5117 = vmatprep.subr.mxu0 0.0
      %5118 = vmatpush1.msra.mxu0 0.0
      %5119 = vmatprep.subr.mxu0 0.0
      %5120 = vmatpush1.msra.mxu0 0.0
      %5121 = vmatprep.subr.mxu0 0.0
      %5122 = vmatpush1.msra.mxu0 0.0
      %5123 = vmatprep.subr.mxu0 0.0
      %5124 = vmatpush1.msra.mxu0 0.0
      %5125 = vmatprep.subr.mxu0 0.0
      %5126 = vmatpush1.msra.mxu0 0.0
      %5127 = vmatprep.subr.mxu0 0.0
      %5128 = vmatpush1.msra.mxu0 0.0
      %5129 = vmatprep.subr.mxu0 0.0
      %5130 = vmatpush1.msra.mxu0 0.0
      %5131 = vmatprep.subr.mxu0 0.0
      %5132 = vmatpush1.msra.mxu0 0.0
      %5133 = vmatprep.subr.mxu0 0.0
      %5134 = vmatpush1.msra.mxu0 0.0
      %5135 = vmatprep.subr.mxu0 0.0
      %5136 = vmatpush1.msra.mxu0 0.0
      %5137 = vmatprep.subr.mxu0 0.0
      %5138 = vmatpush1.msra.mxu0 0.0
      %5139 = vmatprep.subr.mxu0 0.0
      %5140 = vmatpush1.msra.mxu0 0.0
      %5141 = vmatprep.subr.mxu0 0.0
      %5142 = vmatpush1.msra.mxu0 0.0
      %5143 = vmatprep.subr.mxu0 0.0
      %5144 = vmatpush1.msra.mxu0 0.0
      %5145 = vmatprep.subr.mxu0 0.0
      %5146 = vmatpush1.msra.mxu0 0.0
      %5147 = vmatprep.subr.mxu0 0.0
      %5148 = vmatpush1.msra.mxu0 0.0
      %5149 = vmatprep.subr.mxu0 0.0
      %5150 = vmatpush1.msra.mxu0 0.0
      %5151 = vmatprep.subr.mxu0 0.0
      %5152 = vmatpush1.msra.mxu0 0.0
      %5153 = vmatprep.subr.mxu0 0.0
      %5154 = vmatpush1.msra.mxu0 0.0
      %5155 = vmatprep.subr.mxu0 0.0
      %5156 = vmatpush1.msra.mxu0 0.0
      %5157 = vmatprep.subr.mxu0 0.0
      %5158 = vmatpush1.msra.mxu0 0.0
      %5159 = vmatprep.subr.mxu0 0.0
      %5160 = vmatpush1.msra.mxu0 0.0
      %5161 = vmatprep.subr.mxu0 0.0
      %5162 = vmatpush1.msra.mxu0 0.0
      %5163 = vmatprep.mubr.f32.mxu0 0.0
      %5164 = vmatmul.mubr.f32.gmra.mrb[0].mxu0 %v5094
      %v5165 = vpop.f32.mrb[0].mxu0
      %v5166 = vadd.f32 0.0, %v5165
      %v5167 = vpop.f32.mrb[0].mxu0
      %5168 = vdwg.mxu0
      %v5170 = vsel %vm3191, %v3185, 0
      %v5173 = vsel %vm3195, %v367, 0
      %5175 = vmatprep.subr.mxu0 0.0
      %5176 = vmatpush1.msra.mxu0 %v5173
      %5177 = vmatprep.subr.mxu0 0.0
      %5178 = vmatpush1.msra.mxu0 0.0
      %5179 = vmatprep.subr.mxu0 0.0
      %5180 = vmatpush1.msra.mxu0 0.0
      %5181 = vmatprep.subr.mxu0 0.0
      %5182 = vmatpush1.msra.mxu0 0.0
      %5183 = vmatprep.subr.mxu0 0.0
      %5184 = vmatpush1.msra.mxu0 0.0
      %5185 = vmatprep.subr.mxu0 0.0
      %5186 = vmatpush1.msra.mxu0 0.0
      %5187 = vmatprep.subr.mxu0 0.0
      %5188 = vmatpush1.msra.mxu0 0.0
      %5189 = vmatprep.subr.mxu0 0.0
      %5190 = vmatpush1.msra.mxu0 0.0
      %5191 = vmatprep.subr.mxu0 0.0
      %5192 = vmatpush1.msra.mxu0 0.0
      %5193 = vmatprep.subr.mxu0 0.0
      %5194 = vmatpush1.msra.mxu0 0.0
      %5195 = vmatprep.subr.mxu0 0.0
      %5196 = vmatpush1.msra.mxu0 0.0
      %5197 = vmatprep.subr.mxu0 0.0
      %5198 = vmatpush1.msra.mxu0 0.0
      %5199 = vmatprep.subr.mxu0 0.0
      %5200 = vmatpush1.msra.mxu0 0.0
      %5201 = vmatprep.subr.mxu0 0.0
      %5202 = vmatpush1.msra.mxu0 0.0
      %5203 = vmatprep.subr.mxu0 0.0
      %5204 = vmatpush1.msra.mxu0 0.0
      %5205 = vmatprep.subr.mxu0 0.0
      %5206 = vmatpush1.msra.mxu0 0.0
      %5207 = vmatprep.subr.mxu0 0.0
      %5208 = vmatpush1.msra.mxu0 0.0
      %5209 = vmatprep.subr.mxu0 0.0
      %5210 = vmatpush1.msra.mxu0 0.0
      %5211 = vmatprep.subr.mxu0 0.0
      %5212 = vmatpush1.msra.mxu0 0.0
      %5213 = vmatprep.subr.mxu0 0.0
      %5214 = vmatpush1.msra.mxu0 0.0
      %5215 = vmatprep.subr.mxu0 0.0
      %5216 = vmatpush1.msra.mxu0 0.0
      %5217 = vmatprep.subr.mxu0 0.0
      %5218 = vmatpush1.msra.mxu0 0.0
      %5219 = vmatprep.subr.mxu0 0.0
      %5220 = vmatpush1.msra.mxu0 0.0
      %5221 = vmatprep.subr.mxu0 0.0
      %5222 = vmatpush1.msra.mxu0 0.0
      %5223 = vmatprep.subr.mxu0 0.0
      %5224 = vmatpush1.msra.mxu0 0.0
      %5225 = vmatprep.subr.mxu0 0.0
      %5226 = vmatpush1.msra.mxu0 0.0
      %5227 = vmatprep.subr.mxu0 0.0
      %5228 = vmatpush1.msra.mxu0 0.0
      %5229 = vmatprep.subr.mxu0 0.0
      %5230 = vmatpush1.msra.mxu0 0.0
      %5231 = vmatprep.subr.mxu0 0.0
      %5232 = vmatpush1.msra.mxu0 0.0
      %5233 = vmatprep.subr.mxu0 0.0
      %5234 = vmatpush1.msra.mxu0 0.0
      %5235 = vmatprep.subr.mxu0 0.0
      %5236 = vmatpush1.msra.mxu0 0.0
      %5237 = vmatprep.subr.mxu0 0.0
      %5238 = vmatpush1.msra.mxu0 0.0
      %5239 = vmatprep.mubr.f32.mxu0 0.0
      %5240 = vmatmul.mubr.f32.gmra.mrb[0].mxu0 %v5170
      %v5241 = vpop.f32.mrb[0].mxu0
      %v5242 = vadd.f32 0.0, %v5241
      %v5243 = vpop.f32.mrb[0].mxu0
      %5244 = vdwg.mxu0
      %v5246 = vsel %vm3191, %v3186, 0
      %v5249 = vsel %vm3195, %v368, 0
      %5251 = vmatprep.subr.mxu0 0.0
      %5252 = vmatpush1.msra.mxu0 %v5249
      %5253 = vmatprep.subr.mxu0 0.0
      %5254 = vmatpush1.msra.mxu0 0.0
      %5255 = vmatprep.subr.mxu0 0.0
      %5256 = vmatpush1.msra.mxu0 0.0
      %5257 = vmatprep.subr.mxu0 0.0
      %5258 = vmatpush1.msra.mxu0 0.0
      %5259 = vmatprep.subr.mxu0 0.0
      %5260 = vmatpush1.msra.mxu0 0.0
      %5261 = vmatprep.subr.mxu0 0.0
      %5262 = vmatpush1.msra.mxu0 0.0
      %5263 = vmatprep.subr.mxu0 0.0
      %5264 = vmatpush1.msra.mxu0 0.0
      %5265 = vmatprep.subr.mxu0 0.0
      %5266 = vmatpush1.msra.mxu0 0.0
      %5267 = vmatprep.subr.mxu0 0.0
      %5268 = vmatpush1.msra.mxu0 0.0
      %5269 = vmatprep.subr.mxu0 0.0
      %5270 = vmatpush1.msra.mxu0 0.0
      %5271 = vmatprep.subr.mxu0 0.0
      %5272 = vmatpush1.msra.mxu0 0.0
      %5273 = vmatprep.subr.mxu0 0.0
      %5274 = vmatpush1.msra.mxu0 0.0
      %5275 = vmatprep.subr.mxu0 0.0
      %5276 = vmatpush1.msra.mxu0 0.0
      %5277 = vmatprep.subr.mxu0 0.0
      %5278 = vmatpush1.msra.mxu0 0.0
      %5279 = vmatprep.subr.mxu0 0.0
      %5280 = vmatpush1.msra.mxu0 0.0
      %5281 = vmatprep.subr.mxu0 0.0
      %5282 = vmatpush1.msra.mxu0 0.0
      %5283 = vmatprep.subr.mxu0 0.0
      %5284 = vmatpush1.msra.mxu0 0.0
      %5285 = vmatprep.subr.mxu0 0.0
      %5286 = vmatpush1.msra.mxu0 0.0
      %5287 = vmatprep.subr.mxu0 0.0
      %5288 = vmatpush1.msra.mxu0 0.0
      %5289 = vmatprep.subr.mxu0 0.0
      %5290 = vmatpush1.msra.mxu0 0.0
      %5291 = vmatprep.subr.mxu0 0.0
      %5292 = vmatpush1.msra.mxu0 0.0
      %5293 = vmatprep.subr.mxu0 0.0
      %5294 = vmatpush1.msra.mxu0 0.0
      %5295 = vmatprep.subr.mxu0 0.0
      %5296 = vmatpush1.msra.mxu0 0.0
      %5297 = vmatprep.subr.mxu0 0.0
      %5298 = vmatpush1.msra.mxu0 0.0
      %5299 = vmatprep.subr.mxu0 0.0
      %5300 = vmatpush1.msra.mxu0 0.0
      %5301 = vmatprep.subr.mxu0 0.0
      %5302 = vmatpush1.msra.mxu0 0.0
      %5303 = vmatprep.subr.mxu0 0.0
      %5304 = vmatpush1.msra.mxu0 0.0
      %5305 = vmatprep.subr.mxu0 0.0
      %5306 = vmatpush1.msra.mxu0 0.0
      %5307 = vmatprep.subr.mxu0 0.0
      %5308 = vmatpush1.msra.mxu0 0.0
      %5309 = vmatprep.subr.mxu0 0.0
      %5310 = vmatpush1.msra.mxu0 0.0
      %5311 = vmatprep.subr.mxu0 0.0
      %5312 = vmatpush1.msra.mxu0 0.0
      %5313 = vmatprep.subr.mxu0 0.0
      %5314 = vmatpush1.msra.mxu0 0.0
      %5315 = vmatprep.mubr.f32.mxu0 0.0
      %5316 = vmatmul.mubr.f32.gmra.mrb[0].mxu0 %v5246
      %v5317 = vpop.f32.mrb[0].mxu0
      %v5318 = vadd.f32 0.0, %v5317
      %v5319 = vpop.f32.mrb[0].mxu0
      %5320 = vdwg.mxu0
      %v5322 = vsel %vm3191, %v3187, 0
      %v5325 = vsel %vm3195, %v369, 0
      %5327 = vmatprep.subr.mxu0 0.0
      %5328 = vmatpush1.msra.mxu0 %v5325
      %5329 = vmatprep.subr.mxu0 0.0
      %5330 = vmatpush1.msra.mxu0 0.0
      %5331 = vmatprep.subr.mxu0 0.0
      %5332 = vmatpush1.msra.mxu0 0.0
      %5333 = vmatprep.subr.mxu0 0.0
      %5334 = vmatpush1.msra.mxu0 0.0
      %5335 = vmatprep.subr.mxu0 0.0
      %5336 = vmatpush1.msra.mxu0 0.0
      %5337 = vmatprep.subr.mxu0 0.0
      %5338 = vmatpush1.msra.mxu0 0.0
      %5339 = vmatprep.subr.mxu0 0.0
      %5340 = vmatpush1.msra.mxu0 0.0
      %5341 = vmatprep.subr.mxu0 0.0
      %5342 = vmatpush1.msra.mxu0 0.0
      %5343 = vmatprep.subr.mxu0 0.0
      %5344 = vmatpush1.msra.mxu0 0.0
      %5345 = vmatprep.subr.mxu0 0.0
      %5346 = vmatpush1.msra.mxu0 0.0
      %5347 = vmatprep.subr.mxu0 0.0
      %5348 = vmatpush1.msra.mxu0 0.0
      %5349 = vmatprep.subr.mxu0 0.0
      %5350 = vmatpush1.msra.mxu0 0.0
      %5351 = vmatprep.subr.mxu0 0.0
      %5352 = vmatpush1.msra.mxu0 0.0
      %5353 = vmatprep.subr.mxu0 0.0
      %5354 = vmatpush1.msra.mxu0 0.0
      %5355 = vmatprep.subr.mxu0 0.0
      %5356 = vmatpush1.msra.mxu0 0.0
      %5357 = vmatprep.subr.mxu0 0.0
      %5358 = vmatpush1.msra.mxu0 0.0
      %5359 = vmatprep.subr.mxu0 0.0
      %5360 = vmatpush1.msra.mxu0 0.0
      %5361 = vmatprep.subr.mxu0 0.0
      %5362 = vmatpush1.msra.mxu0 0.0
      %5363 = vmatprep.subr.mxu0 0.0
      %5364 = vmatpush1.msra.mxu0 0.0
      %5365 = vmatprep.subr.mxu0 0.0
      %5366 = vmatpush1.msra.mxu0 0.0
      %5367 = vmatprep.subr.mxu0 0.0
      %5368 = vmatpush1.msra.mxu0 0.0
      %5369 = vmatprep.subr.mxu0 0.0
      %5370 = vmatpush1.msra.mxu0 0.0
      %5371 = vmatprep.subr.mxu0 0.0
      %5372 = vmatpush1.msra.mxu0 0.0
      %5373 = vmatprep.subr.mxu0 0.0
      %5374 = vmatpush1.msra.mxu0 0.0
      %5375 = vmatprep.subr.mxu0 0.0
      %5376 = vmatpush1.msra.mxu0 0.0
      %5377 = vmatprep.subr.mxu0 0.0
      %5378 = vmatpush1.msra.mxu0 0.0
      %5379 = vmatprep.subr.mxu0 0.0
      %5380 = vmatpush1.msra.mxu0 0.0
      %5381 = vmatprep.subr.mxu0 0.0
      %5382 = vmatpush1.msra.mxu0 0.0
      %5383 = vmatprep.subr.mxu0 0.0
      %5384 = vmatpush1.msra.mxu0 0.0
      %5385 = vmatprep.subr.mxu0 0.0
      %5386 = vmatpush1.msra.mxu0 0.0
      %5387 = vmatprep.subr.mxu0 0.0
      %5388 = vmatpush1.msra.mxu0 0.0
      %5389 = vmatprep.subr.mxu0 0.0
      %5390 = vmatpush1.msra.mxu0 0.0
      %5391 = vmatprep.mubr.f32.mxu0 0.0
      %5392 = vmatmul.mubr.f32.gmra.mrb[0].mxu0 %v5322
      %v5393 = vpop.f32.mrb[0].mxu0
      %v5394 = vadd.f32 0.0, %v5393
      %v5395 = vpop.f32.mrb[0].mxu0
      %5396 = vdwg.mxu0
      %v5398 = vsel %vm3191, %v3188, 0
      %v5401 = vsel %vm3195, %v370, 0
      %5403 = vmatprep.subr.mxu0 0.0
      %5404 = vmatpush1.msra.mxu0 %v5401
      %5405 = vmatprep.subr.mxu0 0.0
      %5406 = vmatpush1.msra.mxu0 0.0
      %5407 = vmatprep.subr.mxu0 0.0
      %5408 = vmatpush1.msra.mxu0 0.0
      %5409 = vmatprep.subr.mxu0 0.0
      %5410 = vmatpush1.msra.mxu0 0.0
      %5411 = vmatprep.subr.mxu0 0.0
      %5412 = vmatpush1.msra.mxu0 0.0
      %5413 = vmatprep.subr.mxu0 0.0
      %5414 = vmatpush1.msra.mxu0 0.0
      %5415 = vmatprep.subr.mxu0 0.0
      %5416 = vmatpush1.msra.mxu0 0.0
      %5417 = vmatprep.subr.mxu0 0.0
      %5418 = vmatpush1.msra.mxu0 0.0
      %5419 = vmatprep.subr.mxu0 0.0
      %5420 = vmatpush1.msra.mxu0 0.0
      %5421 = vmatprep.subr.mxu0 0.0
      %5422 = vmatpush1.msra.mxu0 0.0
      %5423 = vmatprep.subr.mxu0 0.0
      %5424 = vmatpush1.msra.mxu0 0.0
      %5425 = vmatprep.subr.mxu0 0.0
      %5426 = vmatpush1.msra.mxu0 0.0
      %5427 = vmatprep.subr.mxu0 0.0
      %5428 = vmatpush1.msra.mxu0 0.0
      %5429 = vmatprep.subr.mxu0 0.0
      %5430 = vmatpush1.msra.mxu0 0.0
      %5431 = vmatprep.subr.mxu0 0.0
      %5432 = vmatpush1.msra.mxu0 0.0
      %5433 = vmatprep.subr.mxu0 0.0
      %5434 = vmatpush1.msra.mxu0 0.0
      %5435 = vmatprep.subr.mxu0 0.0
      %5436 = vmatpush1.msra.mxu0 0.0
      %5437 = vmatprep.subr.mxu0 0.0
      %5438 = vmatpush1.msra.mxu0 0.0
      %5439 = vmatprep.subr.mxu0 0.0
      %5440 = vmatpush1.msra.mxu0 0.0
      %5441 = vmatprep.subr.mxu0 0.0
      %5442 = vmatpush1.msra.mxu0 0.0
      %5443 = vmatprep.subr.mxu0 0.0
      %5444 = vmatpush1.msra.mxu0 0.0
      %5445 = vmatprep.subr.mxu0 0.0
      %5446 = vmatpush1.msra.mxu0 0.0
      %5447 = vmatprep.subr.mxu0 0.0
      %5448 = vmatpush1.msra.mxu0 0.0
      %5449 = vmatprep.subr.mxu0 0.0
      %5450 = vmatpush1.msra.mxu0 0.0
      %5451 = vmatprep.subr.mxu0 0.0
      %5452 = vmatpush1.msra.mxu0 0.0
      %5453 = vmatprep.subr.mxu0 0.0
      %5454 = vmatpush1.msra.mxu0 0.0
      %5455 = vmatprep.subr.mxu0 0.0
      %5456 = vmatpush1.msra.mxu0 0.0
      %5457 = vmatprep.subr.mxu0 0.0
      %5458 = vmatpush1.msra.mxu0 0.0
      %5459 = vmatprep.subr.mxu0 0.0
      %5460 = vmatpush1.msra.mxu0 0.0
      %5461 = vmatprep.subr.mxu0 0.0
      %5462 = vmatpush1.msra.mxu0 0.0
      %5463 = vmatprep.subr.mxu0 0.0
      %5464 = vmatpush1.msra.mxu0 0.0
      %5465 = vmatprep.subr.mxu0 0.0
      %5466 = vmatpush1.msra.mxu0 0.0
      %5467 = vmatprep.mubr.f32.mxu0 0.0
      %5468 = vmatmul.mubr.f32.gmra.mrb[0].mxu0 %v5398
      %v5469 = vpop.f32.mrb[0].mxu0
      %v5470 = vadd.f32 0.0, %v5469
      %v5471 = vpop.f32.mrb[0].mxu0
      %5472 = vdwg.mxu0
      %v5474 = vsel %vm3191, %v3189, 0
      %v5477 = vsel %vm3195, %v371, 0
      %5479 = vmatprep.subr.mxu0 0.0
      %5480 = vmatpush1.msra.mxu0 %v5477
      %5481 = vmatprep.subr.mxu0 0.0
      %5482 = vmatpush1.msra.mxu0 0.0
      %5483 = vmatprep.subr.mxu0 0.0
      %5484 = vmatpush1.msra.mxu0 0.0
      %5485 = vmatprep.subr.mxu0 0.0
      %5486 = vmatpush1.msra.mxu0 0.0
      %5487 = vmatprep.subr.mxu0 0.0
      %5488 = vmatpush1.msra.mxu0 0.0
      %5489 = vmatprep.subr.mxu0 0.0
      %5490 = vmatpush1.msra.mxu0 0.0
      %5491 = vmatprep.subr.mxu0 0.0
      %5492 = vmatpush1.msra.mxu0 0.0
      %5493 = vmatprep.subr.mxu0 0.0
      %5494 = vmatpush1.msra.mxu0 0.0
      %5495 = vmatprep.subr.mxu0 0.0
      %5496 = vmatpush1.msra.mxu0 0.0
      %5497 = vmatprep.subr.mxu0 0.0
      %5498 = vmatpush1.msra.mxu0 0.0
      %5499 = vmatprep.subr.mxu0 0.0
      %5500 = vmatpush1.msra.mxu0 0.0
      %5501 = vmatprep.subr.mxu0 0.0
      %5502 = vmatpush1.msra.mxu0 0.0
      %5503 = vmatprep.subr.mxu0 0.0
      %5504 = vmatpush1.msra.mxu0 0.0
      %5505 = vmatprep.subr.mxu0 0.0
      %5506 = vmatpush1.msra.mxu0 0.0
      %5507 = vmatprep.subr.mxu0 0.0
      %5508 = vmatpush1.msra.mxu0 0.0
      %5509 = vmatprep.subr.mxu0 0.0
      %5510 = vmatpush1.msra.mxu0 0.0
      %5511 = vmatprep.subr.mxu0 0.0
      %5512 = vmatpush1.msra.mxu0 0.0
      %5513 = vmatprep.subr.mxu0 0.0
      %5514 = vmatpush1.msra.mxu0 0.0
      %5515 = vmatprep.subr.mxu0 0.0
      %5516 = vmatpush1.msra.mxu0 0.0
      %5517 = vmatprep.subr.mxu0 0.0
      %5518 = vmatpush1.msra.mxu0 0.0
      %5519 = vmatprep.subr.mxu0 0.0
      %5520 = vmatpush1.msra.mxu0 0.0
      %5521 = vmatprep.subr.mxu0 0.0
      %5522 = vmatpush1.msra.mxu0 0.0
      %5523 = vmatprep.subr.mxu0 0.0
      %5524 = vmatpush1.msra.mxu0 0.0
      %5525 = vmatprep.subr.mxu0 0.0
      %5526 = vmatpush1.msra.mxu0 0.0
      %5527 = vmatprep.subr.mxu0 0.0
      %5528 = vmatpush1.msra.mxu0 0.0
      %5529 = vmatprep.subr.mxu0 0.0
      %5530 = vmatpush1.msra.mxu0 0.0
      %5531 = vmatprep.subr.mxu0 0.0
      %5532 = vmatpush1.msra.mxu0 0.0
      %5533 = vmatprep.subr.mxu0 0.0
      %5534 = vmatpush1.msra.mxu0 0.0
      %5535 = vmatprep.subr.mxu0 0.0
      %5536 = vmatpush1.msra.mxu0 0.0
      %5537 = vmatprep.subr.mxu0 0.0
      %5538 = vmatpush1.msra.mxu0 0.0
      %5539 = vmatprep.subr.mxu0 0.0
      %5540 = vmatpush1.msra.mxu0 0.0
      %5541 = vmatprep.subr.mxu0 0.0
      %5542 = vmatpush1.msra.mxu0 0.0
      %5543 = vmatprep.mubr.f32.mxu0 0.0
      %5544 = vmatmul.mubr.f32.gmra.mrb[0].mxu0 %v5474
      %v5545 = vpop.f32.mrb[0].mxu0
      %v5546 = vadd.f32 0.0, %v5545
      %v5547 = vpop.f32.mrb[0].mxu0
      %5548 = vdwg.mxu0
      %v5550 = vsel %vm3191, %v3190, 0
      %v5553 = vsel %vm3195, %v372, 0
      %5555 = vmatprep.subr.mxu0 0.0
      %5556 = vmatpush1.msra.mxu0 %v5553
      %5557 = vmatprep.subr.mxu0 0.0
      %5558 = vmatpush1.msra.mxu0 0.0
      %5559 = vmatprep.subr.mxu0 0.0
      %5560 = vmatpush1.msra.mxu0 0.0
      %5561 = vmatprep.subr.mxu0 0.0
      %5562 = vmatpush1.msra.mxu0 0.0
      %5563 = vmatprep.subr.mxu0 0.0
      %5564 = vmatpush1.msra.mxu0 0.0
      %5565 = vmatprep.subr.mxu0 0.0
      %5566 = vmatpush1.msra.mxu0 0.0
      %5567 = vmatprep.subr.mxu0 0.0
      %5568 = vmatpush1.msra.mxu0 0.0
      %5569 = vmatprep.subr.mxu0 0.0
      %5570 = vmatpush1.msra.mxu0 0.0
      %5571 = vmatprep.subr.mxu0 0.0
      %5572 = vmatpush1.msra.mxu0 0.0
      %5573 = vmatprep.subr.mxu0 0.0
      %5574 = vmatpush1.msra.mxu0 0.0
      %5575 = vmatprep.subr.mxu0 0.0
      %5576 = vmatpush1.msra.mxu0 0.0
      %5577 = vmatprep.subr.mxu0 0.0
      %5578 = vmatpush1.msra.mxu0 0.0
      %5579 = vmatprep.subr.mxu0 0.0
      %5580 = vmatpush1.msra.mxu0 0.0
      %5581 = vmatprep.subr.mxu0 0.0
      %5582 = vmatpush1.msra.mxu0 0.0
      %5583 = vmatprep.subr.mxu0 0.0
      %5584 = vmatpush1.msra.mxu0 0.0
      %5585 = vmatprep.subr.mxu0 0.0
      %5586 = vmatpush1.msra.mxu0 0.0
      %5587 = vmatprep.subr.mxu0 0.0
      %5588 = vmatpush1.msra.mxu0 0.0
      %5589 = vmatprep.subr.mxu0 0.0
      %5590 = vmatpush1.msra.mxu0 0.0
      %5591 = vmatprep.subr.mxu0 0.0
      %5592 = vmatpush1.msra.mxu0 0.0
      %5593 = vmatprep.subr.mxu0 0.0
      %5594 = vmatpush1.msra.mxu0 0.0
      %5595 = vmatprep.subr.mxu0 0.0
      %5596 = vmatpush1.msra.mxu0 0.0
      %5597 = vmatprep.subr.mxu0 0.0
      %5598 = vmatpush1.msra.mxu0 0.0
      %5599 = vmatprep.subr.mxu0 0.0
      %5600 = vmatpush1.msra.mxu0 0.0
      %5601 = vmatprep.subr.mxu0 0.0
      %5602 = vmatpush1.msra.mxu0 0.0
      %5603 = vmatprep.subr.mxu0 0.0
      %5604 = vmatpush1.msra.mxu0 0.0
      %5605 = vmatprep.subr.mxu0 0.0
      %5606 = vmatpush1.msra.mxu0 0.0
      %5607 = vmatprep.subr.mxu0 0.0
      %5608 = vmatpush1.msra.mxu0 0.0
      %5609 = vmatprep.subr.mxu0 0.0
      %5610 = vmatpush1.msra.mxu0 0.0
      %5611 = vmatprep.subr.mxu0 0.0
      %5612 = vmatpush1.msra.mxu0 0.0
      %5613 = vmatprep.subr.mxu0 0.0
      %5614 = vmatpush1.msra.mxu0 0.0
      %5615 = vmatprep.subr.mxu0 0.0
      %5616 = vmatpush1.msra.mxu0 0.0
      %5617 = vmatprep.subr.mxu0 0.0
      %5618 = vmatpush1.msra.mxu0 0.0
      %5619 = vmatprep.mubr.f32.mxu0 0.0
      %5620 = vmatmul.mubr.f32.gmra.mrb[0].mxu0 %v5550
      %v5621 = vpop.f32.mrb[0].mxu0
      %v5622 = vadd.f32 0.0, %v5621
      %v5623 = vpop.f32.mrb[0].mxu0
      %5624 = vdwg.mxu0
      %vm5625 = vcmask 60416
      %5626 = vst.msk [vmem:[%s243] sm:$0xf] %vm5625, %v3266
      %5627 = vst.msk [vmem:[%s243 + $0x4] sm:$0xf] %vm5625, %v3342
      %5628 = vst.msk [vmem:[%s243 + $0x8] sm:$0xf] %vm5625, %v3418
      %5629 = vst.msk [vmem:[%s243 + $0xc] sm:$0xf] %vm5625, %v3494
      %5630 = vst.msk [vmem:[%s243 + $0x10] sm:$0xf] %vm5625, %v3570
      %5631 = vst.msk [vmem:[%s243 + $0x14] sm:$0xf] %vm5625, %v3646
      %5632 = vst.msk [vmem:[%s243 + $0x18] sm:$0xf] %vm5625, %v3722
      %5633 = vst.msk [vmem:[%s243 + $0x1c] sm:$0xf] %vm5625, %v3798
      %5634 = vst.msk [vmem:[%s243 + $0x20] sm:$0xf] %vm5625, %v3874
      %5635 = vst.msk [vmem:[%s243 + $0x24] sm:$0xf] %vm5625, %v3950
      %5636 = vst.msk [vmem:[%s243 + $0x28] sm:$0xf] %vm5625, %v4026
      %5637 = vst.msk [vmem:[%s243 + $0x2c] sm:$0xf] %vm5625, %v4102
      %5638 = vst.msk [vmem:[%s243 + $0x30] sm:$0xf] %vm5625, %v4178
      %5639 = vst.msk [vmem:[%s243 + $0x34] sm:$0xf] %vm5625, %v4254
      %5640 = vst.msk [vmem:[%s243 + $0x38] sm:$0xf] %vm5625, %v4330
      %5641 = vst.msk [vmem:[%s243 + $0x3c] sm:$0xf] %vm5625, %v4406
      %5642 = vst.msk [vmem:[%s243 + $0x40] sm:$0xf] %vm5625, %v4482
      %5643 = vst.msk [vmem:[%s243 + $0x44] sm:$0xf] %vm5625, %v4558
      %5644 = vst.msk [vmem:[%s243 + $0x48] sm:$0xf] %vm5625, %v4634
      %5645 = vst.msk [vmem:[%s243 + $0x4c] sm:$0xf] %vm5625, %v4710
      %5646 = vst.msk [vmem:[%s243 + $0x50] sm:$0xf] %vm5625, %v4786
      %5647 = vst.msk [vmem:[%s243 + $0x54] sm:$0xf] %vm5625, %v4862
      %5648 = vst.msk [vmem:[%s243 + $0x58] sm:$0xf] %vm5625, %v4938
      %5649 = vst.msk [vmem:[%s243 + $0x5c] sm:$0xf] %vm5625, %v5014
      %5650 = vst.msk [vmem:[%s243 + $0x60] sm:$0xf] %vm5625, %v5090
      %5651 = vst.msk [vmem:[%s243 + $0x64] sm:$0xf] %vm5625, %v5166
      %5652 = vst.msk [vmem:[%s243 + $0x68] sm:$0xf] %vm5625, %v5242
      %5653 = vst.msk [vmem:[%s243 + $0x6c] sm:$0xf] %vm5625, %v5318
      %5654 = vst.msk [vmem:[%s243 + $0x70] sm:$0xf] %vm5625, %v5394
      %5655 = vst.msk [vmem:[%s243 + $0x74] sm:$0xf] %vm5625, %v5470
      %5656 = vst.msk [vmem:[%s243 + $0x78] sm:$0xf] %vm5625, %v5546
      %5657 = vst.msk [vmem:[%s243 + $0x7c] sm:$0xf] %vm5625, %v5622
      %s5658 = smul.u32 32, %s15
      %p5659 = scmp.lt.s32.totalorder %s5658, 63
      %s5660 = scalar_select %p5659, %s5658, 63
      %s5661 = smul.addr %s5660, 4
      %s5662 = scalar_lea.vmem %s4, %s5661
      // Predicated region
      $region37: #{_lambda_.23} parent=35 // pred_check
        %p5663 = pneg %p132
      $region38: #{_lambda_.23} parent=35 // pred_check_branch
        %5665 = sbr.rel (%p5663) target = $region40
      $region39: #{_lambda_.23} parent=35 // pred_region
        %s5666 = smul.u32 32, %s15
      $region40: #{_lambda_.23} parent=35 // pred_fallthru
        _
    $region36: #{_lambda_.23} parent=5 // pred_fallthru
      _
    %p5667 = scmp.le.s32.totalorder 2, %s10
    // Predicated region
    $region41: #{_lambda_.23} parent=5 // pred_check
      %p5668 = pneg %p5667
    $region42: #{_lambda_.23} parent=5 // pred_check_branch
      %5670 = sbr.rel (%p5668) target = $region44
    $region43: #{_lambda_.23} parent=5 // pred_region
      %s5671 = ssub.s32 %s10, 2
      // Predicated region
      $region45: #{_lambda_.23} parent=43 // pred_check
        %p5672 = pneg %p138
      $region46: #{_lambda_.23} parent=43 // pred_check_branch
        %5674 = sbr.rel (%p5672) target = $region48
      $region47: #{_lambda_.23} parent=43 // pred_region
        %s5675 = smul.u32 32, %s16
        %p5676 = scmp.lt.s32.totalorder %s5675, 63
        %s5677 = scalar_select %p5676, %s5675, 63
        %s5678 = smul.addr %s5677, 4
        %s5679 = scalar_lea.vmem %s4, %s5678
      $region48: #{_lambda_.23} parent=43 // pred_fallthru
        _
    $region44: #{_lambda_.23} parent=5 // pred_fallthru
      _
  $region6: #{_lambda_.23} parent=0 // loop_footer
    %s14 = sadd.s32 1, %s10
  $region7: #{_lambda_.23} parent=0 // loop_footer_branch
    %9 = sbr.rel target = $region3
  $region8: #{_lambda_.23} parent=0 // loop_exit
    _

// kernel: _lambda_.33
$region0: #{_lambda_.33}
  #allocation0 [shape = 'u32[]', space=smem, size = 0x4, offset = 0x4, fixed_abs, tag = 'smem constant byte address 0x4 - core index']
  #allocation1 [shape = 'u32[144,128]{1,0:T(1,128)}', space=vmem, size = 0x12000, scoped, tag = 'internal scratch']
  %s0 = inlined_call_operand.vmem [shape: f32[32,32], index: 0, kind: input, shape index: {}]
  %s1 = inlined_call_operand.vmem [shape: f32[1,32], index: 1, kind: input, shape index: {}]
  %s2 = inlined_call_operand.vmem [shape: f32[1,32], index: 2, kind: input, shape index: {}]
  %s3 = inlined_call_operand.vmem [shape: f32[32,96], index: 3, kind: input, shape index: {}]
  %s4 = inlined_call_operand.vmem [shape: f32[1,96], index: 4, kind: input, shape index: {}]
  %s5 = inlined_call_operand.vmem [shape: f32[32,96], index: 5, kind: output, shape index: {}]
  %s6 = sld [smem:[#allocation0]]
  $region30: #{_lambda_.33} parent=0
    _
  %s8 = ssub.s32 1, %s6
  %s9 = scalar_select 0, %s8, %s6
  // Predicated region
  $region2: #{_lambda_.33} parent=0 // pred_check
    _
  $region3: #{_lambda_.33} parent=0 // pred_check_branch
    %11 = sbr.rel (0) target = $region5
  $region4: #{_lambda_.33} parent=0 // pred_region
    _
  $region5: #{_lambda_.33} parent=0 // pred_fallthru
    _
  // Predicated region
  $region6: #{_lambda_.33} parent=0 // pred_check
    _
  $region7: #{_lambda_.33} parent=0 // pred_check_branch
    %13 = sbr.rel (0) target = $region9
  $region8: #{_lambda_.33} parent=0 // pred_region
    _
  $region9: #{_lambda_.33} parent=0 // pred_fallthru
    _
  // Predicated region
  $region10: #{_lambda_.33} parent=0 // pred_check
    _
  $region11: #{_lambda_.33} parent=0 // pred_check_branch
    %15 = sbr.rel (0) target = $region13
  $region12: #{_lambda_.33} parent=0 // pred_region
    _
  $region13: #{_lambda_.33} parent=0 // pred_fallthru
    _
  // Predicated region
  $region14: #{_lambda_.33} parent=0 // pred_check
    _
  $region15: #{_lambda_.33} parent=0 // pred_check_branch
    %17 = sbr.rel (0) target = $region17
  $region16: #{_lambda_.33} parent=0 // pred_region
    _
  $region17: #{_lambda_.33} parent=0 // pred_fallthru
    _
  // Predicated region
  $region18: #{_lambda_.33} parent=0 // pred_check
    _
  $region19: #{_lambda_.33} parent=0 // pred_check_branch
    %19 = sbr.rel (0) target = $region21
  $region20: #{_lambda_.33} parent=0 // pred_region
    _
  $region21: #{_lambda_.33} parent=0 // pred_fallthru
    _
  %v20 = vld [vmem:[%s0] sm:$0xff]
  %v21 = vld [vmem:[%s0 + $0x8] sm:$0xff]
  %v22 = vld [vmem:[%s0 + $0x10] sm:$0xff]
  %v23 = vld [vmem:[%s0 + $0x18] sm:$0xff]
  %vm24 = vcmask 261120
  %v25 = vsel %vm24, %v20, 0.0
  %26 = vadd.xlane.f32.xlu0 %v25
  %v27 = vpop.xlane.xlu0 %26
  %v28 = vsel %vm24, %v21, 0.0
  %29 = vadd.xlane.f32.xlu0 %v28
  %v30 = vpop.xlane.xlu0 %29
  %v31 = vsel %vm24, %v22, 0.0
  %32 = vadd.xlane.f32.xlu0 %v31
  %v33 = vpop.xlane.xlu0 %32
  %v34 = vsel %vm24, %v23, 0.0
  %35 = vadd.xlane.f32.xlu0 %v34
  %v36 = vpop.xlane.xlu0 %35
  %v37 = vrcp.pop 32.0
  %v38 = vmul.f32 %v27, %v37
  %v39 = vmul.f32 %v30, %v37
  %v40 = vmul.f32 %v33, %v37
  %v41 = vmul.f32 %v36, %v37
  %v42 = vsub.f32 %v20, %v38
  %v43 = vsub.f32 %v21, %v39
  %v44 = vsub.f32 %v22, %v40
  %v45 = vsub.f32 %v23, %v41
  %v46 = vmul.f32 %v42, %v42
  %v47 = vmul.f32 %v43, %v43
  %v48 = vmul.f32 %v44, %v44
  %v49 = vmul.f32 %v45, %v45
  %v50 = vsel %vm24, %v46, 0.0
  %51 = vadd.xlane.f32.xlu0 %v50
  %v52 = vpop.xlane.xlu0 %51
  %v53 = vsel %vm24, %v47, 0.0
  %54 = vadd.xlane.f32.xlu0 %v53
  %v55 = vpop.xlane.xlu0 %54
  %v56 = vsel %vm24, %v48, 0.0
  %57 = vadd.xlane.f32.xlu0 %v56
  %v58 = vpop.xlane.xlu0 %57
  %v59 = vsel %vm24, %v49, 0.0
  %60 = vadd.xlane.f32.xlu0 %v59
  %v61 = vpop.xlane.xlu0 %60
  %v62 = vmul.f32 %v52, %v37
  %v63 = vmul.f32 %v55, %v37
  %v64 = vmul.f32 %v58, %v37
  %v65 = vmul.f32 %v61, %v37
  %v66 = vadd.f32 %v62, 1e-05
  %v67 = vadd.f32 %v63, 1e-05
  %v68 = vadd.f32 %v64, 1e-05
  %v69 = vadd.f32 %v65, 1e-05
  %v70 = vrsqrt.pop %v66
  %v71 = vrsqrt.pop %v67
  %v72 = vrsqrt.pop %v68
  %v73 = vrsqrt.pop %v69
  %v74 = vmul.f32 %v42, %v70
  %v75 = vmul.f32 %v43, %v71
  %v76 = vmul.f32 %v44, %v72
  %v77 = vmul.f32 %v45, %v73
  %v78 = vld [vmem:[%s1] sm:$0x1]
  %v80 = vlaneseq
  %v81 = vshrl.u32 %v80, 7
  %v82 = vsub.s32 0, %v81
  %v83 = vrot.slane %v78, %v82
  %v85 = vmul.f32 %v74, %v83
  %v86 = vmul.f32 %v75, %v83
  %v87 = vmul.f32 %v76, %v83
  %v88 = vmul.f32 %v77, %v83
  %v89 = vld [vmem:[%s2] sm:$0x1]
  %v91 = vlaneseq
  %v92 = vshrl.u32 %v91, 7
  %v93 = vsub.s32 0, %v92
  %v94 = vrot.slane %v89, %v93
  %v96 = vadd.f32 %v85, %v94
  %v97 = vadd.f32 %v86, %v94
  %v98 = vadd.f32 %v87, %v94
  %v99 = vadd.f32 %v88, %v94
  %v100 = vld [vmem:[%s3] sm:$0xff]
  %v101 = vld [vmem:[%s3 + $0x8] sm:$0xff]
  %v102 = vld [vmem:[%s3 + $0x10] sm:$0xff]
  %v103 = vld [vmem:[%s3 + $0x18] sm:$0xff]
  %v104 = vld [vmem:[%s4] sm:$0x1]
  %v106 = vlaneseq
  %v107 = vshrl.u32 %v106, 7
  %v108 = vsub.s32 0, %v107
  %v109 = vrot.slane %v104, %v108
  %v112 = vsel %vm24, %v96, 0
  %v115 = vsel %vm24, %v97, 0
  %v118 = vsel %vm24, %v98, 0
  %v121 = vsel %vm24, %v99, 0
  %123 = vmatprep.subr.mxu0 0.0
  %124 = vmatpush1.msra.mxu0 %v100
  %125 = vmatprep.subr.mxu0 0.0
  %126 = vmatpush1.msra.mxu0 %v101
  %127 = vmatprep.subr.mxu0 0.0
  %128 = vmatpush1.msra.mxu0 %v102
  %129 = vmatprep.subr.mxu0 0.0
  %130 = vmatpush1.msra.mxu0 %v103
  %131 = vmatprep.subr.mxu0 0.0
  %132 = vmatpush1.msra.mxu0 0.0
  %133 = vmatprep.subr.mxu0 0.0
  %134 = vmatpush1.msra.mxu0 0.0
  %135 = vmatprep.subr.mxu0 0.0
  %136 = vmatpush1.msra.mxu0 0.0
  %137 = vmatprep.subr.mxu0 0.0
  %138 = vmatpush1.msra.mxu0 0.0
  %139 = vmatprep.subr.mxu0 0.0
  %140 = vmatpush1.msra.mxu0 0.0
  %141 = vmatprep.subr.mxu0 0.0
  %142 = vmatpush1.msra.mxu0 0.0
  %143 = vmatprep.subr.mxu0 0.0
  %144 = vmatpush1.msra.mxu0 0.0
  %145 = vmatprep.subr.mxu0 0.0
  %146 = vmatpush1.msra.mxu0 0.0
  %147 = vmatprep.subr.mxu0 0.0
  %148 = vmatpush1.msra.mxu0 0.0
  %149 = vmatprep.subr.mxu0 0.0
  %150 = vmatpush1.msra.mxu0 0.0
  %151 = vmatprep.subr.mxu0 0.0
  %152 = vmatpush1.msra.mxu0 0.0
  %153 = vmatprep.subr.mxu0 0.0
  %154 = vmatpush1.msra.mxu0 0.0
  %155 = vmatprep.subr.mxu0 0.0
  %156 = vmatpush1.msra.mxu0 0.0
  %157 = vmatprep.subr.mxu0 0.0
  %158 = vmatpush1.msra.mxu0 0.0
  %159 = vmatprep.subr.mxu0 0.0
  %160 = vmatpush1.msra.mxu0 0.0
  %161 = vmatprep.subr.mxu0 0.0
  %162 = vmatpush1.msra.mxu0 0.0
  %163 = vmatprep.subr.mxu0 0.0
  %164 = vmatpush1.msra.mxu0 0.0
  %165 = vmatprep.subr.mxu0 0.0
  %166 = vmatpush1.msra.mxu0 0.0
  %167 = vmatprep.subr.mxu0 0.0
  %168 = vmatpush1.msra.mxu0 0.0
  %169 = vmatprep.subr.mxu0 0.0
  %170 = vmatpush1.msra.mxu0 0.0
  %171 = vmatprep.subr.mxu0 0.0
  %172 = vmatpush1.msra.mxu0 0.0
  %173 = vmatprep.subr.mxu0 0.0
  %174 = vmatpush1.msra.mxu0 0.0
  %175 = vmatprep.subr.mxu0 0.0
  %176 = vmatpush1.msra.mxu0 0.0
  %177 = vmatprep.subr.mxu0 0.0
  %178 = vmatpush1.msra.mxu0 0.0
  %179 = vmatprep.subr.mxu0 0.0
  %180 = vmatpush1.msra.mxu0 0.0
  %181 = vmatprep.subr.mxu0 0.0
  %182 = vmatpush1.msra.mxu0 0.0
  %183 = vmatprep.subr.mxu0 0.0
  %184 = vmatpush1.msra.mxu0 0.0
  %185 = vmatprep.subr.mxu0 0.0
  %186 = vmatpush1.msra.mxu0 0.0
  %187 = vmatprep.mubr.f32.mxu0 0.0
  %188 = vmatmul.mubr.f32.gmra.mrb[0].mxu0 %v112
  %v189 = vpop.f32.mrb[0].mxu0
  %v190 = vadd.f32 %v109, %v189
  %v191 = vpop.f32.mrb[0].mxu0
  %192 = vmatprep.mubr.f32.mxu0 0.0
  %193 = vmatmul.mubr.f32.gmra.mrb[0].mxu0 %v115
  %v194 = vpop.f32.mrb[0].mxu0
  %v195 = vadd.f32 %v109, %v194
  %v196 = vpop.f32.mrb[0].mxu0
  %197 = vmatprep.mubr.f32.mxu0 0.0
  %198 = vmatmul.mubr.f32.gmra.mrb[0].mxu0 %v118
  %v199 = vpop.f32.mrb[0].mxu0
  %v200 = vadd.f32 %v109, %v199
  %v201 = vpop.f32.mrb[0].mxu0
  %202 = vmatprep.mubr.f32.mxu0 0.0
  %203 = vmatmul.mubr.f32.gmra.mrb[0].mxu0 %v121
  %v204 = vpop.f32.mrb[0].mxu0
  %v205 = vadd.f32 %v109, %v204
  %v206 = vpop.f32.mrb[0].mxu0
  %207 = vdwg.mxu0
  %vm208 = vcmask 785408
  %209 = vst.msk [vmem:[%s5] sm:$0xff] %vm208, %v190
  %210 = vst.msk [vmem:[%s5 + $0x8] sm:$0xff] %vm208, %v195
  %211 = vst.msk [vmem:[%s5 + $0x10] sm:$0xff] %vm208, %v200
  %212 = vst.msk [vmem:[%s5 + $0x18] sm:$0xff] %vm208, %v205
  // Predicated region
  $region22: #{_lambda_.33} parent=0 // pred_check
    _
  $region23: #{_lambda_.33} parent=0 // pred_check_branch
    %214 = sbr.rel (0) target = $region25
  $region24: #{_lambda_.33} parent=0 // pred_region
    _
  $region25: #{_lambda_.33} parent=0 // pred_fallthru
    _
  // Predicated region
  $region26: #{_lambda_.33} parent=0 // pred_check
    _
  $region27: #{_lambda_.33} parent=0 // pred_check_branch
    %216 = sbr.rel (0) target = $region29
  $region28: #{_lambda_.33} parent=0 // pred_region
    _
  $region29: #{_lambda_.33} parent=0 // pred_fallthru
    _

// kernel: _lambda_.32
$region0: #{_lambda_.32}
  #allocation0 [shape = 'u32[]', space=smem, size = 0x4, offset = 0x4, fixed_abs, tag = 'smem constant byte address 0x4 - core index']
  #allocation1 [shape = 'u32[144,128]{1,0:T(1,128)}', space=vmem, size = 0x12000, scoped, tag = 'internal scratch']
  %s0 = inlined_call_operand.vmem [shape: f32[32,64], index: 0, kind: input, shape index: {}]
  %s1 = inlined_call_operand.vmem [shape: f32[1,64], index: 1, kind: input, shape index: {}]
  %s2 = inlined_call_operand.vmem [shape: f32[1,64], index: 2, kind: input, shape index: {}]
  %s3 = inlined_call_operand.vmem [shape: f32[64,32], index: 3, kind: input, shape index: {}]
  %s4 = inlined_call_operand.vmem [shape: f32[1,32], index: 4, kind: input, shape index: {}]
  %s5 = inlined_call_operand.vmem [shape: f32[32,32], index: 5, kind: output, shape index: {}]
  %s6 = sld [smem:[#allocation0]]
  $region30: #{_lambda_.32} parent=0
    _
  %s8 = ssub.s32 1, %s6
  %s9 = scalar_select 0, %s8, %s6
  // Predicated region
  $region2: #{_lambda_.32} parent=0 // pred_check
    _
  $region3: #{_lambda_.32} parent=0 // pred_check_branch
    %11 = sbr.rel (0) target = $region5
  $region4: #{_lambda_.32} parent=0 // pred_region
    _
  $region5: #{_lambda_.32} parent=0 // pred_fallthru
    _
  // Predicated region
  $region6: #{_lambda_.32} parent=0 // pred_check
    _
  $region7: #{_lambda_.32} parent=0 // pred_check_branch
    %13 = sbr.rel (0) target = $region9
  $region8: #{_lambda_.32} parent=0 // pred_region
    _
  $region9: #{_lambda_.32} parent=0 // pred_fallthru
    _
  // Predicated region
  $region10: #{_lambda_.32} parent=0 // pred_check
    _
  $region11: #{_lambda_.32} parent=0 // pred_check_branch
    %15 = sbr.rel (0) target = $region13
  $region12: #{_lambda_.32} parent=0 // pred_region
    _
  $region13: #{_lambda_.32} parent=0 // pred_fallthru
    _
  // Predicated region
  $region14: #{_lambda_.32} parent=0 // pred_check
    _
  $region15: #{_lambda_.32} parent=0 // pred_check_branch
    %17 = sbr.rel (0) target = $region17
  $region16: #{_lambda_.32} parent=0 // pred_region
    _
  $region17: #{_lambda_.32} parent=0 // pred_fallthru
    _
  // Predicated region
  $region18: #{_lambda_.32} parent=0 // pred_check
    _
  $region19: #{_lambda_.32} parent=0 // pred_check_branch
    %19 = sbr.rel (0) target = $region21
  $region20: #{_lambda_.32} parent=0 // pred_region
    _
  $region21: #{_lambda_.32} parent=0 // pred_fallthru
    _
  %v20 = vld [vmem:[%s0] sm:$0xff]
  %v21 = vld [vmem:[%s0 + $0x8] sm:$0xff]
  %v22 = vld [vmem:[%s0 + $0x10] sm:$0xff]
  %v23 = vld [vmem:[%s0 + $0x18] sm:$0xff]
  %vm24 = vcmask 523264
  %v25 = vsel %vm24, %v20, 0.0
  %26 = vadd.xlane.f32.xlu0 %v25
  %v27 = vpop.xlane.xlu0 %26
  %v28 = vsel %vm24, %v21, 0.0
  %29 = vadd.xlane.f32.xlu0 %v28
  %v30 = vpop.xlane.xlu0 %29
  %v31 = vsel %vm24, %v22, 0.0
  %32 = vadd.xlane.f32.xlu0 %v31
  %v33 = vpop.xlane.xlu0 %32
  %v34 = vsel %vm24, %v23, 0.0
  %35 = vadd.xlane.f32.xlu0 %v34
  %v36 = vpop.xlane.xlu0 %35
  %v37 = vrcp.pop 64.0
  %v38 = vmul.f32 %v27, %v37
  %v39 = vmul.f32 %v30, %v37
  %v40 = vmul.f32 %v33, %v37
  %v41 = vmul.f32 %v36, %v37
  %v42 = vsub.f32 %v20, %v38
  %v43 = vsub.f32 %v21, %v39
  %v44 = vsub.f32 %v22, %v40
  %v45 = vsub.f32 %v23, %v41
  %v46 = vmul.f32 %v42, %v42
  %v47 = vmul.f32 %v43, %v43
  %v48 = vmul.f32 %v44, %v44
  %v49 = vmul.f32 %v45, %v45
  %v50 = vsel %vm24, %v46, 0.0
  %51 = vadd.xlane.f32.xlu0 %v50
  %v52 = vpop.xlane.xlu0 %51
  %v53 = vsel %vm24, %v47, 0.0
  %54 = vadd.xlane.f32.xlu0 %v53
  %v55 = vpop.xlane.xlu0 %54
  %v56 = vsel %vm24, %v48, 0.0
  %57 = vadd.xlane.f32.xlu0 %v56
  %v58 = vpop.xlane.xlu0 %57
  %v59 = vsel %vm24, %v49, 0.0
  %60 = vadd.xlane.f32.xlu0 %v59
  %v61 = vpop.xlane.xlu0 %60
  %v62 = vmul.f32 %v52, %v37
  %v63 = vmul.f32 %v55, %v37
  %v64 = vmul.f32 %v58, %v37
  %v65 = vmul.f32 %v61, %v37
  %v66 = vadd.f32 %v62, 1e-05
  %v67 = vadd.f32 %v63, 1e-05
  %v68 = vadd.f32 %v64, 1e-05
  %v69 = vadd.f32 %v65, 1e-05
  %v70 = vrsqrt.pop %v66
  %v71 = vrsqrt.pop %v67
  %v72 = vrsqrt.pop %v68
  %v73 = vrsqrt.pop %v69
  %v74 = vmul.f32 %v42, %v70
  %v75 = vmul.f32 %v43, %v71
  %v76 = vmul.f32 %v44, %v72
  %v77 = vmul.f32 %v45, %v73
  %v78 = vld [vmem:[%s1] sm:$0x1]
  %v80 = vlaneseq
  %v81 = vshrl.u32 %v80, 7
  %v82 = vsub.s32 0, %v81
  %v83 = vrot.slane %v78, %v82
  %v85 = vmul.f32 %v74, %v83
  %v86 = vmul.f32 %v75, %v83
  %v87 = vmul.f32 %v76, %v83
  %v88 = vmul.f32 %v77, %v83
  %v89 = vld [vmem:[%s2] sm:$0x1]
  %v91 = vlaneseq
  %v92 = vshrl.u32 %v91, 7
  %v93 = vsub.s32 0, %v92
  %v94 = vrot.slane %v89, %v93
  %v96 = vadd.f32 %v85, %v94
  %v97 = vadd.f32 %v86, %v94
  %v98 = vadd.f32 %v87, %v94
  %v99 = vadd.f32 %v88, %v94
  %v100 = vld [vmem:[%s3] sm:$0xff]
  %v101 = vld [vmem:[%s3 + $0x8] sm:$0xff]
  %v102 = vld [vmem:[%s3 + $0x10] sm:$0xff]
  %v103 = vld [vmem:[%s3 + $0x18] sm:$0xff]
  %v104 = vld [vmem:[%s3 + $0x20] sm:$0xff]
  %v105 = vld [vmem:[%s3 + $0x28] sm:$0xff]
  %v106 = vld [vmem:[%s3 + $0x30] sm:$0xff]
  %v107 = vld [vmem:[%s3 + $0x38] sm:$0xff]
  %v108 = vld [vmem:[%s4] sm:$0x1]
  %v110 = vlaneseq
  %v111 = vshrl.u32 %v110, 7
  %v112 = vsub.s32 0, %v111
  %v113 = vrot.slane %v108, %v112
  %v116 = vsel %vm24, %v96, 0
  %v119 = vsel %vm24, %v97, 0
  %v122 = vsel %vm24, %v98, 0
  %v125 = vsel %vm24, %v99, 0
  %127 = vmatprep.subr.mxu0 0.0
  %128 = vmatpush1.msra.mxu0 %v100
  %129 = vmatprep.subr.mxu0 0.0
  %130 = vmatpush1.msra.mxu0 %v101
  %131 = vmatprep.subr.mxu0 0.0
  %132 = vmatpush1.msra.mxu0 %v102
  %133 = vmatprep.subr.mxu0 0.0
  %134 = vmatpush1.msra.mxu0 %v103
  %135 = vmatprep.subr.mxu0 0.0
  %136 = vmatpush1.msra.mxu0 %v104
  %137 = vmatprep.subr.mxu0 0.0
  %138 = vmatpush1.msra.mxu0 %v105
  %139 = vmatprep.subr.mxu0 0.0
  %140 = vmatpush1.msra.mxu0 %v106
  %141 = vmatprep.subr.mxu0 0.0
  %142 = vmatpush1.msra.mxu0 %v107
  %143 = vmatprep.subr.mxu0 0.0
  %144 = vmatpush1.msra.mxu0 0.0
  %145 = vmatprep.subr.mxu0 0.0
  %146 = vmatpush1.msra.mxu0 0.0
  %147 = vmatprep.subr.mxu0 0.0
  %148 = vmatpush1.msra.mxu0 0.0
  %149 = vmatprep.subr.mxu0 0.0
  %150 = vmatpush1.msra.mxu0 0.0
  %151 = vmatprep.subr.mxu0 0.0
  %152 = vmatpush1.msra.mxu0 0.0
  %153 = vmatprep.subr.mxu0 0.0
  %154 = vmatpush1.msra.mxu0 0.0
  %155 = vmatprep.subr.mxu0 0.0
  %156 = vmatpush1.msra.mxu0 0.0
  %157 = vmatprep.subr.mxu0 0.0
  %158 = vmatpush1.msra.mxu0 0.0
  %159 = vmatprep.subr.mxu0 0.0
  %160 = vmatpush1.msra.mxu0 0.0
  %161 = vmatprep.subr.mxu0 0.0
  %162 = vmatpush1.msra.mxu0 0.0
  %163 = vmatprep.subr.mxu0 0.0
  %164 = vmatpush1.msra.mxu0 0.0
  %165 = vmatprep.subr.mxu0 0.0
  %166 = vmatpush1.msra.mxu0 0.0
  %167 = vmatprep.subr.mxu0 0.0
  %168 = vmatpush1.msra.mxu0 0.0
  %169 = vmatprep.subr.mxu0 0.0
  %170 = vmatpush1.msra.mxu0 0.0
  %171 = vmatprep.subr.mxu0 0.0
  %172 = vmatpush1.msra.mxu0 0.0
  %173 = vmatprep.subr.mxu0 0.0
  %174 = vmatpush1.msra.mxu0 0.0
  %175 = vmatprep.subr.mxu0 0.0
  %176 = vmatpush1.msra.mxu0 0.0
  %177 = vmatprep.subr.mxu0 0.0
  %178 = vmatpush1.msra.mxu0 0.0
  %179 = vmatprep.subr.mxu0 0.0
  %180 = vmatpush1.msra.mxu0 0.0
  %181 = vmatprep.subr.mxu0 0.0
  %182 = vmatpush1.msra.mxu0 0.0
  %183 = vmatprep.subr.mxu0 0.0
  %184 = vmatpush1.msra.mxu0 0.0
  %185 = vmatprep.subr.mxu0 0.0
  %186 = vmatpush1.msra.mxu0 0.0
  %187 = vmatprep.subr.mxu0 0.0
  %188 = vmatpush1.msra.mxu0 0.0
  %189 = vmatprep.subr.mxu0 0.0
  %190 = vmatpush1.msra.mxu0 0.0
  %191 = vmatprep.mubr.f32.mxu0 0.0
  %192 = vmatmul.mubr.f32.gmra.mrb[0].mxu0 %v116
  %v193 = vpop.f32.mrb[0].mxu0
  %v194 = vadd.f32 %v113, %v193
  %v195 = vpop.f32.mrb[0].mxu0
  %196 = vmatprep.mubr.f32.mxu0 0.0
  %197 = vmatmul.mubr.f32.gmra.mrb[0].mxu0 %v119
  %v198 = vpop.f32.mrb[0].mxu0
  %v199 = vadd.f32 %v113, %v198
  %v200 = vpop.f32.mrb[0].mxu0
  %201 = vmatprep.mubr.f32.mxu0 0.0
  %202 = vmatmul.mubr.f32.gmra.mrb[0].mxu0 %v122
  %v203 = vpop.f32.mrb[0].mxu0
  %v204 = vadd.f32 %v113, %v203
  %v205 = vpop.f32.mrb[0].mxu0
  %206 = vmatprep.mubr.f32.mxu0 0.0
  %207 = vmatmul.mubr.f32.gmra.mrb[0].mxu0 %v125
  %v208 = vpop.f32.mrb[0].mxu0
  %v209 = vadd.f32 %v113, %v208
  %v210 = vpop.f32.mrb[0].mxu0
  %211 = vdwg.mxu0
  %vm212 = vcmask 261120
  %213 = vst.msk [vmem:[%s5] sm:$0xff] %vm212, %v194
  %214 = vst.msk [vmem:[%s5 + $0x8] sm:$0xff] %vm212, %v199
  %215 = vst.msk [vmem:[%s5 + $0x10] sm:$0xff] %vm212, %v204
  %216 = vst.msk [vmem:[%s5 + $0x18] sm:$0xff] %vm212, %v209
  // Predicated region
  $region22: #{_lambda_.32} parent=0 // pred_check
    _
  $region23: #{_lambda_.32} parent=0 // pred_check_branch
    %218 = sbr.rel (0) target = $region25
  $region24: #{_lambda_.32} parent=0 // pred_region
    _
  $region25: #{_lambda_.32} parent=0 // pred_fallthru
    _
  // Predicated region
  $region26: #{_lambda_.32} parent=0 // pred_check
    _
  $region27: #{_lambda_.32} parent=0 // pred_check_branch
    %220 = sbr.rel (0) target = $region29
  $region28: #{_lambda_.32} parent=0 // pred_region
    _
  $region29: #{_lambda_.32} parent=0 // pred_fallthru
    _

// kernel: _lambda_.35
$region0: #{_lambda_.35}
  #allocation0 [shape = 'u32[]', space=smem, size = 0x4, offset = 0x4, fixed_abs, tag = 'smem constant byte address 0x4 - core index']
  #allocation1 [shape = 'u32[144,128]{1,0:T(1,128)}', space=vmem, size = 0x12000, scoped, tag = 'internal scratch']
  %s0 = inlined_call_operand.vmem [shape: f32[32,32], index: 0, kind: input, shape index: {}]
  %s1 = inlined_call_operand.vmem [shape: f32[32,32], index: 1, kind: input, shape index: {}]
  %s2 = inlined_call_operand.vmem [shape: f32[1,32], index: 2, kind: input, shape index: {}]
  %s3 = inlined_call_operand.vmem [shape: f32[32,32], index: 3, kind: input, shape index: {}]
  %s4 = inlined_call_operand.vmem [shape: f32[32,32], index: 4, kind: output, shape index: {}]
  %s5 = sld [smem:[#allocation0]]
  $region26: #{_lambda_.35} parent=0
    _
  %s7 = ssub.s32 1, %s5
  %s8 = scalar_select 0, %s7, %s5
  // Predicated region
  $region2: #{_lambda_.35} parent=0 // pred_check
    _
  $region3: #{_lambda_.35} parent=0 // pred_check_branch
    %10 = sbr.rel (0) target = $region5
  $region4: #{_lambda_.35} parent=0 // pred_region
    _
  $region5: #{_lambda_.35} parent=0 // pred_fallthru
    _
  // Predicated region
  $region6: #{_lambda_.35} parent=0 // pred_check
    _
  $region7: #{_lambda_.35} parent=0 // pred_check_branch
    %12 = sbr.rel (0) target = $region9
  $region8: #{_lambda_.35} parent=0 // pred_region
    _
  $region9: #{_lambda_.35} parent=0 // pred_fallthru
    _
  // Predicated region
  $region10: #{_lambda_.35} parent=0 // pred_check
    _
  $region11: #{_lambda_.35} parent=0 // pred_check_branch
    %14 = sbr.rel (0) target = $region13
  $region12: #{_lambda_.35} parent=0 // pred_region
    _
  $region13: #{_lambda_.35} parent=0 // pred_fallthru
    _
  // Predicated region
  $region14: #{_lambda_.35} parent=0 // pred_check
    _
  $region15: #{_lambda_.35} parent=0 // pred_check_branch
    %16 = sbr.rel (0) target = $region17
  $region16: #{_lambda_.35} parent=0 // pred_region
    _
  $region17: #{_lambda_.35} parent=0 // pred_fallthru
    _
  %v17 = vld [vmem:[%s0] sm:$0xff]
  %v18 = vld [vmem:[%s0 + $0x8] sm:$0xff]
  %v19 = vld [vmem:[%s0 + $0x10] sm:$0xff]
  %v20 = vld [vmem:[%s0 + $0x18] sm:$0xff]
  %v21 = vld [vmem:[%s1] sm:$0xff]
  %v22 = vld [vmem:[%s1 + $0x8] sm:$0xff]
  %v23 = vld [vmem:[%s1 + $0x10] sm:$0xff]
  %v24 = vld [vmem:[%s1 + $0x18] sm:$0xff]
  %v25 = vld [vmem:[%s2] sm:$0x1]
  %v27 = vlaneseq
  %v28 = vshrl.u32 %v27, 7
  %v29 = vsub.s32 0, %v28
  %v30 = vrot.slane %v25, %v29
  %vm32 = vcmask 261120
  %v34 = vsel %vm32, %v17, 0
  %v37 = vsel %vm32, %v18, 0
  %v40 = vsel %vm32, %v19, 0
  %v43 = vsel %vm32, %v20, 0
  %45 = vmatprep.subr.mxu0 0.0
  %46 = vmatpush1.msra.mxu0 %v21
  %47 = vmatprep.subr.mxu0 0.0
  %48 = vmatpush1.msra.mxu0 %v22
  %49 = vmatprep.subr.mxu0 0.0
  %50 = vmatpush1.msra.mxu0 %v23
  %51 = vmatprep.subr.mxu0 0.0
  %52 = vmatpush1.msra.mxu0 %v24
  %53 = vmatprep.subr.mxu0 0.0
  %54 = vmatpush1.msra.mxu0 0.0
  %55 = vmatprep.subr.mxu0 0.0
  %56 = vmatpush1.msra.mxu0 0.0
  %57 = vmatprep.subr.mxu0 0.0
  %58 = vmatpush1.msra.mxu0 0.0
  %59 = vmatprep.subr.mxu0 0.0
  %60 = vmatpush1.msra.mxu0 0.0
  %61 = vmatprep.subr.mxu0 0.0
  %62 = vmatpush1.msra.mxu0 0.0
  %63 = vmatprep.subr.mxu0 0.0
  %64 = vmatpush1.msra.mxu0 0.0
  %65 = vmatprep.subr.mxu0 0.0
  %66 = vmatpush1.msra.mxu0 0.0
  %67 = vmatprep.subr.mxu0 0.0
  %68 = vmatpush1.msra.mxu0 0.0
  %69 = vmatprep.subr.mxu0 0.0
  %70 = vmatpush1.msra.mxu0 0.0
  %71 = vmatprep.subr.mxu0 0.0
  %72 = vmatpush1.msra.mxu0 0.0
  %73 = vmatprep.subr.mxu0 0.0
  %74 = vmatpush1.msra.mxu0 0.0
  %75 = vmatprep.subr.mxu0 0.0
  %76 = vmatpush1.msra.mxu0 0.0
  %77 = vmatprep.subr.mxu0 0.0
  %78 = vmatpush1.msra.mxu0 0.0
  %79 = vmatprep.subr.mxu0 0.0
  %80 = vmatpush1.msra.mxu0 0.0
  %81 = vmatprep.subr.mxu0 0.0
  %82 = vmatpush1.msra.mxu0 0.0
  %83 = vmatprep.subr.mxu0 0.0
  %84 = vmatpush1.msra.mxu0 0.0
  %85 = vmatprep.subr.mxu0 0.0
  %86 = vmatpush1.msra.mxu0 0.0
  %87 = vmatprep.subr.mxu0 0.0
  %88 = vmatpush1.msra.mxu0 0.0
  %89 = vmatprep.subr.mxu0 0.0
  %90 = vmatpush1.msra.mxu0 0.0
  %91 = vmatprep.subr.mxu0 0.0
  %92 = vmatpush1.msra.mxu0 0.0
  %93 = vmatprep.subr.mxu0 0.0
  %94 = vmatpush1.msra.mxu0 0.0
  %95 = vmatprep.subr.mxu0 0.0
  %96 = vmatpush1.msra.mxu0 0.0
  %97 = vmatprep.subr.mxu0 0.0
  %98 = vmatpush1.msra.mxu0 0.0
  %99 = vmatprep.subr.mxu0 0.0
  %100 = vmatpush1.msra.mxu0 0.0
  %101 = vmatprep.subr.mxu0 0.0
  %102 = vmatpush1.msra.mxu0 0.0
  %103 = vmatprep.subr.mxu0 0.0
  %104 = vmatpush1.msra.mxu0 0.0
  %105 = vmatprep.subr.mxu0 0.0
  %106 = vmatpush1.msra.mxu0 0.0
  %107 = vmatprep.subr.mxu0 0.0
  %108 = vmatpush1.msra.mxu0 0.0
  %109 = vmatprep.mubr.f32.mxu0 0.0
  %110 = vmatmul.mubr.f32.gmra.mrb[0].mxu0 %v34
  %v111 = vpop.f32.mrb[0].mxu0
  %v112 = vadd.f32 %v30, %v111
  %v113 = vpop.f32.mrb[0].mxu0
  %114 = vmatprep.mubr.f32.mxu0 0.0
  %115 = vmatmul.mubr.f32.gmra.mrb[0].mxu0 %v37
  %v116 = vpop.f32.mrb[0].mxu0
  %v117 = vadd.f32 %v30, %v116
  %v118 = vpop.f32.mrb[0].mxu0
  %119 = vmatprep.mubr.f32.mxu0 0.0
  %120 = vmatmul.mubr.f32.gmra.mrb[0].mxu0 %v40
  %v121 = vpop.f32.mrb[0].mxu0
  %v122 = vadd.f32 %v30, %v121
  %v123 = vpop.f32.mrb[0].mxu0
  %124 = vmatprep.mubr.f32.mxu0 0.0
  %125 = vmatmul.mubr.f32.gmra.mrb[0].mxu0 %v43
  %v126 = vpop.f32.mrb[0].mxu0
  %v127 = vadd.f32 %v30, %v126
  %v128 = vpop.f32.mrb[0].mxu0
  %129 = vdwg.mxu0
  %v130 = vld [vmem:[%s3] sm:$0xff]
  %v131 = vld [vmem:[%s3 + $0x8] sm:$0xff]
  %v132 = vld [vmem:[%s3 + $0x10] sm:$0xff]
  %v133 = vld [vmem:[%s3 + $0x18] sm:$0xff]
  %v134 = vadd.f32 %v112, %v130
  %v135 = vadd.f32 %v117, %v131
  %v136 = vadd.f32 %v122, %v132
  %v137 = vadd.f32 %v127, %v133
  %138 = vst.msk [vmem:[%s4] sm:$0xff] %vm32, %v134
  %139 = vst.msk [vmem:[%s4 + $0x8] sm:$0xff] %vm32, %v135
  %140 = vst.msk [vmem:[%s4 + $0x10] sm:$0xff] %vm32, %v136
  %141 = vst.msk [vmem:[%s4 + $0x18] sm:$0xff] %vm32, %v137
  // Predicated region
  $region18: #{_lambda_.35} parent=0 // pred_check
    _
  $region19: #{_lambda_.35} parent=0 // pred_check_branch
    %143 = sbr.rel (0) target = $region21
  $region20: #{_lambda_.35} parent=0 // pred_region
    _
  $region21: #{_lambda_.35} parent=0 // pred_fallthru
    _
  // Predicated region
  $region22: #{_lambda_.35} parent=0 // pred_check
    _
  $region23: #{_lambda_.35} parent=0 // pred_check_branch
    %145 = sbr.rel (0) target = $region25
  $region24: #{_lambda_.35} parent=0 // pred_region
    _
  $region25: #{_lambda_.35} parent=0 // pred_fallthru
    _

// kernel: _lambda_.37
$region0: #{_lambda_.37}
  #allocation0 [shape = 'u32[]', space=smem, size = 0x4, offset = 0x4, fixed_abs, tag = 'smem constant byte address 0x4 - core index']
  #allocation1 [shape = 'u32[144,128]{1,0:T(1,128)}', space=vmem, size = 0x12000, scoped, tag = 'internal scratch']
  %s0 = inlined_call_operand.vmem [shape: f32[32,64], index: 0, kind: input, shape index: {}]
  %s1 = inlined_call_operand.vmem [shape: f32[64,32], index: 1, kind: input, shape index: {}]
  %s2 = inlined_call_operand.vmem [shape: f32[1,32], index: 2, kind: input, shape index: {}]
  %s3 = inlined_call_operand.vmem [shape: f32[32,32], index: 3, kind: input, shape index: {}]
  %s4 = inlined_call_operand.vmem [shape: f32[32,32], index: 4, kind: output, shape index: {}]
  %s5 = sld [smem:[#allocation0]]
  $region26: #{_lambda_.37} parent=0
    _
  %s7 = ssub.s32 1, %s5
  %s8 = scalar_select 0, %s7, %s5
  // Predicated region
  $region2: #{_lambda_.37} parent=0 // pred_check
    _
  $region3: #{_lambda_.37} parent=0 // pred_check_branch
    %10 = sbr.rel (0) target = $region5
  $region4: #{_lambda_.37} parent=0 // pred_region
    _
  $region5: #{_lambda_.37} parent=0 // pred_fallthru
    _
  // Predicated region
  $region6: #{_lambda_.37} parent=0 // pred_check
    _
  $region7: #{_lambda_.37} parent=0 // pred_check_branch
    %12 = sbr.rel (0) target = $region9
  $region8: #{_lambda_.37} parent=0 // pred_region
    _
  $region9: #{_lambda_.37} parent=0 // pred_fallthru
    _
  // Predicated region
  $region10: #{_lambda_.37} parent=0 // pred_check
    _
  $region11: #{_lambda_.37} parent=0 // pred_check_branch
    %14 = sbr.rel (0) target = $region13
  $region12: #{_lambda_.37} parent=0 // pred_region
    _
  $region13: #{_lambda_.37} parent=0 // pred_fallthru
    _
  // Predicated region
  $region14: #{_lambda_.37} parent=0 // pred_check
    _
  $region15: #{_lambda_.37} parent=0 // pred_check_branch
    %16 = sbr.rel (0) target = $region17
  $region16: #{_lambda_.37} parent=0 // pred_region
    _
  $region17: #{_lambda_.37} parent=0 // pred_fallthru
    _
  %v17 = vld [vmem:[%s0] sm:$0xff]
  %v18 = vld [vmem:[%s0 + $0x8] sm:$0xff]
  %v19 = vld [vmem:[%s0 + $0x10] sm:$0xff]
  %v20 = vld [vmem:[%s0 + $0x18] sm:$0xff]
  %v21 = vld [vmem:[%s1] sm:$0xff]
  %v22 = vld [vmem:[%s1 + $0x8] sm:$0xff]
  %v23 = vld [vmem:[%s1 + $0x10] sm:$0xff]
  %v24 = vld [vmem:[%s1 + $0x18] sm:$0xff]
  %v25 = vld [vmem:[%s1 + $0x20] sm:$0xff]
  %v26 = vld [vmem:[%s1 + $0x28] sm:$0xff]
  %v27 = vld [vmem:[%s1 + $0x30] sm:$0xff]
  %v28 = vld [vmem:[%s1 + $0x38] sm:$0xff]
  %v29 = vld [vmem:[%s2] sm:$0x1]
  %v31 = vlaneseq
  %v32 = vshrl.u32 %v31, 7
  %v33 = vsub.s32 0, %v32
  %v34 = vrot.slane %v29, %v33
  %vm36 = vcmask 523264
  %v38 = vsel %vm36, %v17, 0
  %v41 = vsel %vm36, %v18, 0
  %v44 = vsel %vm36, %v19, 0
  %v47 = vsel %vm36, %v20, 0
  %49 = vmatprep.subr.mxu0 0.0
  %50 = vmatpush1.msra.mxu0 %v21
  %51 = vmatprep.subr.mxu0 0.0
  %52 = vmatpush1.msra.mxu0 %v22
  %53 = vmatprep.subr.mxu0 0.0
  %54 = vmatpush1.msra.mxu0 %v23
  %55 = vmatprep.subr.mxu0 0.0
  %56 = vmatpush1.msra.mxu0 %v24
  %57 = vmatprep.subr.mxu0 0.0
  %58 = vmatpush1.msra.mxu0 %v25
  %59 = vmatprep.subr.mxu0 0.0
  %60 = vmatpush1.msra.mxu0 %v26
  %61 = vmatprep.subr.mxu0 0.0
  %62 = vmatpush1.msra.mxu0 %v27
  %63 = vmatprep.subr.mxu0 0.0
  %64 = vmatpush1.msra.mxu0 %v28
  %65 = vmatprep.subr.mxu0 0.0
  %66 = vmatpush1.msra.mxu0 0.0
  %67 = vmatprep.subr.mxu0 0.0
  %68 = vmatpush1.msra.mxu0 0.0
  %69 = vmatprep.subr.mxu0 0.0
  %70 = vmatpush1.msra.mxu0 0.0
  %71 = vmatprep.subr.mxu0 0.0
  %72 = vmatpush1.msra.mxu0 0.0
  %73 = vmatprep.subr.mxu0 0.0
  %74 = vmatpush1.msra.mxu0 0.0
  %75 = vmatprep.subr.mxu0 0.0
  %76 = vmatpush1.msra.mxu0 0.0
  %77 = vmatprep.subr.mxu0 0.0
  %78 = vmatpush1.msra.mxu0 0.0
  %79 = vmatprep.subr.mxu0 0.0
  %80 = vmatpush1.msra.mxu0 0.0
  %81 = vmatprep.subr.mxu0 0.0
  %82 = vmatpush1.msra.mxu0 0.0
  %83 = vmatprep.subr.mxu0 0.0
  %84 = vmatpush1.msra.mxu0 0.0
  %85 = vmatprep.subr.mxu0 0.0
  %86 = vmatpush1.msra.mxu0 0.0
  %87 = vmatprep.subr.mxu0 0.0
  %88 = vmatpush1.msra.mxu0 0.0
  %89 = vmatprep.subr.mxu0 0.0
  %90 = vmatpush1.msra.mxu0 0.0
  %91 = vmatprep.subr.mxu0 0.0
  %92 = vmatpush1.msra.mxu0 0.0
  %93 = vmatprep.subr.mxu0 0.0
  %94 = vmatpush1.msra.mxu0 0.0
  %95 = vmatprep.subr.mxu0 0.0
  %96 = vmatpush1.msra.mxu0 0.0
  %97 = vmatprep.subr.mxu0 0.0
  %98 = vmatpush1.msra.mxu0 0.0
  %99 = vmatprep.subr.mxu0 0.0
  %100 = vmatpush1.msra.mxu0 0.0
  %101 = vmatprep.subr.mxu0 0.0
  %102 = vmatpush1.msra.mxu0 0.0
  %103 = vmatprep.subr.mxu0 0.0
  %104 = vmatpush1.msra.mxu0 0.0
  %105 = vmatprep.subr.mxu0 0.0
  %106 = vmatpush1.msra.mxu0 0.0
  %107 = vmatprep.subr.mxu0 0.0
  %108 = vmatpush1.msra.mxu0 0.0
  %109 = vmatprep.subr.mxu0 0.0
  %110 = vmatpush1.msra.mxu0 0.0
  %111 = vmatprep.subr.mxu0 0.0
  %112 = vmatpush1.msra.mxu0 0.0
  %113 = vmatprep.mubr.f32.mxu0 0.0
  %114 = vmatmul.mubr.f32.gmra.mrb[0].mxu0 %v38
  %v115 = vpop.f32.mrb[0].mxu0
  %v116 = vadd.f32 %v34, %v115
  %v117 = vpop.f32.mrb[0].mxu0
  %118 = vmatprep.mubr.f32.mxu0 0.0
  %119 = vmatmul.mubr.f32.gmra.mrb[0].mxu0 %v41
  %v120 = vpop.f32.mrb[0].mxu0
  %v121 = vadd.f32 %v34, %v120
  %v122 = vpop.f32.mrb[0].mxu0
  %123 = vmatprep.mubr.f32.mxu0 0.0
  %124 = vmatmul.mubr.f32.gmra.mrb[0].mxu0 %v44
  %v125 = vpop.f32.mrb[0].mxu0
  %v126 = vadd.f32 %v34, %v125
  %v127 = vpop.f32.mrb[0].mxu0
  %128 = vmatprep.mubr.f32.mxu0 0.0
  %129 = vmatmul.mubr.f32.gmra.mrb[0].mxu0 %v47
  %v130 = vpop.f32.mrb[0].mxu0
  %v131 = vadd.f32 %v34, %v130
  %v132 = vpop.f32.mrb[0].mxu0
  %133 = vdwg.mxu0
  %v134 = vld [vmem:[%s3] sm:$0xff]
  %v135 = vld [vmem:[%s3 + $0x8] sm:$0xff]
  %v136 = vld [vmem:[%s3 + $0x10] sm:$0xff]
  %v137 = vld [vmem:[%s3 + $0x18] sm:$0xff]
  %v138 = vadd.f32 %v116, %v134
  %v139 = vadd.f32 %v121, %v135
  %v140 = vadd.f32 %v126, %v136
  %v141 = vadd.f32 %v131, %v137
  %vm142 = vcmask 261120
  %143 = vst.msk [vmem:[%s4] sm:$0xff] %vm142, %v138
  %144 = vst.msk [vmem:[%s4 + $0x8] sm:$0xff] %vm142, %v139
  %145 = vst.msk [vmem:[%s4 + $0x10] sm:$0xff] %vm142, %v140
  %146 = vst.msk [vmem:[%s4 + $0x18] sm:$0xff] %vm142, %v141
  // Predicated region
  $region18: #{_lambda_.37} parent=0 // pred_check
    _
  $region19: #{_lambda_.37} parent=0 // pred_check_branch
    %148 = sbr.rel (0) target = $region21
  $region20: #{_lambda_.37} parent=0 // pred_region
    _
  $region21: #{_lambda_.37} parent=0 // pred_fallthru
    _
  // Predicated region
  $region22: #{_lambda_.37} parent=0 // pred_check
    _
  $region23: #{_lambda_.37} parent=0 // pred_check_branch
    %150 = sbr.rel (0) target = $region25
  $region24: #{_lambda_.37} parent=0 // pred_region
    _
  $region25: #{_lambda_.37} parent=0 // pred_fallthru
    _

// kernel: _lambda_.36
$region0: #{_lambda_.36}
  #allocation0 [shape = 'u32[]', space=smem, size = 0x4, offset = 0x4, fixed_abs, tag = 'smem constant byte address 0x4 - core index']
  #allocation1 [shape = 'u32[144,128]{1,0:T(1,128)}', space=vmem, size = 0x12000, scoped, tag = 'internal scratch']
  %s0 = inlined_call_operand.vmem [shape: f32[32,32], index: 0, kind: input, shape index: {}]
  %s1 = inlined_call_operand.vmem [shape: f32[1,32], index: 1, kind: input, shape index: {}]
  %s2 = inlined_call_operand.vmem [shape: f32[1,32], index: 2, kind: input, shape index: {}]
  %s3 = inlined_call_operand.vmem [shape: f32[32,64], index: 3, kind: input, shape index: {}]
  %s4 = inlined_call_operand.vmem [shape: f32[1,64], index: 4, kind: input, shape index: {}]
  %s5 = inlined_call_operand.vmem [shape: f32[32,64], index: 5, kind: output, shape index: {}]
  %s6 = sld [smem:[#allocation0]]
  $region30: #{_lambda_.36} parent=0
    _
  %s8 = ssub.s32 1, %s6
  %s9 = scalar_select 0, %s8, %s6
  // Predicated region
  $region2: #{_lambda_.36} parent=0 // pred_check
    _
  $region3: #{_lambda_.36} parent=0 // pred_check_branch
    %11 = sbr.rel (0) target = $region5
  $region4: #{_lambda_.36} parent=0 // pred_region
    _
  $region5: #{_lambda_.36} parent=0 // pred_fallthru
    _
  // Predicated region
  $region6: #{_lambda_.36} parent=0 // pred_check
    _
  $region7: #{_lambda_.36} parent=0 // pred_check_branch
    %13 = sbr.rel (0) target = $region9
  $region8: #{_lambda_.36} parent=0 // pred_region
    _
  $region9: #{_lambda_.36} parent=0 // pred_fallthru
    _
  // Predicated region
  $region10: #{_lambda_.36} parent=0 // pred_check
    _
  $region11: #{_lambda_.36} parent=0 // pred_check_branch
    %15 = sbr.rel (0) target = $region13
  $region12: #{_lambda_.36} parent=0 // pred_region
    _
  $region13: #{_lambda_.36} parent=0 // pred_fallthru
    _
  // Predicated region
  $region14: #{_lambda_.36} parent=0 // pred_check
    _
  $region15: #{_lambda_.36} parent=0 // pred_check_branch
    %17 = sbr.rel (0) target = $region17
  $region16: #{_lambda_.36} parent=0 // pred_region
    _
  $region17: #{_lambda_.36} parent=0 // pred_fallthru
    _
  // Predicated region
  $region18: #{_lambda_.36} parent=0 // pred_check
    _
  $region19: #{_lambda_.36} parent=0 // pred_check_branch
    %19 = sbr.rel (0) target = $region21
  $region20: #{_lambda_.36} parent=0 // pred_region
    _
  $region21: #{_lambda_.36} parent=0 // pred_fallthru
    _
  %v20 = vld [vmem:[%s0] sm:$0xff]
  %v21 = vld [vmem:[%s0 + $0x8] sm:$0xff]
  %v22 = vld [vmem:[%s0 + $0x10] sm:$0xff]
  %v23 = vld [vmem:[%s0 + $0x18] sm:$0xff]
  %vm24 = vcmask 261120
  %v25 = vsel %vm24, %v20, 0.0
  %26 = vadd.xlane.f32.xlu0 %v25
  %v27 = vpop.xlane.xlu0 %26
  %v28 = vsel %vm24, %v21, 0.0
  %29 = vadd.xlane.f32.xlu0 %v28
  %v30 = vpop.xlane.xlu0 %29
  %v31 = vsel %vm24, %v22, 0.0
  %32 = vadd.xlane.f32.xlu0 %v31
  %v33 = vpop.xlane.xlu0 %32
  %v34 = vsel %vm24, %v23, 0.0
  %35 = vadd.xlane.f32.xlu0 %v34
  %v36 = vpop.xlane.xlu0 %35
  %v37 = vrcp.pop 32.0
  %v38 = vmul.f32 %v27, %v37
  %v39 = vmul.f32 %v30, %v37
  %v40 = vmul.f32 %v33, %v37
  %v41 = vmul.f32 %v36, %v37
  %v42 = vsub.f32 %v20, %v38
  %v43 = vsub.f32 %v21, %v39
  %v44 = vsub.f32 %v22, %v40
  %v45 = vsub.f32 %v23, %v41
  %v46 = vmul.f32 %v42, %v42
  %v47 = vmul.f32 %v43, %v43
  %v48 = vmul.f32 %v44, %v44
  %v49 = vmul.f32 %v45, %v45
  %v50 = vsel %vm24, %v46, 0.0
  %51 = vadd.xlane.f32.xlu0 %v50
  %v52 = vpop.xlane.xlu0 %51
  %v53 = vsel %vm24, %v47, 0.0
  %54 = vadd.xlane.f32.xlu0 %v53
  %v55 = vpop.xlane.xlu0 %54
  %v56 = vsel %vm24, %v48, 0.0
  %57 = vadd.xlane.f32.xlu0 %v56
  %v58 = vpop.xlane.xlu0 %57
  %v59 = vsel %vm24, %v49, 0.0
  %60 = vadd.xlane.f32.xlu0 %v59
  %v61 = vpop.xlane.xlu0 %60
  %v62 = vmul.f32 %v52, %v37
  %v63 = vmul.f32 %v55, %v37
  %v64 = vmul.f32 %v58, %v37
  %v65 = vmul.f32 %v61, %v37
  %v66 = vadd.f32 %v62, 1e-05
  %v67 = vadd.f32 %v63, 1e-05
  %v68 = vadd.f32 %v64, 1e-05
  %v69 = vadd.f32 %v65, 1e-05
  %v70 = vrsqrt.pop %v66
  %v71 = vrsqrt.pop %v67
  %v72 = vrsqrt.pop %v68
  %v73 = vrsqrt.pop %v69
  %v74 = vmul.f32 %v42, %v70
  %v75 = vmul.f32 %v43, %v71
  %v76 = vmul.f32 %v44, %v72
  %v77 = vmul.f32 %v45, %v73
  %v78 = vld [vmem:[%s1] sm:$0x1]
  %v80 = vlaneseq
  %v81 = vshrl.u32 %v80, 7
  %v82 = vsub.s32 0, %v81
  %v83 = vrot.slane %v78, %v82
  %v85 = vmul.f32 %v74, %v83
  %v86 = vmul.f32 %v75, %v83
  %v87 = vmul.f32 %v76, %v83
  %v88 = vmul.f32 %v77, %v83
  %v89 = vld [vmem:[%s2] sm:$0x1]
  %v91 = vlaneseq
  %v92 = vshrl.u32 %v91, 7
  %v93 = vsub.s32 0, %v92
  %v94 = vrot.slane %v89, %v93
  %v96 = vadd.f32 %v85, %v94
  %v97 = vadd.f32 %v86, %v94
  %v98 = vadd.f32 %v87, %v94
  %v99 = vadd.f32 %v88, %v94
  %v100 = vld [vmem:[%s3] sm:$0xff]
  %v101 = vld [vmem:[%s3 + $0x8] sm:$0xff]
  %v102 = vld [vmem:[%s3 + $0x10] sm:$0xff]
  %v103 = vld [vmem:[%s3 + $0x18] sm:$0xff]
  %v104 = vld [vmem:[%s4] sm:$0x1]
  %v106 = vlaneseq
  %v107 = vshrl.u32 %v106, 7
  %v108 = vsub.s32 0, %v107
  %v109 = vrot.slane %v104, %v108
  %v112 = vsel %vm24, %v96, 0
  %v115 = vsel %vm24, %v97, 0
  %v118 = vsel %vm24, %v98, 0
  %v121 = vsel %vm24, %v99, 0
  %123 = vmatprep.subr.mxu0 0.0
  %124 = vmatpush1.msra.mxu0 %v100
  %125 = vmatprep.subr.mxu0 0.0
  %126 = vmatpush1.msra.mxu0 %v101
  %127 = vmatprep.subr.mxu0 0.0
  %128 = vmatpush1.msra.mxu0 %v102
  %129 = vmatprep.subr.mxu0 0.0
  %130 = vmatpush1.msra.mxu0 %v103
  %131 = vmatprep.subr.mxu0 0.0
  %132 = vmatpush1.msra.mxu0 0.0
  %133 = vmatprep.subr.mxu0 0.0
  %134 = vmatpush1.msra.mxu0 0.0
  %135 = vmatprep.subr.mxu0 0.0
  %136 = vmatpush1.msra.mxu0 0.0
  %137 = vmatprep.subr.mxu0 0.0
  %138 = vmatpush1.msra.mxu0 0.0
  %139 = vmatprep.subr.mxu0 0.0
  %140 = vmatpush1.msra.mxu0 0.0
  %141 = vmatprep.subr.mxu0 0.0
  %142 = vmatpush1.msra.mxu0 0.0
  %143 = vmatprep.subr.mxu0 0.0
  %144 = vmatpush1.msra.mxu0 0.0
  %145 = vmatprep.subr.mxu0 0.0
  %146 = vmatpush1.msra.mxu0 0.0
  %147 = vmatprep.subr.mxu0 0.0
  %148 = vmatpush1.msra.mxu0 0.0
  %149 = vmatprep.subr.mxu0 0.0
  %150 = vmatpush1.msra.mxu0 0.0
  %151 = vmatprep.subr.mxu0 0.0
  %152 = vmatpush1.msra.mxu0 0.0
  %153 = vmatprep.subr.mxu0 0.0
  %154 = vmatpush1.msra.mxu0 0.0
  %155 = vmatprep.subr.mxu0 0.0
  %156 = vmatpush1.msra.mxu0 0.0
  %157 = vmatprep.subr.mxu0 0.0
  %158 = vmatpush1.msra.mxu0 0.0
  %159 = vmatprep.subr.mxu0 0.0
  %160 = vmatpush1.msra.mxu0 0.0
  %161 = vmatprep.subr.mxu0 0.0
  %162 = vmatpush1.msra.mxu0 0.0
  %163 = vmatprep.subr.mxu0 0.0
  %164 = vmatpush1.msra.mxu0 0.0
  %165 = vmatprep.subr.mxu0 0.0
  %166 = vmatpush1.msra.mxu0 0.0
  %167 = vmatprep.subr.mxu0 0.0
  %168 = vmatpush1.msra.mxu0 0.0
  %169 = vmatprep.subr.mxu0 0.0
  %170 = vmatpush1.msra.mxu0 0.0
  %171 = vmatprep.subr.mxu0 0.0
  %172 = vmatpush1.msra.mxu0 0.0
  %173 = vmatprep.subr.mxu0 0.0
  %174 = vmatpush1.msra.mxu0 0.0
  %175 = vmatprep.subr.mxu0 0.0
  %176 = vmatpush1.msra.mxu0 0.0
  %177 = vmatprep.subr.mxu0 0.0
  %178 = vmatpush1.msra.mxu0 0.0
  %179 = vmatprep.subr.mxu0 0.0
  %180 = vmatpush1.msra.mxu0 0.0
  %181 = vmatprep.subr.mxu0 0.0
  %182 = vmatpush1.msra.mxu0 0.0
  %183 = vmatprep.subr.mxu0 0.0
  %184 = vmatpush1.msra.mxu0 0.0
  %185 = vmatprep.subr.mxu0 0.0
  %186 = vmatpush1.msra.mxu0 0.0
  %187 = vmatprep.mubr.f32.mxu0 0.0
  %188 = vmatmul.mubr.f32.gmra.mrb[0].mxu0 %v112
  %v189 = vpop.f32.mrb[0].mxu0
  %v190 = vadd.f32 %v109, %v189
  %v191 = vpop.f32.mrb[0].mxu0
  %192 = vmatprep.mubr.f32.mxu0 0.0
  %193 = vmatmul.mubr.f32.gmra.mrb[0].mxu0 %v115
  %v194 = vpop.f32.mrb[0].mxu0
  %v195 = vadd.f32 %v109, %v194
  %v196 = vpop.f32.mrb[0].mxu0
  %197 = vmatprep.mubr.f32.mxu0 0.0
  %198 = vmatmul.mubr.f32.gmra.mrb[0].mxu0 %v118
  %v199 = vpop.f32.mrb[0].mxu0
  %v200 = vadd.f32 %v109, %v199
  %v201 = vpop.f32.mrb[0].mxu0
  %202 = vmatprep.mubr.f32.mxu0 0.0
  %203 = vmatmul.mubr.f32.gmra.mrb[0].mxu0 %v121
  %v204 = vpop.f32.mrb[0].mxu0
  %v205 = vadd.f32 %v109, %v204
  %v206 = vpop.f32.mrb[0].mxu0
  %207 = vdwg.mxu0
  %v208 = vmul.f32 %v190, 0.5
  %v209 = vmul.f32 %v195, 0.5
  %v210 = vmul.f32 %v200, 0.5
  %v211 = vmul.f32 %v205, 0.5
  %v212 = vmul.f32 %v190, 0.70710677
  %v213 = vmul.f32 %v195, 0.70710677
  %v214 = vmul.f32 %v200, 0.70710677
  %v215 = vmul.f32 %v205, 0.70710677
  %v216 = verf.f32.pop %v212
  %v217 = verf.f32.pop %v213
  %v218 = verf.f32.pop %v214
  %v219 = verf.f32.pop %v215
  %v220 = vadd.f32 %v216, 1.0
  %v221 = vadd.f32 %v217, 1.0
  %v222 = vadd.f32 %v218, 1.0
  %v223 = vadd.f32 %v219, 1.0
  %v224 = vmul.f32 %v208, %v220
  %v225 = vmul.f32 %v209, %v221
  %v226 = vmul.f32 %v210, %v222
  %v227 = vmul.f32 %v211, %v223
  %vm228 = vcmask 523264
  %229 = vst.msk [vmem:[%s5] sm:$0xff] %vm228, %v224
  %230 = vst.msk [vmem:[%s5 + $0x8] sm:$0xff] %vm228, %v225
  %231 = vst.msk [vmem:[%s5 + $0x10] sm:$0xff] %vm228, %v226
  %232 = vst.msk [vmem:[%s5 + $0x18] sm:$0xff] %vm228, %v227
  // Predicated region
  $region22: #{_lambda_.36} parent=0 // pred_check
    _
  $region23: #{_lambda_.36} parent=0 // pred_check_branch
    %234 = sbr.rel (0) target = $region25
  $region24: #{_lambda_.36} parent=0 // pred_region
    _
  $region25: #{_lambda_.36} parent=0 // pred_fallthru
    _
  // Predicated region
  $region26: #{_lambda_.36} parent=0 // pred_check
    _
  $region27: #{_lambda_.36} parent=0 // pred_check_branch
    %236 = sbr.rel (0) target = $region29
  $region28: #{_lambda_.36} parent=0 // pred_region
    _
  $region29: #{_lambda_.36} parent=0 // pred_fallthru
    _

// kernel: _lambda_.34
$region0: #{_lambda_.34}
  #allocation0 [shape = 'u32[]', space=smem, size = 0x4, offset = 0x4, fixed_abs, tag = 'smem constant byte address 0x4 - core index']
  #allocation1 [shape = 'u32[144,128]{1,0:T(1,128)}', space=vmem, size = 0x12000, scoped, tag = 'internal scratch']
  %s0 = inlined_call_operand.vmem [shape: f32[16,4,16], index: 0, kind: input, shape index: {}]
  %s1 = inlined_call_operand.vmem [shape: f32[16,4,16], index: 1, kind: input, shape index: {}]
  %s2 = inlined_call_operand.vmem [shape: f32[16,4,16], index: 2, kind: input, shape index: {}]
  %s3 = inlined_call_operand.vmem [shape: f32[8,4,4], index: 3, kind: input, shape index: {}]
  %s4 = inlined_call_operand.vmem [shape: f32[16,4,16], index: 4, kind: output, shape index: {}]
  %s5 = sld [smem:[#allocation0]]
  $region49: #{_lambda_.34} parent=0
    _
  %s7 = ssub.s32 1, %s5
  %s8 = scalar_select 0, %s7, %s5
  loop: start=0, step=1, limit=4
  $region2: #{_lambda_.34} parent=0 // loop_pre_header
    _
  $region3: #{_lambda_.34} parent=0 // loop_header
    %s10 = sphi 0, %s14
    %p11 = scmp.ge.s32.totalorder %s10, 4
    %s20 = sphi 0, %s22
    %s23 = sphi 0, %s20
    %s24 = sphi 0, %s23
    %s40 = sphi 0, %s24
    %s46 = sphi 0, %s48
    %s49 = sphi 0, %s46
    %s50 = sphi 0, %s49
    %s66 = sphi 0, %s50
    %s72 = sphi 0, %s74
    %s75 = sphi 0, %s72
    %s76 = sphi 0, %s75
    %s92 = sphi 0, %s76
    %s96 = sphi 0, %s96
    %s98 = sphi 0, %s96
    %s99 = sphi 0, %s98
    %s113 = sphi 0, %s99
    %s119 = sphi 0, %s121
    %s122 = sphi 0, %s119
    %s123 = sphi 0, %s122
    %s139 = sphi 0, %s123
  $region4: #{_lambda_.34} parent=0 // loop_header_branch
    %13 = sbr.rel (%p11) target = $region8
  $region5: #{_lambda_.34} parent=0 // loop_body
    %s15 = ssub.s32 %s10, 1
    %s16 = ssub.s32 %s10, 2
    %s17 = sadd.s32 %s10, 1
    %s18 = ssub.s32 %s10, %s17
    %p19 = scmp.eq.s32.totalorder %s18, 0
    %s21 = sadd.s32 %s20, 1
    %s22 = scalar_select %p19, %s20, %s21
    %p25 = pneg %p19
    %p26 = scmp.eq.s32.totalorder %s10, 1
    %p27 = por %p25, %p26
    %p28 = scmp.ne.s32.totalorder %s20, %s23
    %p29 = scmp.eq.s32.totalorder %s10, 0
    %p30 = por %p28, %p29
    %p31 = scmp.ne.s32.totalorder %s20, %s23
    %p32 = scmp.eq.s32.totalorder %s15, 1
    %p33 = por %p31, %p32
    %p34 = scmp.ne.s32.totalorder %s23, %s24
    %p35 = scmp.eq.s32.totalorder %s15, 0
    %p36 = por %p34, %p35
    %p37 = scmp.ne.s32.totalorder %s23, %s24
    %p38 = scmp.eq.s32.totalorder %s16, 1
    %p39 = por %p37, %p38
    %p41 = scmp.ne.s32.totalorder %s24, %s40
    %p42 = scmp.eq.s32.totalorder %s16, 0
    %p43 = por %p41, %p42
    %s44 = ssub.s32 %s10, %s17
    %p45 = scmp.eq.s32.totalorder %s44, 0
    %s47 = sadd.s32 %s46, 1
    %s48 = scalar_select %p45, %s46, %s47
    %p51 = pneg %p45
    %p52 = scmp.eq.s32.totalorder %s10, 1
    %p53 = por %p51, %p52
    %p54 = scmp.ne.s32.totalorder %s46, %s49
    %p55 = scmp.eq.s32.totalorder %s10, 0
    %p56 = por %p54, %p55
    %p57 = scmp.ne.s32.totalorder %s46, %s49
    %p58 = scmp.eq.s32.totalorder %s15, 1
    %p59 = por %p57, %p58
    %p60 = scmp.ne.s32.totalorder %s49, %s50
    %p61 = scmp.eq.s32.totalorder %s15, 0
    %p62 = por %p60, %p61
    %p63 = scmp.ne.s32.totalorder %s49, %s50
    %p64 = scmp.eq.s32.totalorder %s16, 1
    %p65 = por %p63, %p64
    %p67 = scmp.ne.s32.totalorder %s50, %s66
    %p68 = scmp.eq.s32.totalorder %s16, 0
    %p69 = por %p67, %p68
    %s70 = ssub.s32 %s10, %s17
    %p71 = scmp.eq.s32.totalorder %s70, 0
    %s73 = sadd.s32 %s72, 1
    %s74 = scalar_select %p71, %s72, %s73
    %p77 = pneg %p71
    %p78 = scmp.eq.s32.totalorder %s10, 1
    %p79 = por %p77, %p78
    %p80 = scmp.ne.s32.totalorder %s72, %s75
    %p81 = scmp.eq.s32.totalorder %s10, 0
    %p82 = por %p80, %p81
    %p83 = scmp.ne.s32.totalorder %s72, %s75
    %p84 = scmp.eq.s32.totalorder %s15, 1
    %p85 = por %p83, %p84
    %p86 = scmp.ne.s32.totalorder %s75, %s76
    %p87 = scmp.eq.s32.totalorder %s15, 0
    %p88 = por %p86, %p87
    %p89 = scmp.ne.s32.totalorder %s75, %s76
    %p90 = scmp.eq.s32.totalorder %s16, 1
    %p91 = por %p89, %p90
    %p93 = scmp.ne.s32.totalorder %s76, %s92
    %p94 = scmp.eq.s32.totalorder %s16, 0
    %p95 = por %p93, %p94
    %s97 = sadd.s32 %s96, 1
    %p100 = scmp.eq.s32.totalorder %s10, 1
    %p101 = scmp.ne.s32.totalorder %s96, %s98
    %p102 = scmp.eq.s32.totalorder %s10, 0
    %p103 = por %p101, %p102
    %p104 = scmp.ne.s32.totalorder %s96, %s98
    %p105 = scmp.eq.s32.totalorder %s15, 1
    %p106 = por %p104, %p105
    %p107 = scmp.ne.s32.totalorder %s98, %s99
    %p108 = scmp.eq.s32.totalorder %s15, 0
    %p109 = por %p107, %p108
    %p110 = scmp.ne.s32.totalorder %s98, %s99
    %p111 = scmp.eq.s32.totalorder %s16, 1
    %p112 = por %p110, %p111
    %p114 = scmp.ne.s32.totalorder %s99, %s113
    %p115 = scmp.eq.s32.totalorder %s16, 0
    %p116 = por %p114, %p115
    %s117 = ssub.s32 %s10, %s17
    %p118 = scmp.eq.s32.totalorder %s117, 0
    %s120 = sadd.s32 %s119, 1
    %s121 = scalar_select %p118, %s119, %s120
    %p124 = pneg %p118
    %p125 = scmp.eq.s32.totalorder %s10, 1
    %p126 = por %p124, %p125
    %p127 = scmp.ne.s32.totalorder %s119, %s122
    %p128 = scmp.eq.s32.totalorder %s10, 0
    %p129 = por %p127, %p128
    %p130 = scmp.ne.s32.totalorder %s119, %s122
    %p131 = scmp.eq.s32.totalorder %s15, 1
    %p132 = por %p130, %p131
    %p133 = scmp.ne.s32.totalorder %s122, %s123
    %p134 = scmp.eq.s32.totalorder %s15, 0
    %p135 = por %p133, %p134
    %p136 = scmp.ne.s32.totalorder %s122, %s123
    %p137 = scmp.eq.s32.totalorder %s16, 1
    %p138 = por %p136, %p137
    %p140 = scmp.ne.s32.totalorder %s123, %s139
    %p141 = scmp.eq.s32.totalorder %s16, 0
    %p142 = por %p140, %p141
    %p143 = scmp.le.s32.totalorder 1, %s10
    %p144 = scmp.lt.s32.totalorder %s10, 3
    %p145 = pnand %p143, %p144
    %p146 = pneg %p145
    // Predicated region
    $region9: #{_lambda_.34} parent=5 // pred_check
      _
    $region10: #{_lambda_.34} parent=5 // pred_check_branch
      %148 = sbr.rel (%p145) target = $region12
    $region11: #{_lambda_.34} parent=5 // pred_region
      %s149 = ssub.s32 %s10, 1
      // Predicated region
      $region13: #{_lambda_.34} parent=11 // pred_check
        %p150 = pneg %p109
      $region14: #{_lambda_.34} parent=11 // pred_check_branch
        %152 = sbr.rel (%p150) target = $region16
      $region15: #{_lambda_.34} parent=11 // pred_region
        _
      $region16: #{_lambda_.34} parent=11 // pred_fallthru
        _
    $region12: #{_lambda_.34} parent=5 // pred_fallthru
      _
    %p153 = scmp.lt.s32.totalorder %s10, 2
    // Predicated region
    $region17: #{_lambda_.34} parent=5 // pred_check
      %p154 = pneg %p153
    $region18: #{_lambda_.34} parent=5 // pred_check_branch
      %156 = sbr.rel (%p154) target = $region20
    $region19: #{_lambda_.34} parent=5 // pred_region
      // Predicated region
      $region21: #{_lambda_.34} parent=19 // pred_check
        %p157 = pneg %p30
      $region22: #{_lambda_.34} parent=19 // pred_check_branch
        %159 = sbr.rel (%p157) target = $region24
      $region23: #{_lambda_.34} parent=19 // pred_region
        %s160 = smul.u32 8, %s10
        %p161 = scmp.lt.s32.totalorder %s160, 15
        %s162 = scalar_select %p161, %s160, 15
        %s163 = smul.addr %s162, 4
        %s164 = scalar_lea.vmem %s0, %s163
        %s165 = smul.u32 8, %s10
      $region24: #{_lambda_.34} parent=19 // pred_fallthru
        _
      // Predicated region
      $region25: #{_lambda_.34} parent=19 // pred_check
        %p166 = pneg %p56
      $region26: #{_lambda_.34} parent=19 // pred_check_branch
        %168 = sbr.rel (%p166) target = $region28
      $region27: #{_lambda_.34} parent=19 // pred_region
        %s169 = smul.u32 8, %s10
        %p170 = scmp.lt.s32.totalorder %s169, 15
        %s171 = scalar_select %p170, %s169, 15
        %s172 = smul.addr %s171, 4
        %s173 = scalar_lea.vmem %s1, %s172
        %s174 = smul.u32 8, %s10
      $region28: #{_lambda_.34} parent=19 // pred_fallthru
        _
      // Predicated region
      $region29: #{_lambda_.34} parent=19 // pred_check
        %p175 = pneg %p82
      $region30: #{_lambda_.34} parent=19 // pred_check_branch
        %177 = sbr.rel (%p175) target = $region32
      $region31: #{_lambda_.34} parent=19 // pred_region
        %s178 = smul.u32 8, %s10
        %p179 = scmp.lt.s32.totalorder %s178, 15
        %s180 = scalar_select %p179, %s178, 15
        %s181 = smul.addr %s180, 4
        %s182 = scalar_lea.vmem %s2, %s181
        %s183 = smul.u32 8, %s10
      $region32: #{_lambda_.34} parent=19 // pred_fallthru
        _
    $region20: #{_lambda_.34} parent=5 // pred_fallthru
      _
    %p184 = scmp.le.s32.totalorder 1, %s10
    %p185 = scmp.lt.s32.totalorder %s10, 3
    %p186 = pnand %p184, %p185
    %p187 = pneg %p186
    // Predicated region
    $region33: #{_lambda_.34} parent=5 // pred_check
      _
    $region34: #{_lambda_.34} parent=5 // pred_check_branch
      %189 = sbr.rel (%p186) target = $region36
    $region35: #{_lambda_.34} parent=5 // pred_region
      %s190 = ssub.s32 %s10, 1
      %s191 = smul.u32 8, %s15
      %p192 = scmp.lt.s32.totalorder %s191, 15
      %s193 = scalar_select %p192, %s191, 15
      %s194 = smul.addr %s193, 4
      %s195 = scalar_lea.vmem %s0, %s194
      %p196 = pneg %p36
      %p197 = pneg %p33
      %s198 = smul.u32 8, %s15
      %p199 = scmp.lt.s32.totalorder %s198, 15
      %s200 = scalar_select %p199, %s198, 15
      %s201 = smul.addr %s200, 4
      %s202 = scalar_lea.vmem %s1, %s201
      %p203 = pneg %p62
      %p204 = pneg %p59
      %s205 = smul.u32 8, %s15
      %p206 = scmp.lt.s32.totalorder %s205, 15
      %s207 = scalar_select %p206, %s205, 15
      %s208 = smul.addr %s207, 4
      %s209 = scalar_lea.vmem %s2, %s208
      %p210 = pneg %p88
      %p211 = pneg %p85
      %p212 = pneg %p109
      %p213 = pneg %p106
      %p214 = pneg %p135
      %p215 = pneg %p132
      %s216 = smul.u32 8, %s15
      %p217 = scmp.lt.s32.totalorder %s216, 15
      %s218 = scalar_select %p217, %s216, 15
      %s219 = smul.addr %s218, 4
      %s220 = scalar_lea.vmem %s4, %s219
      %s221 = smul.u32 8, %s15
      %p222 = scmp.lt.s32.totalorder %s221, 15
      %s223 = scalar_select %p222, %s221, 15
      %s224 = smul.addr %s223, 4
      %s225 = scalar_lea.vmem %s0, %s224
      %s226 = smul.u32 8, %s15
      %s227 = smul.u32 8, %s15
      %p228 = scmp.lt.s32.totalorder %s227, 15
      %s229 = scalar_select %p228, %s227, 15
      %s230 = smul.addr %s229, 4
      %s231 = scalar_lea.vmem %s1, %s230
      %s232 = smul.u32 8, %s15
      %s233 = smul.u32 8, %s15
      %p234 = scmp.lt.s32.totalorder %s233, 15
      %s235 = scalar_select %p234, %s233, 15
      %s236 = smul.addr %s235, 4
      %s237 = scalar_lea.vmem %s2, %s236
      %s238 = smul.u32 8, %s15
      %s239 = smul.u32 8, %s15
      %p240 = scmp.lt.s32.totalorder %s239, 15
      %s241 = scalar_select %p240, %s239, 15
      %s242 = smul.addr %s241, 4
      %s243 = scalar_lea.vmem %s4, %s242
      %s244 = smul.u32 8, %s15
      %v245 = vld [vmem:[%s225] sm:$0xf]
      %v246 = vld [vmem:[%s225 + $0x4] sm:$0xf]
      %v247 = vld [vmem:[%s225 + $0x8] sm:$0xf]
      %v248 = vld [vmem:[%s225 + $0xc] sm:$0xf]
      %v249 = vld [vmem:[%s225 + $0x10] sm:$0xf]
      %v250 = vld [vmem:[%s225 + $0x14] sm:$0xf]
      %v251 = vld [vmem:[%s225 + $0x18] sm:$0xf]
      %v252 = vld [vmem:[%s225 + $0x1c] sm:$0xf]
      %v253 = vmul.f32 %v245, 0.25
      %v254 = vmul.f32 %v246, 0.25
      %v255 = vmul.f32 %v247, 0.25
      %v256 = vmul.f32 %v248, 0.25
      %v257 = vmul.f32 %v249, 0.25
      %v258 = vmul.f32 %v250, 0.25
      %v259 = vmul.f32 %v251, 0.25
      %v260 = vmul.f32 %v252, 0.25
      %v261 = vld [vmem:[%s231] sm:$0xf]
      %v262 = vld [vmem:[%s231 + $0x4] sm:$0xf]
      %v263 = vld [vmem:[%s231 + $0x8] sm:$0xf]
      %v264 = vld [vmem:[%s231 + $0xc] sm:$0xf]
      %v265 = vld [vmem:[%s231 + $0x10] sm:$0xf]
      %v266 = vld [vmem:[%s231 + $0x14] sm:$0xf]
      %v267 = vld [vmem:[%s231 + $0x18] sm:$0xf]
      %v268 = vld [vmem:[%s231 + $0x1c] sm:$0xf]
      %v269 = vld [vmem:[%s237] sm:$0xf]
      %v270 = vld [vmem:[%s237 + $0x4] sm:$0xf]
      %v271 = vld [vmem:[%s237 + $0x8] sm:$0xf]
      %v272 = vld [vmem:[%s237 + $0xc] sm:$0xf]
      %v273 = vld [vmem:[%s237 + $0x10] sm:$0xf]
      %v274 = vld [vmem:[%s237 + $0x14] sm:$0xf]
      %v275 = vld [vmem:[%s237 + $0x18] sm:$0xf]
      %v276 = vld [vmem:[%s237 + $0x1c] sm:$0xf]
      %v277 = vld [vmem:[%s3] sm:$0xf]
      %v278 = vld [vmem:[%s3 + $0x4] sm:$0xf]
      %v279 = vld [vmem:[%s3 + $0x8] sm:$0xf]
      %v280 = vld [vmem:[%s3 + $0xc] sm:$0xf]
      %v281 = vld [vmem:[%s3 + $0x10] sm:$0xf]
      %v282 = vld [vmem:[%s3 + $0x14] sm:$0xf]
      %v283 = vld [vmem:[%s3 + $0x18] sm:$0xf]
      %v284 = vld [vmem:[%s3 + $0x1c] sm:$0xf]
      %vm285 = vcmask 130048
      %v287 = vsel %vm285, %v253, 0
      %v290 = vsel %vm285, %v261, 0
      %292 = vmatprep.subr.mxu0 0.0
      %293 = vmatpush1.xpose.msra.mxu0 %v290
      %294 = vmatprep.subr.mxu0 0.0
      %295 = vmatpush1.xpose.msra.mxu0 0.0
      %296 = vmatprep.subr.mxu0 0.0
      %297 = vmatpush1.xpose.msra.mxu0 0.0
      %298 = vmatprep.subr.mxu0 0.0
      %299 = vmatpush1.xpose.msra.mxu0 0.0
      %300 = vmatprep.subr.mxu0 0.0
      %301 = vmatpush1.xpose.msra.mxu0 0.0
      %302 = vmatprep.subr.mxu0 0.0
      %303 = vmatpush1.xpose.msra.mxu0 0.0
      %304 = vmatprep.subr.mxu0 0.0
      %305 = vmatpush1.xpose.msra.mxu0 0.0
      %306 = vmatprep.subr.mxu0 0.0
      %307 = vmatpush1.xpose.msra.mxu0 0.0
      %308 = vmatprep.subr.mxu0 0.0
      %309 = vmatpush1.xpose.msra.mxu0 0.0
      %310 = vmatprep.subr.mxu0 0.0
      %311 = vmatpush1.xpose.msra.mxu0 0.0
      %312 = vmatprep.subr.mxu0 0.0
      %313 = vmatpush1.xpose.msra.mxu0 0.0
      %314 = vmatprep.subr.mxu0 0.0
      %315 = vmatpush1.xpose.msra.mxu0 0.0
      %316 = vmatprep.subr.mxu0 0.0
      %317 = vmatpush1.xpose.msra.mxu0 0.0
      %318 = vmatprep.subr.mxu0 0.0
      %319 = vmatpush1.xpose.msra.mxu0 0.0
      %320 = vmatprep.subr.mxu0 0.0
      %321 = vmatpush1.xpose.msra.mxu0 0.0
      %322 = vmatprep.subr.mxu0 0.0
      %323 = vmatpush1.xpose.msra.mxu0 0.0
      %324 = vmatprep.subr.mxu0 0.0
      %325 = vmatpush1.xpose.msra.mxu0 0.0
      %326 = vmatprep.subr.mxu0 0.0
      %327 = vmatpush1.xpose.msra.mxu0 0.0
      %328 = vmatprep.subr.mxu0 0.0
      %329 = vmatpush1.xpose.msra.mxu0 0.0
      %330 = vmatprep.subr.mxu0 0.0
      %331 = vmatpush1.xpose.msra.mxu0 0.0
      %332 = vmatprep.subr.mxu0 0.0
      %333 = vmatpush1.xpose.msra.mxu0 0.0
      %334 = vmatprep.subr.mxu0 0.0
      %335 = vmatpush1.xpose.msra.mxu0 0.0
      %336 = vmatprep.subr.mxu0 0.0
      %337 = vmatpush1.xpose.msra.mxu0 0.0
      %338 = vmatprep.subr.mxu0 0.0
      %339 = vmatpush1.xpose.msra.mxu0 0.0
      %340 = vmatprep.subr.mxu0 0.0
      %341 = vmatpush1.xpose.msra.mxu0 0.0
      %342 = vmatprep.subr.mxu0 0.0
      %343 = vmatpush1.xpose.msra.mxu0 0.0
      %344 = vmatprep.subr.mxu0 0.0
      %345 = vmatpush1.xpose.msra.mxu0 0.0
      %346 = vmatprep.subr.mxu0 0.0
      %347 = vmatpush1.xpose.msra.mxu0 0.0
      %348 = vmatprep.subr.mxu0 0.0
      %349 = vmatpush1.xpose.msra.mxu0 0.0
      %350 = vmatprep.subr.mxu0 0.0
      %351 = vmatpush1.xpose.msra.mxu0 0.0
      %352 = vmatprep.subr.mxu0 0.0
      %353 = vmatpush1.xpose.msra.mxu0 0.0
      %354 = vmatprep.subr.mxu0 0.0
      %355 = vmatpush1.xpose.msra.mxu0 0.0
      %356 = vmatprep.mubr.f32.mxu0 0.0
      %357 = vmatmul.mubr.f32.gmra.mrb[0].mxu0 %v287
      %v358 = vpop.f32.mrb[0].mxu0
      %v359 = vadd.f32 %v277, %v358
      %v360 = vpop.f32.mrb[0].mxu0
      %361 = vdwg.mxu0
      %v363 = vsel %vm285, %v254, 0
      %v366 = vsel %vm285, %v262, 0
      %368 = vmatprep.subr.mxu0 0.0
      %369 = vmatpush1.xpose.msra.mxu0 %v366
      %370 = vmatprep.subr.mxu0 0.0
      %371 = vmatpush1.xpose.msra.mxu0 0.0
      %372 = vmatprep.subr.mxu0 0.0
      %373 = vmatpush1.xpose.msra.mxu0 0.0
      %374 = vmatprep.subr.mxu0 0.0
      %375 = vmatpush1.xpose.msra.mxu0 0.0
      %376 = vmatprep.subr.mxu0 0.0
      %377 = vmatpush1.xpose.msra.mxu0 0.0
      %378 = vmatprep.subr.mxu0 0.0
      %379 = vmatpush1.xpose.msra.mxu0 0.0
      %380 = vmatprep.subr.mxu0 0.0
      %381 = vmatpush1.xpose.msra.mxu0 0.0
      %382 = vmatprep.subr.mxu0 0.0
      %383 = vmatpush1.xpose.msra.mxu0 0.0
      %384 = vmatprep.subr.mxu0 0.0
      %385 = vmatpush1.xpose.msra.mxu0 0.0
      %386 = vmatprep.subr.mxu0 0.0
      %387 = vmatpush1.xpose.msra.mxu0 0.0
      %388 = vmatprep.subr.mxu0 0.0
      %389 = vmatpush1.xpose.msra.mxu0 0.0
      %390 = vmatprep.subr.mxu0 0.0
      %391 = vmatpush1.xpose.msra.mxu0 0.0
      %392 = vmatprep.subr.mxu0 0.0
      %393 = vmatpush1.xpose.msra.mxu0 0.0
      %394 = vmatprep.subr.mxu0 0.0
      %395 = vmatpush1.xpose.msra.mxu0 0.0
      %396 = vmatprep.subr.mxu0 0.0
      %397 = vmatpush1.xpose.msra.mxu0 0.0
      %398 = vmatprep.subr.mxu0 0.0
      %399 = vmatpush1.xpose.msra.mxu0 0.0
      %400 = vmatprep.subr.mxu0 0.0
      %401 = vmatpush1.xpose.msra.mxu0 0.0
      %402 = vmatprep.subr.mxu0 0.0
      %403 = vmatpush1.xpose.msra.mxu0 0.0
      %404 = vmatprep.subr.mxu0 0.0
      %405 = vmatpush1.xpose.msra.mxu0 0.0
      %406 = vmatprep.subr.mxu0 0.0
      %407 = vmatpush1.xpose.msra.mxu0 0.0
      %408 = vmatprep.subr.mxu0 0.0
      %409 = vmatpush1.xpose.msra.mxu0 0.0
      %410 = vmatprep.subr.mxu0 0.0
      %411 = vmatpush1.xpose.msra.mxu0 0.0
      %412 = vmatprep.subr.mxu0 0.0
      %413 = vmatpush1.xpose.msra.mxu0 0.0
      %414 = vmatprep.subr.mxu0 0.0
      %415 = vmatpush1.xpose.msra.mxu0 0.0
      %416 = vmatprep.subr.mxu0 0.0
      %417 = vmatpush1.xpose.msra.mxu0 0.0
      %418 = vmatprep.subr.mxu0 0.0
      %419 = vmatpush1.xpose.msra.mxu0 0.0
      %420 = vmatprep.subr.mxu0 0.0
      %421 = vmatpush1.xpose.msra.mxu0 0.0
      %422 = vmatprep.subr.mxu0 0.0
      %423 = vmatpush1.xpose.msra.mxu0 0.0
      %424 = vmatprep.subr.mxu0 0.0
      %425 = vmatpush1.xpose.msra.mxu0 0.0
      %426 = vmatprep.subr.mxu0 0.0
      %427 = vmatpush1.xpose.msra.mxu0 0.0
      %428 = vmatprep.subr.mxu0 0.0
      %429 = vmatpush1.xpose.msra.mxu0 0.0
      %430 = vmatprep.subr.mxu0 0.0
      %431 = vmatpush1.xpose.msra.mxu0 0.0
      %432 = vmatprep.mubr.f32.mxu0 0.0
      %433 = vmatmul.mubr.f32.gmra.mrb[0].mxu0 %v363
      %v434 = vpop.f32.mrb[0].mxu0
      %v435 = vadd.f32 %v278, %v434
      %v436 = vpop.f32.mrb[0].mxu0
      %437 = vdwg.mxu0
      %v439 = vsel %vm285, %v255, 0
      %v442 = vsel %vm285, %v263, 0
      %444 = vmatprep.subr.mxu0 0.0
      %445 = vmatpush1.xpose.msra.mxu0 %v442
      %446 = vmatprep.subr.mxu0 0.0
      %447 = vmatpush1.xpose.msra.mxu0 0.0
      %448 = vmatprep.subr.mxu0 0.0
      %449 = vmatpush1.xpose.msra.mxu0 0.0
      %450 = vmatprep.subr.mxu0 0.0
      %451 = vmatpush1.xpose.msra.mxu0 0.0
      %452 = vmatprep.subr.mxu0 0.0
      %453 = vmatpush1.xpose.msra.mxu0 0.0
      %454 = vmatprep.subr.mxu0 0.0
      %455 = vmatpush1.xpose.msra.mxu0 0.0
      %456 = vmatprep.subr.mxu0 0.0
      %457 = vmatpush1.xpose.msra.mxu0 0.0
      %458 = vmatprep.subr.mxu0 0.0
      %459 = vmatpush1.xpose.msra.mxu0 0.0
      %460 = vmatprep.subr.mxu0 0.0
      %461 = vmatpush1.xpose.msra.mxu0 0.0
      %462 = vmatprep.subr.mxu0 0.0
      %463 = vmatpush1.xpose.msra.mxu0 0.0
      %464 = vmatprep.subr.mxu0 0.0
      %465 = vmatpush1.xpose.msra.mxu0 0.0
      %466 = vmatprep.subr.mxu0 0.0
      %467 = vmatpush1.xpose.msra.mxu0 0.0
      %468 = vmatprep.subr.mxu0 0.0
      %469 = vmatpush1.xpose.msra.mxu0 0.0
      %470 = vmatprep.subr.mxu0 0.0
      %471 = vmatpush1.xpose.msra.mxu0 0.0
      %472 = vmatprep.subr.mxu0 0.0
      %473 = vmatpush1.xpose.msra.mxu0 0.0
      %474 = vmatprep.subr.mxu0 0.0
      %475 = vmatpush1.xpose.msra.mxu0 0.0
      %476 = vmatprep.subr.mxu0 0.0
      %477 = vmatpush1.xpose.msra.mxu0 0.0
      %478 = vmatprep.subr.mxu0 0.0
      %479 = vmatpush1.xpose.msra.mxu0 0.0
      %480 = vmatprep.subr.mxu0 0.0
      %481 = vmatpush1.xpose.msra.mxu0 0.0
      %482 = vmatprep.subr.mxu0 0.0
      %483 = vmatpush1.xpose.msra.mxu0 0.0
      %484 = vmatprep.subr.mxu0 0.0
      %485 = vmatpush1.xpose.msra.mxu0 0.0
      %486 = vmatprep.subr.mxu0 0.0
      %487 = vmatpush1.xpose.msra.mxu0 0.0
      %488 = vmatprep.subr.mxu0 0.0
      %489 = vmatpush1.xpose.msra.mxu0 0.0
      %490 = vmatprep.subr.mxu0 0.0
      %491 = vmatpush1.xpose.msra.mxu0 0.0
      %492 = vmatprep.subr.mxu0 0.0
      %493 = vmatpush1.xpose.msra.mxu0 0.0
      %494 = vmatprep.subr.mxu0 0.0
      %495 = vmatpush1.xpose.msra.mxu0 0.0
      %496 = vmatprep.subr.mxu0 0.0
      %497 = vmatpush1.xpose.msra.mxu0 0.0
      %498 = vmatprep.subr.mxu0 0.0
      %499 = vmatpush1.xpose.msra.mxu0 0.0
      %500 = vmatprep.subr.mxu0 0.0
      %501 = vmatpush1.xpose.msra.mxu0 0.0
      %502 = vmatprep.subr.mxu0 0.0
      %503 = vmatpush1.xpose.msra.mxu0 0.0
      %504 = vmatprep.subr.mxu0 0.0
      %505 = vmatpush1.xpose.msra.mxu0 0.0
      %506 = vmatprep.subr.mxu0 0.0
      %507 = vmatpush1.xpose.msra.mxu0 0.0
      %508 = vmatprep.mubr.f32.mxu0 0.0
      %509 = vmatmul.mubr.f32.gmra.mrb[0].mxu0 %v439
      %v510 = vpop.f32.mrb[0].mxu0
      %v511 = vadd.f32 %v279, %v510
      %v512 = vpop.f32.mrb[0].mxu0
      %513 = vdwg.mxu0
      %v515 = vsel %vm285, %v256, 0
      %v518 = vsel %vm285, %v264, 0
      %520 = vmatprep.subr.mxu0 0.0
      %521 = vmatpush1.xpose.msra.mxu0 %v518
      %522 = vmatprep.subr.mxu0 0.0
      %523 = vmatpush1.xpose.msra.mxu0 0.0
      %524 = vmatprep.subr.mxu0 0.0
      %525 = vmatpush1.xpose.msra.mxu0 0.0
      %526 = vmatprep.subr.mxu0 0.0
      %527 = vmatpush1.xpose.msra.mxu0 0.0
      %528 = vmatprep.subr.mxu0 0.0
      %529 = vmatpush1.xpose.msra.mxu0 0.0
      %530 = vmatprep.subr.mxu0 0.0
      %531 = vmatpush1.xpose.msra.mxu0 0.0
      %532 = vmatprep.subr.mxu0 0.0
      %533 = vmatpush1.xpose.msra.mxu0 0.0
      %534 = vmatprep.subr.mxu0 0.0
      %535 = vmatpush1.xpose.msra.mxu0 0.0
      %536 = vmatprep.subr.mxu0 0.0
      %537 = vmatpush1.xpose.msra.mxu0 0.0
      %538 = vmatprep.subr.mxu0 0.0
      %539 = vmatpush1.xpose.msra.mxu0 0.0
      %540 = vmatprep.subr.mxu0 0.0
      %541 = vmatpush1.xpose.msra.mxu0 0.0
      %542 = vmatprep.subr.mxu0 0.0
      %543 = vmatpush1.xpose.msra.mxu0 0.0
      %544 = vmatprep.subr.mxu0 0.0
      %545 = vmatpush1.xpose.msra.mxu0 0.0
      %546 = vmatprep.subr.mxu0 0.0
      %547 = vmatpush1.xpose.msra.mxu0 0.0
      %548 = vmatprep.subr.mxu0 0.0
      %549 = vmatpush1.xpose.msra.mxu0 0.0
      %550 = vmatprep.subr.mxu0 0.0
      %551 = vmatpush1.xpose.msra.mxu0 0.0
      %552 = vmatprep.subr.mxu0 0.0
      %553 = vmatpush1.xpose.msra.mxu0 0.0
      %554 = vmatprep.subr.mxu0 0.0
      %555 = vmatpush1.xpose.msra.mxu0 0.0
      %556 = vmatprep.subr.mxu0 0.0
      %557 = vmatpush1.xpose.msra.mxu0 0.0
      %558 = vmatprep.subr.mxu0 0.0
      %559 = vmatpush1.xpose.msra.mxu0 0.0
      %560 = vmatprep.subr.mxu0 0.0
      %561 = vmatpush1.xpose.msra.mxu0 0.0
      %562 = vmatprep.subr.mxu0 0.0
      %563 = vmatpush1.xpose.msra.mxu0 0.0
      %564 = vmatprep.subr.mxu0 0.0
      %565 = vmatpush1.xpose.msra.mxu0 0.0
      %566 = vmatprep.subr.mxu0 0.0
      %567 = vmatpush1.xpose.msra.mxu0 0.0
      %568 = vmatprep.subr.mxu0 0.0
      %569 = vmatpush1.xpose.msra.mxu0 0.0
      %570 = vmatprep.subr.mxu0 0.0
      %571 = vmatpush1.xpose.msra.mxu0 0.0
      %572 = vmatprep.subr.mxu0 0.0
      %573 = vmatpush1.xpose.msra.mxu0 0.0
      %574 = vmatprep.subr.mxu0 0.0
      %575 = vmatpush1.xpose.msra.mxu0 0.0
      %576 = vmatprep.subr.mxu0 0.0
      %577 = vmatpush1.xpose.msra.mxu0 0.0
      %578 = vmatprep.subr.mxu0 0.0
      %579 = vmatpush1.xpose.msra.mxu0 0.0
      %580 = vmatprep.subr.mxu0 0.0
      %581 = vmatpush1.xpose.msra.mxu0 0.0
      %582 = vmatprep.subr.mxu0 0.0
      %583 = vmatpush1.xpose.msra.mxu0 0.0
      %584 = vmatprep.mubr.f32.mxu0 0.0
      %585 = vmatmul.mubr.f32.gmra.mrb[0].mxu0 %v515
      %v586 = vpop.f32.mrb[0].mxu0
      %v587 = vadd.f32 %v280, %v586
      %v588 = vpop.f32.mrb[0].mxu0
      %589 = vdwg.mxu0
      %v591 = vsel %vm285, %v257, 0
      %v594 = vsel %vm285, %v265, 0
      %596 = vmatprep.subr.mxu0 0.0
      %597 = vmatpush1.xpose.msra.mxu0 %v594
      %598 = vmatprep.subr.mxu0 0.0
      %599 = vmatpush1.xpose.msra.mxu0 0.0
      %600 = vmatprep.subr.mxu0 0.0
      %601 = vmatpush1.xpose.msra.mxu0 0.0
      %602 = vmatprep.subr.mxu0 0.0
      %603 = vmatpush1.xpose.msra.mxu0 0.0
      %604 = vmatprep.subr.mxu0 0.0
      %605 = vmatpush1.xpose.msra.mxu0 0.0
      %606 = vmatprep.subr.mxu0 0.0
      %607 = vmatpush1.xpose.msra.mxu0 0.0
      %608 = vmatprep.subr.mxu0 0.0
      %609 = vmatpush1.xpose.msra.mxu0 0.0
      %610 = vmatprep.subr.mxu0 0.0
      %611 = vmatpush1.xpose.msra.mxu0 0.0
      %612 = vmatprep.subr.mxu0 0.0
      %613 = vmatpush1.xpose.msra.mxu0 0.0
      %614 = vmatprep.subr.mxu0 0.0
      %615 = vmatpush1.xpose.msra.mxu0 0.0
      %616 = vmatprep.subr.mxu0 0.0
      %617 = vmatpush1.xpose.msra.mxu0 0.0
      %618 = vmatprep.subr.mxu0 0.0
      %619 = vmatpush1.xpose.msra.mxu0 0.0
      %620 = vmatprep.subr.mxu0 0.0
      %621 = vmatpush1.xpose.msra.mxu0 0.0
      %622 = vmatprep.subr.mxu0 0.0
      %623 = vmatpush1.xpose.msra.mxu0 0.0
      %624 = vmatprep.subr.mxu0 0.0
      %625 = vmatpush1.xpose.msra.mxu0 0.0
      %626 = vmatprep.subr.mxu0 0.0
      %627 = vmatpush1.xpose.msra.mxu0 0.0
      %628 = vmatprep.subr.mxu0 0.0
      %629 = vmatpush1.xpose.msra.mxu0 0.0
      %630 = vmatprep.subr.mxu0 0.0
      %631 = vmatpush1.xpose.msra.mxu0 0.0
      %632 = vmatprep.subr.mxu0 0.0
      %633 = vmatpush1.xpose.msra.mxu0 0.0
      %634 = vmatprep.subr.mxu0 0.0
      %635 = vmatpush1.xpose.msra.mxu0 0.0
      %636 = vmatprep.subr.mxu0 0.0
      %637 = vmatpush1.xpose.msra.mxu0 0.0
      %638 = vmatprep.subr.mxu0 0.0
      %639 = vmatpush1.xpose.msra.mxu0 0.0
      %640 = vmatprep.subr.mxu0 0.0
      %641 = vmatpush1.xpose.msra.mxu0 0.0
      %642 = vmatprep.subr.mxu0 0.0
      %643 = vmatpush1.xpose.msra.mxu0 0.0
      %644 = vmatprep.subr.mxu0 0.0
      %645 = vmatpush1.xpose.msra.mxu0 0.0
      %646 = vmatprep.subr.mxu0 0.0
      %647 = vmatpush1.xpose.msra.mxu0 0.0
      %648 = vmatprep.subr.mxu0 0.0
      %649 = vmatpush1.xpose.msra.mxu0 0.0
      %650 = vmatprep.subr.mxu0 0.0
      %651 = vmatpush1.xpose.msra.mxu0 0.0
      %652 = vmatprep.subr.mxu0 0.0
      %653 = vmatpush1.xpose.msra.mxu0 0.0
      %654 = vmatprep.subr.mxu0 0.0
      %655 = vmatpush1.xpose.msra.mxu0 0.0
      %656 = vmatprep.subr.mxu0 0.0
      %657 = vmatpush1.xpose.msra.mxu0 0.0
      %658 = vmatprep.subr.mxu0 0.0
      %659 = vmatpush1.xpose.msra.mxu0 0.0
      %660 = vmatprep.mubr.f32.mxu0 0.0
      %661 = vmatmul.mubr.f32.gmra.mrb[0].mxu0 %v591
      %v662 = vpop.f32.mrb[0].mxu0
      %v663 = vadd.f32 %v281, %v662
      %v664 = vpop.f32.mrb[0].mxu0
      %665 = vdwg.mxu0
      %v667 = vsel %vm285, %v258, 0
      %v670 = vsel %vm285, %v266, 0
      %672 = vmatprep.subr.mxu0 0.0
      %673 = vmatpush1.xpose.msra.mxu0 %v670
      %674 = vmatprep.subr.mxu0 0.0
      %675 = vmatpush1.xpose.msra.mxu0 0.0
      %676 = vmatprep.subr.mxu0 0.0
      %677 = vmatpush1.xpose.msra.mxu0 0.0
      %678 = vmatprep.subr.mxu0 0.0
      %679 = vmatpush1.xpose.msra.mxu0 0.0
      %680 = vmatprep.subr.mxu0 0.0
      %681 = vmatpush1.xpose.msra.mxu0 0.0
      %682 = vmatprep.subr.mxu0 0.0
      %683 = vmatpush1.xpose.msra.mxu0 0.0
      %684 = vmatprep.subr.mxu0 0.0
      %685 = vmatpush1.xpose.msra.mxu0 0.0
      %686 = vmatprep.subr.mxu0 0.0
      %687 = vmatpush1.xpose.msra.mxu0 0.0
      %688 = vmatprep.subr.mxu0 0.0
      %689 = vmatpush1.xpose.msra.mxu0 0.0
      %690 = vmatprep.subr.mxu0 0.0
      %691 = vmatpush1.xpose.msra.mxu0 0.0
      %692 = vmatprep.subr.mxu0 0.0
      %693 = vmatpush1.xpose.msra.mxu0 0.0
      %694 = vmatprep.subr.mxu0 0.0
      %695 = vmatpush1.xpose.msra.mxu0 0.0
      %696 = vmatprep.subr.mxu0 0.0
      %697 = vmatpush1.xpose.msra.mxu0 0.0
      %698 = vmatprep.subr.mxu0 0.0
      %699 = vmatpush1.xpose.msra.mxu0 0.0
      %700 = vmatprep.subr.mxu0 0.0
      %701 = vmatpush1.xpose.msra.mxu0 0.0
      %702 = vmatprep.subr.mxu0 0.0
      %703 = vmatpush1.xpose.msra.mxu0 0.0
      %704 = vmatprep.subr.mxu0 0.0
      %705 = vmatpush1.xpose.msra.mxu0 0.0
      %706 = vmatprep.subr.mxu0 0.0
      %707 = vmatpush1.xpose.msra.mxu0 0.0
      %708 = vmatprep.subr.mxu0 0.0
      %709 = vmatpush1.xpose.msra.mxu0 0.0
      %710 = vmatprep.subr.mxu0 0.0
      %711 = vmatpush1.xpose.msra.mxu0 0.0
      %712 = vmatprep.subr.mxu0 0.0
      %713 = vmatpush1.xpose.msra.mxu0 0.0
      %714 = vmatprep.subr.mxu0 0.0
      %715 = vmatpush1.xpose.msra.mxu0 0.0
      %716 = vmatprep.subr.mxu0 0.0
      %717 = vmatpush1.xpose.msra.mxu0 0.0
      %718 = vmatprep.subr.mxu0 0.0
      %719 = vmatpush1.xpose.msra.mxu0 0.0
      %720 = vmatprep.subr.mxu0 0.0
      %721 = vmatpush1.xpose.msra.mxu0 0.0
      %722 = vmatprep.subr.mxu0 0.0
      %723 = vmatpush1.xpose.msra.mxu0 0.0
      %724 = vmatprep.subr.mxu0 0.0
      %725 = vmatpush1.xpose.msra.mxu0 0.0
      %726 = vmatprep.subr.mxu0 0.0
      %727 = vmatpush1.xpose.msra.mxu0 0.0
      %728 = vmatprep.subr.mxu0 0.0
      %729 = vmatpush1.xpose.msra.mxu0 0.0
      %730 = vmatprep.subr.mxu0 0.0
      %731 = vmatpush1.xpose.msra.mxu0 0.0
      %732 = vmatprep.subr.mxu0 0.0
      %733 = vmatpush1.xpose.msra.mxu0 0.0
      %734 = vmatprep.subr.mxu0 0.0
      %735 = vmatpush1.xpose.msra.mxu0 0.0
      %736 = vmatprep.mubr.f32.mxu0 0.0
      %737 = vmatmul.mubr.f32.gmra.mrb[0].mxu0 %v667
      %v738 = vpop.f32.mrb[0].mxu0
      %v739 = vadd.f32 %v282, %v738
      %v740 = vpop.f32.mrb[0].mxu0
      %741 = vdwg.mxu0
      %v743 = vsel %vm285, %v259, 0
      %v746 = vsel %vm285, %v267, 0
      %748 = vmatprep.subr.mxu0 0.0
      %749 = vmatpush1.xpose.msra.mxu0 %v746
      %750 = vmatprep.subr.mxu0 0.0
      %751 = vmatpush1.xpose.msra.mxu0 0.0
      %752 = vmatprep.subr.mxu0 0.0
      %753 = vmatpush1.xpose.msra.mxu0 0.0
      %754 = vmatprep.subr.mxu0 0.0
      %755 = vmatpush1.xpose.msra.mxu0 0.0
      %756 = vmatprep.subr.mxu0 0.0
      %757 = vmatpush1.xpose.msra.mxu0 0.0
      %758 = vmatprep.subr.mxu0 0.0
      %759 = vmatpush1.xpose.msra.mxu0 0.0
      %760 = vmatprep.subr.mxu0 0.0
      %761 = vmatpush1.xpose.msra.mxu0 0.0
      %762 = vmatprep.subr.mxu0 0.0
      %763 = vmatpush1.xpose.msra.mxu0 0.0
      %764 = vmatprep.subr.mxu0 0.0
      %765 = vmatpush1.xpose.msra.mxu0 0.0
      %766 = vmatprep.subr.mxu0 0.0
      %767 = vmatpush1.xpose.msra.mxu0 0.0
      %768 = vmatprep.subr.mxu0 0.0
      %769 = vmatpush1.xpose.msra.mxu0 0.0
      %770 = vmatprep.subr.mxu0 0.0
      %771 = vmatpush1.xpose.msra.mxu0 0.0
      %772 = vmatprep.subr.mxu0 0.0
      %773 = vmatpush1.xpose.msra.mxu0 0.0
      %774 = vmatprep.subr.mxu0 0.0
      %775 = vmatpush1.xpose.msra.mxu0 0.0
      %776 = vmatprep.subr.mxu0 0.0
      %777 = vmatpush1.xpose.msra.mxu0 0.0
      %778 = vmatprep.subr.mxu0 0.0
      %779 = vmatpush1.xpose.msra.mxu0 0.0
      %780 = vmatprep.subr.mxu0 0.0
      %781 = vmatpush1.xpose.msra.mxu0 0.0
      %782 = vmatprep.subr.mxu0 0.0
      %783 = vmatpush1.xpose.msra.mxu0 0.0
      %784 = vmatprep.subr.mxu0 0.0
      %785 = vmatpush1.xpose.msra.mxu0 0.0
      %786 = vmatprep.subr.mxu0 0.0
      %787 = vmatpush1.xpose.msra.mxu0 0.0
      %788 = vmatprep.subr.mxu0 0.0
      %789 = vmatpush1.xpose.msra.mxu0 0.0
      %790 = vmatprep.subr.mxu0 0.0
      %791 = vmatpush1.xpose.msra.mxu0 0.0
      %792 = vmatprep.subr.mxu0 0.0
      %793 = vmatpush1.xpose.msra.mxu0 0.0
      %794 = vmatprep.subr.mxu0 0.0
      %795 = vmatpush1.xpose.msra.mxu0 0.0
      %796 = vmatprep.subr.mxu0 0.0
      %797 = vmatpush1.xpose.msra.mxu0 0.0
      %798 = vmatprep.subr.mxu0 0.0
      %799 = vmatpush1.xpose.msra.mxu0 0.0
      %800 = vmatprep.subr.mxu0 0.0
      %801 = vmatpush1.xpose.msra.mxu0 0.0
      %802 = vmatprep.subr.mxu0 0.0
      %803 = vmatpush1.xpose.msra.mxu0 0.0
      %804 = vmatprep.subr.mxu0 0.0
      %805 = vmatpush1.xpose.msra.mxu0 0.0
      %806 = vmatprep.subr.mxu0 0.0
      %807 = vmatpush1.xpose.msra.mxu0 0.0
      %808 = vmatprep.subr.mxu0 0.0
      %809 = vmatpush1.xpose.msra.mxu0 0.0
      %810 = vmatprep.subr.mxu0 0.0
      %811 = vmatpush1.xpose.msra.mxu0 0.0
      %812 = vmatprep.mubr.f32.mxu0 0.0
      %813 = vmatmul.mubr.f32.gmra.mrb[0].mxu0 %v743
      %v814 = vpop.f32.mrb[0].mxu0
      %v815 = vadd.f32 %v283, %v814
      %v816 = vpop.f32.mrb[0].mxu0
      %817 = vdwg.mxu0
      %v819 = vsel %vm285, %v260, 0
      %v822 = vsel %vm285, %v268, 0
      %824 = vmatprep.subr.mxu0 0.0
      %825 = vmatpush1.xpose.msra.mxu0 %v822
      %826 = vmatprep.subr.mxu0 0.0
      %827 = vmatpush1.xpose.msra.mxu0 0.0
      %828 = vmatprep.subr.mxu0 0.0
      %829 = vmatpush1.xpose.msra.mxu0 0.0
      %830 = vmatprep.subr.mxu0 0.0
      %831 = vmatpush1.xpose.msra.mxu0 0.0
      %832 = vmatprep.subr.mxu0 0.0
      %833 = vmatpush1.xpose.msra.mxu0 0.0
      %834 = vmatprep.subr.mxu0 0.0
      %835 = vmatpush1.xpose.msra.mxu0 0.0
      %836 = vmatprep.subr.mxu0 0.0
      %837 = vmatpush1.xpose.msra.mxu0 0.0
      %838 = vmatprep.subr.mxu0 0.0
      %839 = vmatpush1.xpose.msra.mxu0 0.0
      %840 = vmatprep.subr.mxu0 0.0
      %841 = vmatpush1.xpose.msra.mxu0 0.0
      %842 = vmatprep.subr.mxu0 0.0
      %843 = vmatpush1.xpose.msra.mxu0 0.0
      %844 = vmatprep.subr.mxu0 0.0
      %845 = vmatpush1.xpose.msra.mxu0 0.0
      %846 = vmatprep.subr.mxu0 0.0
      %847 = vmatpush1.xpose.msra.mxu0 0.0
      %848 = vmatprep.subr.mxu0 0.0
      %849 = vmatpush1.xpose.msra.mxu0 0.0
      %850 = vmatprep.subr.mxu0 0.0
      %851 = vmatpush1.xpose.msra.mxu0 0.0
      %852 = vmatprep.subr.mxu0 0.0
      %853 = vmatpush1.xpose.msra.mxu0 0.0
      %854 = vmatprep.subr.mxu0 0.0
      %855 = vmatpush1.xpose.msra.mxu0 0.0
      %856 = vmatprep.subr.mxu0 0.0
      %857 = vmatpush1.xpose.msra.mxu0 0.0
      %858 = vmatprep.subr.mxu0 0.0
      %859 = vmatpush1.xpose.msra.mxu0 0.0
      %860 = vmatprep.subr.mxu0 0.0
      %861 = vmatpush1.xpose.msra.mxu0 0.0
      %862 = vmatprep.subr.mxu0 0.0
      %863 = vmatpush1.xpose.msra.mxu0 0.0
      %864 = vmatprep.subr.mxu0 0.0
      %865 = vmatpush1.xpose.msra.mxu0 0.0
      %866 = vmatprep.subr.mxu0 0.0
      %867 = vmatpush1.xpose.msra.mxu0 0.0
      %868 = vmatprep.subr.mxu0 0.0
      %869 = vmatpush1.xpose.msra.mxu0 0.0
      %870 = vmatprep.subr.mxu0 0.0
      %871 = vmatpush1.xpose.msra.mxu0 0.0
      %872 = vmatprep.subr.mxu0 0.0
      %873 = vmatpush1.xpose.msra.mxu0 0.0
      %874 = vmatprep.subr.mxu0 0.0
      %875 = vmatpush1.xpose.msra.mxu0 0.0
      %876 = vmatprep.subr.mxu0 0.0
      %877 = vmatpush1.xpose.msra.mxu0 0.0
      %878 = vmatprep.subr.mxu0 0.0
      %879 = vmatpush1.xpose.msra.mxu0 0.0
      %880 = vmatprep.subr.mxu0 0.0
      %881 = vmatpush1.xpose.msra.mxu0 0.0
      %882 = vmatprep.subr.mxu0 0.0
      %883 = vmatpush1.xpose.msra.mxu0 0.0
      %884 = vmatprep.subr.mxu0 0.0
      %885 = vmatpush1.xpose.msra.mxu0 0.0
      %886 = vmatprep.subr.mxu0 0.0
      %887 = vmatpush1.xpose.msra.mxu0 0.0
      %888 = vmatprep.mubr.f32.mxu0 0.0
      %889 = vmatmul.mubr.f32.gmra.mrb[0].mxu0 %v819
      %v890 = vpop.f32.mrb[0].mxu0
      %v891 = vadd.f32 %v284, %v890
      %v892 = vpop.f32.mrb[0].mxu0
      %893 = vdwg.mxu0
      %vm894 = vcmask 27648
      %v895 = vsel %vm894, %v359, -inf
      %896 = vmax.xlane.f32.xlu0 %v895
      %v897 = vpop.xlane.xlu0 %896
      %v898 = vsel %vm894, %v435, -inf
      %899 = vmax.xlane.f32.xlu0 %v898
      %v900 = vpop.xlane.xlu0 %899
      %v901 = vsel %vm894, %v511, -inf
      %902 = vmax.xlane.f32.xlu0 %v901
      %v903 = vpop.xlane.xlu0 %902
      %v904 = vsel %vm894, %v587, -inf
      %905 = vmax.xlane.f32.xlu0 %v904
      %v906 = vpop.xlane.xlu0 %905
      %v907 = vsel %vm894, %v663, -inf
      %908 = vmax.xlane.f32.xlu0 %v907
      %v909 = vpop.xlane.xlu0 %908
      %v910 = vsel %vm894, %v739, -inf
      %911 = vmax.xlane.f32.xlu0 %v910
      %v912 = vpop.xlane.xlu0 %911
      %v913 = vsel %vm894, %v815, -inf
      %914 = vmax.xlane.f32.xlu0 %v913
      %v915 = vpop.xlane.xlu0 %914
      %v916 = vsel %vm894, %v891, -inf
      %917 = vmax.xlane.f32.xlu0 %v916
      %v918 = vpop.xlane.xlu0 %917
      %v919 = vsub.f32 %v359, %v897
      %v920 = vsub.f32 %v435, %v900
      %v921 = vsub.f32 %v511, %v903
      %v922 = vsub.f32 %v587, %v906
      %v923 = vsub.f32 %v663, %v909
      %v924 = vsub.f32 %v739, %v912
      %v925 = vsub.f32 %v815, %v915
      %v926 = vsub.f32 %v891, %v918
      %v927 = vmul.f32 %v919, 1.442695
      %v928 = vpow.pop %v927
      %v929 = vmul.f32 %v920, 1.442695
      %v930 = vpow.pop %v929
      %v931 = vmul.f32 %v921, 1.442695
      %v932 = vpow.pop %v931
      %v933 = vmul.f32 %v922, 1.442695
      %v934 = vpow.pop %v933
      %v935 = vmul.f32 %v923, 1.442695
      %v936 = vpow.pop %v935
      %v937 = vmul.f32 %v924, 1.442695
      %v938 = vpow.pop %v937
      %v939 = vmul.f32 %v925, 1.442695
      %v940 = vpow.pop %v939
      %v941 = vmul.f32 %v926, 1.442695
      %v942 = vpow.pop %v941
      %v943 = vsel %vm894, %v928, 0.0
      %944 = vadd.xlane.f32.xlu0 %v943
      %v945 = vpop.xlane.xlu0 %944
      %v946 = vsel %vm894, %v930, 0.0
      %947 = vadd.xlane.f32.xlu0 %v946
      %v948 = vpop.xlane.xlu0 %947
      %v949 = vsel %vm894, %v932, 0.0
      %950 = vadd.xlane.f32.xlu0 %v949
      %v951 = vpop.xlane.xlu0 %950
      %v952 = vsel %vm894, %v934, 0.0
      %953 = vadd.xlane.f32.xlu0 %v952
      %v954 = vpop.xlane.xlu0 %953
      %v955 = vsel %vm894, %v936, 0.0
      %956 = vadd.xlane.f32.xlu0 %v955
      %v957 = vpop.xlane.xlu0 %956
      %v958 = vsel %vm894, %v938, 0.0
      %959 = vadd.xlane.f32.xlu0 %v958
      %v960 = vpop.xlane.xlu0 %959
      %v961 = vsel %vm894, %v940, 0.0
      %962 = vadd.xlane.f32.xlu0 %v961
      %v963 = vpop.xlane.xlu0 %962
      %v964 = vsel %vm894, %v942, 0.0
      %965 = vadd.xlane.f32.xlu0 %v964
      %v966 = vpop.xlane.xlu0 %965
      %v967 = vrcp.pop %v945
      %v968 = vrcp.pop %v948
      %v969 = vrcp.pop %v951
      %v970 = vrcp.pop %v954
      %v971 = vrcp.pop %v957
      %v972 = vrcp.pop %v960
      %v973 = vrcp.pop %v963
      %v974 = vrcp.pop %v966
      %v975 = vmul.f32 %v928, %v967
      %v976 = vmul.f32 %v930, %v968
      %v977 = vmul.f32 %v932, %v969
      %v978 = vmul.f32 %v934, %v970
      %v979 = vmul.f32 %v936, %v971
      %v980 = vmul.f32 %v938, %v972
      %v981 = vmul.f32 %v940, %v973
      %v982 = vmul.f32 %v942, %v974
      %vm983 = vcmask 31744
      %v985 = vsel %vm983, %v975, 0
      %vm987 = vcmask 1043456
      %v989 = vsel %vm987, %v269, 0
      %991 = vmatprep.subr.mxu0 0.0
      %992 = vmatpush1.msra.mxu0 %v989
      %993 = vmatprep.subr.mxu0 0.0
      %994 = vmatpush1.msra.mxu0 0.0
      %995 = vmatprep.subr.mxu0 0.0
      %996 = vmatpush1.msra.mxu0 0.0
      %997 = vmatprep.subr.mxu0 0.0
      %998 = vmatpush1.msra.mxu0 0.0
      %999 = vmatprep.subr.mxu0 0.0
      %1000 = vmatpush1.msra.mxu0 0.0
      %1001 = vmatprep.subr.mxu0 0.0
      %1002 = vmatpush1.msra.mxu0 0.0
      %1003 = vmatprep.subr.mxu0 0.0
      %1004 = vmatpush1.msra.mxu0 0.0
      %1005 = vmatprep.subr.mxu0 0.0
      %1006 = vmatpush1.msra.mxu0 0.0
      %1007 = vmatprep.subr.mxu0 0.0
      %1008 = vmatpush1.msra.mxu0 0.0
      %1009 = vmatprep.subr.mxu0 0.0
      %1010 = vmatpush1.msra.mxu0 0.0
      %1011 = vmatprep.subr.mxu0 0.0
      %1012 = vmatpush1.msra.mxu0 0.0
      %1013 = vmatprep.subr.mxu0 0.0
      %1014 = vmatpush1.msra.mxu0 0.0
      %1015 = vmatprep.subr.mxu0 0.0
      %1016 = vmatpush1.msra.mxu0 0.0
      %1017 = vmatprep.subr.mxu0 0.0
      %1018 = vmatpush1.msra.mxu0 0.0
      %1019 = vmatprep.subr.mxu0 0.0
      %1020 = vmatpush1.msra.mxu0 0.0
      %1021 = vmatprep.subr.mxu0 0.0
      %1022 = vmatpush1.msra.mxu0 0.0
      %1023 = vmatprep.subr.mxu0 0.0
      %1024 = vmatpush1.msra.mxu0 0.0
      %1025 = vmatprep.subr.mxu0 0.0
      %1026 = vmatpush1.msra.mxu0 0.0
      %1027 = vmatprep.subr.mxu0 0.0
      %1028 = vmatpush1.msra.mxu0 0.0
      %1029 = vmatprep.subr.mxu0 0.0
      %1030 = vmatpush1.msra.mxu0 0.0
      %1031 = vmatprep.subr.mxu0 0.0
      %1032 = vmatpush1.msra.mxu0 0.0
      %1033 = vmatprep.subr.mxu0 0.0
      %1034 = vmatpush1.msra.mxu0 0.0
      %1035 = vmatprep.subr.mxu0 0.0
      %1036 = vmatpush1.msra.mxu0 0.0
      %1037 = vmatprep.subr.mxu0 0.0
      %1038 = vmatpush1.msra.mxu0 0.0
      %1039 = vmatprep.subr.mxu0 0.0
      %1040 = vmatpush1.msra.mxu0 0.0
      %1041 = vmatprep.subr.mxu0 0.0
      %1042 = vmatpush1.msra.mxu0 0.0
      %1043 = vmatprep.subr.mxu0 0.0
      %1044 = vmatpush1.msra.mxu0 0.0
      %1045 = vmatprep.subr.mxu0 0.0
      %1046 = vmatpush1.msra.mxu0 0.0
      %1047 = vmatprep.subr.mxu0 0.0
      %1048 = vmatpush1.msra.mxu0 0.0
      %1049 = vmatprep.subr.mxu0 0.0
      %1050 = vmatpush1.msra.mxu0 0.0
      %1051 = vmatprep.subr.mxu0 0.0
      %1052 = vmatpush1.msra.mxu0 0.0
      %1053 = vmatprep.subr.mxu0 0.0
      %1054 = vmatpush1.msra.mxu0 0.0
      %1055 = vmatprep.mubr.f32.mxu0 0.0
      %1056 = vmatmul.mubr.f32.gmra.mrb[0].mxu0 %v985
      %v1057 = vpop.f32.mrb[0].mxu0
      %v1058 = vadd.f32 0.0, %v1057
      %v1059 = vpop.f32.mrb[0].mxu0
      %1060 = vdwg.mxu0
      %v1062 = vsel %vm983, %v976, 0
      %v1065 = vsel %vm987, %v270, 0
      %1067 = vmatprep.subr.mxu0 0.0
      %1068 = vmatpush1.msra.mxu0 %v1065
      %1069 = vmatprep.subr.mxu0 0.0
      %1070 = vmatpush1.msra.mxu0 0.0
      %1071 = vmatprep.subr.mxu0 0.0
      %1072 = vmatpush1.msra.mxu0 0.0
      %1073 = vmatprep.subr.mxu0 0.0
      %1074 = vmatpush1.msra.mxu0 0.0
      %1075 = vmatprep.subr.mxu0 0.0
      %1076 = vmatpush1.msra.mxu0 0.0
      %1077 = vmatprep.subr.mxu0 0.0
      %1078 = vmatpush1.msra.mxu0 0.0
      %1079 = vmatprep.subr.mxu0 0.0
      %1080 = vmatpush1.msra.mxu0 0.0
      %1081 = vmatprep.subr.mxu0 0.0
      %1082 = vmatpush1.msra.mxu0 0.0
      %1083 = vmatprep.subr.mxu0 0.0
      %1084 = vmatpush1.msra.mxu0 0.0
      %1085 = vmatprep.subr.mxu0 0.0
      %1086 = vmatpush1.msra.mxu0 0.0
      %1087 = vmatprep.subr.mxu0 0.0
      %1088 = vmatpush1.msra.mxu0 0.0
      %1089 = vmatprep.subr.mxu0 0.0
      %1090 = vmatpush1.msra.mxu0 0.0
      %1091 = vmatprep.subr.mxu0 0.0
      %1092 = vmatpush1.msra.mxu0 0.0
      %1093 = vmatprep.subr.mxu0 0.0
      %1094 = vmatpush1.msra.mxu0 0.0
      %1095 = vmatprep.subr.mxu0 0.0
      %1096 = vmatpush1.msra.mxu0 0.0
      %1097 = vmatprep.subr.mxu0 0.0
      %1098 = vmatpush1.msra.mxu0 0.0
      %1099 = vmatprep.subr.mxu0 0.0
      %1100 = vmatpush1.msra.mxu0 0.0
      %1101 = vmatprep.subr.mxu0 0.0
      %1102 = vmatpush1.msra.mxu0 0.0
      %1103 = vmatprep.subr.mxu0 0.0
      %1104 = vmatpush1.msra.mxu0 0.0
      %1105 = vmatprep.subr.mxu0 0.0
      %1106 = vmatpush1.msra.mxu0 0.0
      %1107 = vmatprep.subr.mxu0 0.0
      %1108 = vmatpush1.msra.mxu0 0.0
      %1109 = vmatprep.subr.mxu0 0.0
      %1110 = vmatpush1.msra.mxu0 0.0
      %1111 = vmatprep.subr.mxu0 0.0
      %1112 = vmatpush1.msra.mxu0 0.0
      %1113 = vmatprep.subr.mxu0 0.0
      %1114 = vmatpush1.msra.mxu0 0.0
      %1115 = vmatprep.subr.mxu0 0.0
      %1116 = vmatpush1.msra.mxu0 0.0
      %1117 = vmatprep.subr.mxu0 0.0
      %1118 = vmatpush1.msra.mxu0 0.0
      %1119 = vmatprep.subr.mxu0 0.0
      %1120 = vmatpush1.msra.mxu0 0.0
      %1121 = vmatprep.subr.mxu0 0.0
      %1122 = vmatpush1.msra.mxu0 0.0
      %1123 = vmatprep.subr.mxu0 0.0
      %1124 = vmatpush1.msra.mxu0 0.0
      %1125 = vmatprep.subr.mxu0 0.0
      %1126 = vmatpush1.msra.mxu0 0.0
      %1127 = vmatprep.subr.mxu0 0.0
      %1128 = vmatpush1.msra.mxu0 0.0
      %1129 = vmatprep.subr.mxu0 0.0
      %1130 = vmatpush1.msra.mxu0 0.0
      %1131 = vmatprep.mubr.f32.mxu0 0.0
      %1132 = vmatmul.mubr.f32.gmra.mrb[0].mxu0 %v1062
      %v1133 = vpop.f32.mrb[0].mxu0
      %v1134 = vadd.f32 0.0, %v1133
      %v1135 = vpop.f32.mrb[0].mxu0
      %1136 = vdwg.mxu0
      %v1138 = vsel %vm983, %v977, 0
      %v1141 = vsel %vm987, %v271, 0
      %1143 = vmatprep.subr.mxu0 0.0
      %1144 = vmatpush1.msra.mxu0 %v1141
      %1145 = vmatprep.subr.mxu0 0.0
      %1146 = vmatpush1.msra.mxu0 0.0
      %1147 = vmatprep.subr.mxu0 0.0
      %1148 = vmatpush1.msra.mxu0 0.0
      %1149 = vmatprep.subr.mxu0 0.0
      %1150 = vmatpush1.msra.mxu0 0.0
      %1151 = vmatprep.subr.mxu0 0.0
      %1152 = vmatpush1.msra.mxu0 0.0
      %1153 = vmatprep.subr.mxu0 0.0
      %1154 = vmatpush1.msra.mxu0 0.0
      %1155 = vmatprep.subr.mxu0 0.0
      %1156 = vmatpush1.msra.mxu0 0.0
      %1157 = vmatprep.subr.mxu0 0.0
      %1158 = vmatpush1.msra.mxu0 0.0
      %1159 = vmatprep.subr.mxu0 0.0
      %1160 = vmatpush1.msra.mxu0 0.0
      %1161 = vmatprep.subr.mxu0 0.0
      %1162 = vmatpush1.msra.mxu0 0.0
      %1163 = vmatprep.subr.mxu0 0.0
      %1164 = vmatpush1.msra.mxu0 0.0
      %1165 = vmatprep.subr.mxu0 0.0
      %1166 = vmatpush1.msra.mxu0 0.0
      %1167 = vmatprep.subr.mxu0 0.0
      %1168 = vmatpush1.msra.mxu0 0.0
      %1169 = vmatprep.subr.mxu0 0.0
      %1170 = vmatpush1.msra.mxu0 0.0
      %1171 = vmatprep.subr.mxu0 0.0
      %1172 = vmatpush1.msra.mxu0 0.0
      %1173 = vmatprep.subr.mxu0 0.0
      %1174 = vmatpush1.msra.mxu0 0.0
      %1175 = vmatprep.subr.mxu0 0.0
      %1176 = vmatpush1.msra.mxu0 0.0
      %1177 = vmatprep.subr.mxu0 0.0
      %1178 = vmatpush1.msra.mxu0 0.0
      %1179 = vmatprep.subr.mxu0 0.0
      %1180 = vmatpush1.msra.mxu0 0.0
      %1181 = vmatprep.subr.mxu0 0.0
      %1182 = vmatpush1.msra.mxu0 0.0
      %1183 = vmatprep.subr.mxu0 0.0
      %1184 = vmatpush1.msra.mxu0 0.0
      %1185 = vmatprep.subr.mxu0 0.0
      %1186 = vmatpush1.msra.mxu0 0.0
      %1187 = vmatprep.subr.mxu0 0.0
      %1188 = vmatpush1.msra.mxu0 0.0
      %1189 = vmatprep.subr.mxu0 0.0
      %1190 = vmatpush1.msra.mxu0 0.0
      %1191 = vmatprep.subr.mxu0 0.0
      %1192 = vmatpush1.msra.mxu0 0.0
      %1193 = vmatprep.subr.mxu0 0.0
      %1194 = vmatpush1.msra.mxu0 0.0
      %1195 = vmatprep.subr.mxu0 0.0
      %1196 = vmatpush1.msra.mxu0 0.0
      %1197 = vmatprep.subr.mxu0 0.0
      %1198 = vmatpush1.msra.mxu0 0.0
      %1199 = vmatprep.subr.mxu0 0.0
      %1200 = vmatpush1.msra.mxu0 0.0
      %1201 = vmatprep.subr.mxu0 0.0
      %1202 = vmatpush1.msra.mxu0 0.0
      %1203 = vmatprep.subr.mxu0 0.0
      %1204 = vmatpush1.msra.mxu0 0.0
      %1205 = vmatprep.subr.mxu0 0.0
      %1206 = vmatpush1.msra.mxu0 0.0
      %1207 = vmatprep.mubr.f32.mxu0 0.0
      %1208 = vmatmul.mubr.f32.gmra.mrb[0].mxu0 %v1138
      %v1209 = vpop.f32.mrb[0].mxu0
      %v1210 = vadd.f32 0.0, %v1209
      %v1211 = vpop.f32.mrb[0].mxu0
      %1212 = vdwg.mxu0
      %v1214 = vsel %vm983, %v978, 0
      %v1217 = vsel %vm987, %v272, 0
      %1219 = vmatprep.subr.mxu0 0.0
      %1220 = vmatpush1.msra.mxu0 %v1217
      %1221 = vmatprep.subr.mxu0 0.0
      %1222 = vmatpush1.msra.mxu0 0.0
      %1223 = vmatprep.subr.mxu0 0.0
      %1224 = vmatpush1.msra.mxu0 0.0
      %1225 = vmatprep.subr.mxu0 0.0
      %1226 = vmatpush1.msra.mxu0 0.0
      %1227 = vmatprep.subr.mxu0 0.0
      %1228 = vmatpush1.msra.mxu0 0.0
      %1229 = vmatprep.subr.mxu0 0.0
      %1230 = vmatpush1.msra.mxu0 0.0
      %1231 = vmatprep.subr.mxu0 0.0
      %1232 = vmatpush1.msra.mxu0 0.0
      %1233 = vmatprep.subr.mxu0 0.0
      %1234 = vmatpush1.msra.mxu0 0.0
      %1235 = vmatprep.subr.mxu0 0.0
      %1236 = vmatpush1.msra.mxu0 0.0
      %1237 = vmatprep.subr.mxu0 0.0
      %1238 = vmatpush1.msra.mxu0 0.0
      %1239 = vmatprep.subr.mxu0 0.0
      %1240 = vmatpush1.msra.mxu0 0.0
      %1241 = vmatprep.subr.mxu0 0.0
      %1242 = vmatpush1.msra.mxu0 0.0
      %1243 = vmatprep.subr.mxu0 0.0
      %1244 = vmatpush1.msra.mxu0 0.0
      %1245 = vmatprep.subr.mxu0 0.0
      %1246 = vmatpush1.msra.mxu0 0.0
      %1247 = vmatprep.subr.mxu0 0.0
      %1248 = vmatpush1.msra.mxu0 0.0
      %1249 = vmatprep.subr.mxu0 0.0
      %1250 = vmatpush1.msra.mxu0 0.0
      %1251 = vmatprep.subr.mxu0 0.0
      %1252 = vmatpush1.msra.mxu0 0.0
      %1253 = vmatprep.subr.mxu0 0.0
      %1254 = vmatpush1.msra.mxu0 0.0
      %1255 = vmatprep.subr.mxu0 0.0
      %1256 = vmatpush1.msra.mxu0 0.0
      %1257 = vmatprep.subr.mxu0 0.0
      %1258 = vmatpush1.msra.mxu0 0.0
      %1259 = vmatprep.subr.mxu0 0.0
      %1260 = vmatpush1.msra.mxu0 0.0
      %1261 = vmatprep.subr.mxu0 0.0
      %1262 = vmatpush1.msra.mxu0 0.0
      %1263 = vmatprep.subr.mxu0 0.0
      %1264 = vmatpush1.msra.mxu0 0.0
      %1265 = vmatprep.subr.mxu0 0.0
      %1266 = vmatpush1.msra.mxu0 0.0
      %1267 = vmatprep.subr.mxu0 0.0
      %1268 = vmatpush1.msra.mxu0 0.0
      %1269 = vmatprep.subr.mxu0 0.0
      %1270 = vmatpush1.msra.mxu0 0.0
      %1271 = vmatprep.subr.mxu0 0.0
      %1272 = vmatpush1.msra.mxu0 0.0
      %1273 = vmatprep.subr.mxu0 0.0
      %1274 = vmatpush1.msra.mxu0 0.0
      %1275 = vmatprep.subr.mxu0 0.0
      %1276 = vmatpush1.msra.mxu0 0.0
      %1277 = vmatprep.subr.mxu0 0.0
      %1278 = vmatpush1.msra.mxu0 0.0
      %1279 = vmatprep.subr.mxu0 0.0
      %1280 = vmatpush1.msra.mxu0 0.0
      %1281 = vmatprep.subr.mxu0 0.0
      %1282 = vmatpush1.msra.mxu0 0.0
      %1283 = vmatprep.mubr.f32.mxu0 0.0
      %1284 = vmatmul.mubr.f32.gmra.mrb[0].mxu0 %v1214
      %v1285 = vpop.f32.mrb[0].mxu0
      %v1286 = vadd.f32 0.0, %v1285
      %v1287 = vpop.f32.mrb[0].mxu0
      %1288 = vdwg.mxu0
      %v1290 = vsel %vm983, %v979, 0
      %v1293 = vsel %vm987, %v273, 0
      %1295 = vmatprep.subr.mxu0 0.0
      %1296 = vmatpush1.msra.mxu0 %v1293
      %1297 = vmatprep.subr.mxu0 0.0
      %1298 = vmatpush1.msra.mxu0 0.0
      %1299 = vmatprep.subr.mxu0 0.0
      %1300 = vmatpush1.msra.mxu0 0.0
      %1301 = vmatprep.subr.mxu0 0.0
      %1302 = vmatpush1.msra.mxu0 0.0
      %1303 = vmatprep.subr.mxu0 0.0
      %1304 = vmatpush1.msra.mxu0 0.0
      %1305 = vmatprep.subr.mxu0 0.0
      %1306 = vmatpush1.msra.mxu0 0.0
      %1307 = vmatprep.subr.mxu0 0.0
      %1308 = vmatpush1.msra.mxu0 0.0
      %1309 = vmatprep.subr.mxu0 0.0
      %1310 = vmatpush1.msra.mxu0 0.0
      %1311 = vmatprep.subr.mxu0 0.0
      %1312 = vmatpush1.msra.mxu0 0.0
      %1313 = vmatprep.subr.mxu0 0.0
      %1314 = vmatpush1.msra.mxu0 0.0
      %1315 = vmatprep.subr.mxu0 0.0
      %1316 = vmatpush1.msra.mxu0 0.0
      %1317 = vmatprep.subr.mxu0 0.0
      %1318 = vmatpush1.msra.mxu0 0.0
      %1319 = vmatprep.subr.mxu0 0.0
      %1320 = vmatpush1.msra.mxu0 0.0
      %1321 = vmatprep.subr.mxu0 0.0
      %1322 = vmatpush1.msra.mxu0 0.0
      %1323 = vmatprep.subr.mxu0 0.0
      %1324 = vmatpush1.msra.mxu0 0.0
      %1325 = vmatprep.subr.mxu0 0.0
      %1326 = vmatpush1.msra.mxu0 0.0
      %1327 = vmatprep.subr.mxu0 0.0
      %1328 = vmatpush1.msra.mxu0 0.0
      %1329 = vmatprep.subr.mxu0 0.0
      %1330 = vmatpush1.msra.mxu0 0.0
      %1331 = vmatprep.subr.mxu0 0.0
      %1332 = vmatpush1.msra.mxu0 0.0
      %1333 = vmatprep.subr.mxu0 0.0
      %1334 = vmatpush1.msra.mxu0 0.0
      %1335 = vmatprep.subr.mxu0 0.0
      %1336 = vmatpush1.msra.mxu0 0.0
      %1337 = vmatprep.subr.mxu0 0.0
      %1338 = vmatpush1.msra.mxu0 0.0
      %1339 = vmatprep.subr.mxu0 0.0
      %1340 = vmatpush1.msra.mxu0 0.0
      %1341 = vmatprep.subr.mxu0 0.0
      %1342 = vmatpush1.msra.mxu0 0.0
      %1343 = vmatprep.subr.mxu0 0.0
      %1344 = vmatpush1.msra.mxu0 0.0
      %1345 = vmatprep.subr.mxu0 0.0
      %1346 = vmatpush1.msra.mxu0 0.0
      %1347 = vmatprep.subr.mxu0 0.0
      %1348 = vmatpush1.msra.mxu0 0.0
      %1349 = vmatprep.subr.mxu0 0.0
      %1350 = vmatpush1.msra.mxu0 0.0
      %1351 = vmatprep.subr.mxu0 0.0
      %1352 = vmatpush1.msra.mxu0 0.0
      %1353 = vmatprep.subr.mxu0 0.0
      %1354 = vmatpush1.msra.mxu0 0.0
      %1355 = vmatprep.subr.mxu0 0.0
      %1356 = vmatpush1.msra.mxu0 0.0
      %1357 = vmatprep.subr.mxu0 0.0
      %1358 = vmatpush1.msra.mxu0 0.0
      %1359 = vmatprep.mubr.f32.mxu0 0.0
      %1360 = vmatmul.mubr.f32.gmra.mrb[0].mxu0 %v1290
      %v1361 = vpop.f32.mrb[0].mxu0
      %v1362 = vadd.f32 0.0, %v1361
      %v1363 = vpop.f32.mrb[0].mxu0
      %1364 = vdwg.mxu0
      %v1366 = vsel %vm983, %v980, 0
      %v1369 = vsel %vm987, %v274, 0
      %1371 = vmatprep.subr.mxu0 0.0
      %1372 = vmatpush1.msra.mxu0 %v1369
      %1373 = vmatprep.subr.mxu0 0.0
      %1374 = vmatpush1.msra.mxu0 0.0
      %1375 = vmatprep.subr.mxu0 0.0
      %1376 = vmatpush1.msra.mxu0 0.0
      %1377 = vmatprep.subr.mxu0 0.0
      %1378 = vmatpush1.msra.mxu0 0.0
      %1379 = vmatprep.subr.mxu0 0.0
      %1380 = vmatpush1.msra.mxu0 0.0
      %1381 = vmatprep.subr.mxu0 0.0
      %1382 = vmatpush1.msra.mxu0 0.0
      %1383 = vmatprep.subr.mxu0 0.0
      %1384 = vmatpush1.msra.mxu0 0.0
      %1385 = vmatprep.subr.mxu0 0.0
      %1386 = vmatpush1.msra.mxu0 0.0
      %1387 = vmatprep.subr.mxu0 0.0
      %1388 = vmatpush1.msra.mxu0 0.0
      %1389 = vmatprep.subr.mxu0 0.0
      %1390 = vmatpush1.msra.mxu0 0.0
      %1391 = vmatprep.subr.mxu0 0.0
      %1392 = vmatpush1.msra.mxu0 0.0
      %1393 = vmatprep.subr.mxu0 0.0
      %1394 = vmatpush1.msra.mxu0 0.0
      %1395 = vmatprep.subr.mxu0 0.0
      %1396 = vmatpush1.msra.mxu0 0.0
      %1397 = vmatprep.subr.mxu0 0.0
      %1398 = vmatpush1.msra.mxu0 0.0
      %1399 = vmatprep.subr.mxu0 0.0
      %1400 = vmatpush1.msra.mxu0 0.0
      %1401 = vmatprep.subr.mxu0 0.0
      %1402 = vmatpush1.msra.mxu0 0.0
      %1403 = vmatprep.subr.mxu0 0.0
      %1404 = vmatpush1.msra.mxu0 0.0
      %1405 = vmatprep.subr.mxu0 0.0
      %1406 = vmatpush1.msra.mxu0 0.0
      %1407 = vmatprep.subr.mxu0 0.0
      %1408 = vmatpush1.msra.mxu0 0.0
      %1409 = vmatprep.subr.mxu0 0.0
      %1410 = vmatpush1.msra.mxu0 0.0
      %1411 = vmatprep.subr.mxu0 0.0
      %1412 = vmatpush1.msra.mxu0 0.0
      %1413 = vmatprep.subr.mxu0 0.0
      %1414 = vmatpush1.msra.mxu0 0.0
      %1415 = vmatprep.subr.mxu0 0.0
      %1416 = vmatpush1.msra.mxu0 0.0
      %1417 = vmatprep.subr.mxu0 0.0
      %1418 = vmatpush1.msra.mxu0 0.0
      %1419 = vmatprep.subr.mxu0 0.0
      %1420 = vmatpush1.msra.mxu0 0.0
      %1421 = vmatprep.subr.mxu0 0.0
      %1422 = vmatpush1.msra.mxu0 0.0
      %1423 = vmatprep.subr.mxu0 0.0
      %1424 = vmatpush1.msra.mxu0 0.0
      %1425 = vmatprep.subr.mxu0 0.0
      %1426 = vmatpush1.msra.mxu0 0.0
      %1427 = vmatprep.subr.mxu0 0.0
      %1428 = vmatpush1.msra.mxu0 0.0
      %1429 = vmatprep.subr.mxu0 0.0
      %1430 = vmatpush1.msra.mxu0 0.0
      %1431 = vmatprep.subr.mxu0 0.0
      %1432 = vmatpush1.msra.mxu0 0.0
      %1433 = vmatprep.subr.mxu0 0.0
      %1434 = vmatpush1.msra.mxu0 0.0
      %1435 = vmatprep.mubr.f32.mxu0 0.0
      %1436 = vmatmul.mubr.f32.gmra.mrb[0].mxu0 %v1366
      %v1437 = vpop.f32.mrb[0].mxu0
      %v1438 = vadd.f32 0.0, %v1437
      %v1439 = vpop.f32.mrb[0].mxu0
      %1440 = vdwg.mxu0
      %v1442 = vsel %vm983, %v981, 0
      %v1445 = vsel %vm987, %v275, 0
      %1447 = vmatprep.subr.mxu0 0.0
      %1448 = vmatpush1.msra.mxu0 %v1445
      %1449 = vmatprep.subr.mxu0 0.0
      %1450 = vmatpush1.msra.mxu0 0.0
      %1451 = vmatprep.subr.mxu0 0.0
      %1452 = vmatpush1.msra.mxu0 0.0
      %1453 = vmatprep.subr.mxu0 0.0
      %1454 = vmatpush1.msra.mxu0 0.0
      %1455 = vmatprep.subr.mxu0 0.0
      %1456 = vmatpush1.msra.mxu0 0.0
      %1457 = vmatprep.subr.mxu0 0.0
      %1458 = vmatpush1.msra.mxu0 0.0
      %1459 = vmatprep.subr.mxu0 0.0
      %1460 = vmatpush1.msra.mxu0 0.0
      %1461 = vmatprep.subr.mxu0 0.0
      %1462 = vmatpush1.msra.mxu0 0.0
      %1463 = vmatprep.subr.mxu0 0.0
      %1464 = vmatpush1.msra.mxu0 0.0
      %1465 = vmatprep.subr.mxu0 0.0
      %1466 = vmatpush1.msra.mxu0 0.0
      %1467 = vmatprep.subr.mxu0 0.0
      %1468 = vmatpush1.msra.mxu0 0.0
      %1469 = vmatprep.subr.mxu0 0.0
      %1470 = vmatpush1.msra.mxu0 0.0
      %1471 = vmatprep.subr.mxu0 0.0
      %1472 = vmatpush1.msra.mxu0 0.0
      %1473 = vmatprep.subr.mxu0 0.0
      %1474 = vmatpush1.msra.mxu0 0.0
      %1475 = vmatprep.subr.mxu0 0.0
      %1476 = vmatpush1.msra.mxu0 0.0
      %1477 = vmatprep.subr.mxu0 0.0
      %1478 = vmatpush1.msra.mxu0 0.0
      %1479 = vmatprep.subr.mxu0 0.0
      %1480 = vmatpush1.msra.mxu0 0.0
      %1481 = vmatprep.subr.mxu0 0.0
      %1482 = vmatpush1.msra.mxu0 0.0
      %1483 = vmatprep.subr.mxu0 0.0
      %1484 = vmatpush1.msra.mxu0 0.0
      %1485 = vmatprep.subr.mxu0 0.0
      %1486 = vmatpush1.msra.mxu0 0.0
      %1487 = vmatprep.subr.mxu0 0.0
      %1488 = vmatpush1.msra.mxu0 0.0
      %1489 = vmatprep.subr.mxu0 0.0
      %1490 = vmatpush1.msra.mxu0 0.0
      %1491 = vmatprep.subr.mxu0 0.0
      %1492 = vmatpush1.msra.mxu0 0.0
      %1493 = vmatprep.subr.mxu0 0.0
      %1494 = vmatpush1.msra.mxu0 0.0
      %1495 = vmatprep.subr.mxu0 0.0
      %1496 = vmatpush1.msra.mxu0 0.0
      %1497 = vmatprep.subr.mxu0 0.0
      %1498 = vmatpush1.msra.mxu0 0.0
      %1499 = vmatprep.subr.mxu0 0.0
      %1500 = vmatpush1.msra.mxu0 0.0
      %1501 = vmatprep.subr.mxu0 0.0
      %1502 = vmatpush1.msra.mxu0 0.0
      %1503 = vmatprep.subr.mxu0 0.0
      %1504 = vmatpush1.msra.mxu0 0.0
      %1505 = vmatprep.subr.mxu0 0.0
      %1506 = vmatpush1.msra.mxu0 0.0
      %1507 = vmatprep.subr.mxu0 0.0
      %1508 = vmatpush1.msra.mxu0 0.0
      %1509 = vmatprep.subr.mxu0 0.0
      %1510 = vmatpush1.msra.mxu0 0.0
      %1511 = vmatprep.mubr.f32.mxu0 0.0
      %1512 = vmatmul.mubr.f32.gmra.mrb[0].mxu0 %v1442
      %v1513 = vpop.f32.mrb[0].mxu0
      %v1514 = vadd.f32 0.0, %v1513
      %v1515 = vpop.f32.mrb[0].mxu0
      %1516 = vdwg.mxu0
      %v1518 = vsel %vm983, %v982, 0
      %v1521 = vsel %vm987, %v276, 0
      %1523 = vmatprep.subr.mxu0 0.0
      %1524 = vmatpush1.msra.mxu0 %v1521
      %1525 = vmatprep.subr.mxu0 0.0
      %1526 = vmatpush1.msra.mxu0 0.0
      %1527 = vmatprep.subr.mxu0 0.0
      %1528 = vmatpush1.msra.mxu0 0.0
      %1529 = vmatprep.subr.mxu0 0.0
      %1530 = vmatpush1.msra.mxu0 0.0
      %1531 = vmatprep.subr.mxu0 0.0
      %1532 = vmatpush1.msra.mxu0 0.0
      %1533 = vmatprep.subr.mxu0 0.0
      %1534 = vmatpush1.msra.mxu0 0.0
      %1535 = vmatprep.subr.mxu0 0.0
      %1536 = vmatpush1.msra.mxu0 0.0
      %1537 = vmatprep.subr.mxu0 0.0
      %1538 = vmatpush1.msra.mxu0 0.0
      %1539 = vmatprep.subr.mxu0 0.0
      %1540 = vmatpush1.msra.mxu0 0.0
      %1541 = vmatprep.subr.mxu0 0.0
      %1542 = vmatpush1.msra.mxu0 0.0
      %1543 = vmatprep.subr.mxu0 0.0
      %1544 = vmatpush1.msra.mxu0 0.0
      %1545 = vmatprep.subr.mxu0 0.0
      %1546 = vmatpush1.msra.mxu0 0.0
      %1547 = vmatprep.subr.mxu0 0.0
      %1548 = vmatpush1.msra.mxu0 0.0
      %1549 = vmatprep.subr.mxu0 0.0
      %1550 = vmatpush1.msra.mxu0 0.0
      %1551 = vmatprep.subr.mxu0 0.0
      %1552 = vmatpush1.msra.mxu0 0.0
      %1553 = vmatprep.subr.mxu0 0.0
      %1554 = vmatpush1.msra.mxu0 0.0
      %1555 = vmatprep.subr.mxu0 0.0
      %1556 = vmatpush1.msra.mxu0 0.0
      %1557 = vmatprep.subr.mxu0 0.0
      %1558 = vmatpush1.msra.mxu0 0.0
      %1559 = vmatprep.subr.mxu0 0.0
      %1560 = vmatpush1.msra.mxu0 0.0
      %1561 = vmatprep.subr.mxu0 0.0
      %1562 = vmatpush1.msra.mxu0 0.0
      %1563 = vmatprep.subr.mxu0 0.0
      %1564 = vmatpush1.msra.mxu0 0.0
      %1565 = vmatprep.subr.mxu0 0.0
      %1566 = vmatpush1.msra.mxu0 0.0
      %1567 = vmatprep.subr.mxu0 0.0
      %1568 = vmatpush1.msra.mxu0 0.0
      %1569 = vmatprep.subr.mxu0 0.0
      %1570 = vmatpush1.msra.mxu0 0.0
      %1571 = vmatprep.subr.mxu0 0.0
      %1572 = vmatpush1.msra.mxu0 0.0
      %1573 = vmatprep.subr.mxu0 0.0
      %1574 = vmatpush1.msra.mxu0 0.0
      %1575 = vmatprep.subr.mxu0 0.0
      %1576 = vmatpush1.msra.mxu0 0.0
      %1577 = vmatprep.subr.mxu0 0.0
      %1578 = vmatpush1.msra.mxu0 0.0
      %1579 = vmatprep.subr.mxu0 0.0
      %1580 = vmatpush1.msra.mxu0 0.0
      %1581 = vmatprep.subr.mxu0 0.0
      %1582 = vmatpush1.msra.mxu0 0.0
      %1583 = vmatprep.subr.mxu0 0.0
      %1584 = vmatpush1.msra.mxu0 0.0
      %1585 = vmatprep.subr.mxu0 0.0
      %1586 = vmatpush1.msra.mxu0 0.0
      %1587 = vmatprep.mubr.f32.mxu0 0.0
      %1588 = vmatmul.mubr.f32.gmra.mrb[0].mxu0 %v1518
      %v1589 = vpop.f32.mrb[0].mxu0
      %v1590 = vadd.f32 0.0, %v1589
      %v1591 = vpop.f32.mrb[0].mxu0
      %1592 = vdwg.mxu0
      %vm1593 = vcmask 125952
      %1594 = vst.msk [vmem:[%s243] sm:$0xf] %vm1593, %v1058
      %1595 = vst.msk [vmem:[%s243 + $0x4] sm:$0xf] %vm1593, %v1134
      %1596 = vst.msk [vmem:[%s243 + $0x8] sm:$0xf] %vm1593, %v1210
      %1597 = vst.msk [vmem:[%s243 + $0xc] sm:$0xf] %vm1593, %v1286
      %1598 = vst.msk [vmem:[%s243 + $0x10] sm:$0xf] %vm1593, %v1362
      %1599 = vst.msk [vmem:[%s243 + $0x14] sm:$0xf] %vm1593, %v1438
      %1600 = vst.msk [vmem:[%s243 + $0x18] sm:$0xf] %vm1593, %v1514
      %1601 = vst.msk [vmem:[%s243 + $0x1c] sm:$0xf] %vm1593, %v1590
      %s1602 = smul.u32 8, %s15
      %p1603 = scmp.lt.s32.totalorder %s1602, 15
      %s1604 = scalar_select %p1603, %s1602, 15
      %s1605 = smul.addr %s1604, 4
      %s1606 = scalar_lea.vmem %s4, %s1605
      // Predicated region
      $region37: #{_lambda_.34} parent=35 // pred_check
        %p1607 = pneg %p132
      $region38: #{_lambda_.34} parent=35 // pred_check_branch
        %1609 = sbr.rel (%p1607) target = $region40
      $region39: #{_lambda_.34} parent=35 // pred_region
        %s1610 = smul.u32 8, %s15
      $region40: #{_lambda_.34} parent=35 // pred_fallthru
        _
    $region36: #{_lambda_.34} parent=5 // pred_fallthru
      _
    %p1611 = scmp.le.s32.totalorder 2, %s10
    // Predicated region
    $region41: #{_lambda_.34} parent=5 // pred_check
      %p1612 = pneg %p1611
    $region42: #{_lambda_.34} parent=5 // pred_check_branch
      %1614 = sbr.rel (%p1612) target = $region44
    $region43: #{_lambda_.34} parent=5 // pred_region
      %s1615 = ssub.s32 %s10, 2
      // Predicated region
      $region45: #{_lambda_.34} parent=43 // pred_check
        %p1616 = pneg %p138
      $region46: #{_lambda_.34} parent=43 // pred_check_branch
        %1618 = sbr.rel (%p1616) target = $region48
      $region47: #{_lambda_.34} parent=43 // pred_region
        %s1619 = smul.u32 8, %s16
        %p1620 = scmp.lt.s32.totalorder %s1619, 15
        %s1621 = scalar_select %p1620, %s1619, 15
        %s1622 = smul.addr %s1621, 4
        %s1623 = scalar_lea.vmem %s4, %s1622
      $region48: #{_lambda_.34} parent=43 // pred_fallthru
        _
    $region44: #{_lambda_.34} parent=5 // pred_fallthru
      _
  $region6: #{_lambda_.34} parent=0 // loop_footer
    %s14 = sadd.s32 1, %s10
  $region7: #{_lambda_.34} parent=0 // loop_footer_branch
    %9 = sbr.rel target = $region3
  $region8: #{_lambda_.34} parent=0 // loop_exit
    _

// kernel: _lambda_.43
$region0: #{_lambda_.43}
  #allocation0 [shape = 'u32[]', space=smem, size = 0x4, offset = 0x4, fixed_abs, tag = 'smem constant byte address 0x4 - core index']
  #allocation1 [shape = 'u32[144,128]{1,0:T(1,128)}', space=vmem, size = 0x12000, scoped, tag = 'internal scratch']
  %s0 = inlined_call_operand.vmem [shape: f32[32,32], index: 0, kind: input, shape index: {}]
  %s1 = inlined_call_operand.vmem [shape: f32[1,32], index: 1, kind: input, shape index: {}]
  %s2 = inlined_call_operand.vmem [shape: f32[1,32], index: 2, kind: input, shape index: {}]
  %s3 = inlined_call_operand.vmem [shape: f32[32,64], index: 3, kind: input, shape index: {}]
  %s4 = inlined_call_operand.vmem [shape: f32[1,64], index: 4, kind: input, shape index: {}]
  %s5 = inlined_call_operand.vmem [shape: f32[32,64], index: 5, kind: output, shape index: {}]
  %s6 = sld [smem:[#allocation0]]
  $region30: #{_lambda_.43} parent=0
    _
  %s8 = ssub.s32 1, %s6
  %s9 = scalar_select 0, %s8, %s6
  // Predicated region
  $region2: #{_lambda_.43} parent=0 // pred_check
    _
  $region3: #{_lambda_.43} parent=0 // pred_check_branch
    %11 = sbr.rel (0) target = $region5
  $region4: #{_lambda_.43} parent=0 // pred_region
    _
  $region5: #{_lambda_.43} parent=0 // pred_fallthru
    _
  // Predicated region
  $region6: #{_lambda_.43} parent=0 // pred_check
    _
  $region7: #{_lambda_.43} parent=0 // pred_check_branch
    %13 = sbr.rel (0) target = $region9
  $region8: #{_lambda_.43} parent=0 // pred_region
    _
  $region9: #{_lambda_.43} parent=0 // pred_fallthru
    _
  // Predicated region
  $region10: #{_lambda_.43} parent=0 // pred_check
    _
  $region11: #{_lambda_.43} parent=0 // pred_check_branch
    %15 = sbr.rel (0) target = $region13
  $region12: #{_lambda_.43} parent=0 // pred_region
    _
  $region13: #{_lambda_.43} parent=0 // pred_fallthru
    _
  // Predicated region
  $region14: #{_lambda_.43} parent=0 // pred_check
    _
  $region15: #{_lambda_.43} parent=0 // pred_check_branch
    %17 = sbr.rel (0) target = $region17
  $region16: #{_lambda_.43} parent=0 // pred_region
    _
  $region17: #{_lambda_.43} parent=0 // pred_fallthru
    _
  // Predicated region
  $region18: #{_lambda_.43} parent=0 // pred_check
    _
  $region19: #{_lambda_.43} parent=0 // pred_check_branch
    %19 = sbr.rel (0) target = $region21
  $region20: #{_lambda_.43} parent=0 // pred_region
    _
  $region21: #{_lambda_.43} parent=0 // pred_fallthru
    _
  %v20 = vld [vmem:[%s0] sm:$0xff]
  %v21 = vld [vmem:[%s0 + $0x8] sm:$0xff]
  %v22 = vld [vmem:[%s0 + $0x10] sm:$0xff]
  %v23 = vld [vmem:[%s0 + $0x18] sm:$0xff]
  %vm24 = vcmask 261120
  %v25 = vsel %vm24, %v20, 0.0
  %26 = vadd.xlane.f32.xlu0 %v25
  %v27 = vpop.xlane.xlu0 %26
  %v28 = vsel %vm24, %v21, 0.0
  %29 = vadd.xlane.f32.xlu0 %v28
  %v30 = vpop.xlane.xlu0 %29
  %v31 = vsel %vm24, %v22, 0.0
  %32 = vadd.xlane.f32.xlu0 %v31
  %v33 = vpop.xlane.xlu0 %32
  %v34 = vsel %vm24, %v23, 0.0
  %35 = vadd.xlane.f32.xlu0 %v34
  %v36 = vpop.xlane.xlu0 %35
  %v37 = vrcp.pop 32.0
  %v38 = vmul.f32 %v27, %v37
  %v39 = vmul.f32 %v30, %v37
  %v40 = vmul.f32 %v33, %v37
  %v41 = vmul.f32 %v36, %v37
  %v42 = vsub.f32 %v20, %v38
  %v43 = vsub.f32 %v21, %v39
  %v44 = vsub.f32 %v22, %v40
  %v45 = vsub.f32 %v23, %v41
  %v46 = vmul.f32 %v42, %v42
  %v47 = vmul.f32 %v43, %v43
  %v48 = vmul.f32 %v44, %v44
  %v49 = vmul.f32 %v45, %v45
  %v50 = vsel %vm24, %v46, 0.0
  %51 = vadd.xlane.f32.xlu0 %v50
  %v52 = vpop.xlane.xlu0 %51
  %v53 = vsel %vm24, %v47, 0.0
  %54 = vadd.xlane.f32.xlu0 %v53
  %v55 = vpop.xlane.xlu0 %54
  %v56 = vsel %vm24, %v48, 0.0
  %57 = vadd.xlane.f32.xlu0 %v56
  %v58 = vpop.xlane.xlu0 %57
  %v59 = vsel %vm24, %v49, 0.0
  %60 = vadd.xlane.f32.xlu0 %v59
  %v61 = vpop.xlane.xlu0 %60
  %v62 = vmul.f32 %v52, %v37
  %v63 = vmul.f32 %v55, %v37
  %v64 = vmul.f32 %v58, %v37
  %v65 = vmul.f32 %v61, %v37
  %v66 = vadd.f32 %v62, 1e-05
  %v67 = vadd.f32 %v63, 1e-05
  %v68 = vadd.f32 %v64, 1e-05
  %v69 = vadd.f32 %v65, 1e-05
  %v70 = vrsqrt.pop %v66
  %v71 = vrsqrt.pop %v67
  %v72 = vrsqrt.pop %v68
  %v73 = vrsqrt.pop %v69
  %v74 = vmul.f32 %v42, %v70
  %v75 = vmul.f32 %v43, %v71
  %v76 = vmul.f32 %v44, %v72
  %v77 = vmul.f32 %v45, %v73
  %v78 = vld [vmem:[%s1] sm:$0x1]
  %v80 = vlaneseq
  %v81 = vshrl.u32 %v80, 7
  %v82 = vsub.s32 0, %v81
  %v83 = vrot.slane %v78, %v82
  %v85 = vmul.f32 %v74, %v83
  %v86 = vmul.f32 %v75, %v83
  %v87 = vmul.f32 %v76, %v83
  %v88 = vmul.f32 %v77, %v83
  %v89 = vld [vmem:[%s2] sm:$0x1]
  %v91 = vlaneseq
  %v92 = vshrl.u32 %v91, 7
  %v93 = vsub.s32 0, %v92
  %v94 = vrot.slane %v89, %v93
  %v96 = vadd.f32 %v85, %v94
  %v97 = vadd.f32 %v86, %v94
  %v98 = vadd.f32 %v87, %v94
  %v99 = vadd.f32 %v88, %v94
  %v100 = vld [vmem:[%s3] sm:$0xff]
  %v101 = vld [vmem:[%s3 + $0x8] sm:$0xff]
  %v102 = vld [vmem:[%s3 + $0x10] sm:$0xff]
  %v103 = vld [vmem:[%s3 + $0x18] sm:$0xff]
  %v104 = vld [vmem:[%s4] sm:$0x1]
  %v106 = vlaneseq
  %v107 = vshrl.u32 %v106, 7
  %v108 = vsub.s32 0, %v107
  %v109 = vrot.slane %v104, %v108
  %v112 = vsel %vm24, %v96, 0
  %v115 = vsel %vm24, %v97, 0
  %v118 = vsel %vm24, %v98, 0
  %v121 = vsel %vm24, %v99, 0
  %123 = vmatprep.subr.mxu0 0.0
  %124 = vmatpush1.msra.mxu0 %v100
  %125 = vmatprep.subr.mxu0 0.0
  %126 = vmatpush1.msra.mxu0 %v101
  %127 = vmatprep.subr.mxu0 0.0
  %128 = vmatpush1.msra.mxu0 %v102
  %129 = vmatprep.subr.mxu0 0.0
  %130 = vmatpush1.msra.mxu0 %v103
  %131 = vmatprep.subr.mxu0 0.0
  %132 = vmatpush1.msra.mxu0 0.0
  %133 = vmatprep.subr.mxu0 0.0
  %134 = vmatpush1.msra.mxu0 0.0
  %135 = vmatprep.subr.mxu0 0.0
  %136 = vmatpush1.msra.mxu0 0.0
  %137 = vmatprep.subr.mxu0 0.0
  %138 = vmatpush1.msra.mxu0 0.0
  %139 = vmatprep.subr.mxu0 0.0
  %140 = vmatpush1.msra.mxu0 0.0
  %141 = vmatprep.subr.mxu0 0.0
  %142 = vmatpush1.msra.mxu0 0.0
  %143 = vmatprep.subr.mxu0 0.0
  %144 = vmatpush1.msra.mxu0 0.0
  %145 = vmatprep.subr.mxu0 0.0
  %146 = vmatpush1.msra.mxu0 0.0
  %147 = vmatprep.subr.mxu0 0.0
  %148 = vmatpush1.msra.mxu0 0.0
  %149 = vmatprep.subr.mxu0 0.0
  %150 = vmatpush1.msra.mxu0 0.0
  %151 = vmatprep.subr.mxu0 0.0
  %152 = vmatpush1.msra.mxu0 0.0
  %153 = vmatprep.subr.mxu0 0.0
  %154 = vmatpush1.msra.mxu0 0.0
  %155 = vmatprep.subr.mxu0 0.0
  %156 = vmatpush1.msra.mxu0 0.0
  %157 = vmatprep.subr.mxu0 0.0
  %158 = vmatpush1.msra.mxu0 0.0
  %159 = vmatprep.subr.mxu0 0.0
  %160 = vmatpush1.msra.mxu0 0.0
  %161 = vmatprep.subr.mxu0 0.0
  %162 = vmatpush1.msra.mxu0 0.0
  %163 = vmatprep.subr.mxu0 0.0
  %164 = vmatpush1.msra.mxu0 0.0
  %165 = vmatprep.subr.mxu0 0.0
  %166 = vmatpush1.msra.mxu0 0.0
  %167 = vmatprep.subr.mxu0 0.0
  %168 = vmatpush1.msra.mxu0 0.0
  %169 = vmatprep.subr.mxu0 0.0
  %170 = vmatpush1.msra.mxu0 0.0
  %171 = vmatprep.subr.mxu0 0.0
  %172 = vmatpush1.msra.mxu0 0.0
  %173 = vmatprep.subr.mxu0 0.0
  %174 = vmatpush1.msra.mxu0 0.0
  %175 = vmatprep.subr.mxu0 0.0
  %176 = vmatpush1.msra.mxu0 0.0
  %177 = vmatprep.subr.mxu0 0.0
  %178 = vmatpush1.msra.mxu0 0.0
  %179 = vmatprep.subr.mxu0 0.0
  %180 = vmatpush1.msra.mxu0 0.0
  %181 = vmatprep.subr.mxu0 0.0
  %182 = vmatpush1.msra.mxu0 0.0
  %183 = vmatprep.subr.mxu0 0.0
  %184 = vmatpush1.msra.mxu0 0.0
  %185 = vmatprep.subr.mxu0 0.0
  %186 = vmatpush1.msra.mxu0 0.0
  %187 = vmatprep.mubr.f32.mxu0 0.0
  %188 = vmatmul.mubr.f32.gmra.mrb[0].mxu0 %v112
  %v189 = vpop.f32.mrb[0].mxu0
  %v190 = vadd.f32 %v109, %v189
  %v191 = vpop.f32.mrb[0].mxu0
  %192 = vmatprep.mubr.f32.mxu0 0.0
  %193 = vmatmul.mubr.f32.gmra.mrb[0].mxu0 %v115
  %v194 = vpop.f32.mrb[0].mxu0
  %v195 = vadd.f32 %v109, %v194
  %v196 = vpop.f32.mrb[0].mxu0
  %197 = vmatprep.mubr.f32.mxu0 0.0
  %198 = vmatmul.mubr.f32.gmra.mrb[0].mxu0 %v118
  %v199 = vpop.f32.mrb[0].mxu0
  %v200 = vadd.f32 %v109, %v199
  %v201 = vpop.f32.mrb[0].mxu0
  %202 = vmatprep.mubr.f32.mxu0 0.0
  %203 = vmatmul.mubr.f32.gmra.mrb[0].mxu0 %v121
  %v204 = vpop.f32.mrb[0].mxu0
  %v205 = vadd.f32 %v109, %v204
  %v206 = vpop.f32.mrb[0].mxu0
  %207 = vdwg.mxu0
  %vm208 = vcmask 523264
  %209 = vst.msk [vmem:[%s5] sm:$0xff] %vm208, %v190
  %210 = vst.msk [vmem:[%s5 + $0x8] sm:$0xff] %vm208, %v195
  %211 = vst.msk [vmem:[%s5 + $0x10] sm:$0xff] %vm208, %v200
  %212 = vst.msk [vmem:[%s5 + $0x18] sm:$0xff] %vm208, %v205
  // Predicated region
  $region22: #{_lambda_.43} parent=0 // pred_check
    _
  $region23: #{_lambda_.43} parent=0 // pred_check_branch
    %214 = sbr.rel (0) target = $region25
  $region24: #{_lambda_.43} parent=0 // pred_region
    _
  $region25: #{_lambda_.43} parent=0 // pred_fallthru
    _
  // Predicated region
  $region26: #{_lambda_.43} parent=0 // pred_check
    _
  $region27: #{_lambda_.43} parent=0 // pred_check_branch
    %216 = sbr.rel (0) target = $region29
  $region28: #{_lambda_.43} parent=0 // pred_region
    _
  $region29: #{_lambda_.43} parent=0 // pred_fallthru
    _

</llo_original>
